<compile_context>
chip_gen: v5e
topology: v5e:2x2
jax: 0.10.0
libtpu: 0.0.40
codegen_flags: <defaults>
</compile_context>

<pallas_src>
import functools
import math

import jax
import jax.numpy as jnp
from jax.experimental import pallas as pl
from jax.experimental.pallas import tpu as pltpu


_LN_EPS = 1e-5  # nn.Transformer default layer_norm_eps


# ----------------------------------------------------------------------------
# in-kernel helpers (traced inside the fused kernel)
# ----------------------------------------------------------------------------
def _layernorm(y, g, b):
    mu = jnp.mean(y, axis=-1, keepdims=True)
    c = y - mu
    var = jnp.mean(c * c, axis=-1, keepdims=True)
    return c * jax.lax.rsqrt(var + _LN_EPS) * g + b


def _mm(a, w_bf16):
    """bf16 x bf16 matmul with f32 accumulation (MXU-native on v6e/v7x)."""
    return jnp.dot(a.astype(jnp.bfloat16), w_bf16,
                   preferred_element_type=jnp.float32)


def _mha(q, k, v, wo, bo, mask, nhead, scale):
    """Multi-head attention with the output projection fused per head.

    concat_h(softmax(q_h k_h^T) v_h) @ Wo == sum_h softmax(q_h k_h^T) v_h @ Wo_h
    so no concatenated (S, D) head tensor is ever materialized.
    q, k, v: (S, D) f32;  wo: (H, dh, D) bf16;  bo: (1, D) f32.
    """
    d = q.shape[-1]
    dh = d // nhead
    qb = q.astype(jnp.bfloat16)
    kb = k.astype(jnp.bfloat16)
    vb = v.astype(jnp.bfloat16)
    out = None
    for h in range(nhead):                       # static unroll (nhead=4)
        lo = h * dh
        qh = qb[:, lo:lo + dh]
        kh = kb[:, lo:lo + dh]
        vh = vb[:, lo:lo + dh]
        # q @ k^T without an explicit transpose (contract last dims of both)
        s = jax.lax.dot_general(qh, kh, (((1,), (1,)), ((), ())),
                                preferred_element_type=jnp.float32) * scale
        if mask is not None:
            s = s + mask
        s = s - jnp.max(s, axis=-1, keepdims=True)
        p = jnp.exp(s)
        # approx reciprocal -> EUP slot (otherwise idle here)
        p = p * pl.reciprocal(jnp.sum(p, axis=-1, keepdims=True), approx=True)
        ho = jnp.dot(p.astype(jnp.bfloat16), vh,
                     preferred_element_type=jnp.float32)
        contrib = jnp.dot(ho.astype(jnp.bfloat16), wo[h],
                          preferred_element_type=jnp.float32)
        out = contrib if out is None else out + contrib
    return out + bo


# ----------------------------------------------------------------------------
# the single fused kernel: one grid step == one batch element, full forward
# ----------------------------------------------------------------------------
def _transformer_kernel(
        emb_ref,
        # encoder (stacked over layers)
        e_wqkv, e_bqkv, e_wo, e_bo, e_w1, e_b1, e_w2, e_b2,
        e_ln1g, e_ln1b, e_ln2g, e_ln2b,
        enc_ng, enc_nb,
        # decoder (stacked over layers)
        sa_wqkv, sa_bqkv, sa_wo, sa_bo,
        ca_wqkv, ca_bqkv, ca_wo, ca_bo,
        d_w1, d_b1, d_w2, d_b2,
        d_ln1g, d_ln1b, d_ln2g, d_ln2b, d_ln3g, d_ln3b,
        dec_ng, dec_nb,
        fc_w, fc_b,
        out_ref,
        *, d_model, nhead, n_enc, n_dec, emb_scale):
    s = emb_ref.shape[1]
    scale = 1.0 / math.sqrt(d_model // nhead)

    # intended causal mask, built in-kernel (no (S,S) mask DMA)
    row = jax.lax.broadcasted_iota(jnp.int32, (s, s), 0)
    col = jax.lax.broadcasted_iota(jnp.int32, (s, s), 1)
    causal = jnp.where(col <= row, 0.0, -1e30).astype(jnp.float32)

    # sqrt(d_model) embedding scale fused here
    x0 = emb_ref[0].astype(jnp.float32) * emb_scale          # (S, D)

    # ---------------- encoder ----------------
    x = x0
    for l in range(n_enc):                                    # static unroll
        qkv = _mm(x, e_wqkv[l]) + e_bqkv[l]                   # (S, 3D)
        a = _mha(qkv[:, :d_model], qkv[:, d_model:2 * d_model],
                 qkv[:, 2 * d_model:], e_wo[l], e_bo[l], causal, nhead, scale)
        x = _layernorm(a + x, e_ln1g[l], e_ln1b[l])
        h = jnp.maximum(_mm(x, e_w1[l]) + e_b1[l], 0.0)
        x = _layernorm(_mm(h, e_w2[l]) + e_b2[l] + x, e_ln2g[l], e_ln2b[l])
    memory = _layernorm(x, enc_ng[...], enc_nb[...])

    # ---------------- decoder ----------------
    y = x0
    for l in range(n_dec):                                    # static unroll
        qkv = _mm(y, sa_wqkv[l]) + sa_bqkv[l]
        a = _mha(qkv[:, :d_model], qkv[:, d_model:2 * d_model],
                 qkv[:, 2 * d_model:], sa_wo[l], sa_bo[l], causal, nhead, scale)
        y = _layernorm(a + y, d_ln1g[l], d_ln1b[l])

        # cross-attention: q from decoder stream, k/v from encoder memory
        wq = ca_wqkv[l]
        bq = ca_bqkv[l]
        q2 = _mm(y, wq[:, :d_model]) + bq[:, :d_model]
        kv = _mm(memory, wq[:, d_model:]) + bq[:, d_model:]
        a2 = _mha(q2, kv[:, :d_model], kv[:, d_model:],
                  ca_wo[l], ca_bo[l], None, nhead, scale)     # no memory mask
        y = _layernorm(a2 + y, d_ln2g[l], d_ln2b[l])

        h = jnp.maximum(_mm(y, d_w1[l]) + d_b1[l], 0.0)
        y = _layernorm(_mm(h, d_w2[l]) + d_b2[l] + y, d_ln3g[l], d_ln3b[l])
    y = _layernorm(y, dec_ng[...], dec_nb[...])

    # fc_out (vocab pre-padded to a 128-lane multiple -> lane-dense store)
    out_ref[0] = _mm(y, fc_w[...]) + fc_b[...]


# ----------------------------------------------------------------------------
# wrapper: one pallas_call for the whole transformer
# ----------------------------------------------------------------------------
_PARAM_ORDER = (
    "e_wqkv", "e_bqkv", "e_wo", "e_bo", "e_w1", "e_b1", "e_w2", "e_b2",
    "e_ln1g", "e_ln1b", "e_ln2g", "e_ln2b",
    "enc_norm_g", "enc_norm_b",
    "d_sa_wqkv", "d_sa_bqkv", "d_sa_wo", "d_sa_bo",
    "d_ca_wqkv", "d_ca_bqkv", "d_ca_wo", "d_ca_bo",
    "d_w1", "d_b1", "d_w2", "d_b2",
    "d_ln1g", "d_ln1b", "d_ln2g", "d_ln2b", "d_ln3g", "d_ln3b",
    "dec_norm_g", "dec_norm_b",
    "fc_out_w", "fc_out_b",
)


def _const_spec(arr):
    nd = arr.ndim
    return pl.BlockSpec(arr.shape, lambda i, _nd=nd: (0,) * _nd)


def transformer_forward(params, cfg, input_ids):
    """input_ids: (batch, seq) int32  ->  logits (seq, batch, vocab)."""
    d = cfg["d_model"]
    nhead = cfg["nhead"]
    vocab = cfg["vocab_size"]
    b, s = input_ids.shape
    vp = params["fc_out_w"].shape[1]             # padded vocab (128-multiple)

    # embedding gather (single XLA gather); the sqrt(d_model) scale is fused
    # inside the kernel.
    emb = jnp.take(params["embedding"], input_ids, axis=0)   # (B, S, D) f32

    weight_args = [params[k] for k in _PARAM_ORDER]
    in_specs = ([pl.BlockSpec((1, s, d), lambda i: (i, 0, 0))]
                + [_const_spec(a) for a in weight_args])

    kernel = functools.partial(
        _transformer_kernel,
        d_model=d, nhead=nhead,
        n_enc=cfg["num_encoder_layers"], n_dec=cfg["num_decoder_layers"],
        emb_scale=float(math.sqrt(d)))

    logits = pl.pallas_call(
        kernel,
        out_shape=jax.ShapeDtypeStruct((b, s, vp), jnp.float32),
        grid=(b,),
        in_specs=in_specs,
        out_specs=pl.BlockSpec((1, s, vp), lambda i: (i, 0, 0)),
        compiler_params=pltpu.CompilerParams(
            dimension_semantics=("parallel",)),   # >=2 steps -> both v7x TCs
    )(emb, *weight_args)

    # strip vocab padding and return PyTorch's (seq, batch, vocab) layout.
    # TODO(synk): at production vocab sizes fold this transpose into the kernel
    #   out_spec ((S, B, V) blocks) to avoid an extra HBM pass over the logits.
    return logits[:, :, :vocab].transpose(1, 0, 2)


# ----------------------------------------------------------------------------
# deterministic synthetic parameters (weights as (d_in, d_out), bf16 matmul
# weights, f32 biases / LayerNorm params, fc_out pre-padded to 128 lanes)
# ----------------------------------------------------------------------------
def init_params(key, vocab, d_model, nhead, n_enc, n_dec, d_ff):
    keys = iter(jax.random.split(key, 64))
    dh = d_model // nhead
    vpad = ((vocab + 127) // 128) * 128

    def w(shape, scale=0.05, dtype=jnp.bfloat16):
        return (scale * jax.random.normal(next(keys), shape, jnp.float32)
                ).astype(dtype)

    def zeros(shape):
        return jnp.zeros(shape, jnp.float32)

    def ones(shape):
        return jnp.ones(shape, jnp.float32)

    fc_w = w((d_model, vocab), dtype=jnp.float32)
    fc_w = jnp.pad(fc_w, ((0, 0), (0, vpad - vocab))).astype(jnp.bfloat16)

    return dict(
        embedding=w((vocab, d_model), scale=1.0, dtype=jnp.float32),
        # encoder layers (stacked over the layer dim)
        e_wqkv=w((n_enc, d_model, 3 * d_model)),
        e_bqkv=zeros((n_enc, 1, 3 * d_model)),
        e_wo=w((n_enc, nhead, dh, d_model)),
        e_bo=zeros((n_enc, 1, d_model)),
        e_w1=w((n_enc, d_model, d_ff)),
        e_b1=zeros((n_enc, 1, d_ff)),
        e_w2=w((n_enc, d_ff, d_model)),
        e_b2=zeros((n_enc, 1, d_model)),
        e_ln1g=ones((n_enc, 1, d_model)), e_ln1b=zeros((n_enc, 1, d_model)),
        e_ln2g=ones((n_enc, 1, d_model)), e_ln2b=zeros((n_enc, 1, d_model)),
        enc_norm_g=ones((1, d_model)), enc_norm_b=zeros((1, d_model)),
        # decoder layers (stacked over the layer dim)
        d_sa_wqkv=w((n_dec, d_model, 3 * d_model)),
        d_sa_bqkv=zeros((n_dec, 1, 3 * d_model)),
        d_sa_wo=w((n_dec, nhead, dh, d_model)),
        d_sa_bo=zeros((n_dec, 1, d_model)),
        d_ca_wqkv=w((n_dec, d_model, 3 * d_model)),
        d_ca_bqkv=zeros((n_dec, 1, 3 * d_model)),
        d_ca_wo=w((n_dec, nhead, dh, d_model)),
        d_ca_bo=zeros((n_dec, 1, d_model)),
        d_w1=w((n_dec, d_model, d_ff)),
        d_b1=zeros((n_dec, 1, d_ff)),
        d_w2=w((n_dec, d_ff, d_model)),
        d_b2=zeros((n_dec, 1, d_model)),
        d_ln1g=ones((n_dec, 1, d_model)), d_ln1b=zeros((n_dec, 1, d_model)),
        d_ln2g=ones((n_dec, 1, d_model)), d_ln2b=zeros((n_dec, 1, d_model)),
        d_ln3g=ones((n_dec, 1, d_model)), d_ln3b=zeros((n_dec, 1, d_model)),
        dec_norm_g=ones((1, d_model)), dec_norm_b=zeros((1, d_model)),
        # fc_out, pre-padded ONCE so no jnp.pad in the traced forward
        fc_out_w=fc_w,
        fc_out_b=zeros((1, vpad)),
    )


# ----------------------------------------------------------------------------
if __name__ == "__main__":
    cfg = dict(vocab_size=50, d_model=32, nhead=4,
               num_encoder_layers=2, num_decoder_layers=2, dim_feedforward=64)
    batch, seq = 2, 8

    key = jax.random.PRNGKey(0)
    k_param, k_ids = jax.random.split(key)
    params = init_params(k_param, cfg["vocab_size"], cfg["d_model"], cfg["nhead"],
                         cfg["num_encoder_layers"], cfg["num_decoder_layers"],
                         cfg["dim_feedforward"])
    input_ids = jax.random.randint(k_ids, (batch, seq), 0, cfg["vocab_size"],
                                   dtype=jnp.int32)

    fwd = jax.jit(lambda p, ids: transformer_forward(p, cfg, ids))
    logits = jax.block_until_ready(fwd(params, input_ids))

    assert logits.shape == (seq, batch, cfg["vocab_size"]), logits.shape
    assert bool(jnp.all(jnp.isfinite(logits)))
    print("KERNEL_OK")
</pallas_src>

<mosaic_0001>
module attributes {stable_mosaic.version = 11 : i64} {
  func.func @_transformer_kernel(%arg0: i32, %arg1: memref<1x8x32xf32, #tpu.memory_space<vmem>>, %arg2: memref<2x32x96xbf16, #tpu.memory_space<vmem>>, %arg3: memref<2x1x96xf32, #tpu.memory_space<vmem>>, %arg4: memref<2x4x8x32xbf16, #tpu.memory_space<vmem>>, %arg5: memref<2x1x32xf32, #tpu.memory_space<vmem>>, %arg6: memref<2x32x64xbf16, #tpu.memory_space<vmem>>, %arg7: memref<2x1x64xf32, #tpu.memory_space<vmem>>, %arg8: memref<2x64x32xbf16, #tpu.memory_space<vmem>>, %arg9: memref<2x1x32xf32, #tpu.memory_space<vmem>>, %arg10: memref<2x1x32xf32, #tpu.memory_space<vmem>>, %arg11: memref<2x1x32xf32, #tpu.memory_space<vmem>>, %arg12: memref<2x1x32xf32, #tpu.memory_space<vmem>>, %arg13: memref<2x1x32xf32, #tpu.memory_space<vmem>>, %arg14: memref<1x32xf32, #tpu.memory_space<vmem>>, %arg15: memref<1x32xf32, #tpu.memory_space<vmem>>, %arg16: memref<2x32x96xbf16, #tpu.memory_space<vmem>>, %arg17: memref<2x1x96xf32, #tpu.memory_space<vmem>>, %arg18: memref<2x4x8x32xbf16, #tpu.memory_space<vmem>>, %arg19: memref<2x1x32xf32, #tpu.memory_space<vmem>>, %arg20: memref<2x32x96xbf16, #tpu.memory_space<vmem>>, %arg21: memref<2x1x96xf32, #tpu.memory_space<vmem>>, %arg22: memref<2x4x8x32xbf16, #tpu.memory_space<vmem>>, %arg23: memref<2x1x32xf32, #tpu.memory_space<vmem>>, %arg24: memref<2x32x64xbf16, #tpu.memory_space<vmem>>, %arg25: memref<2x1x64xf32, #tpu.memory_space<vmem>>, %arg26: memref<2x64x32xbf16, #tpu.memory_space<vmem>>, %arg27: memref<2x1x32xf32, #tpu.memory_space<vmem>>, %arg28: memref<2x1x32xf32, #tpu.memory_space<vmem>>, %arg29: memref<2x1x32xf32, #tpu.memory_space<vmem>>, %arg30: memref<2x1x32xf32, #tpu.memory_space<vmem>>, %arg31: memref<2x1x32xf32, #tpu.memory_space<vmem>>, %arg32: memref<2x1x32xf32, #tpu.memory_space<vmem>>, %arg33: memref<2x1x32xf32, #tpu.memory_space<vmem>>, %arg34: memref<1x32xf32, #tpu.memory_space<vmem>>, %arg35: memref<1x32xf32, #tpu.memory_space<vmem>>, %arg36: memref<32x128xbf16, #tpu.memory_space<vmem>>, %arg37: memref<1x128xf32, #tpu.memory_space<vmem>>, %arg38: memref<1x8x128xf32, #tpu.memory_space<vmem>>) attributes {dimension_semantics = [#tpu.dimension_semantics<parallel>], iteration_bounds = array<i64: 2>, scalar_prefetch = 0 : i64, scratch_operands = 0 : i64, tpu.core_type = #tpu.core_type<tc>, window_params = [{transform_indices = @transform_0, window_bounds = array<i64: 1, 8, 32>}, {pipeline_mode = #tpu.pipeline_mode<synchronous>, transform_indices = @transform_1, window_bounds = array<i64: 2, 32, 96>}, {pipeline_mode = #tpu.pipeline_mode<synchronous>, transform_indices = @transform_2, window_bounds = array<i64: 2, 1, 96>}, {pipeline_mode = #tpu.pipeline_mode<synchronous>, transform_indices = @transform_3, window_bounds = array<i64: 2, 4, 8, 32>}, {pipeline_mode = #tpu.pipeline_mode<synchronous>, transform_indices = @transform_4, window_bounds = array<i64: 2, 1, 32>}, {pipeline_mode = #tpu.pipeline_mode<synchronous>, transform_indices = @transform_5, window_bounds = array<i64: 2, 32, 64>}, {pipeline_mode = #tpu.pipeline_mode<synchronous>, transform_indices = @transform_6, window_bounds = array<i64: 2, 1, 64>}, {pipeline_mode = #tpu.pipeline_mode<synchronous>, transform_indices = @transform_7, window_bounds = array<i64: 2, 64, 32>}, {pipeline_mode = #tpu.pipeline_mode<synchronous>, transform_indices = @transform_8, window_bounds = array<i64: 2, 1, 32>}, {pipeline_mode = #tpu.pipeline_mode<synchronous>, transform_indices = @transform_9, window_bounds = array<i64: 2, 1, 32>}, {pipeline_mode = #tpu.pipeline_mode<synchronous>, transform_indices = @transform_10, window_bounds = array<i64: 2, 1, 32>}, {pipeline_mode = #tpu.pipeline_mode<synchronous>, transform_indices = @transform_11, window_bounds = array<i64: 2, 1, 32>}, {pipeline_mode = #tpu.pipeline_mode<synchronous>, transform_indices = @transform_12, window_bounds = array<i64: 2, 1, 32>}, {pipeline_mode = #tpu.pipeline_mode<synchronous>, transform_indices = @transform_13, window_bounds = array<i64: 1, 32>}, {pipeline_mode = #tpu.pipeline_mode<synchronous>, transform_indices = @transform_14, window_bounds = array<i64: 1, 32>}, {pipeline_mode = #tpu.pipeline_mode<synchronous>, transform_indices = @transform_15, window_bounds = array<i64: 2, 32, 96>}, {pipeline_mode = #tpu.pipeline_mode<synchronous>, transform_indices = @transform_16, window_bounds = array<i64: 2, 1, 96>}, {pipeline_mode = #tpu.pipeline_mode<synchronous>, transform_indices = @transform_17, window_bounds = array<i64: 2, 4, 8, 32>}, {pipeline_mode = #tpu.pipeline_mode<synchronous>, transform_indices = @transform_18, window_bounds = array<i64: 2, 1, 32>}, {pipeline_mode = #tpu.pipeline_mode<synchronous>, transform_indices = @transform_19, window_bounds = array<i64: 2, 32, 96>}, {pipeline_mode = #tpu.pipeline_mode<synchronous>, transform_indices = @transform_20, window_bounds = array<i64: 2, 1, 96>}, {pipeline_mode = #tpu.pipeline_mode<synchronous>, transform_indices = @transform_21, window_bounds = array<i64: 2, 4, 8, 32>}, {pipeline_mode = #tpu.pipeline_mode<synchronous>, transform_indices = @transform_22, window_bounds = array<i64: 2, 1, 32>}, {pipeline_mode = #tpu.pipeline_mode<synchronous>, transform_indices = @transform_23, window_bounds = array<i64: 2, 32, 64>}, {pipeline_mode = #tpu.pipeline_mode<synchronous>, transform_indices = @transform_24, window_bounds = array<i64: 2, 1, 64>}, {pipeline_mode = #tpu.pipeline_mode<synchronous>, transform_indices = @transform_25, window_bounds = array<i64: 2, 64, 32>}, {pipeline_mode = #tpu.pipeline_mode<synchronous>, transform_indices = @transform_26, window_bounds = array<i64: 2, 1, 32>}, {pipeline_mode = #tpu.pipeline_mode<synchronous>, transform_indices = @transform_27, window_bounds = array<i64: 2, 1, 32>}, {pipeline_mode = #tpu.pipeline_mode<synchronous>, transform_indices = @transform_28, window_bounds = array<i64: 2, 1, 32>}, {pipeline_mode = #tpu.pipeline_mode<synchronous>, transform_indices = @transform_29, window_bounds = array<i64: 2, 1, 32>}, {pipeline_mode = #tpu.pipeline_mode<synchronous>, transform_indices = @transform_30, window_bounds = array<i64: 2, 1, 32>}, {pipeline_mode = #tpu.pipeline_mode<synchronous>, transform_indices = @transform_31, window_bounds = array<i64: 2, 1, 32>}, {pipeline_mode = #tpu.pipeline_mode<synchronous>, transform_indices = @transform_32, window_bounds = array<i64: 2, 1, 32>}, {pipeline_mode = #tpu.pipeline_mode<synchronous>, transform_indices = @transform_33, window_bounds = array<i64: 1, 32>}, {pipeline_mode = #tpu.pipeline_mode<synchronous>, transform_indices = @transform_34, window_bounds = array<i64: 1, 32>}, {pipeline_mode = #tpu.pipeline_mode<synchronous>, transform_indices = @transform_35, window_bounds = array<i64: 32, 128>}, {pipeline_mode = #tpu.pipeline_mode<synchronous>, transform_indices = @transform_36, window_bounds = array<i64: 1, 128>}, {transform_indices = @transform_37, window_bounds = array<i64: 1, 8, 128>}]} {
    %0 = tpu.iota {dimensions = array<i32: 0>} : vector<8x8xi32>
    %1 = tpu.iota {dimensions = array<i32: 1>} : vector<8x8xi32>
    %2 = arith.cmpi sle, %1, %0 : vector<8x8xi32>
    %cst = arith.constant 0.000000e+00 : f32
    %cst_0 = arith.constant -1.000000e+30 : f32
    %3 = vector.broadcast %cst : f32 to vector<8x8xf32>
    %4 = vector.broadcast %cst_0 : f32 to vector<8x8xf32>
    %5 = arith.select %2, %3, %4 : vector<8x8xi1>, vector<8x8xf32>
    %c0 = arith.constant 0 : index
    %c0_1 = arith.constant 0 : index
    %c0_2 = arith.constant 0 : index
    %6 = vector.load %arg1[%c0, %c0_1, %c0_2] : memref<1x8x32xf32, #tpu.memory_space<vmem>>, vector<1x8x32xf32>
    %7 = vector.shape_cast %6 : vector<1x8x32xf32> to vector<8x32xf32>
    %cst_3 = arith.constant 5.65685415 : f32
    %8 = vector.broadcast %cst_3 : f32 to vector<8x32xf32>
    %9 = arith.mulf %7, %8 : vector<8x32xf32>
    %c0_4 = arith.constant 0 : index
    %c0_5 = arith.constant 0 : index
    %c0_6 = arith.constant 0 : index
    %10 = vector.load %arg2[%c0_4, %c0_5, %c0_6] : memref<2x32x96xbf16, #tpu.memory_space<vmem>>, vector<1x32x96xbf16>
    %11 = vector.shape_cast %10 : vector<1x32x96xbf16> to vector<32x96xbf16>
    %12 = arith.truncf %9 : vector<8x32xf32> to vector<8x32xbf16>
    %cst_7 = arith.constant dense<0.000000e+00> : vector<8x96xf32>
    %13 = tpu.matmul %12, %11, %cst_7 {dimension_numbers = #tpu.dot_dimension_numbers<[1], [0], [0], [1], [0, 0, 1, 1], [], []>} : vector<8x32xbf16>, vector<32x96xbf16>, vector<8x96xf32> -> vector<8x96xf32>
    %c0_8 = arith.constant 0 : index
    %c0_9 = arith.constant 0 : index
    %c0_10 = arith.constant 0 : index
    %14 = vector.load %arg3[%c0_8, %c0_9, %c0_10] : memref<2x1x96xf32, #tpu.memory_space<vmem>>, vector<1x1x96xf32>
    %15 = vector.shape_cast %14 : vector<1x1x96xf32> to vector<1x96xf32>
    %16 = vector.broadcast %15 : vector<1x96xf32> to vector<8x96xf32>
    %17 = arith.addf %13, %16 : vector<8x96xf32>
    %18 = vector.extract_strided_slice %17 {offsets = [0, 0], sizes = [8, 32], strides = [1, 1]} : vector<8x96xf32> to vector<8x32xf32>
    %19 = vector.extract_strided_slice %17 {offsets = [0, 32], sizes = [8, 32], strides = [1, 1]} : vector<8x96xf32> to vector<8x32xf32>
    %20 = vector.extract_strided_slice %17 {offsets = [0, 64], sizes = [8, 32], strides = [1, 1]} : vector<8x96xf32> to vector<8x32xf32>
    %c0_11 = arith.constant 0 : index
    %c0_12 = arith.constant 0 : index
    %c0_13 = arith.constant 0 : index
    %c0_14 = arith.constant 0 : index
    %21 = vector.load %arg4[%c0_11, %c0_12, %c0_13, %c0_14] : memref<2x4x8x32xbf16, #tpu.memory_space<vmem>>, vector<1x4x8x32xbf16>
    %22 = vector.shape_cast %21 : vector<1x4x8x32xbf16> to vector<4x8x32xbf16>
    %c0_15 = arith.constant 0 : index
    %c0_16 = arith.constant 0 : index
    %c0_17 = arith.constant 0 : index
    %23 = vector.load %arg5[%c0_15, %c0_16, %c0_17] : memref<2x1x32xf32, #tpu.memory_space<vmem>>, vector<1x1x32xf32>
    %24 = vector.shape_cast %23 : vector<1x1x32xf32> to vector<1x32xf32>
    %25 = arith.truncf %18 : vector<8x32xf32> to vector<8x32xbf16>
    %26 = arith.truncf %19 : vector<8x32xf32> to vector<8x32xbf16>
    %27 = arith.truncf %20 : vector<8x32xf32> to vector<8x32xbf16>
    %28 = vector.extract_strided_slice %25 {offsets = [0, 0], sizes = [8, 8], strides = [1, 1]} : vector<8x32xbf16> to vector<8x8xbf16>
    %29 = vector.extract_strided_slice %26 {offsets = [0, 0], sizes = [8, 8], strides = [1, 1]} : vector<8x32xbf16> to vector<8x8xbf16>
    %30 = vector.extract_strided_slice %27 {offsets = [0, 0], sizes = [8, 8], strides = [1, 1]} : vector<8x32xbf16> to vector<8x8xbf16>
    %cst_18 = arith.constant dense<0.000000e+00> : vector<8x8xf32>
    %31 = tpu.matmul %28, %29, %cst_18 {dimension_numbers = #tpu.dot_dimension_numbers<[1], [1], [0], [0], [0, 0, 1, 0], [], []>} : vector<8x8xbf16>, vector<8x8xbf16>, vector<8x8xf32> -> vector<8x8xf32>
    %cst_19 = arith.constant 0.353553385 : f32
    %32 = vector.broadcast %cst_19 : f32 to vector<8x8xf32>
    %33 = arith.mulf %31, %32 : vector<8x8xf32>
    %34 = arith.addf %33, %5 : vector<8x8xf32>
    %cst_20 = arith.constant dense<0xFF800000> : vector<8xf32>
    %35 = vector.multi_reduction <maximumf>, %34, %cst_20 [1] : vector<8x8xf32> to vector<8xf32>
    %36 = vector.shape_cast %35 : vector<8xf32> to vector<8x1xf32>
    %37 = vector.broadcast %36 : vector<8x1xf32> to vector<8x8xf32>
    %38 = arith.subf %34, %37 : vector<8x8xf32>
    %39 = math.exp %38 : vector<8x8xf32>
    %cst_21 = arith.constant dense<0.000000e+00> : vector<8xf32>
    %40 = vector.multi_reduction <add>, %39, %cst_21 [1] : vector<8x8xf32> to vector<8xf32>
    %41 = vector.shape_cast %40 : vector<8xf32> to vector<8x1xf32>
    %42 = tpu.reciprocal %41 {approx = true} : vector<8x1xf32> -> vector<8x1xf32>
    %43 = vector.broadcast %42 : vector<8x1xf32> to vector<8x8xf32>
    %44 = arith.mulf %39, %43 : vector<8x8xf32>
    %45 = arith.truncf %44 : vector<8x8xf32> to vector<8x8xbf16>
    %cst_22 = arith.constant dense<0.000000e+00> : vector<8x8xf32>
    %46 = tpu.matmul %45, %30, %cst_22 {dimension_numbers = #tpu.dot_dimension_numbers<[1], [0], [0], [1], [0, 0, 1, 1], [], []>} : vector<8x8xbf16>, vector<8x8xbf16>, vector<8x8xf32> -> vector<8x8xf32>
    %47 = arith.truncf %46 : vector<8x8xf32> to vector<8x8xbf16>
    %48 = vector.extract_strided_slice %22 {offsets = [0, 0, 0], sizes = [1, 8, 32], strides = [1, 1, 1]} : vector<4x8x32xbf16> to vector<1x8x32xbf16>
    %49 = vector.shape_cast %48 : vector<1x8x32xbf16> to vector<8x32xbf16>
    %cst_23 = arith.constant dense<0.000000e+00> : vector<8x32xf32>
    %50 = tpu.matmul %47, %49, %cst_23 {dimension_numbers = #tpu.dot_dimension_numbers<[1], [0], [0], [1], [0, 0, 1, 1], [], []>} : vector<8x8xbf16>, vector<8x32xbf16>, vector<8x32xf32> -> vector<8x32xf32>
    %51 = vector.extract_strided_slice %25 {offsets = [0, 8], sizes = [8, 8], strides = [1, 1]} : vector<8x32xbf16> to vector<8x8xbf16>
    %52 = vector.extract_strided_slice %26 {offsets = [0, 8], sizes = [8, 8], strides = [1, 1]} : vector<8x32xbf16> to vector<8x8xbf16>
    %53 = vector.extract_strided_slice %27 {offsets = [0, 8], sizes = [8, 8], strides = [1, 1]} : vector<8x32xbf16> to vector<8x8xbf16>
    %cst_24 = arith.constant dense<0.000000e+00> : vector<8x8xf32>
    %54 = tpu.matmul %51, %52, %cst_24 {dimension_numbers = #tpu.dot_dimension_numbers<[1], [1], [0], [0], [0, 0, 1, 0], [], []>} : vector<8x8xbf16>, vector<8x8xbf16>, vector<8x8xf32> -> vector<8x8xf32>
    %cst_25 = arith.constant 0.353553385 : f32
    %55 = vector.broadcast %cst_25 : f32 to vector<8x8xf32>
    %56 = arith.mulf %54, %55 : vector<8x8xf32>
    %57 = arith.addf %56, %5 : vector<8x8xf32>
    %cst_26 = arith.constant dense<0xFF800000> : vector<8xf32>
    %58 = vector.multi_reduction <maximumf>, %57, %cst_26 [1] : vector<8x8xf32> to vector<8xf32>
    %59 = vector.shape_cast %58 : vector<8xf32> to vector<8x1xf32>
    %60 = vector.broadcast %59 : vector<8x1xf32> to vector<8x8xf32>
    %61 = arith.subf %57, %60 : vector<8x8xf32>
    %62 = math.exp %61 : vector<8x8xf32>
    %cst_27 = arith.constant dense<0.000000e+00> : vector<8xf32>
    %63 = vector.multi_reduction <add>, %62, %cst_27 [1] : vector<8x8xf32> to vector<8xf32>
    %64 = vector.shape_cast %63 : vector<8xf32> to vector<8x1xf32>
    %65 = tpu.reciprocal %64 {approx = true} : vector<8x1xf32> -> vector<8x1xf32>
    %66 = vector.broadcast %65 : vector<8x1xf32> to vector<8x8xf32>
    %67 = arith.mulf %62, %66 : vector<8x8xf32>
    %68 = arith.truncf %67 : vector<8x8xf32> to vector<8x8xbf16>
    %cst_28 = arith.constant dense<0.000000e+00> : vector<8x8xf32>
    %69 = tpu.matmul %68, %53, %cst_28 {dimension_numbers = #tpu.dot_dimension_numbers<[1], [0], [0], [1], [0, 0, 1, 1], [], []>} : vector<8x8xbf16>, vector<8x8xbf16>, vector<8x8xf32> -> vector<8x8xf32>
    %70 = arith.truncf %69 : vector<8x8xf32> to vector<8x8xbf16>
    %71 = vector.extract_strided_slice %22 {offsets = [1, 0, 0], sizes = [1, 8, 32], strides = [1, 1, 1]} : vector<4x8x32xbf16> to vector<1x8x32xbf16>
    %72 = vector.shape_cast %71 : vector<1x8x32xbf16> to vector<8x32xbf16>
    %cst_29 = arith.constant dense<0.000000e+00> : vector<8x32xf32>
    %73 = tpu.matmul %70, %72, %cst_29 {dimension_numbers = #tpu.dot_dimension_numbers<[1], [0], [0], [1], [0, 0, 1, 1], [], []>} : vector<8x8xbf16>, vector<8x32xbf16>, vector<8x32xf32> -> vector<8x32xf32>
    %74 = arith.addf %50, %73 : vector<8x32xf32>
    %75 = vector.extract_strided_slice %25 {offsets = [0, 16], sizes = [8, 8], strides = [1, 1]} : vector<8x32xbf16> to vector<8x8xbf16>
    %76 = vector.extract_strided_slice %26 {offsets = [0, 16], sizes = [8, 8], strides = [1, 1]} : vector<8x32xbf16> to vector<8x8xbf16>
    %77 = vector.extract_strided_slice %27 {offsets = [0, 16], sizes = [8, 8], strides = [1, 1]} : vector<8x32xbf16> to vector<8x8xbf16>
    %cst_30 = arith.constant dense<0.000000e+00> : vector<8x8xf32>
    %78 = tpu.matmul %75, %76, %cst_30 {dimension_numbers = #tpu.dot_dimension_numbers<[1], [1], [0], [0], [0, 0, 1, 0], [], []>} : vector<8x8xbf16>, vector<8x8xbf16>, vector<8x8xf32> -> vector<8x8xf32>
    %cst_31 = arith.constant 0.353553385 : f32
    %79 = vector.broadcast %cst_31 : f32 to vector<8x8xf32>
    %80 = arith.mulf %78, %79 : vector<8x8xf32>
    %81 = arith.addf %80, %5 : vector<8x8xf32>
    %cst_32 = arith.constant dense<0xFF800000> : vector<8xf32>
    %82 = vector.multi_reduction <maximumf>, %81, %cst_32 [1] : vector<8x8xf32> to vector<8xf32>
    %83 = vector.shape_cast %82 : vector<8xf32> to vector<8x1xf32>
    %84 = vector.broadcast %83 : vector<8x1xf32> to vector<8x8xf32>
    %85 = arith.subf %81, %84 : vector<8x8xf32>
    %86 = math.exp %85 : vector<8x8xf32>
    %cst_33 = arith.constant dense<0.000000e+00> : vector<8xf32>
    %87 = vector.multi_reduction <add>, %86, %cst_33 [1] : vector<8x8xf32> to vector<8xf32>
    %88 = vector.shape_cast %87 : vector<8xf32> to vector<8x1xf32>
    %89 = tpu.reciprocal %88 {approx = true} : vector<8x1xf32> -> vector<8x1xf32>
    %90 = vector.broadcast %89 : vector<8x1xf32> to vector<8x8xf32>
    %91 = arith.mulf %86, %90 : vector<8x8xf32>
    %92 = arith.truncf %91 : vector<8x8xf32> to vector<8x8xbf16>
    %cst_34 = arith.constant dense<0.000000e+00> : vector<8x8xf32>
    %93 = tpu.matmul %92, %77, %cst_34 {dimension_numbers = #tpu.dot_dimension_numbers<[1], [0], [0], [1], [0, 0, 1, 1], [], []>} : vector<8x8xbf16>, vector<8x8xbf16>, vector<8x8xf32> -> vector<8x8xf32>
    %94 = arith.truncf %93 : vector<8x8xf32> to vector<8x8xbf16>
    %95 = vector.extract_strided_slice %22 {offsets = [2, 0, 0], sizes = [1, 8, 32], strides = [1, 1, 1]} : vector<4x8x32xbf16> to vector<1x8x32xbf16>
    %96 = vector.shape_cast %95 : vector<1x8x32xbf16> to vector<8x32xbf16>
    %cst_35 = arith.constant dense<0.000000e+00> : vector<8x32xf32>
    %97 = tpu.matmul %94, %96, %cst_35 {dimension_numbers = #tpu.dot_dimension_numbers<[1], [0], [0], [1], [0, 0, 1, 1], [], []>} : vector<8x8xbf16>, vector<8x32xbf16>, vector<8x32xf32> -> vector<8x32xf32>
    %98 = arith.addf %74, %97 : vector<8x32xf32>
    %99 = vector.extract_strided_slice %25 {offsets = [0, 24], sizes = [8, 8], strides = [1, 1]} : vector<8x32xbf16> to vector<8x8xbf16>
    %100 = vector.extract_strided_slice %26 {offsets = [0, 24], sizes = [8, 8], strides = [1, 1]} : vector<8x32xbf16> to vector<8x8xbf16>
    %101 = vector.extract_strided_slice %27 {offsets = [0, 24], sizes = [8, 8], strides = [1, 1]} : vector<8x32xbf16> to vector<8x8xbf16>
    %cst_36 = arith.constant dense<0.000000e+00> : vector<8x8xf32>
    %102 = tpu.matmul %99, %100, %cst_36 {dimension_numbers = #tpu.dot_dimension_numbers<[1], [1], [0], [0], [0, 0, 1, 0], [], []>} : vector<8x8xbf16>, vector<8x8xbf16>, vector<8x8xf32> -> vector<8x8xf32>
    %cst_37 = arith.constant 0.353553385 : f32
    %103 = vector.broadcast %cst_37 : f32 to vector<8x8xf32>
    %104 = arith.mulf %102, %103 : vector<8x8xf32>
    %105 = arith.addf %104, %5 : vector<8x8xf32>
    %cst_38 = arith.constant dense<0xFF800000> : vector<8xf32>
    %106 = vector.multi_reduction <maximumf>, %105, %cst_38 [1] : vector<8x8xf32> to vector<8xf32>
    %107 = vector.shape_cast %106 : vector<8xf32> to vector<8x1xf32>
    %108 = vector.broadcast %107 : vector<8x1xf32> to vector<8x8xf32>
    %109 = arith.subf %105, %108 : vector<8x8xf32>
    %110 = math.exp %109 : vector<8x8xf32>
    %cst_39 = arith.constant dense<0.000000e+00> : vector<8xf32>
    %111 = vector.multi_reduction <add>, %110, %cst_39 [1] : vector<8x8xf32> to vector<8xf32>
    %112 = vector.shape_cast %111 : vector<8xf32> to vector<8x1xf32>
    %113 = tpu.reciprocal %112 {approx = true} : vector<8x1xf32> -> vector<8x1xf32>
    %114 = vector.broadcast %113 : vector<8x1xf32> to vector<8x8xf32>
    %115 = arith.mulf %110, %114 : vector<8x8xf32>
    %116 = arith.truncf %115 : vector<8x8xf32> to vector<8x8xbf16>
    %cst_40 = arith.constant dense<0.000000e+00> : vector<8x8xf32>
    %117 = tpu.matmul %116, %101, %cst_40 {dimension_numbers = #tpu.dot_dimension_numbers<[1], [0], [0], [1], [0, 0, 1, 1], [], []>} : vector<8x8xbf16>, vector<8x8xbf16>, vector<8x8xf32> -> vector<8x8xf32>
    %118 = arith.truncf %117 : vector<8x8xf32> to vector<8x8xbf16>
    %119 = vector.extract_strided_slice %22 {offsets = [3, 0, 0], sizes = [1, 8, 32], strides = [1, 1, 1]} : vector<4x8x32xbf16> to vector<1x8x32xbf16>
    %120 = vector.shape_cast %119 : vector<1x8x32xbf16> to vector<8x32xbf16>
    %cst_41 = arith.constant dense<0.000000e+00> : vector<8x32xf32>
    %121 = tpu.matmul %118, %120, %cst_41 {dimension_numbers = #tpu.dot_dimension_numbers<[1], [0], [0], [1], [0, 0, 1, 1], [], []>} : vector<8x8xbf16>, vector<8x32xbf16>, vector<8x32xf32> -> vector<8x32xf32>
    %122 = arith.addf %98, %121 : vector<8x32xf32>
    %123 = vector.broadcast %24 : vector<1x32xf32> to vector<8x32xf32>
    %124 = arith.addf %122, %123 : vector<8x32xf32>
    %125 = arith.addf %124, %9 : vector<8x32xf32>
    %c0_42 = arith.constant 0 : index
    %c0_43 = arith.constant 0 : index
    %c0_44 = arith.constant 0 : index
    %126 = vector.load %arg10[%c0_42, %c0_43, %c0_44] : memref<2x1x32xf32, #tpu.memory_space<vmem>>, vector<1x1x32xf32>
    %127 = vector.shape_cast %126 : vector<1x1x32xf32> to vector<1x32xf32>
    %c0_45 = arith.constant 0 : index
    %c0_46 = arith.constant 0 : index
    %c0_47 = arith.constant 0 : index
    %128 = vector.load %arg11[%c0_45, %c0_46, %c0_47] : memref<2x1x32xf32, #tpu.memory_space<vmem>>, vector<1x1x32xf32>
    %129 = vector.shape_cast %128 : vector<1x1x32xf32> to vector<1x32xf32>
    %cst_48 = arith.constant dense<0.000000e+00> : vector<8xf32>
    %130 = vector.multi_reduction <add>, %125, %cst_48 [1] : vector<8x32xf32> to vector<8xf32>
    %131 = vector.shape_cast %130 : vector<8xf32> to vector<8x1xf32>
    %cst_49 = arith.constant 3.200000e+01 : f32
    %132 = vector.broadcast %cst_49 : f32 to vector<8x1xf32>
    %133 = arith.divf %131, %132 : vector<8x1xf32>
    %134 = vector.broadcast %133 : vector<8x1xf32> to vector<8x32xf32>
    %135 = arith.subf %125, %134 : vector<8x32xf32>
    %136 = arith.mulf %135, %135 : vector<8x32xf32>
    %cst_50 = arith.constant dense<0.000000e+00> : vector<8xf32>
    %137 = vector.multi_reduction <add>, %136, %cst_50 [1] : vector<8x32xf32> to vector<8xf32>
    %138 = vector.shape_cast %137 : vector<8xf32> to vector<8x1xf32>
    %cst_51 = arith.constant 3.200000e+01 : f32
    %139 = vector.broadcast %cst_51 : f32 to vector<8x1xf32>
    %140 = arith.divf %138, %139 : vector<8x1xf32>
    %cst_52 = arith.constant 9.99999974E-6 : f32
    %141 = vector.broadcast %cst_52 : f32 to vector<8x1xf32>
    %142 = arith.addf %140, %141 : vector<8x1xf32>
    %143 = math.rsqrt %142 : vector<8x1xf32>
    %144 = vector.broadcast %143 : vector<8x1xf32> to vector<8x32xf32>
    %145 = arith.mulf %135, %144 : vector<8x32xf32>
    %146 = vector.broadcast %127 : vector<1x32xf32> to vector<8x32xf32>
    %147 = arith.mulf %145, %146 : vector<8x32xf32>
    %148 = vector.broadcast %129 : vector<1x32xf32> to vector<8x32xf32>
    %149 = arith.addf %147, %148 : vector<8x32xf32>
    %c0_53 = arith.constant 0 : index
    %c0_54 = arith.constant 0 : index
    %c0_55 = arith.constant 0 : index
    %150 = vector.load %arg6[%c0_53, %c0_54, %c0_55] : memref<2x32x64xbf16, #tpu.memory_space<vmem>>, vector<1x32x64xbf16>
    %151 = vector.shape_cast %150 : vector<1x32x64xbf16> to vector<32x64xbf16>
    %152 = arith.truncf %149 : vector<8x32xf32> to vector<8x32xbf16>
    %cst_56 = arith.constant dense<0.000000e+00> : vector<8x64xf32>
    %153 = tpu.matmul %152, %151, %cst_56 {dimension_numbers = #tpu.dot_dimension_numbers<[1], [0], [0], [1], [0, 0, 1, 1], [], []>} : vector<8x32xbf16>, vector<32x64xbf16>, vector<8x64xf32> -> vector<8x64xf32>
    %c0_57 = arith.constant 0 : index
    %c0_58 = arith.constant 0 : index
    %c0_59 = arith.constant 0 : index
    %154 = vector.load %arg7[%c0_57, %c0_58, %c0_59] : memref<2x1x64xf32, #tpu.memory_space<vmem>>, vector<1x1x64xf32>
    %155 = vector.shape_cast %154 : vector<1x1x64xf32> to vector<1x64xf32>
    %156 = vector.broadcast %155 : vector<1x64xf32> to vector<8x64xf32>
    %157 = arith.addf %153, %156 : vector<8x64xf32>
    %cst_60 = arith.constant 0.000000e+00 : f32
    %158 = vector.broadcast %cst_60 : f32 to vector<8x64xf32>
    %159 = arith.maximumf %157, %158 : vector<8x64xf32>
    %c0_61 = arith.constant 0 : index
    %c0_62 = arith.constant 0 : index
    %c0_63 = arith.constant 0 : index
    %160 = vector.load %arg8[%c0_61, %c0_62, %c0_63] : memref<2x64x32xbf16, #tpu.memory_space<vmem>>, vector<1x64x32xbf16>
    %161 = vector.shape_cast %160 : vector<1x64x32xbf16> to vector<64x32xbf16>
    %162 = arith.truncf %159 : vector<8x64xf32> to vector<8x64xbf16>
    %cst_64 = arith.constant dense<0.000000e+00> : vector<8x32xf32>
    %163 = tpu.matmul %162, %161, %cst_64 {dimension_numbers = #tpu.dot_dimension_numbers<[1], [0], [0], [1], [0, 0, 1, 1], [], []>} : vector<8x64xbf16>, vector<64x32xbf16>, vector<8x32xf32> -> vector<8x32xf32>
    %c0_65 = arith.constant 0 : index
    %c0_66 = arith.constant 0 : index
    %c0_67 = arith.constant 0 : index
    %164 = vector.load %arg9[%c0_65, %c0_66, %c0_67] : memref<2x1x32xf32, #tpu.memory_space<vmem>>, vector<1x1x32xf32>
    %165 = vector.shape_cast %164 : vector<1x1x32xf32> to vector<1x32xf32>
    %166 = vector.broadcast %165 : vector<1x32xf32> to vector<8x32xf32>
    %167 = arith.addf %163, %166 : vector<8x32xf32>
    %168 = arith.addf %167, %149 : vector<8x32xf32>
    %c0_68 = arith.constant 0 : index
    %c0_69 = arith.constant 0 : index
    %c0_70 = arith.constant 0 : index
    %169 = vector.load %arg12[%c0_68, %c0_69, %c0_70] : memref<2x1x32xf32, #tpu.memory_space<vmem>>, vector<1x1x32xf32>
    %170 = vector.shape_cast %169 : vector<1x1x32xf32> to vector<1x32xf32>
    %c0_71 = arith.constant 0 : index
    %c0_72 = arith.constant 0 : index
    %c0_73 = arith.constant 0 : index
    %171 = vector.load %arg13[%c0_71, %c0_72, %c0_73] : memref<2x1x32xf32, #tpu.memory_space<vmem>>, vector<1x1x32xf32>
    %172 = vector.shape_cast %171 : vector<1x1x32xf32> to vector<1x32xf32>
    %cst_74 = arith.constant dense<0.000000e+00> : vector<8xf32>
    %173 = vector.multi_reduction <add>, %168, %cst_74 [1] : vector<8x32xf32> to vector<8xf32>
    %174 = vector.shape_cast %173 : vector<8xf32> to vector<8x1xf32>
    %cst_75 = arith.constant 3.200000e+01 : f32
    %175 = vector.broadcast %cst_75 : f32 to vector<8x1xf32>
    %176 = arith.divf %174, %175 : vector<8x1xf32>
    %177 = vector.broadcast %176 : vector<8x1xf32> to vector<8x32xf32>
    %178 = arith.subf %168, %177 : vector<8x32xf32>
    %179 = arith.mulf %178, %178 : vector<8x32xf32>
    %cst_76 = arith.constant dense<0.000000e+00> : vector<8xf32>
    %180 = vector.multi_reduction <add>, %179, %cst_76 [1] : vector<8x32xf32> to vector<8xf32>
    %181 = vector.shape_cast %180 : vector<8xf32> to vector<8x1xf32>
    %cst_77 = arith.constant 3.200000e+01 : f32
    %182 = vector.broadcast %cst_77 : f32 to vector<8x1xf32>
    %183 = arith.divf %181, %182 : vector<8x1xf32>
    %cst_78 = arith.constant 9.99999974E-6 : f32
    %184 = vector.broadcast %cst_78 : f32 to vector<8x1xf32>
    %185 = arith.addf %183, %184 : vector<8x1xf32>
    %186 = math.rsqrt %185 : vector<8x1xf32>
    %187 = vector.broadcast %186 : vector<8x1xf32> to vector<8x32xf32>
    %188 = arith.mulf %178, %187 : vector<8x32xf32>
    %189 = vector.broadcast %170 : vector<1x32xf32> to vector<8x32xf32>
    %190 = arith.mulf %188, %189 : vector<8x32xf32>
    %191 = vector.broadcast %172 : vector<1x32xf32> to vector<8x32xf32>
    %192 = arith.addf %190, %191 : vector<8x32xf32>
    %c1 = arith.constant 1 : index
    %c0_79 = arith.constant 0 : index
    %c0_80 = arith.constant 0 : index
    %193 = vector.load %arg2[%c1, %c0_79, %c0_80] : memref<2x32x96xbf16, #tpu.memory_space<vmem>>, vector<1x32x96xbf16>
    %194 = vector.shape_cast %193 : vector<1x32x96xbf16> to vector<32x96xbf16>
    %195 = arith.truncf %192 : vector<8x32xf32> to vector<8x32xbf16>
    %cst_81 = arith.constant dense<0.000000e+00> : vector<8x96xf32>
    %196 = tpu.matmul %195, %194, %cst_81 {dimension_numbers = #tpu.dot_dimension_numbers<[1], [0], [0], [1], [0, 0, 1, 1], [], []>} : vector<8x32xbf16>, vector<32x96xbf16>, vector<8x96xf32> -> vector<8x96xf32>
    %c1_82 = arith.constant 1 : index
    %c0_83 = arith.constant 0 : index
    %c0_84 = arith.constant 0 : index
    %197 = vector.load %arg3[%c1_82, %c0_83, %c0_84] : memref<2x1x96xf32, #tpu.memory_space<vmem>>, vector<1x1x96xf32>
    %198 = vector.shape_cast %197 : vector<1x1x96xf32> to vector<1x96xf32>
    %199 = vector.broadcast %198 : vector<1x96xf32> to vector<8x96xf32>
    %200 = arith.addf %196, %199 : vector<8x96xf32>
    %201 = vector.extract_strided_slice %200 {offsets = [0, 0], sizes = [8, 32], strides = [1, 1]} : vector<8x96xf32> to vector<8x32xf32>
    %202 = vector.extract_strided_slice %200 {offsets = [0, 32], sizes = [8, 32], strides = [1, 1]} : vector<8x96xf32> to vector<8x32xf32>
    %203 = vector.extract_strided_slice %200 {offsets = [0, 64], sizes = [8, 32], strides = [1, 1]} : vector<8x96xf32> to vector<8x32xf32>
    %c1_85 = arith.constant 1 : index
    %c0_86 = arith.constant 0 : index
    %c0_87 = arith.constant 0 : index
    %c0_88 = arith.constant 0 : index
    %204 = vector.load %arg4[%c1_85, %c0_86, %c0_87, %c0_88] : memref<2x4x8x32xbf16, #tpu.memory_space<vmem>>, vector<1x4x8x32xbf16>
    %205 = vector.shape_cast %204 : vector<1x4x8x32xbf16> to vector<4x8x32xbf16>
    %c1_89 = arith.constant 1 : index
    %c0_90 = arith.constant 0 : index
    %c0_91 = arith.constant 0 : index
    %206 = vector.load %arg5[%c1_89, %c0_90, %c0_91] : memref<2x1x32xf32, #tpu.memory_space<vmem>>, vector<1x1x32xf32>
    %207 = vector.shape_cast %206 : vector<1x1x32xf32> to vector<1x32xf32>
    %208 = arith.truncf %201 : vector<8x32xf32> to vector<8x32xbf16>
    %209 = arith.truncf %202 : vector<8x32xf32> to vector<8x32xbf16>
    %210 = arith.truncf %203 : vector<8x32xf32> to vector<8x32xbf16>
    %211 = vector.extract_strided_slice %208 {offsets = [0, 0], sizes = [8, 8], strides = [1, 1]} : vector<8x32xbf16> to vector<8x8xbf16>
    %212 = vector.extract_strided_slice %209 {offsets = [0, 0], sizes = [8, 8], strides = [1, 1]} : vector<8x32xbf16> to vector<8x8xbf16>
    %213 = vector.extract_strided_slice %210 {offsets = [0, 0], sizes = [8, 8], strides = [1, 1]} : vector<8x32xbf16> to vector<8x8xbf16>
    %cst_92 = arith.constant dense<0.000000e+00> : vector<8x8xf32>
    %214 = tpu.matmul %211, %212, %cst_92 {dimension_numbers = #tpu.dot_dimension_numbers<[1], [1], [0], [0], [0, 0, 1, 0], [], []>} : vector<8x8xbf16>, vector<8x8xbf16>, vector<8x8xf32> -> vector<8x8xf32>
    %cst_93 = arith.constant 0.353553385 : f32
    %215 = vector.broadcast %cst_93 : f32 to vector<8x8xf32>
    %216 = arith.mulf %214, %215 : vector<8x8xf32>
    %217 = arith.addf %216, %5 : vector<8x8xf32>
    %cst_94 = arith.constant dense<0xFF800000> : vector<8xf32>
    %218 = vector.multi_reduction <maximumf>, %217, %cst_94 [1] : vector<8x8xf32> to vector<8xf32>
    %219 = vector.shape_cast %218 : vector<8xf32> to vector<8x1xf32>
    %220 = vector.broadcast %219 : vector<8x1xf32> to vector<8x8xf32>
    %221 = arith.subf %217, %220 : vector<8x8xf32>
    %222 = math.exp %221 : vector<8x8xf32>
    %cst_95 = arith.constant dense<0.000000e+00> : vector<8xf32>
    %223 = vector.multi_reduction <add>, %222, %cst_95 [1] : vector<8x8xf32> to vector<8xf32>
    %224 = vector.shape_cast %223 : vector<8xf32> to vector<8x1xf32>
    %225 = tpu.reciprocal %224 {approx = true} : vector<8x1xf32> -> vector<8x1xf32>
    %226 = vector.broadcast %225 : vector<8x1xf32> to vector<8x8xf32>
    %227 = arith.mulf %222, %226 : vector<8x8xf32>
    %228 = arith.truncf %227 : vector<8x8xf32> to vector<8x8xbf16>
    %cst_96 = arith.constant dense<0.000000e+00> : vector<8x8xf32>
    %229 = tpu.matmul %228, %213, %cst_96 {dimension_numbers = #tpu.dot_dimension_numbers<[1], [0], [0], [1], [0, 0, 1, 1], [], []>} : vector<8x8xbf16>, vector<8x8xbf16>, vector<8x8xf32> -> vector<8x8xf32>
    %230 = arith.truncf %229 : vector<8x8xf32> to vector<8x8xbf16>
    %231 = vector.extract_strided_slice %205 {offsets = [0, 0, 0], sizes = [1, 8, 32], strides = [1, 1, 1]} : vector<4x8x32xbf16> to vector<1x8x32xbf16>
    %232 = vector.shape_cast %231 : vector<1x8x32xbf16> to vector<8x32xbf16>
    %cst_97 = arith.constant dense<0.000000e+00> : vector<8x32xf32>
    %233 = tpu.matmul %230, %232, %cst_97 {dimension_numbers = #tpu.dot_dimension_numbers<[1], [0], [0], [1], [0, 0, 1, 1], [], []>} : vector<8x8xbf16>, vector<8x32xbf16>, vector<8x32xf32> -> vector<8x32xf32>
    %234 = vector.extract_strided_slice %208 {offsets = [0, 8], sizes = [8, 8], strides = [1, 1]} : vector<8x32xbf16> to vector<8x8xbf16>
    %235 = vector.extract_strided_slice %209 {offsets = [0, 8], sizes = [8, 8], strides = [1, 1]} : vector<8x32xbf16> to vector<8x8xbf16>
    %236 = vector.extract_strided_slice %210 {offsets = [0, 8], sizes = [8, 8], strides = [1, 1]} : vector<8x32xbf16> to vector<8x8xbf16>
    %cst_98 = arith.constant dense<0.000000e+00> : vector<8x8xf32>
    %237 = tpu.matmul %234, %235, %cst_98 {dimension_numbers = #tpu.dot_dimension_numbers<[1], [1], [0], [0], [0, 0, 1, 0], [], []>} : vector<8x8xbf16>, vector<8x8xbf16>, vector<8x8xf32> -> vector<8x8xf32>
    %cst_99 = arith.constant 0.353553385 : f32
    %238 = vector.broadcast %cst_99 : f32 to vector<8x8xf32>
    %239 = arith.mulf %237, %238 : vector<8x8xf32>
    %240 = arith.addf %239, %5 : vector<8x8xf32>
    %cst_100 = arith.constant dense<0xFF800000> : vector<8xf32>
    %241 = vector.multi_reduction <maximumf>, %240, %cst_100 [1] : vector<8x8xf32> to vector<8xf32>
    %242 = vector.shape_cast %241 : vector<8xf32> to vector<8x1xf32>
    %243 = vector.broadcast %242 : vector<8x1xf32> to vector<8x8xf32>
    %244 = arith.subf %240, %243 : vector<8x8xf32>
    %245 = math.exp %244 : vector<8x8xf32>
    %cst_101 = arith.constant dense<0.000000e+00> : vector<8xf32>
    %246 = vector.multi_reduction <add>, %245, %cst_101 [1] : vector<8x8xf32> to vector<8xf32>
    %247 = vector.shape_cast %246 : vector<8xf32> to vector<8x1xf32>
    %248 = tpu.reciprocal %247 {approx = true} : vector<8x1xf32> -> vector<8x1xf32>
    %249 = vector.broadcast %248 : vector<8x1xf32> to vector<8x8xf32>
    %250 = arith.mulf %245, %249 : vector<8x8xf32>
    %251 = arith.truncf %250 : vector<8x8xf32> to vector<8x8xbf16>
    %cst_102 = arith.constant dense<0.000000e+00> : vector<8x8xf32>
    %252 = tpu.matmul %251, %236, %cst_102 {dimension_numbers = #tpu.dot_dimension_numbers<[1], [0], [0], [1], [0, 0, 1, 1], [], []>} : vector<8x8xbf16>, vector<8x8xbf16>, vector<8x8xf32> -> vector<8x8xf32>
    %253 = arith.truncf %252 : vector<8x8xf32> to vector<8x8xbf16>
    %254 = vector.extract_strided_slice %205 {offsets = [1, 0, 0], sizes = [1, 8, 32], strides = [1, 1, 1]} : vector<4x8x32xbf16> to vector<1x8x32xbf16>
    %255 = vector.shape_cast %254 : vector<1x8x32xbf16> to vector<8x32xbf16>
    %cst_103 = arith.constant dense<0.000000e+00> : vector<8x32xf32>
    %256 = tpu.matmul %253, %255, %cst_103 {dimension_numbers = #tpu.dot_dimension_numbers<[1], [0], [0], [1], [0, 0, 1, 1], [], []>} : vector<8x8xbf16>, vector<8x32xbf16>, vector<8x32xf32> -> vector<8x32xf32>
    %257 = arith.addf %233, %256 : vector<8x32xf32>
    %258 = vector.extract_strided_slice %208 {offsets = [0, 16], sizes = [8, 8], strides = [1, 1]} : vector<8x32xbf16> to vector<8x8xbf16>
    %259 = vector.extract_strided_slice %209 {offsets = [0, 16], sizes = [8, 8], strides = [1, 1]} : vector<8x32xbf16> to vector<8x8xbf16>
    %260 = vector.extract_strided_slice %210 {offsets = [0, 16], sizes = [8, 8], strides = [1, 1]} : vector<8x32xbf16> to vector<8x8xbf16>
    %cst_104 = arith.constant dense<0.000000e+00> : vector<8x8xf32>
    %261 = tpu.matmul %258, %259, %cst_104 {dimension_numbers = #tpu.dot_dimension_numbers<[1], [1], [0], [0], [0, 0, 1, 0], [], []>} : vector<8x8xbf16>, vector<8x8xbf16>, vector<8x8xf32> -> vector<8x8xf32>
    %cst_105 = arith.constant 0.353553385 : f32
    %262 = vector.broadcast %cst_105 : f32 to vector<8x8xf32>
    %263 = arith.mulf %261, %262 : vector<8x8xf32>
    %264 = arith.addf %263, %5 : vector<8x8xf32>
    %cst_106 = arith.constant dense<0xFF800000> : vector<8xf32>
    %265 = vector.multi_reduction <maximumf>, %264, %cst_106 [1] : vector<8x8xf32> to vector<8xf32>
    %266 = vector.shape_cast %265 : vector<8xf32> to vector<8x1xf32>
    %267 = vector.broadcast %266 : vector<8x1xf32> to vector<8x8xf32>
    %268 = arith.subf %264, %267 : vector<8x8xf32>
    %269 = math.exp %268 : vector<8x8xf32>
    %cst_107 = arith.constant dense<0.000000e+00> : vector<8xf32>
    %270 = vector.multi_reduction <add>, %269, %cst_107 [1] : vector<8x8xf32> to vector<8xf32>
    %271 = vector.shape_cast %270 : vector<8xf32> to vector<8x1xf32>
    %272 = tpu.reciprocal %271 {approx = true} : vector<8x1xf32> -> vector<8x1xf32>
    %273 = vector.broadcast %272 : vector<8x1xf32> to vector<8x8xf32>
    %274 = arith.mulf %269, %273 : vector<8x8xf32>
    %275 = arith.truncf %274 : vector<8x8xf32> to vector<8x8xbf16>
    %cst_108 = arith.constant dense<0.000000e+00> : vector<8x8xf32>
    %276 = tpu.matmul %275, %260, %cst_108 {dimension_numbers = #tpu.dot_dimension_numbers<[1], [0], [0], [1], [0, 0, 1, 1], [], []>} : vector<8x8xbf16>, vector<8x8xbf16>, vector<8x8xf32> -> vector<8x8xf32>
    %277 = arith.truncf %276 : vector<8x8xf32> to vector<8x8xbf16>
    %278 = vector.extract_strided_slice %205 {offsets = [2, 0, 0], sizes = [1, 8, 32], strides = [1, 1, 1]} : vector<4x8x32xbf16> to vector<1x8x32xbf16>
    %279 = vector.shape_cast %278 : vector<1x8x32xbf16> to vector<8x32xbf16>
    %cst_109 = arith.constant dense<0.000000e+00> : vector<8x32xf32>
    %280 = tpu.matmul %277, %279, %cst_109 {dimension_numbers = #tpu.dot_dimension_numbers<[1], [0], [0], [1], [0, 0, 1, 1], [], []>} : vector<8x8xbf16>, vector<8x32xbf16>, vector<8x32xf32> -> vector<8x32xf32>
    %281 = arith.addf %257, %280 : vector<8x32xf32>
    %282 = vector.extract_strided_slice %208 {offsets = [0, 24], sizes = [8, 8], strides = [1, 1]} : vector<8x32xbf16> to vector<8x8xbf16>
    %283 = vector.extract_strided_slice %209 {offsets = [0, 24], sizes = [8, 8], strides = [1, 1]} : vector<8x32xbf16> to vector<8x8xbf16>
    %284 = vector.extract_strided_slice %210 {offsets = [0, 24], sizes = [8, 8], strides = [1, 1]} : vector<8x32xbf16> to vector<8x8xbf16>
    %cst_110 = arith.constant dense<0.000000e+00> : vector<8x8xf32>
    %285 = tpu.matmul %282, %283, %cst_110 {dimension_numbers = #tpu.dot_dimension_numbers<[1], [1], [0], [0], [0, 0, 1, 0], [], []>} : vector<8x8xbf16>, vector<8x8xbf16>, vector<8x8xf32> -> vector<8x8xf32>
    %cst_111 = arith.constant 0.353553385 : f32
    %286 = vector.broadcast %cst_111 : f32 to vector<8x8xf32>
    %287 = arith.mulf %285, %286 : vector<8x8xf32>
    %288 = arith.addf %287, %5 : vector<8x8xf32>
    %cst_112 = arith.constant dense<0xFF800000> : vector<8xf32>
    %289 = vector.multi_reduction <maximumf>, %288, %cst_112 [1] : vector<8x8xf32> to vector<8xf32>
    %290 = vector.shape_cast %289 : vector<8xf32> to vector<8x1xf32>
    %291 = vector.broadcast %290 : vector<8x1xf32> to vector<8x8xf32>
    %292 = arith.subf %288, %291 : vector<8x8xf32>
    %293 = math.exp %292 : vector<8x8xf32>
    %cst_113 = arith.constant dense<0.000000e+00> : vector<8xf32>
    %294 = vector.multi_reduction <add>, %293, %cst_113 [1] : vector<8x8xf32> to vector<8xf32>
    %295 = vector.shape_cast %294 : vector<8xf32> to vector<8x1xf32>
    %296 = tpu.reciprocal %295 {approx = true} : vector<8x1xf32> -> vector<8x1xf32>
    %297 = vector.broadcast %296 : vector<8x1xf32> to vector<8x8xf32>
    %298 = arith.mulf %293, %297 : vector<8x8xf32>
    %299 = arith.truncf %298 : vector<8x8xf32> to vector<8x8xbf16>
    %cst_114 = arith.constant dense<0.000000e+00> : vector<8x8xf32>
    %300 = tpu.matmul %299, %284, %cst_114 {dimension_numbers = #tpu.dot_dimension_numbers<[1], [0], [0], [1], [0, 0, 1, 1], [], []>} : vector<8x8xbf16>, vector<8x8xbf16>, vector<8x8xf32> -> vector<8x8xf32>
    %301 = arith.truncf %300 : vector<8x8xf32> to vector<8x8xbf16>
    %302 = vector.extract_strided_slice %205 {offsets = [3, 0, 0], sizes = [1, 8, 32], strides = [1, 1, 1]} : vector<4x8x32xbf16> to vector<1x8x32xbf16>
    %303 = vector.shape_cast %302 : vector<1x8x32xbf16> to vector<8x32xbf16>
    %cst_115 = arith.constant dense<0.000000e+00> : vector<8x32xf32>
    %304 = tpu.matmul %301, %303, %cst_115 {dimension_numbers = #tpu.dot_dimension_numbers<[1], [0], [0], [1], [0, 0, 1, 1], [], []>} : vector<8x8xbf16>, vector<8x32xbf16>, vector<8x32xf32> -> vector<8x32xf32>
    %305 = arith.addf %281, %304 : vector<8x32xf32>
    %306 = vector.broadcast %207 : vector<1x32xf32> to vector<8x32xf32>
    %307 = arith.addf %305, %306 : vector<8x32xf32>
    %308 = arith.addf %307, %192 : vector<8x32xf32>
    %c1_116 = arith.constant 1 : index
    %c0_117 = arith.constant 0 : index
    %c0_118 = arith.constant 0 : index
    %309 = vector.load %arg10[%c1_116, %c0_117, %c0_118] : memref<2x1x32xf32, #tpu.memory_space<vmem>>, vector<1x1x32xf32>
    %310 = vector.shape_cast %309 : vector<1x1x32xf32> to vector<1x32xf32>
    %c1_119 = arith.constant 1 : index
    %c0_120 = arith.constant 0 : index
    %c0_121 = arith.constant 0 : index
    %311 = vector.load %arg11[%c1_119, %c0_120, %c0_121] : memref<2x1x32xf32, #tpu.memory_space<vmem>>, vector<1x1x32xf32>
    %312 = vector.shape_cast %311 : vector<1x1x32xf32> to vector<1x32xf32>
    %cst_122 = arith.constant dense<0.000000e+00> : vector<8xf32>
    %313 = vector.multi_reduction <add>, %308, %cst_122 [1] : vector<8x32xf32> to vector<8xf32>
    %314 = vector.shape_cast %313 : vector<8xf32> to vector<8x1xf32>
    %cst_123 = arith.constant 3.200000e+01 : f32
    %315 = vector.broadcast %cst_123 : f32 to vector<8x1xf32>
    %316 = arith.divf %314, %315 : vector<8x1xf32>
    %317 = vector.broadcast %316 : vector<8x1xf32> to vector<8x32xf32>
    %318 = arith.subf %308, %317 : vector<8x32xf32>
    %319 = arith.mulf %318, %318 : vector<8x32xf32>
    %cst_124 = arith.constant dense<0.000000e+00> : vector<8xf32>
    %320 = vector.multi_reduction <add>, %319, %cst_124 [1] : vector<8x32xf32> to vector<8xf32>
    %321 = vector.shape_cast %320 : vector<8xf32> to vector<8x1xf32>
    %cst_125 = arith.constant 3.200000e+01 : f32
    %322 = vector.broadcast %cst_125 : f32 to vector<8x1xf32>
    %323 = arith.divf %321, %322 : vector<8x1xf32>
    %cst_126 = arith.constant 9.99999974E-6 : f32
    %324 = vector.broadcast %cst_126 : f32 to vector<8x1xf32>
    %325 = arith.addf %323, %324 : vector<8x1xf32>
    %326 = math.rsqrt %325 : vector<8x1xf32>
    %327 = vector.broadcast %326 : vector<8x1xf32> to vector<8x32xf32>
    %328 = arith.mulf %318, %327 : vector<8x32xf32>
    %329 = vector.broadcast %310 : vector<1x32xf32> to vector<8x32xf32>
    %330 = arith.mulf %328, %329 : vector<8x32xf32>
    %331 = vector.broadcast %312 : vector<1x32xf32> to vector<8x32xf32>
    %332 = arith.addf %330, %331 : vector<8x32xf32>
    %c1_127 = arith.constant 1 : index
    %c0_128 = arith.constant 0 : index
    %c0_129 = arith.constant 0 : index
    %333 = vector.load %arg6[%c1_127, %c0_128, %c0_129] : memref<2x32x64xbf16, #tpu.memory_space<vmem>>, vector<1x32x64xbf16>
    %334 = vector.shape_cast %333 : vector<1x32x64xbf16> to vector<32x64xbf16>
    %335 = arith.truncf %332 : vector<8x32xf32> to vector<8x32xbf16>
    %cst_130 = arith.constant dense<0.000000e+00> : vector<8x64xf32>
    %336 = tpu.matmul %335, %334, %cst_130 {dimension_numbers = #tpu.dot_dimension_numbers<[1], [0], [0], [1], [0, 0, 1, 1], [], []>} : vector<8x32xbf16>, vector<32x64xbf16>, vector<8x64xf32> -> vector<8x64xf32>
    %c1_131 = arith.constant 1 : index
    %c0_132 = arith.constant 0 : index
    %c0_133 = arith.constant 0 : index
    %337 = vector.load %arg7[%c1_131, %c0_132, %c0_133] : memref<2x1x64xf32, #tpu.memory_space<vmem>>, vector<1x1x64xf32>
    %338 = vector.shape_cast %337 : vector<1x1x64xf32> to vector<1x64xf32>
    %339 = vector.broadcast %338 : vector<1x64xf32> to vector<8x64xf32>
    %340 = arith.addf %336, %339 : vector<8x64xf32>
    %cst_134 = arith.constant 0.000000e+00 : f32
    %341 = vector.broadcast %cst_134 : f32 to vector<8x64xf32>
    %342 = arith.maximumf %340, %341 : vector<8x64xf32>
    %c1_135 = arith.constant 1 : index
    %c0_136 = arith.constant 0 : index
    %c0_137 = arith.constant 0 : index
    %343 = vector.load %arg8[%c1_135, %c0_136, %c0_137] : memref<2x64x32xbf16, #tpu.memory_space<vmem>>, vector<1x64x32xbf16>
    %344 = vector.shape_cast %343 : vector<1x64x32xbf16> to vector<64x32xbf16>
    %345 = arith.truncf %342 : vector<8x64xf32> to vector<8x64xbf16>
    %cst_138 = arith.constant dense<0.000000e+00> : vector<8x32xf32>
    %346 = tpu.matmul %345, %344, %cst_138 {dimension_numbers = #tpu.dot_dimension_numbers<[1], [0], [0], [1], [0, 0, 1, 1], [], []>} : vector<8x64xbf16>, vector<64x32xbf16>, vector<8x32xf32> -> vector<8x32xf32>
    %c1_139 = arith.constant 1 : index
    %c0_140 = arith.constant 0 : index
    %c0_141 = arith.constant 0 : index
    %347 = vector.load %arg9[%c1_139, %c0_140, %c0_141] : memref<2x1x32xf32, #tpu.memory_space<vmem>>, vector<1x1x32xf32>
    %348 = vector.shape_cast %347 : vector<1x1x32xf32> to vector<1x32xf32>
    %349 = vector.broadcast %348 : vector<1x32xf32> to vector<8x32xf32>
    %350 = arith.addf %346, %349 : vector<8x32xf32>
    %351 = arith.addf %350, %332 : vector<8x32xf32>
    %c1_142 = arith.constant 1 : index
    %c0_143 = arith.constant 0 : index
    %c0_144 = arith.constant 0 : index
    %352 = vector.load %arg12[%c1_142, %c0_143, %c0_144] : memref<2x1x32xf32, #tpu.memory_space<vmem>>, vector<1x1x32xf32>
    %353 = vector.shape_cast %352 : vector<1x1x32xf32> to vector<1x32xf32>
    %c1_145 = arith.constant 1 : index
    %c0_146 = arith.constant 0 : index
    %c0_147 = arith.constant 0 : index
    %354 = vector.load %arg13[%c1_145, %c0_146, %c0_147] : memref<2x1x32xf32, #tpu.memory_space<vmem>>, vector<1x1x32xf32>
    %355 = vector.shape_cast %354 : vector<1x1x32xf32> to vector<1x32xf32>
    %cst_148 = arith.constant dense<0.000000e+00> : vector<8xf32>
    %356 = vector.multi_reduction <add>, %351, %cst_148 [1] : vector<8x32xf32> to vector<8xf32>
    %357 = vector.shape_cast %356 : vector<8xf32> to vector<8x1xf32>
    %cst_149 = arith.constant 3.200000e+01 : f32
    %358 = vector.broadcast %cst_149 : f32 to vector<8x1xf32>
    %359 = arith.divf %357, %358 : vector<8x1xf32>
    %360 = vector.broadcast %359 : vector<8x1xf32> to vector<8x32xf32>
    %361 = arith.subf %351, %360 : vector<8x32xf32>
    %362 = arith.mulf %361, %361 : vector<8x32xf32>
    %cst_150 = arith.constant dense<0.000000e+00> : vector<8xf32>
    %363 = vector.multi_reduction <add>, %362, %cst_150 [1] : vector<8x32xf32> to vector<8xf32>
    %364 = vector.shape_cast %363 : vector<8xf32> to vector<8x1xf32>
    %cst_151 = arith.constant 3.200000e+01 : f32
    %365 = vector.broadcast %cst_151 : f32 to vector<8x1xf32>
    %366 = arith.divf %364, %365 : vector<8x1xf32>
    %cst_152 = arith.constant 9.99999974E-6 : f32
    %367 = vector.broadcast %cst_152 : f32 to vector<8x1xf32>
    %368 = arith.addf %366, %367 : vector<8x1xf32>
    %369 = math.rsqrt %368 : vector<8x1xf32>
    %370 = vector.broadcast %369 : vector<8x1xf32> to vector<8x32xf32>
    %371 = arith.mulf %361, %370 : vector<8x32xf32>
    %372 = vector.broadcast %353 : vector<1x32xf32> to vector<8x32xf32>
    %373 = arith.mulf %371, %372 : vector<8x32xf32>
    %374 = vector.broadcast %355 : vector<1x32xf32> to vector<8x32xf32>
    %375 = arith.addf %373, %374 : vector<8x32xf32>
    %c0_153 = arith.constant 0 : index
    %c0_154 = arith.constant 0 : index
    %376 = vector.load %arg14[%c0_153, %c0_154] : memref<1x32xf32, #tpu.memory_space<vmem>>, vector<1x32xf32>
    %c0_155 = arith.constant 0 : index
    %c0_156 = arith.constant 0 : index
    %377 = vector.load %arg15[%c0_155, %c0_156] : memref<1x32xf32, #tpu.memory_space<vmem>>, vector<1x32xf32>
    %cst_157 = arith.constant dense<0.000000e+00> : vector<8xf32>
    %378 = vector.multi_reduction <add>, %375, %cst_157 [1] : vector<8x32xf32> to vector<8xf32>
    %379 = vector.shape_cast %378 : vector<8xf32> to vector<8x1xf32>
    %cst_158 = arith.constant 3.200000e+01 : f32
    %380 = vector.broadcast %cst_158 : f32 to vector<8x1xf32>
    %381 = arith.divf %379, %380 : vector<8x1xf32>
    %382 = vector.broadcast %381 : vector<8x1xf32> to vector<8x32xf32>
    %383 = arith.subf %375, %382 : vector<8x32xf32>
    %384 = arith.mulf %383, %383 : vector<8x32xf32>
    %cst_159 = arith.constant dense<0.000000e+00> : vector<8xf32>
    %385 = vector.multi_reduction <add>, %384, %cst_159 [1] : vector<8x32xf32> to vector<8xf32>
    %386 = vector.shape_cast %385 : vector<8xf32> to vector<8x1xf32>
    %cst_160 = arith.constant 3.200000e+01 : f32
    %387 = vector.broadcast %cst_160 : f32 to vector<8x1xf32>
    %388 = arith.divf %386, %387 : vector<8x1xf32>
    %cst_161 = arith.constant 9.99999974E-6 : f32
    %389 = vector.broadcast %cst_161 : f32 to vector<8x1xf32>
    %390 = arith.addf %388, %389 : vector<8x1xf32>
    %391 = math.rsqrt %390 : vector<8x1xf32>
    %392 = vector.broadcast %391 : vector<8x1xf32> to vector<8x32xf32>
    %393 = arith.mulf %383, %392 : vector<8x32xf32>
    %394 = vector.broadcast %376 : vector<1x32xf32> to vector<8x32xf32>
    %395 = arith.mulf %393, %394 : vector<8x32xf32>
    %396 = vector.broadcast %377 : vector<1x32xf32> to vector<8x32xf32>
    %397 = arith.addf %395, %396 : vector<8x32xf32>
    %c0_162 = arith.constant 0 : index
    %c0_163 = arith.constant 0 : index
    %c0_164 = arith.constant 0 : index
    %398 = vector.load %arg16[%c0_162, %c0_163, %c0_164] : memref<2x32x96xbf16, #tpu.memory_space<vmem>>, vector<1x32x96xbf16>
    %399 = vector.shape_cast %398 : vector<1x32x96xbf16> to vector<32x96xbf16>
    %400 = arith.truncf %9 : vector<8x32xf32> to vector<8x32xbf16>
    %cst_165 = arith.constant dense<0.000000e+00> : vector<8x96xf32>
    %401 = tpu.matmul %400, %399, %cst_165 {dimension_numbers = #tpu.dot_dimension_numbers<[1], [0], [0], [1], [0, 0, 1, 1], [], []>} : vector<8x32xbf16>, vector<32x96xbf16>, vector<8x96xf32> -> vector<8x96xf32>
    %c0_166 = arith.constant 0 : index
    %c0_167 = arith.constant 0 : index
    %c0_168 = arith.constant 0 : index
    %402 = vector.load %arg17[%c0_166, %c0_167, %c0_168] : memref<2x1x96xf32, #tpu.memory_space<vmem>>, vector<1x1x96xf32>
    %403 = vector.shape_cast %402 : vector<1x1x96xf32> to vector<1x96xf32>
    %404 = vector.broadcast %403 : vector<1x96xf32> to vector<8x96xf32>
    %405 = arith.addf %401, %404 : vector<8x96xf32>
    %406 = vector.extract_strided_slice %405 {offsets = [0, 0], sizes = [8, 32], strides = [1, 1]} : vector<8x96xf32> to vector<8x32xf32>
    %407 = vector.extract_strided_slice %405 {offsets = [0, 32], sizes = [8, 32], strides = [1, 1]} : vector<8x96xf32> to vector<8x32xf32>
    %408 = vector.extract_strided_slice %405 {offsets = [0, 64], sizes = [8, 32], strides = [1, 1]} : vector<8x96xf32> to vector<8x32xf32>
    %c0_169 = arith.constant 0 : index
    %c0_170 = arith.constant 0 : index
    %c0_171 = arith.constant 0 : index
    %c0_172 = arith.constant 0 : index
    %409 = vector.load %arg18[%c0_169, %c0_170, %c0_171, %c0_172] : memref<2x4x8x32xbf16, #tpu.memory_space<vmem>>, vector<1x4x8x32xbf16>
    %410 = vector.shape_cast %409 : vector<1x4x8x32xbf16> to vector<4x8x32xbf16>
    %c0_173 = arith.constant 0 : index
    %c0_174 = arith.constant 0 : index
    %c0_175 = arith.constant 0 : index
    %411 = vector.load %arg19[%c0_173, %c0_174, %c0_175] : memref<2x1x32xf32, #tpu.memory_space<vmem>>, vector<1x1x32xf32>
    %412 = vector.shape_cast %411 : vector<1x1x32xf32> to vector<1x32xf32>
    %413 = arith.truncf %406 : vector<8x32xf32> to vector<8x32xbf16>
    %414 = arith.truncf %407 : vector<8x32xf32> to vector<8x32xbf16>
    %415 = arith.truncf %408 : vector<8x32xf32> to vector<8x32xbf16>
    %416 = vector.extract_strided_slice %413 {offsets = [0, 0], sizes = [8, 8], strides = [1, 1]} : vector<8x32xbf16> to vector<8x8xbf16>
    %417 = vector.extract_strided_slice %414 {offsets = [0, 0], sizes = [8, 8], strides = [1, 1]} : vector<8x32xbf16> to vector<8x8xbf16>
    %418 = vector.extract_strided_slice %415 {offsets = [0, 0], sizes = [8, 8], strides = [1, 1]} : vector<8x32xbf16> to vector<8x8xbf16>
    %cst_176 = arith.constant dense<0.000000e+00> : vector<8x8xf32>
    %419 = tpu.matmul %416, %417, %cst_176 {dimension_numbers = #tpu.dot_dimension_numbers<[1], [1], [0], [0], [0, 0, 1, 0], [], []>} : vector<8x8xbf16>, vector<8x8xbf16>, vector<8x8xf32> -> vector<8x8xf32>
    %cst_177 = arith.constant 0.353553385 : f32
    %420 = vector.broadcast %cst_177 : f32 to vector<8x8xf32>
    %421 = arith.mulf %419, %420 : vector<8x8xf32>
    %422 = arith.addf %421, %5 : vector<8x8xf32>
    %cst_178 = arith.constant dense<0xFF800000> : vector<8xf32>
    %423 = vector.multi_reduction <maximumf>, %422, %cst_178 [1] : vector<8x8xf32> to vector<8xf32>
    %424 = vector.shape_cast %423 : vector<8xf32> to vector<8x1xf32>
    %425 = vector.broadcast %424 : vector<8x1xf32> to vector<8x8xf32>
    %426 = arith.subf %422, %425 : vector<8x8xf32>
    %427 = math.exp %426 : vector<8x8xf32>
    %cst_179 = arith.constant dense<0.000000e+00> : vector<8xf32>
    %428 = vector.multi_reduction <add>, %427, %cst_179 [1] : vector<8x8xf32> to vector<8xf32>
    %429 = vector.shape_cast %428 : vector<8xf32> to vector<8x1xf32>
    %430 = tpu.reciprocal %429 {approx = true} : vector<8x1xf32> -> vector<8x1xf32>
    %431 = vector.broadcast %430 : vector<8x1xf32> to vector<8x8xf32>
    %432 = arith.mulf %427, %431 : vector<8x8xf32>
    %433 = arith.truncf %432 : vector<8x8xf32> to vector<8x8xbf16>
    %cst_180 = arith.constant dense<0.000000e+00> : vector<8x8xf32>
    %434 = tpu.matmul %433, %418, %cst_180 {dimension_numbers = #tpu.dot_dimension_numbers<[1], [0], [0], [1], [0, 0, 1, 1], [], []>} : vector<8x8xbf16>, vector<8x8xbf16>, vector<8x8xf32> -> vector<8x8xf32>
    %435 = arith.truncf %434 : vector<8x8xf32> to vector<8x8xbf16>
    %436 = vector.extract_strided_slice %410 {offsets = [0, 0, 0], sizes = [1, 8, 32], strides = [1, 1, 1]} : vector<4x8x32xbf16> to vector<1x8x32xbf16>
    %437 = vector.shape_cast %436 : vector<1x8x32xbf16> to vector<8x32xbf16>
    %cst_181 = arith.constant dense<0.000000e+00> : vector<8x32xf32>
    %438 = tpu.matmul %435, %437, %cst_181 {dimension_numbers = #tpu.dot_dimension_numbers<[1], [0], [0], [1], [0, 0, 1, 1], [], []>} : vector<8x8xbf16>, vector<8x32xbf16>, vector<8x32xf32> -> vector<8x32xf32>
    %439 = vector.extract_strided_slice %413 {offsets = [0, 8], sizes = [8, 8], strides = [1, 1]} : vector<8x32xbf16> to vector<8x8xbf16>
    %440 = vector.extract_strided_slice %414 {offsets = [0, 8], sizes = [8, 8], strides = [1, 1]} : vector<8x32xbf16> to vector<8x8xbf16>
    %441 = vector.extract_strided_slice %415 {offsets = [0, 8], sizes = [8, 8], strides = [1, 1]} : vector<8x32xbf16> to vector<8x8xbf16>
    %cst_182 = arith.constant dense<0.000000e+00> : vector<8x8xf32>
    %442 = tpu.matmul %439, %440, %cst_182 {dimension_numbers = #tpu.dot_dimension_numbers<[1], [1], [0], [0], [0, 0, 1, 0], [], []>} : vector<8x8xbf16>, vector<8x8xbf16>, vector<8x8xf32> -> vector<8x8xf32>
    %cst_183 = arith.constant 0.353553385 : f32
    %443 = vector.broadcast %cst_183 : f32 to vector<8x8xf32>
    %444 = arith.mulf %442, %443 : vector<8x8xf32>
    %445 = arith.addf %444, %5 : vector<8x8xf32>
    %cst_184 = arith.constant dense<0xFF800000> : vector<8xf32>
    %446 = vector.multi_reduction <maximumf>, %445, %cst_184 [1] : vector<8x8xf32> to vector<8xf32>
    %447 = vector.shape_cast %446 : vector<8xf32> to vector<8x1xf32>
    %448 = vector.broadcast %447 : vector<8x1xf32> to vector<8x8xf32>
    %449 = arith.subf %445, %448 : vector<8x8xf32>
    %450 = math.exp %449 : vector<8x8xf32>
    %cst_185 = arith.constant dense<0.000000e+00> : vector<8xf32>
    %451 = vector.multi_reduction <add>, %450, %cst_185 [1] : vector<8x8xf32> to vector<8xf32>
    %452 = vector.shape_cast %451 : vector<8xf32> to vector<8x1xf32>
    %453 = tpu.reciprocal %452 {approx = true} : vector<8x1xf32> -> vector<8x1xf32>
    %454 = vector.broadcast %453 : vector<8x1xf32> to vector<8x8xf32>
    %455 = arith.mulf %450, %454 : vector<8x8xf32>
    %456 = arith.truncf %455 : vector<8x8xf32> to vector<8x8xbf16>
    %cst_186 = arith.constant dense<0.000000e+00> : vector<8x8xf32>
    %457 = tpu.matmul %456, %441, %cst_186 {dimension_numbers = #tpu.dot_dimension_numbers<[1], [0], [0], [1], [0, 0, 1, 1], [], []>} : vector<8x8xbf16>, vector<8x8xbf16>, vector<8x8xf32> -> vector<8x8xf32>
    %458 = arith.truncf %457 : vector<8x8xf32> to vector<8x8xbf16>
    %459 = vector.extract_strided_slice %410 {offsets = [1, 0, 0], sizes = [1, 8, 32], strides = [1, 1, 1]} : vector<4x8x32xbf16> to vector<1x8x32xbf16>
    %460 = vector.shape_cast %459 : vector<1x8x32xbf16> to vector<8x32xbf16>
    %cst_187 = arith.constant dense<0.000000e+00> : vector<8x32xf32>
    %461 = tpu.matmul %458, %460, %cst_187 {dimension_numbers = #tpu.dot_dimension_numbers<[1], [0], [0], [1], [0, 0, 1, 1], [], []>} : vector<8x8xbf16>, vector<8x32xbf16>, vector<8x32xf32> -> vector<8x32xf32>
    %462 = arith.addf %438, %461 : vector<8x32xf32>
    %463 = vector.extract_strided_slice %413 {offsets = [0, 16], sizes = [8, 8], strides = [1, 1]} : vector<8x32xbf16> to vector<8x8xbf16>
    %464 = vector.extract_strided_slice %414 {offsets = [0, 16], sizes = [8, 8], strides = [1, 1]} : vector<8x32xbf16> to vector<8x8xbf16>
    %465 = vector.extract_strided_slice %415 {offsets = [0, 16], sizes = [8, 8], strides = [1, 1]} : vector<8x32xbf16> to vector<8x8xbf16>
    %cst_188 = arith.constant dense<0.000000e+00> : vector<8x8xf32>
    %466 = tpu.matmul %463, %464, %cst_188 {dimension_numbers = #tpu.dot_dimension_numbers<[1], [1], [0], [0], [0, 0, 1, 0], [], []>} : vector<8x8xbf16>, vector<8x8xbf16>, vector<8x8xf32> -> vector<8x8xf32>
    %cst_189 = arith.constant 0.353553385 : f32
    %467 = vector.broadcast %cst_189 : f32 to vector<8x8xf32>
    %468 = arith.mulf %466, %467 : vector<8x8xf32>
    %469 = arith.addf %468, %5 : vector<8x8xf32>
    %cst_190 = arith.constant dense<0xFF800000> : vector<8xf32>
    %470 = vector.multi_reduction <maximumf>, %469, %cst_190 [1] : vector<8x8xf32> to vector<8xf32>
    %471 = vector.shape_cast %470 : vector<8xf32> to vector<8x1xf32>
    %472 = vector.broadcast %471 : vector<8x1xf32> to vector<8x8xf32>
    %473 = arith.subf %469, %472 : vector<8x8xf32>
    %474 = math.exp %473 : vector<8x8xf32>
    %cst_191 = arith.constant dense<0.000000e+00> : vector<8xf32>
    %475 = vector.multi_reduction <add>, %474, %cst_191 [1] : vector<8x8xf32> to vector<8xf32>
    %476 = vector.shape_cast %475 : vector<8xf32> to vector<8x1xf32>
    %477 = tpu.reciprocal %476 {approx = true} : vector<8x1xf32> -> vector<8x1xf32>
    %478 = vector.broadcast %477 : vector<8x1xf32> to vector<8x8xf32>
    %479 = arith.mulf %474, %478 : vector<8x8xf32>
    %480 = arith.truncf %479 : vector<8x8xf32> to vector<8x8xbf16>
    %cst_192 = arith.constant dense<0.000000e+00> : vector<8x8xf32>
    %481 = tpu.matmul %480, %465, %cst_192 {dimension_numbers = #tpu.dot_dimension_numbers<[1], [0], [0], [1], [0, 0, 1, 1], [], []>} : vector<8x8xbf16>, vector<8x8xbf16>, vector<8x8xf32> -> vector<8x8xf32>
    %482 = arith.truncf %481 : vector<8x8xf32> to vector<8x8xbf16>
    %483 = vector.extract_strided_slice %410 {offsets = [2, 0, 0], sizes = [1, 8, 32], strides = [1, 1, 1]} : vector<4x8x32xbf16> to vector<1x8x32xbf16>
    %484 = vector.shape_cast %483 : vector<1x8x32xbf16> to vector<8x32xbf16>
    %cst_193 = arith.constant dense<0.000000e+00> : vector<8x32xf32>
    %485 = tpu.matmul %482, %484, %cst_193 {dimension_numbers = #tpu.dot_dimension_numbers<[1], [0], [0], [1], [0, 0, 1, 1], [], []>} : vector<8x8xbf16>, vector<8x32xbf16>, vector<8x32xf32> -> vector<8x32xf32>
    %486 = arith.addf %462, %485 : vector<8x32xf32>
    %487 = vector.extract_strided_slice %413 {offsets = [0, 24], sizes = [8, 8], strides = [1, 1]} : vector<8x32xbf16> to vector<8x8xbf16>
    %488 = vector.extract_strided_slice %414 {offsets = [0, 24], sizes = [8, 8], strides = [1, 1]} : vector<8x32xbf16> to vector<8x8xbf16>
    %489 = vector.extract_strided_slice %415 {offsets = [0, 24], sizes = [8, 8], strides = [1, 1]} : vector<8x32xbf16> to vector<8x8xbf16>
    %cst_194 = arith.constant dense<0.000000e+00> : vector<8x8xf32>
    %490 = tpu.matmul %487, %488, %cst_194 {dimension_numbers = #tpu.dot_dimension_numbers<[1], [1], [0], [0], [0, 0, 1, 0], [], []>} : vector<8x8xbf16>, vector<8x8xbf16>, vector<8x8xf32> -> vector<8x8xf32>
    %cst_195 = arith.constant 0.353553385 : f32
    %491 = vector.broadcast %cst_195 : f32 to vector<8x8xf32>
    %492 = arith.mulf %490, %491 : vector<8x8xf32>
    %493 = arith.addf %492, %5 : vector<8x8xf32>
    %cst_196 = arith.constant dense<0xFF800000> : vector<8xf32>
    %494 = vector.multi_reduction <maximumf>, %493, %cst_196 [1] : vector<8x8xf32> to vector<8xf32>
    %495 = vector.shape_cast %494 : vector<8xf32> to vector<8x1xf32>
    %496 = vector.broadcast %495 : vector<8x1xf32> to vector<8x8xf32>
    %497 = arith.subf %493, %496 : vector<8x8xf32>
    %498 = math.exp %497 : vector<8x8xf32>
    %cst_197 = arith.constant dense<0.000000e+00> : vector<8xf32>
    %499 = vector.multi_reduction <add>, %498, %cst_197 [1] : vector<8x8xf32> to vector<8xf32>
    %500 = vector.shape_cast %499 : vector<8xf32> to vector<8x1xf32>
    %501 = tpu.reciprocal %500 {approx = true} : vector<8x1xf32> -> vector<8x1xf32>
    %502 = vector.broadcast %501 : vector<8x1xf32> to vector<8x8xf32>
    %503 = arith.mulf %498, %502 : vector<8x8xf32>
    %504 = arith.truncf %503 : vector<8x8xf32> to vector<8x8xbf16>
    %cst_198 = arith.constant dense<0.000000e+00> : vector<8x8xf32>
    %505 = tpu.matmul %504, %489, %cst_198 {dimension_numbers = #tpu.dot_dimension_numbers<[1], [0], [0], [1], [0, 0, 1, 1], [], []>} : vector<8x8xbf16>, vector<8x8xbf16>, vector<8x8xf32> -> vector<8x8xf32>
    %506 = arith.truncf %505 : vector<8x8xf32> to vector<8x8xbf16>
    %507 = vector.extract_strided_slice %410 {offsets = [3, 0, 0], sizes = [1, 8, 32], strides = [1, 1, 1]} : vector<4x8x32xbf16> to vector<1x8x32xbf16>
    %508 = vector.shape_cast %507 : vector<1x8x32xbf16> to vector<8x32xbf16>
    %cst_199 = arith.constant dense<0.000000e+00> : vector<8x32xf32>
    %509 = tpu.matmul %506, %508, %cst_199 {dimension_numbers = #tpu.dot_dimension_numbers<[1], [0], [0], [1], [0, 0, 1, 1], [], []>} : vector<8x8xbf16>, vector<8x32xbf16>, vector<8x32xf32> -> vector<8x32xf32>
    %510 = arith.addf %486, %509 : vector<8x32xf32>
    %511 = vector.broadcast %412 : vector<1x32xf32> to vector<8x32xf32>
    %512 = arith.addf %510, %511 : vector<8x32xf32>
    %513 = arith.addf %512, %9 : vector<8x32xf32>
    %c0_200 = arith.constant 0 : index
    %c0_201 = arith.constant 0 : index
    %c0_202 = arith.constant 0 : index
    %514 = vector.load %arg28[%c0_200, %c0_201, %c0_202] : memref<2x1x32xf32, #tpu.memory_space<vmem>>, vector<1x1x32xf32>
    %515 = vector.shape_cast %514 : vector<1x1x32xf32> to vector<1x32xf32>
    %c0_203 = arith.constant 0 : index
    %c0_204 = arith.constant 0 : index
    %c0_205 = arith.constant 0 : index
    %516 = vector.load %arg29[%c0_203, %c0_204, %c0_205] : memref<2x1x32xf32, #tpu.memory_space<vmem>>, vector<1x1x32xf32>
    %517 = vector.shape_cast %516 : vector<1x1x32xf32> to vector<1x32xf32>
    %cst_206 = arith.constant dense<0.000000e+00> : vector<8xf32>
    %518 = vector.multi_reduction <add>, %513, %cst_206 [1] : vector<8x32xf32> to vector<8xf32>
    %519 = vector.shape_cast %518 : vector<8xf32> to vector<8x1xf32>
    %cst_207 = arith.constant 3.200000e+01 : f32
    %520 = vector.broadcast %cst_207 : f32 to vector<8x1xf32>
    %521 = arith.divf %519, %520 : vector<8x1xf32>
    %522 = vector.broadcast %521 : vector<8x1xf32> to vector<8x32xf32>
    %523 = arith.subf %513, %522 : vector<8x32xf32>
    %524 = arith.mulf %523, %523 : vector<8x32xf32>
    %cst_208 = arith.constant dense<0.000000e+00> : vector<8xf32>
    %525 = vector.multi_reduction <add>, %524, %cst_208 [1] : vector<8x32xf32> to vector<8xf32>
    %526 = vector.shape_cast %525 : vector<8xf32> to vector<8x1xf32>
    %cst_209 = arith.constant 3.200000e+01 : f32
    %527 = vector.broadcast %cst_209 : f32 to vector<8x1xf32>
    %528 = arith.divf %526, %527 : vector<8x1xf32>
    %cst_210 = arith.constant 9.99999974E-6 : f32
    %529 = vector.broadcast %cst_210 : f32 to vector<8x1xf32>
    %530 = arith.addf %528, %529 : vector<8x1xf32>
    %531 = math.rsqrt %530 : vector<8x1xf32>
    %532 = vector.broadcast %531 : vector<8x1xf32> to vector<8x32xf32>
    %533 = arith.mulf %523, %532 : vector<8x32xf32>
    %534 = vector.broadcast %515 : vector<1x32xf32> to vector<8x32xf32>
    %535 = arith.mulf %533, %534 : vector<8x32xf32>
    %536 = vector.broadcast %517 : vector<1x32xf32> to vector<8x32xf32>
    %537 = arith.addf %535, %536 : vector<8x32xf32>
    %c0_211 = arith.constant 0 : index
    %c0_212 = arith.constant 0 : index
    %c0_213 = arith.constant 0 : index
    %538 = vector.load %arg20[%c0_211, %c0_212, %c0_213] : memref<2x32x96xbf16, #tpu.memory_space<vmem>>, vector<1x32x96xbf16>
    %539 = vector.shape_cast %538 : vector<1x32x96xbf16> to vector<32x96xbf16>
    %c0_214 = arith.constant 0 : index
    %c0_215 = arith.constant 0 : index
    %c0_216 = arith.constant 0 : index
    %540 = vector.load %arg21[%c0_214, %c0_215, %c0_216] : memref<2x1x96xf32, #tpu.memory_space<vmem>>, vector<1x1x96xf32>
    %541 = vector.shape_cast %540 : vector<1x1x96xf32> to vector<1x96xf32>
    %542 = vector.extract_strided_slice %539 {offsets = [0, 0], sizes = [32, 32], strides = [1, 1]} : vector<32x96xbf16> to vector<32x32xbf16>
    %543 = arith.truncf %537 : vector<8x32xf32> to vector<8x32xbf16>
    %cst_217 = arith.constant dense<0.000000e+00> : vector<8x32xf32>
    %544 = tpu.matmul %543, %542, %cst_217 {dimension_numbers = #tpu.dot_dimension_numbers<[1], [0], [0], [1], [0, 0, 1, 1], [], []>} : vector<8x32xbf16>, vector<32x32xbf16>, vector<8x32xf32> -> vector<8x32xf32>
    %545 = vector.extract_strided_slice %541 {offsets = [0, 0], sizes = [1, 32], strides = [1, 1]} : vector<1x96xf32> to vector<1x32xf32>
    %546 = vector.broadcast %545 : vector<1x32xf32> to vector<8x32xf32>
    %547 = arith.addf %544, %546 : vector<8x32xf32>
    %548 = vector.extract_strided_slice %539 {offsets = [0, 32], sizes = [32, 64], strides = [1, 1]} : vector<32x96xbf16> to vector<32x64xbf16>
    %549 = arith.truncf %397 : vector<8x32xf32> to vector<8x32xbf16>
    %cst_218 = arith.constant dense<0.000000e+00> : vector<8x64xf32>
    %550 = tpu.matmul %549, %548, %cst_218 {dimension_numbers = #tpu.dot_dimension_numbers<[1], [0], [0], [1], [0, 0, 1, 1], [], []>} : vector<8x32xbf16>, vector<32x64xbf16>, vector<8x64xf32> -> vector<8x64xf32>
    %551 = vector.extract_strided_slice %541 {offsets = [0, 32], sizes = [1, 64], strides = [1, 1]} : vector<1x96xf32> to vector<1x64xf32>
    %552 = vector.broadcast %551 : vector<1x64xf32> to vector<8x64xf32>
    %553 = arith.addf %550, %552 : vector<8x64xf32>
    %554 = vector.extract_strided_slice %553 {offsets = [0, 0], sizes = [8, 32], strides = [1, 1]} : vector<8x64xf32> to vector<8x32xf32>
    %555 = vector.extract_strided_slice %553 {offsets = [0, 32], sizes = [8, 32], strides = [1, 1]} : vector<8x64xf32> to vector<8x32xf32>
    %c0_219 = arith.constant 0 : index
    %c0_220 = arith.constant 0 : index
    %c0_221 = arith.constant 0 : index
    %c0_222 = arith.constant 0 : index
    %556 = vector.load %arg22[%c0_219, %c0_220, %c0_221, %c0_222] : memref<2x4x8x32xbf16, #tpu.memory_space<vmem>>, vector<1x4x8x32xbf16>
    %557 = vector.shape_cast %556 : vector<1x4x8x32xbf16> to vector<4x8x32xbf16>
    %c0_223 = arith.constant 0 : index
    %c0_224 = arith.constant 0 : index
    %c0_225 = arith.constant 0 : index
    %558 = vector.load %arg23[%c0_223, %c0_224, %c0_225] : memref<2x1x32xf32, #tpu.memory_space<vmem>>, vector<1x1x32xf32>
    %559 = vector.shape_cast %558 : vector<1x1x32xf32> to vector<1x32xf32>
    %560 = arith.truncf %547 : vector<8x32xf32> to vector<8x32xbf16>
    %561 = arith.truncf %554 : vector<8x32xf32> to vector<8x32xbf16>
    %562 = arith.truncf %555 : vector<8x32xf32> to vector<8x32xbf16>
    %563 = vector.extract_strided_slice %560 {offsets = [0, 0], sizes = [8, 8], strides = [1, 1]} : vector<8x32xbf16> to vector<8x8xbf16>
    %564 = vector.extract_strided_slice %561 {offsets = [0, 0], sizes = [8, 8], strides = [1, 1]} : vector<8x32xbf16> to vector<8x8xbf16>
    %565 = vector.extract_strided_slice %562 {offsets = [0, 0], sizes = [8, 8], strides = [1, 1]} : vector<8x32xbf16> to vector<8x8xbf16>
    %cst_226 = arith.constant dense<0.000000e+00> : vector<8x8xf32>
    %566 = tpu.matmul %563, %564, %cst_226 {dimension_numbers = #tpu.dot_dimension_numbers<[1], [1], [0], [0], [0, 0, 1, 0], [], []>} : vector<8x8xbf16>, vector<8x8xbf16>, vector<8x8xf32> -> vector<8x8xf32>
    %cst_227 = arith.constant 0.353553385 : f32
    %567 = vector.broadcast %cst_227 : f32 to vector<8x8xf32>
    %568 = arith.mulf %566, %567 : vector<8x8xf32>
    %cst_228 = arith.constant dense<0xFF800000> : vector<8xf32>
    %569 = vector.multi_reduction <maximumf>, %568, %cst_228 [1] : vector<8x8xf32> to vector<8xf32>
    %570 = vector.shape_cast %569 : vector<8xf32> to vector<8x1xf32>
    %571 = vector.broadcast %570 : vector<8x1xf32> to vector<8x8xf32>
    %572 = arith.subf %568, %571 : vector<8x8xf32>
    %573 = math.exp %572 : vector<8x8xf32>
    %cst_229 = arith.constant dense<0.000000e+00> : vector<8xf32>
    %574 = vector.multi_reduction <add>, %573, %cst_229 [1] : vector<8x8xf32> to vector<8xf32>
    %575 = vector.shape_cast %574 : vector<8xf32> to vector<8x1xf32>
    %576 = tpu.reciprocal %575 {approx = true} : vector<8x1xf32> -> vector<8x1xf32>
    %577 = vector.broadcast %576 : vector<8x1xf32> to vector<8x8xf32>
    %578 = arith.mulf %573, %577 : vector<8x8xf32>
    %579 = arith.truncf %578 : vector<8x8xf32> to vector<8x8xbf16>
    %cst_230 = arith.constant dense<0.000000e+00> : vector<8x8xf32>
    %580 = tpu.matmul %579, %565, %cst_230 {dimension_numbers = #tpu.dot_dimension_numbers<[1], [0], [0], [1], [0, 0, 1, 1], [], []>} : vector<8x8xbf16>, vector<8x8xbf16>, vector<8x8xf32> -> vector<8x8xf32>
    %581 = arith.truncf %580 : vector<8x8xf32> to vector<8x8xbf16>
    %582 = vector.extract_strided_slice %557 {offsets = [0, 0, 0], sizes = [1, 8, 32], strides = [1, 1, 1]} : vector<4x8x32xbf16> to vector<1x8x32xbf16>
    %583 = vector.shape_cast %582 : vector<1x8x32xbf16> to vector<8x32xbf16>
    %cst_231 = arith.constant dense<0.000000e+00> : vector<8x32xf32>
    %584 = tpu.matmul %581, %583, %cst_231 {dimension_numbers = #tpu.dot_dimension_numbers<[1], [0], [0], [1], [0, 0, 1, 1], [], []>} : vector<8x8xbf16>, vector<8x32xbf16>, vector<8x32xf32> -> vector<8x32xf32>
    %585 = vector.extract_strided_slice %560 {offsets = [0, 8], sizes = [8, 8], strides = [1, 1]} : vector<8x32xbf16> to vector<8x8xbf16>
    %586 = vector.extract_strided_slice %561 {offsets = [0, 8], sizes = [8, 8], strides = [1, 1]} : vector<8x32xbf16> to vector<8x8xbf16>
    %587 = vector.extract_strided_slice %562 {offsets = [0, 8], sizes = [8, 8], strides = [1, 1]} : vector<8x32xbf16> to vector<8x8xbf16>
    %cst_232 = arith.constant dense<0.000000e+00> : vector<8x8xf32>
    %588 = tpu.matmul %585, %586, %cst_232 {dimension_numbers = #tpu.dot_dimension_numbers<[1], [1], [0], [0], [0, 0, 1, 0], [], []>} : vector<8x8xbf16>, vector<8x8xbf16>, vector<8x8xf32> -> vector<8x8xf32>
    %cst_233 = arith.constant 0.353553385 : f32
    %589 = vector.broadcast %cst_233 : f32 to vector<8x8xf32>
    %590 = arith.mulf %588, %589 : vector<8x8xf32>
    %cst_234 = arith.constant dense<0xFF800000> : vector<8xf32>
    %591 = vector.multi_reduction <maximumf>, %590, %cst_234 [1] : vector<8x8xf32> to vector<8xf32>
    %592 = vector.shape_cast %591 : vector<8xf32> to vector<8x1xf32>
    %593 = vector.broadcast %592 : vector<8x1xf32> to vector<8x8xf32>
    %594 = arith.subf %590, %593 : vector<8x8xf32>
    %595 = math.exp %594 : vector<8x8xf32>
    %cst_235 = arith.constant dense<0.000000e+00> : vector<8xf32>
    %596 = vector.multi_reduction <add>, %595, %cst_235 [1] : vector<8x8xf32> to vector<8xf32>
    %597 = vector.shape_cast %596 : vector<8xf32> to vector<8x1xf32>
    %598 = tpu.reciprocal %597 {approx = true} : vector<8x1xf32> -> vector<8x1xf32>
    %599 = vector.broadcast %598 : vector<8x1xf32> to vector<8x8xf32>
    %600 = arith.mulf %595, %599 : vector<8x8xf32>
    %601 = arith.truncf %600 : vector<8x8xf32> to vector<8x8xbf16>
    %cst_236 = arith.constant dense<0.000000e+00> : vector<8x8xf32>
    %602 = tpu.matmul %601, %587, %cst_236 {dimension_numbers = #tpu.dot_dimension_numbers<[1], [0], [0], [1], [0, 0, 1, 1], [], []>} : vector<8x8xbf16>, vector<8x8xbf16>, vector<8x8xf32> -> vector<8x8xf32>
    %603 = arith.truncf %602 : vector<8x8xf32> to vector<8x8xbf16>
    %604 = vector.extract_strided_slice %557 {offsets = [1, 0, 0], sizes = [1, 8, 32], strides = [1, 1, 1]} : vector<4x8x32xbf16> to vector<1x8x32xbf16>
    %605 = vector.shape_cast %604 : vector<1x8x32xbf16> to vector<8x32xbf16>
    %cst_237 = arith.constant dense<0.000000e+00> : vector<8x32xf32>
    %606 = tpu.matmul %603, %605, %cst_237 {dimension_numbers = #tpu.dot_dimension_numbers<[1], [0], [0], [1], [0, 0, 1, 1], [], []>} : vector<8x8xbf16>, vector<8x32xbf16>, vector<8x32xf32> -> vector<8x32xf32>
    %607 = arith.addf %584, %606 : vector<8x32xf32>
    %608 = vector.extract_strided_slice %560 {offsets = [0, 16], sizes = [8, 8], strides = [1, 1]} : vector<8x32xbf16> to vector<8x8xbf16>
    %609 = vector.extract_strided_slice %561 {offsets = [0, 16], sizes = [8, 8], strides = [1, 1]} : vector<8x32xbf16> to vector<8x8xbf16>
    %610 = vector.extract_strided_slice %562 {offsets = [0, 16], sizes = [8, 8], strides = [1, 1]} : vector<8x32xbf16> to vector<8x8xbf16>
    %cst_238 = arith.constant dense<0.000000e+00> : vector<8x8xf32>
    %611 = tpu.matmul %608, %609, %cst_238 {dimension_numbers = #tpu.dot_dimension_numbers<[1], [1], [0], [0], [0, 0, 1, 0], [], []>} : vector<8x8xbf16>, vector<8x8xbf16>, vector<8x8xf32> -> vector<8x8xf32>
    %cst_239 = arith.constant 0.353553385 : f32
    %612 = vector.broadcast %cst_239 : f32 to vector<8x8xf32>
    %613 = arith.mulf %611, %612 : vector<8x8xf32>
    %cst_240 = arith.constant dense<0xFF800000> : vector<8xf32>
    %614 = vector.multi_reduction <maximumf>, %613, %cst_240 [1] : vector<8x8xf32> to vector<8xf32>
    %615 = vector.shape_cast %614 : vector<8xf32> to vector<8x1xf32>
    %616 = vector.broadcast %615 : vector<8x1xf32> to vector<8x8xf32>
    %617 = arith.subf %613, %616 : vector<8x8xf32>
    %618 = math.exp %617 : vector<8x8xf32>
    %cst_241 = arith.constant dense<0.000000e+00> : vector<8xf32>
    %619 = vector.multi_reduction <add>, %618, %cst_241 [1] : vector<8x8xf32> to vector<8xf32>
    %620 = vector.shape_cast %619 : vector<8xf32> to vector<8x1xf32>
    %621 = tpu.reciprocal %620 {approx = true} : vector<8x1xf32> -> vector<8x1xf32>
    %622 = vector.broadcast %621 : vector<8x1xf32> to vector<8x8xf32>
    %623 = arith.mulf %618, %622 : vector<8x8xf32>
    %624 = arith.truncf %623 : vector<8x8xf32> to vector<8x8xbf16>
    %cst_242 = arith.constant dense<0.000000e+00> : vector<8x8xf32>
    %625 = tpu.matmul %624, %610, %cst_242 {dimension_numbers = #tpu.dot_dimension_numbers<[1], [0], [0], [1], [0, 0, 1, 1], [], []>} : vector<8x8xbf16>, vector<8x8xbf16>, vector<8x8xf32> -> vector<8x8xf32>
    %626 = arith.truncf %625 : vector<8x8xf32> to vector<8x8xbf16>
    %627 = vector.extract_strided_slice %557 {offsets = [2, 0, 0], sizes = [1, 8, 32], strides = [1, 1, 1]} : vector<4x8x32xbf16> to vector<1x8x32xbf16>
    %628 = vector.shape_cast %627 : vector<1x8x32xbf16> to vector<8x32xbf16>
    %cst_243 = arith.constant dense<0.000000e+00> : vector<8x32xf32>
    %629 = tpu.matmul %626, %628, %cst_243 {dimension_numbers = #tpu.dot_dimension_numbers<[1], [0], [0], [1], [0, 0, 1, 1], [], []>} : vector<8x8xbf16>, vector<8x32xbf16>, vector<8x32xf32> -> vector<8x32xf32>
    %630 = arith.addf %607, %629 : vector<8x32xf32>
    %631 = vector.extract_strided_slice %560 {offsets = [0, 24], sizes = [8, 8], strides = [1, 1]} : vector<8x32xbf16> to vector<8x8xbf16>
    %632 = vector.extract_strided_slice %561 {offsets = [0, 24], sizes = [8, 8], strides = [1, 1]} : vector<8x32xbf16> to vector<8x8xbf16>
    %633 = vector.extract_strided_slice %562 {offsets = [0, 24], sizes = [8, 8], strides = [1, 1]} : vector<8x32xbf16> to vector<8x8xbf16>
    %cst_244 = arith.constant dense<0.000000e+00> : vector<8x8xf32>
    %634 = tpu.matmul %631, %632, %cst_244 {dimension_numbers = #tpu.dot_dimension_numbers<[1], [1], [0], [0], [0, 0, 1, 0], [], []>} : vector<8x8xbf16>, vector<8x8xbf16>, vector<8x8xf32> -> vector<8x8xf32>
    %cst_245 = arith.constant 0.353553385 : f32
    %635 = vector.broadcast %cst_245 : f32 to vector<8x8xf32>
    %636 = arith.mulf %634, %635 : vector<8x8xf32>
    %cst_246 = arith.constant dense<0xFF800000> : vector<8xf32>
    %637 = vector.multi_reduction <maximumf>, %636, %cst_246 [1] : vector<8x8xf32> to vector<8xf32>
    %638 = vector.shape_cast %637 : vector<8xf32> to vector<8x1xf32>
    %639 = vector.broadcast %638 : vector<8x1xf32> to vector<8x8xf32>
    %640 = arith.subf %636, %639 : vector<8x8xf32>
    %641 = math.exp %640 : vector<8x8xf32>
    %cst_247 = arith.constant dense<0.000000e+00> : vector<8xf32>
    %642 = vector.multi_reduction <add>, %641, %cst_247 [1] : vector<8x8xf32> to vector<8xf32>
    %643 = vector.shape_cast %642 : vector<8xf32> to vector<8x1xf32>
    %644 = tpu.reciprocal %643 {approx = true} : vector<8x1xf32> -> vector<8x1xf32>
    %645 = vector.broadcast %644 : vector<8x1xf32> to vector<8x8xf32>
    %646 = arith.mulf %641, %645 : vector<8x8xf32>
    %647 = arith.truncf %646 : vector<8x8xf32> to vector<8x8xbf16>
    %cst_248 = arith.constant dense<0.000000e+00> : vector<8x8xf32>
    %648 = tpu.matmul %647, %633, %cst_248 {dimension_numbers = #tpu.dot_dimension_numbers<[1], [0], [0], [1], [0, 0, 1, 1], [], []>} : vector<8x8xbf16>, vector<8x8xbf16>, vector<8x8xf32> -> vector<8x8xf32>
    %649 = arith.truncf %648 : vector<8x8xf32> to vector<8x8xbf16>
    %650 = vector.extract_strided_slice %557 {offsets = [3, 0, 0], sizes = [1, 8, 32], strides = [1, 1, 1]} : vector<4x8x32xbf16> to vector<1x8x32xbf16>
    %651 = vector.shape_cast %650 : vector<1x8x32xbf16> to vector<8x32xbf16>
    %cst_249 = arith.constant dense<0.000000e+00> : vector<8x32xf32>
    %652 = tpu.matmul %649, %651, %cst_249 {dimension_numbers = #tpu.dot_dimension_numbers<[1], [0], [0], [1], [0, 0, 1, 1], [], []>} : vector<8x8xbf16>, vector<8x32xbf16>, vector<8x32xf32> -> vector<8x32xf32>
    %653 = arith.addf %630, %652 : vector<8x32xf32>
    %654 = vector.broadcast %559 : vector<1x32xf32> to vector<8x32xf32>
    %655 = arith.addf %653, %654 : vector<8x32xf32>
    %656 = arith.addf %655, %537 : vector<8x32xf32>
    %c0_250 = arith.constant 0 : index
    %c0_251 = arith.constant 0 : index
    %c0_252 = arith.constant 0 : index
    %657 = vector.load %arg30[%c0_250, %c0_251, %c0_252] : memref<2x1x32xf32, #tpu.memory_space<vmem>>, vector<1x1x32xf32>
    %658 = vector.shape_cast %657 : vector<1x1x32xf32> to vector<1x32xf32>
    %c0_253 = arith.constant 0 : index
    %c0_254 = arith.constant 0 : index
    %c0_255 = arith.constant 0 : index
    %659 = vector.load %arg31[%c0_253, %c0_254, %c0_255] : memref<2x1x32xf32, #tpu.memory_space<vmem>>, vector<1x1x32xf32>
    %660 = vector.shape_cast %659 : vector<1x1x32xf32> to vector<1x32xf32>
    %cst_256 = arith.constant dense<0.000000e+00> : vector<8xf32>
    %661 = vector.multi_reduction <add>, %656, %cst_256 [1] : vector<8x32xf32> to vector<8xf32>
    %662 = vector.shape_cast %661 : vector<8xf32> to vector<8x1xf32>
    %cst_257 = arith.constant 3.200000e+01 : f32
    %663 = vector.broadcast %cst_257 : f32 to vector<8x1xf32>
    %664 = arith.divf %662, %663 : vector<8x1xf32>
    %665 = vector.broadcast %664 : vector<8x1xf32> to vector<8x32xf32>
    %666 = arith.subf %656, %665 : vector<8x32xf32>
    %667 = arith.mulf %666, %666 : vector<8x32xf32>
    %cst_258 = arith.constant dense<0.000000e+00> : vector<8xf32>
    %668 = vector.multi_reduction <add>, %667, %cst_258 [1] : vector<8x32xf32> to vector<8xf32>
    %669 = vector.shape_cast %668 : vector<8xf32> to vector<8x1xf32>
    %cst_259 = arith.constant 3.200000e+01 : f32
    %670 = vector.broadcast %cst_259 : f32 to vector<8x1xf32>
    %671 = arith.divf %669, %670 : vector<8x1xf32>
    %cst_260 = arith.constant 9.99999974E-6 : f32
    %672 = vector.broadcast %cst_260 : f32 to vector<8x1xf32>
    %673 = arith.addf %671, %672 : vector<8x1xf32>
    %674 = math.rsqrt %673 : vector<8x1xf32>
    %675 = vector.broadcast %674 : vector<8x1xf32> to vector<8x32xf32>
    %676 = arith.mulf %666, %675 : vector<8x32xf32>
    %677 = vector.broadcast %658 : vector<1x32xf32> to vector<8x32xf32>
    %678 = arith.mulf %676, %677 : vector<8x32xf32>
    %679 = vector.broadcast %660 : vector<1x32xf32> to vector<8x32xf32>
    %680 = arith.addf %678, %679 : vector<8x32xf32>
    %c0_261 = arith.constant 0 : index
    %c0_262 = arith.constant 0 : index
    %c0_263 = arith.constant 0 : index
    %681 = vector.load %arg24[%c0_261, %c0_262, %c0_263] : memref<2x32x64xbf16, #tpu.memory_space<vmem>>, vector<1x32x64xbf16>
    %682 = vector.shape_cast %681 : vector<1x32x64xbf16> to vector<32x64xbf16>
    %683 = arith.truncf %680 : vector<8x32xf32> to vector<8x32xbf16>
    %cst_264 = arith.constant dense<0.000000e+00> : vector<8x64xf32>
    %684 = tpu.matmul %683, %682, %cst_264 {dimension_numbers = #tpu.dot_dimension_numbers<[1], [0], [0], [1], [0, 0, 1, 1], [], []>} : vector<8x32xbf16>, vector<32x64xbf16>, vector<8x64xf32> -> vector<8x64xf32>
    %c0_265 = arith.constant 0 : index
    %c0_266 = arith.constant 0 : index
    %c0_267 = arith.constant 0 : index
    %685 = vector.load %arg25[%c0_265, %c0_266, %c0_267] : memref<2x1x64xf32, #tpu.memory_space<vmem>>, vector<1x1x64xf32>
    %686 = vector.shape_cast %685 : vector<1x1x64xf32> to vector<1x64xf32>
    %687 = vector.broadcast %686 : vector<1x64xf32> to vector<8x64xf32>
    %688 = arith.addf %684, %687 : vector<8x64xf32>
    %cst_268 = arith.constant 0.000000e+00 : f32
    %689 = vector.broadcast %cst_268 : f32 to vector<8x64xf32>
    %690 = arith.maximumf %688, %689 : vector<8x64xf32>
    %c0_269 = arith.constant 0 : index
    %c0_270 = arith.constant 0 : index
    %c0_271 = arith.constant 0 : index
    %691 = vector.load %arg26[%c0_269, %c0_270, %c0_271] : memref<2x64x32xbf16, #tpu.memory_space<vmem>>, vector<1x64x32xbf16>
    %692 = vector.shape_cast %691 : vector<1x64x32xbf16> to vector<64x32xbf16>
    %693 = arith.truncf %690 : vector<8x64xf32> to vector<8x64xbf16>
    %cst_272 = arith.constant dense<0.000000e+00> : vector<8x32xf32>
    %694 = tpu.matmul %693, %692, %cst_272 {dimension_numbers = #tpu.dot_dimension_numbers<[1], [0], [0], [1], [0, 0, 1, 1], [], []>} : vector<8x64xbf16>, vector<64x32xbf16>, vector<8x32xf32> -> vector<8x32xf32>
    %c0_273 = arith.constant 0 : index
    %c0_274 = arith.constant 0 : index
    %c0_275 = arith.constant 0 : index
    %695 = vector.load %arg27[%c0_273, %c0_274, %c0_275] : memref<2x1x32xf32, #tpu.memory_space<vmem>>, vector<1x1x32xf32>
    %696 = vector.shape_cast %695 : vector<1x1x32xf32> to vector<1x32xf32>
    %697 = vector.broadcast %696 : vector<1x32xf32> to vector<8x32xf32>
    %698 = arith.addf %694, %697 : vector<8x32xf32>
    %699 = arith.addf %698, %680 : vector<8x32xf32>
    %c0_276 = arith.constant 0 : index
    %c0_277 = arith.constant 0 : index
    %c0_278 = arith.constant 0 : index
    %700 = vector.load %arg32[%c0_276, %c0_277, %c0_278] : memref<2x1x32xf32, #tpu.memory_space<vmem>>, vector<1x1x32xf32>
    %701 = vector.shape_cast %700 : vector<1x1x32xf32> to vector<1x32xf32>
    %c0_279 = arith.constant 0 : index
    %c0_280 = arith.constant 0 : index
    %c0_281 = arith.constant 0 : index
    %702 = vector.load %arg33[%c0_279, %c0_280, %c0_281] : memref<2x1x32xf32, #tpu.memory_space<vmem>>, vector<1x1x32xf32>
    %703 = vector.shape_cast %702 : vector<1x1x32xf32> to vector<1x32xf32>
    %cst_282 = arith.constant dense<0.000000e+00> : vector<8xf32>
    %704 = vector.multi_reduction <add>, %699, %cst_282 [1] : vector<8x32xf32> to vector<8xf32>
    %705 = vector.shape_cast %704 : vector<8xf32> to vector<8x1xf32>
    %cst_283 = arith.constant 3.200000e+01 : f32
    %706 = vector.broadcast %cst_283 : f32 to vector<8x1xf32>
    %707 = arith.divf %705, %706 : vector<8x1xf32>
    %708 = vector.broadcast %707 : vector<8x1xf32> to vector<8x32xf32>
    %709 = arith.subf %699, %708 : vector<8x32xf32>
    %710 = arith.mulf %709, %709 : vector<8x32xf32>
    %cst_284 = arith.constant dense<0.000000e+00> : vector<8xf32>
    %711 = vector.multi_reduction <add>, %710, %cst_284 [1] : vector<8x32xf32> to vector<8xf32>
    %712 = vector.shape_cast %711 : vector<8xf32> to vector<8x1xf32>
    %cst_285 = arith.constant 3.200000e+01 : f32
    %713 = vector.broadcast %cst_285 : f32 to vector<8x1xf32>
    %714 = arith.divf %712, %713 : vector<8x1xf32>
    %cst_286 = arith.constant 9.99999974E-6 : f32
    %715 = vector.broadcast %cst_286 : f32 to vector<8x1xf32>
    %716 = arith.addf %714, %715 : vector<8x1xf32>
    %717 = math.rsqrt %716 : vector<8x1xf32>
    %718 = vector.broadcast %717 : vector<8x1xf32> to vector<8x32xf32>
    %719 = arith.mulf %709, %718 : vector<8x32xf32>
    %720 = vector.broadcast %701 : vector<1x32xf32> to vector<8x32xf32>
    %721 = arith.mulf %719, %720 : vector<8x32xf32>
    %722 = vector.broadcast %703 : vector<1x32xf32> to vector<8x32xf32>
    %723 = arith.addf %721, %722 : vector<8x32xf32>
    %c1_287 = arith.constant 1 : index
    %c0_288 = arith.constant 0 : index
    %c0_289 = arith.constant 0 : index
    %724 = vector.load %arg16[%c1_287, %c0_288, %c0_289] : memref<2x32x96xbf16, #tpu.memory_space<vmem>>, vector<1x32x96xbf16>
    %725 = vector.shape_cast %724 : vector<1x32x96xbf16> to vector<32x96xbf16>
    %726 = arith.truncf %723 : vector<8x32xf32> to vector<8x32xbf16>
    %cst_290 = arith.constant dense<0.000000e+00> : vector<8x96xf32>
    %727 = tpu.matmul %726, %725, %cst_290 {dimension_numbers = #tpu.dot_dimension_numbers<[1], [0], [0], [1], [0, 0, 1, 1], [], []>} : vector<8x32xbf16>, vector<32x96xbf16>, vector<8x96xf32> -> vector<8x96xf32>
    %c1_291 = arith.constant 1 : index
    %c0_292 = arith.constant 0 : index
    %c0_293 = arith.constant 0 : index
    %728 = vector.load %arg17[%c1_291, %c0_292, %c0_293] : memref<2x1x96xf32, #tpu.memory_space<vmem>>, vector<1x1x96xf32>
    %729 = vector.shape_cast %728 : vector<1x1x96xf32> to vector<1x96xf32>
    %730 = vector.broadcast %729 : vector<1x96xf32> to vector<8x96xf32>
    %731 = arith.addf %727, %730 : vector<8x96xf32>
    %732 = vector.extract_strided_slice %731 {offsets = [0, 0], sizes = [8, 32], strides = [1, 1]} : vector<8x96xf32> to vector<8x32xf32>
    %733 = vector.extract_strided_slice %731 {offsets = [0, 32], sizes = [8, 32], strides = [1, 1]} : vector<8x96xf32> to vector<8x32xf32>
    %734 = vector.extract_strided_slice %731 {offsets = [0, 64], sizes = [8, 32], strides = [1, 1]} : vector<8x96xf32> to vector<8x32xf32>
    %c1_294 = arith.constant 1 : index
    %c0_295 = arith.constant 0 : index
    %c0_296 = arith.constant 0 : index
    %c0_297 = arith.constant 0 : index
    %735 = vector.load %arg18[%c1_294, %c0_295, %c0_296, %c0_297] : memref<2x4x8x32xbf16, #tpu.memory_space<vmem>>, vector<1x4x8x32xbf16>
    %736 = vector.shape_cast %735 : vector<1x4x8x32xbf16> to vector<4x8x32xbf16>
    %c1_298 = arith.constant 1 : index
    %c0_299 = arith.constant 0 : index
    %c0_300 = arith.constant 0 : index
    %737 = vector.load %arg19[%c1_298, %c0_299, %c0_300] : memref<2x1x32xf32, #tpu.memory_space<vmem>>, vector<1x1x32xf32>
    %738 = vector.shape_cast %737 : vector<1x1x32xf32> to vector<1x32xf32>
    %739 = arith.truncf %732 : vector<8x32xf32> to vector<8x32xbf16>
    %740 = arith.truncf %733 : vector<8x32xf32> to vector<8x32xbf16>
    %741 = arith.truncf %734 : vector<8x32xf32> to vector<8x32xbf16>
    %742 = vector.extract_strided_slice %739 {offsets = [0, 0], sizes = [8, 8], strides = [1, 1]} : vector<8x32xbf16> to vector<8x8xbf16>
    %743 = vector.extract_strided_slice %740 {offsets = [0, 0], sizes = [8, 8], strides = [1, 1]} : vector<8x32xbf16> to vector<8x8xbf16>
    %744 = vector.extract_strided_slice %741 {offsets = [0, 0], sizes = [8, 8], strides = [1, 1]} : vector<8x32xbf16> to vector<8x8xbf16>
    %cst_301 = arith.constant dense<0.000000e+00> : vector<8x8xf32>
    %745 = tpu.matmul %742, %743, %cst_301 {dimension_numbers = #tpu.dot_dimension_numbers<[1], [1], [0], [0], [0, 0, 1, 0], [], []>} : vector<8x8xbf16>, vector<8x8xbf16>, vector<8x8xf32> -> vector<8x8xf32>
    %cst_302 = arith.constant 0.353553385 : f32
    %746 = vector.broadcast %cst_302 : f32 to vector<8x8xf32>
    %747 = arith.mulf %745, %746 : vector<8x8xf32>
    %748 = arith.addf %747, %5 : vector<8x8xf32>
    %cst_303 = arith.constant dense<0xFF800000> : vector<8xf32>
    %749 = vector.multi_reduction <maximumf>, %748, %cst_303 [1] : vector<8x8xf32> to vector<8xf32>
    %750 = vector.shape_cast %749 : vector<8xf32> to vector<8x1xf32>
    %751 = vector.broadcast %750 : vector<8x1xf32> to vector<8x8xf32>
    %752 = arith.subf %748, %751 : vector<8x8xf32>
    %753 = math.exp %752 : vector<8x8xf32>
    %cst_304 = arith.constant dense<0.000000e+00> : vector<8xf32>
    %754 = vector.multi_reduction <add>, %753, %cst_304 [1] : vector<8x8xf32> to vector<8xf32>
    %755 = vector.shape_cast %754 : vector<8xf32> to vector<8x1xf32>
    %756 = tpu.reciprocal %755 {approx = true} : vector<8x1xf32> -> vector<8x1xf32>
    %757 = vector.broadcast %756 : vector<8x1xf32> to vector<8x8xf32>
    %758 = arith.mulf %753, %757 : vector<8x8xf32>
    %759 = arith.truncf %758 : vector<8x8xf32> to vector<8x8xbf16>
    %cst_305 = arith.constant dense<0.000000e+00> : vector<8x8xf32>
    %760 = tpu.matmul %759, %744, %cst_305 {dimension_numbers = #tpu.dot_dimension_numbers<[1], [0], [0], [1], [0, 0, 1, 1], [], []>} : vector<8x8xbf16>, vector<8x8xbf16>, vector<8x8xf32> -> vector<8x8xf32>
    %761 = arith.truncf %760 : vector<8x8xf32> to vector<8x8xbf16>
    %762 = vector.extract_strided_slice %736 {offsets = [0, 0, 0], sizes = [1, 8, 32], strides = [1, 1, 1]} : vector<4x8x32xbf16> to vector<1x8x32xbf16>
    %763 = vector.shape_cast %762 : vector<1x8x32xbf16> to vector<8x32xbf16>
    %cst_306 = arith.constant dense<0.000000e+00> : vector<8x32xf32>
    %764 = tpu.matmul %761, %763, %cst_306 {dimension_numbers = #tpu.dot_dimension_numbers<[1], [0], [0], [1], [0, 0, 1, 1], [], []>} : vector<8x8xbf16>, vector<8x32xbf16>, vector<8x32xf32> -> vector<8x32xf32>
    %765 = vector.extract_strided_slice %739 {offsets = [0, 8], sizes = [8, 8], strides = [1, 1]} : vector<8x32xbf16> to vector<8x8xbf16>
    %766 = vector.extract_strided_slice %740 {offsets = [0, 8], sizes = [8, 8], strides = [1, 1]} : vector<8x32xbf16> to vector<8x8xbf16>
    %767 = vector.extract_strided_slice %741 {offsets = [0, 8], sizes = [8, 8], strides = [1, 1]} : vector<8x32xbf16> to vector<8x8xbf16>
    %cst_307 = arith.constant dense<0.000000e+00> : vector<8x8xf32>
    %768 = tpu.matmul %765, %766, %cst_307 {dimension_numbers = #tpu.dot_dimension_numbers<[1], [1], [0], [0], [0, 0, 1, 0], [], []>} : vector<8x8xbf16>, vector<8x8xbf16>, vector<8x8xf32> -> vector<8x8xf32>
    %cst_308 = arith.constant 0.353553385 : f32
    %769 = vector.broadcast %cst_308 : f32 to vector<8x8xf32>
    %770 = arith.mulf %768, %769 : vector<8x8xf32>
    %771 = arith.addf %770, %5 : vector<8x8xf32>
    %cst_309 = arith.constant dense<0xFF800000> : vector<8xf32>
    %772 = vector.multi_reduction <maximumf>, %771, %cst_309 [1] : vector<8x8xf32> to vector<8xf32>
    %773 = vector.shape_cast %772 : vector<8xf32> to vector<8x1xf32>
    %774 = vector.broadcast %773 : vector<8x1xf32> to vector<8x8xf32>
    %775 = arith.subf %771, %774 : vector<8x8xf32>
    %776 = math.exp %775 : vector<8x8xf32>
    %cst_310 = arith.constant dense<0.000000e+00> : vector<8xf32>
    %777 = vector.multi_reduction <add>, %776, %cst_310 [1] : vector<8x8xf32> to vector<8xf32>
    %778 = vector.shape_cast %777 : vector<8xf32> to vector<8x1xf32>
    %779 = tpu.reciprocal %778 {approx = true} : vector<8x1xf32> -> vector<8x1xf32>
    %780 = vector.broadcast %779 : vector<8x1xf32> to vector<8x8xf32>
    %781 = arith.mulf %776, %780 : vector<8x8xf32>
    %782 = arith.truncf %781 : vector<8x8xf32> to vector<8x8xbf16>
    %cst_311 = arith.constant dense<0.000000e+00> : vector<8x8xf32>
    %783 = tpu.matmul %782, %767, %cst_311 {dimension_numbers = #tpu.dot_dimension_numbers<[1], [0], [0], [1], [0, 0, 1, 1], [], []>} : vector<8x8xbf16>, vector<8x8xbf16>, vector<8x8xf32> -> vector<8x8xf32>
    %784 = arith.truncf %783 : vector<8x8xf32> to vector<8x8xbf16>
    %785 = vector.extract_strided_slice %736 {offsets = [1, 0, 0], sizes = [1, 8, 32], strides = [1, 1, 1]} : vector<4x8x32xbf16> to vector<1x8x32xbf16>
    %786 = vector.shape_cast %785 : vector<1x8x32xbf16> to vector<8x32xbf16>
    %cst_312 = arith.constant dense<0.000000e+00> : vector<8x32xf32>
    %787 = tpu.matmul %784, %786, %cst_312 {dimension_numbers = #tpu.dot_dimension_numbers<[1], [0], [0], [1], [0, 0, 1, 1], [], []>} : vector<8x8xbf16>, vector<8x32xbf16>, vector<8x32xf32> -> vector<8x32xf32>
    %788 = arith.addf %764, %787 : vector<8x32xf32>
    %789 = vector.extract_strided_slice %739 {offsets = [0, 16], sizes = [8, 8], strides = [1, 1]} : vector<8x32xbf16> to vector<8x8xbf16>
    %790 = vector.extract_strided_slice %740 {offsets = [0, 16], sizes = [8, 8], strides = [1, 1]} : vector<8x32xbf16> to vector<8x8xbf16>
    %791 = vector.extract_strided_slice %741 {offsets = [0, 16], sizes = [8, 8], strides = [1, 1]} : vector<8x32xbf16> to vector<8x8xbf16>
    %cst_313 = arith.constant dense<0.000000e+00> : vector<8x8xf32>
    %792 = tpu.matmul %789, %790, %cst_313 {dimension_numbers = #tpu.dot_dimension_numbers<[1], [1], [0], [0], [0, 0, 1, 0], [], []>} : vector<8x8xbf16>, vector<8x8xbf16>, vector<8x8xf32> -> vector<8x8xf32>
    %cst_314 = arith.constant 0.353553385 : f32
    %793 = vector.broadcast %cst_314 : f32 to vector<8x8xf32>
    %794 = arith.mulf %792, %793 : vector<8x8xf32>
    %795 = arith.addf %794, %5 : vector<8x8xf32>
    %cst_315 = arith.constant dense<0xFF800000> : vector<8xf32>
    %796 = vector.multi_reduction <maximumf>, %795, %cst_315 [1] : vector<8x8xf32> to vector<8xf32>
    %797 = vector.shape_cast %796 : vector<8xf32> to vector<8x1xf32>
    %798 = vector.broadcast %797 : vector<8x1xf32> to vector<8x8xf32>
    %799 = arith.subf %795, %798 : vector<8x8xf32>
    %800 = math.exp %799 : vector<8x8xf32>
    %cst_316 = arith.constant dense<0.000000e+00> : vector<8xf32>
    %801 = vector.multi_reduction <add>, %800, %cst_316 [1] : vector<8x8xf32> to vector<8xf32>
    %802 = vector.shape_cast %801 : vector<8xf32> to vector<8x1xf32>
    %803 = tpu.reciprocal %802 {approx = true} : vector<8x1xf32> -> vector<8x1xf32>
    %804 = vector.broadcast %803 : vector<8x1xf32> to vector<8x8xf32>
    %805 = arith.mulf %800, %804 : vector<8x8xf32>
    %806 = arith.truncf %805 : vector<8x8xf32> to vector<8x8xbf16>
    %cst_317 = arith.constant dense<0.000000e+00> : vector<8x8xf32>
    %807 = tpu.matmul %806, %791, %cst_317 {dimension_numbers = #tpu.dot_dimension_numbers<[1], [0], [0], [1], [0, 0, 1, 1], [], []>} : vector<8x8xbf16>, vector<8x8xbf16>, vector<8x8xf32> -> vector<8x8xf32>
    %808 = arith.truncf %807 : vector<8x8xf32> to vector<8x8xbf16>
    %809 = vector.extract_strided_slice %736 {offsets = [2, 0, 0], sizes = [1, 8, 32], strides = [1, 1, 1]} : vector<4x8x32xbf16> to vector<1x8x32xbf16>
    %810 = vector.shape_cast %809 : vector<1x8x32xbf16> to vector<8x32xbf16>
    %cst_318 = arith.constant dense<0.000000e+00> : vector<8x32xf32>
    %811 = tpu.matmul %808, %810, %cst_318 {dimension_numbers = #tpu.dot_dimension_numbers<[1], [0], [0], [1], [0, 0, 1, 1], [], []>} : vector<8x8xbf16>, vector<8x32xbf16>, vector<8x32xf32> -> vector<8x32xf32>
    %812 = arith.addf %788, %811 : vector<8x32xf32>
    %813 = vector.extract_strided_slice %739 {offsets = [0, 24], sizes = [8, 8], strides = [1, 1]} : vector<8x32xbf16> to vector<8x8xbf16>
    %814 = vector.extract_strided_slice %740 {offsets = [0, 24], sizes = [8, 8], strides = [1, 1]} : vector<8x32xbf16> to vector<8x8xbf16>
    %815 = vector.extract_strided_slice %741 {offsets = [0, 24], sizes = [8, 8], strides = [1, 1]} : vector<8x32xbf16> to vector<8x8xbf16>
    %cst_319 = arith.constant dense<0.000000e+00> : vector<8x8xf32>
    %816 = tpu.matmul %813, %814, %cst_319 {dimension_numbers = #tpu.dot_dimension_numbers<[1], [1], [0], [0], [0, 0, 1, 0], [], []>} : vector<8x8xbf16>, vector<8x8xbf16>, vector<8x8xf32> -> vector<8x8xf32>
    %cst_320 = arith.constant 0.353553385 : f32
    %817 = vector.broadcast %cst_320 : f32 to vector<8x8xf32>
    %818 = arith.mulf %816, %817 : vector<8x8xf32>
    %819 = arith.addf %818, %5 : vector<8x8xf32>
    %cst_321 = arith.constant dense<0xFF800000> : vector<8xf32>
    %820 = vector.multi_reduction <maximumf>, %819, %cst_321 [1] : vector<8x8xf32> to vector<8xf32>
    %821 = vector.shape_cast %820 : vector<8xf32> to vector<8x1xf32>
    %822 = vector.broadcast %821 : vector<8x1xf32> to vector<8x8xf32>
    %823 = arith.subf %819, %822 : vector<8x8xf32>
    %824 = math.exp %823 : vector<8x8xf32>
    %cst_322 = arith.constant dense<0.000000e+00> : vector<8xf32>
    %825 = vector.multi_reduction <add>, %824, %cst_322 [1] : vector<8x8xf32> to vector<8xf32>
    %826 = vector.shape_cast %825 : vector<8xf32> to vector<8x1xf32>
    %827 = tpu.reciprocal %826 {approx = true} : vector<8x1xf32> -> vector<8x1xf32>
    %828 = vector.broadcast %827 : vector<8x1xf32> to vector<8x8xf32>
    %829 = arith.mulf %824, %828 : vector<8x8xf32>
    %830 = arith.truncf %829 : vector<8x8xf32> to vector<8x8xbf16>
    %cst_323 = arith.constant dense<0.000000e+00> : vector<8x8xf32>
    %831 = tpu.matmul %830, %815, %cst_323 {dimension_numbers = #tpu.dot_dimension_numbers<[1], [0], [0], [1], [0, 0, 1, 1], [], []>} : vector<8x8xbf16>, vector<8x8xbf16>, vector<8x8xf32> -> vector<8x8xf32>
    %832 = arith.truncf %831 : vector<8x8xf32> to vector<8x8xbf16>
    %833 = vector.extract_strided_slice %736 {offsets = [3, 0, 0], sizes = [1, 8, 32], strides = [1, 1, 1]} : vector<4x8x32xbf16> to vector<1x8x32xbf16>
    %834 = vector.shape_cast %833 : vector<1x8x32xbf16> to vector<8x32xbf16>
    %cst_324 = arith.constant dense<0.000000e+00> : vector<8x32xf32>
    %835 = tpu.matmul %832, %834, %cst_324 {dimension_numbers = #tpu.dot_dimension_numbers<[1], [0], [0], [1], [0, 0, 1, 1], [], []>} : vector<8x8xbf16>, vector<8x32xbf16>, vector<8x32xf32> -> vector<8x32xf32>
    %836 = arith.addf %812, %835 : vector<8x32xf32>
    %837 = vector.broadcast %738 : vector<1x32xf32> to vector<8x32xf32>
    %838 = arith.addf %836, %837 : vector<8x32xf32>
    %839 = arith.addf %838, %723 : vector<8x32xf32>
    %c1_325 = arith.constant 1 : index
    %c0_326 = arith.constant 0 : index
    %c0_327 = arith.constant 0 : index
    %840 = vector.load %arg28[%c1_325, %c0_326, %c0_327] : memref<2x1x32xf32, #tpu.memory_space<vmem>>, vector<1x1x32xf32>
    %841 = vector.shape_cast %840 : vector<1x1x32xf32> to vector<1x32xf32>
    %c1_328 = arith.constant 1 : index
    %c0_329 = arith.constant 0 : index
    %c0_330 = arith.constant 0 : index
    %842 = vector.load %arg29[%c1_328, %c0_329, %c0_330] : memref<2x1x32xf32, #tpu.memory_space<vmem>>, vector<1x1x32xf32>
    %843 = vector.shape_cast %842 : vector<1x1x32xf32> to vector<1x32xf32>
    %cst_331 = arith.constant dense<0.000000e+00> : vector<8xf32>
    %844 = vector.multi_reduction <add>, %839, %cst_331 [1] : vector<8x32xf32> to vector<8xf32>
    %845 = vector.shape_cast %844 : vector<8xf32> to vector<8x1xf32>
    %cst_332 = arith.constant 3.200000e+01 : f32
    %846 = vector.broadcast %cst_332 : f32 to vector<8x1xf32>
    %847 = arith.divf %845, %846 : vector<8x1xf32>
    %848 = vector.broadcast %847 : vector<8x1xf32> to vector<8x32xf32>
    %849 = arith.subf %839, %848 : vector<8x32xf32>
    %850 = arith.mulf %849, %849 : vector<8x32xf32>
    %cst_333 = arith.constant dense<0.000000e+00> : vector<8xf32>
    %851 = vector.multi_reduction <add>, %850, %cst_333 [1] : vector<8x32xf32> to vector<8xf32>
    %852 = vector.shape_cast %851 : vector<8xf32> to vector<8x1xf32>
    %cst_334 = arith.constant 3.200000e+01 : f32
    %853 = vector.broadcast %cst_334 : f32 to vector<8x1xf32>
    %854 = arith.divf %852, %853 : vector<8x1xf32>
    %cst_335 = arith.constant 9.99999974E-6 : f32
    %855 = vector.broadcast %cst_335 : f32 to vector<8x1xf32>
    %856 = arith.addf %854, %855 : vector<8x1xf32>
    %857 = math.rsqrt %856 : vector<8x1xf32>
    %858 = vector.broadcast %857 : vector<8x1xf32> to vector<8x32xf32>
    %859 = arith.mulf %849, %858 : vector<8x32xf32>
    %860 = vector.broadcast %841 : vector<1x32xf32> to vector<8x32xf32>
    %861 = arith.mulf %859, %860 : vector<8x32xf32>
    %862 = vector.broadcast %843 : vector<1x32xf32> to vector<8x32xf32>
    %863 = arith.addf %861, %862 : vector<8x32xf32>
    %c1_336 = arith.constant 1 : index
    %c0_337 = arith.constant 0 : index
    %c0_338 = arith.constant 0 : index
    %864 = vector.load %arg20[%c1_336, %c0_337, %c0_338] : memref<2x32x96xbf16, #tpu.memory_space<vmem>>, vector<1x32x96xbf16>
    %865 = vector.shape_cast %864 : vector<1x32x96xbf16> to vector<32x96xbf16>
    %c1_339 = arith.constant 1 : index
    %c0_340 = arith.constant 0 : index
    %c0_341 = arith.constant 0 : index
    %866 = vector.load %arg21[%c1_339, %c0_340, %c0_341] : memref<2x1x96xf32, #tpu.memory_space<vmem>>, vector<1x1x96xf32>
    %867 = vector.shape_cast %866 : vector<1x1x96xf32> to vector<1x96xf32>
    %868 = vector.extract_strided_slice %865 {offsets = [0, 0], sizes = [32, 32], strides = [1, 1]} : vector<32x96xbf16> to vector<32x32xbf16>
    %869 = arith.truncf %863 : vector<8x32xf32> to vector<8x32xbf16>
    %cst_342 = arith.constant dense<0.000000e+00> : vector<8x32xf32>
    %870 = tpu.matmul %869, %868, %cst_342 {dimension_numbers = #tpu.dot_dimension_numbers<[1], [0], [0], [1], [0, 0, 1, 1], [], []>} : vector<8x32xbf16>, vector<32x32xbf16>, vector<8x32xf32> -> vector<8x32xf32>
    %871 = vector.extract_strided_slice %867 {offsets = [0, 0], sizes = [1, 32], strides = [1, 1]} : vector<1x96xf32> to vector<1x32xf32>
    %872 = vector.broadcast %871 : vector<1x32xf32> to vector<8x32xf32>
    %873 = arith.addf %870, %872 : vector<8x32xf32>
    %874 = vector.extract_strided_slice %865 {offsets = [0, 32], sizes = [32, 64], strides = [1, 1]} : vector<32x96xbf16> to vector<32x64xbf16>
    %875 = arith.truncf %397 : vector<8x32xf32> to vector<8x32xbf16>
    %cst_343 = arith.constant dense<0.000000e+00> : vector<8x64xf32>
    %876 = tpu.matmul %875, %874, %cst_343 {dimension_numbers = #tpu.dot_dimension_numbers<[1], [0], [0], [1], [0, 0, 1, 1], [], []>} : vector<8x32xbf16>, vector<32x64xbf16>, vector<8x64xf32> -> vector<8x64xf32>
    %877 = vector.extract_strided_slice %867 {offsets = [0, 32], sizes = [1, 64], strides = [1, 1]} : vector<1x96xf32> to vector<1x64xf32>
    %878 = vector.broadcast %877 : vector<1x64xf32> to vector<8x64xf32>
    %879 = arith.addf %876, %878 : vector<8x64xf32>
    %880 = vector.extract_strided_slice %879 {offsets = [0, 0], sizes = [8, 32], strides = [1, 1]} : vector<8x64xf32> to vector<8x32xf32>
    %881 = vector.extract_strided_slice %879 {offsets = [0, 32], sizes = [8, 32], strides = [1, 1]} : vector<8x64xf32> to vector<8x32xf32>
    %c1_344 = arith.constant 1 : index
    %c0_345 = arith.constant 0 : index
    %c0_346 = arith.constant 0 : index
    %c0_347 = arith.constant 0 : index
    %882 = vector.load %arg22[%c1_344, %c0_345, %c0_346, %c0_347] : memref<2x4x8x32xbf16, #tpu.memory_space<vmem>>, vector<1x4x8x32xbf16>
    %883 = vector.shape_cast %882 : vector<1x4x8x32xbf16> to vector<4x8x32xbf16>
    %c1_348 = arith.constant 1 : index
    %c0_349 = arith.constant 0 : index
    %c0_350 = arith.constant 0 : index
    %884 = vector.load %arg23[%c1_348, %c0_349, %c0_350] : memref<2x1x32xf32, #tpu.memory_space<vmem>>, vector<1x1x32xf32>
    %885 = vector.shape_cast %884 : vector<1x1x32xf32> to vector<1x32xf32>
    %886 = arith.truncf %873 : vector<8x32xf32> to vector<8x32xbf16>
    %887 = arith.truncf %880 : vector<8x32xf32> to vector<8x32xbf16>
    %888 = arith.truncf %881 : vector<8x32xf32> to vector<8x32xbf16>
    %889 = vector.extract_strided_slice %886 {offsets = [0, 0], sizes = [8, 8], strides = [1, 1]} : vector<8x32xbf16> to vector<8x8xbf16>
    %890 = vector.extract_strided_slice %887 {offsets = [0, 0], sizes = [8, 8], strides = [1, 1]} : vector<8x32xbf16> to vector<8x8xbf16>
    %891 = vector.extract_strided_slice %888 {offsets = [0, 0], sizes = [8, 8], strides = [1, 1]} : vector<8x32xbf16> to vector<8x8xbf16>
    %cst_351 = arith.constant dense<0.000000e+00> : vector<8x8xf32>
    %892 = tpu.matmul %889, %890, %cst_351 {dimension_numbers = #tpu.dot_dimension_numbers<[1], [1], [0], [0], [0, 0, 1, 0], [], []>} : vector<8x8xbf16>, vector<8x8xbf16>, vector<8x8xf32> -> vector<8x8xf32>
    %cst_352 = arith.constant 0.353553385 : f32
    %893 = vector.broadcast %cst_352 : f32 to vector<8x8xf32>
    %894 = arith.mulf %892, %893 : vector<8x8xf32>
    %cst_353 = arith.constant dense<0xFF800000> : vector<8xf32>
    %895 = vector.multi_reduction <maximumf>, %894, %cst_353 [1] : vector<8x8xf32> to vector<8xf32>
    %896 = vector.shape_cast %895 : vector<8xf32> to vector<8x1xf32>
    %897 = vector.broadcast %896 : vector<8x1xf32> to vector<8x8xf32>
    %898 = arith.subf %894, %897 : vector<8x8xf32>
    %899 = math.exp %898 : vector<8x8xf32>
    %cst_354 = arith.constant dense<0.000000e+00> : vector<8xf32>
    %900 = vector.multi_reduction <add>, %899, %cst_354 [1] : vector<8x8xf32> to vector<8xf32>
    %901 = vector.shape_cast %900 : vector<8xf32> to vector<8x1xf32>
    %902 = tpu.reciprocal %901 {approx = true} : vector<8x1xf32> -> vector<8x1xf32>
    %903 = vector.broadcast %902 : vector<8x1xf32> to vector<8x8xf32>
    %904 = arith.mulf %899, %903 : vector<8x8xf32>
    %905 = arith.truncf %904 : vector<8x8xf32> to vector<8x8xbf16>
    %cst_355 = arith.constant dense<0.000000e+00> : vector<8x8xf32>
    %906 = tpu.matmul %905, %891, %cst_355 {dimension_numbers = #tpu.dot_dimension_numbers<[1], [0], [0], [1], [0, 0, 1, 1], [], []>} : vector<8x8xbf16>, vector<8x8xbf16>, vector<8x8xf32> -> vector<8x8xf32>
    %907 = arith.truncf %906 : vector<8x8xf32> to vector<8x8xbf16>
    %908 = vector.extract_strided_slice %883 {offsets = [0, 0, 0], sizes = [1, 8, 32], strides = [1, 1, 1]} : vector<4x8x32xbf16> to vector<1x8x32xbf16>
    %909 = vector.shape_cast %908 : vector<1x8x32xbf16> to vector<8x32xbf16>
    %cst_356 = arith.constant dense<0.000000e+00> : vector<8x32xf32>
    %910 = tpu.matmul %907, %909, %cst_356 {dimension_numbers = #tpu.dot_dimension_numbers<[1], [0], [0], [1], [0, 0, 1, 1], [], []>} : vector<8x8xbf16>, vector<8x32xbf16>, vector<8x32xf32> -> vector<8x32xf32>
    %911 = vector.extract_strided_slice %886 {offsets = [0, 8], sizes = [8, 8], strides = [1, 1]} : vector<8x32xbf16> to vector<8x8xbf16>
    %912 = vector.extract_strided_slice %887 {offsets = [0, 8], sizes = [8, 8], strides = [1, 1]} : vector<8x32xbf16> to vector<8x8xbf16>
    %913 = vector.extract_strided_slice %888 {offsets = [0, 8], sizes = [8, 8], strides = [1, 1]} : vector<8x32xbf16> to vector<8x8xbf16>
    %cst_357 = arith.constant dense<0.000000e+00> : vector<8x8xf32>
    %914 = tpu.matmul %911, %912, %cst_357 {dimension_numbers = #tpu.dot_dimension_numbers<[1], [1], [0], [0], [0, 0, 1, 0], [], []>} : vector<8x8xbf16>, vector<8x8xbf16>, vector<8x8xf32> -> vector<8x8xf32>
    %cst_358 = arith.constant 0.353553385 : f32
    %915 = vector.broadcast %cst_358 : f32 to vector<8x8xf32>
    %916 = arith.mulf %914, %915 : vector<8x8xf32>
    %cst_359 = arith.constant dense<0xFF800000> : vector<8xf32>
    %917 = vector.multi_reduction <maximumf>, %916, %cst_359 [1] : vector<8x8xf32> to vector<8xf32>
    %918 = vector.shape_cast %917 : vector<8xf32> to vector<8x1xf32>
    %919 = vector.broadcast %918 : vector<8x1xf32> to vector<8x8xf32>
    %920 = arith.subf %916, %919 : vector<8x8xf32>
    %921 = math.exp %920 : vector<8x8xf32>
    %cst_360 = arith.constant dense<0.000000e+00> : vector<8xf32>
    %922 = vector.multi_reduction <add>, %921, %cst_360 [1] : vector<8x8xf32> to vector<8xf32>
    %923 = vector.shape_cast %922 : vector<8xf32> to vector<8x1xf32>
    %924 = tpu.reciprocal %923 {approx = true} : vector<8x1xf32> -> vector<8x1xf32>
    %925 = vector.broadcast %924 : vector<8x1xf32> to vector<8x8xf32>
    %926 = arith.mulf %921, %925 : vector<8x8xf32>
    %927 = arith.truncf %926 : vector<8x8xf32> to vector<8x8xbf16>
    %cst_361 = arith.constant dense<0.000000e+00> : vector<8x8xf32>
    %928 = tpu.matmul %927, %913, %cst_361 {dimension_numbers = #tpu.dot_dimension_numbers<[1], [0], [0], [1], [0, 0, 1, 1], [], []>} : vector<8x8xbf16>, vector<8x8xbf16>, vector<8x8xf32> -> vector<8x8xf32>
    %929 = arith.truncf %928 : vector<8x8xf32> to vector<8x8xbf16>
    %930 = vector.extract_strided_slice %883 {offsets = [1, 0, 0], sizes = [1, 8, 32], strides = [1, 1, 1]} : vector<4x8x32xbf16> to vector<1x8x32xbf16>
    %931 = vector.shape_cast %930 : vector<1x8x32xbf16> to vector<8x32xbf16>
    %cst_362 = arith.constant dense<0.000000e+00> : vector<8x32xf32>
    %932 = tpu.matmul %929, %931, %cst_362 {dimension_numbers = #tpu.dot_dimension_numbers<[1], [0], [0], [1], [0, 0, 1, 1], [], []>} : vector<8x8xbf16>, vector<8x32xbf16>, vector<8x32xf32> -> vector<8x32xf32>
    %933 = arith.addf %910, %932 : vector<8x32xf32>
    %934 = vector.extract_strided_slice %886 {offsets = [0, 16], sizes = [8, 8], strides = [1, 1]} : vector<8x32xbf16> to vector<8x8xbf16>
    %935 = vector.extract_strided_slice %887 {offsets = [0, 16], sizes = [8, 8], strides = [1, 1]} : vector<8x32xbf16> to vector<8x8xbf16>
    %936 = vector.extract_strided_slice %888 {offsets = [0, 16], sizes = [8, 8], strides = [1, 1]} : vector<8x32xbf16> to vector<8x8xbf16>
    %cst_363 = arith.constant dense<0.000000e+00> : vector<8x8xf32>
    %937 = tpu.matmul %934, %935, %cst_363 {dimension_numbers = #tpu.dot_dimension_numbers<[1], [1], [0], [0], [0, 0, 1, 0], [], []>} : vector<8x8xbf16>, vector<8x8xbf16>, vector<8x8xf32> -> vector<8x8xf32>
    %cst_364 = arith.constant 0.353553385 : f32
    %938 = vector.broadcast %cst_364 : f32 to vector<8x8xf32>
    %939 = arith.mulf %937, %938 : vector<8x8xf32>
    %cst_365 = arith.constant dense<0xFF800000> : vector<8xf32>
    %940 = vector.multi_reduction <maximumf>, %939, %cst_365 [1] : vector<8x8xf32> to vector<8xf32>
    %941 = vector.shape_cast %940 : vector<8xf32> to vector<8x1xf32>
    %942 = vector.broadcast %941 : vector<8x1xf32> to vector<8x8xf32>
    %943 = arith.subf %939, %942 : vector<8x8xf32>
    %944 = math.exp %943 : vector<8x8xf32>
    %cst_366 = arith.constant dense<0.000000e+00> : vector<8xf32>
    %945 = vector.multi_reduction <add>, %944, %cst_366 [1] : vector<8x8xf32> to vector<8xf32>
    %946 = vector.shape_cast %945 : vector<8xf32> to vector<8x1xf32>
    %947 = tpu.reciprocal %946 {approx = true} : vector<8x1xf32> -> vector<8x1xf32>
    %948 = vector.broadcast %947 : vector<8x1xf32> to vector<8x8xf32>
    %949 = arith.mulf %944, %948 : vector<8x8xf32>
    %950 = arith.truncf %949 : vector<8x8xf32> to vector<8x8xbf16>
    %cst_367 = arith.constant dense<0.000000e+00> : vector<8x8xf32>
    %951 = tpu.matmul %950, %936, %cst_367 {dimension_numbers = #tpu.dot_dimension_numbers<[1], [0], [0], [1], [0, 0, 1, 1], [], []>} : vector<8x8xbf16>, vector<8x8xbf16>, vector<8x8xf32> -> vector<8x8xf32>
    %952 = arith.truncf %951 : vector<8x8xf32> to vector<8x8xbf16>
    %953 = vector.extract_strided_slice %883 {offsets = [2, 0, 0], sizes = [1, 8, 32], strides = [1, 1, 1]} : vector<4x8x32xbf16> to vector<1x8x32xbf16>
    %954 = vector.shape_cast %953 : vector<1x8x32xbf16> to vector<8x32xbf16>
    %cst_368 = arith.constant dense<0.000000e+00> : vector<8x32xf32>
    %955 = tpu.matmul %952, %954, %cst_368 {dimension_numbers = #tpu.dot_dimension_numbers<[1], [0], [0], [1], [0, 0, 1, 1], [], []>} : vector<8x8xbf16>, vector<8x32xbf16>, vector<8x32xf32> -> vector<8x32xf32>
    %956 = arith.addf %933, %955 : vector<8x32xf32>
    %957 = vector.extract_strided_slice %886 {offsets = [0, 24], sizes = [8, 8], strides = [1, 1]} : vector<8x32xbf16> to vector<8x8xbf16>
    %958 = vector.extract_strided_slice %887 {offsets = [0, 24], sizes = [8, 8], strides = [1, 1]} : vector<8x32xbf16> to vector<8x8xbf16>
    %959 = vector.extract_strided_slice %888 {offsets = [0, 24], sizes = [8, 8], strides = [1, 1]} : vector<8x32xbf16> to vector<8x8xbf16>
    %cst_369 = arith.constant dense<0.000000e+00> : vector<8x8xf32>
    %960 = tpu.matmul %957, %958, %cst_369 {dimension_numbers = #tpu.dot_dimension_numbers<[1], [1], [0], [0], [0, 0, 1, 0], [], []>} : vector<8x8xbf16>, vector<8x8xbf16>, vector<8x8xf32> -> vector<8x8xf32>
    %cst_370 = arith.constant 0.353553385 : f32
    %961 = vector.broadcast %cst_370 : f32 to vector<8x8xf32>
    %962 = arith.mulf %960, %961 : vector<8x8xf32>
    %cst_371 = arith.constant dense<0xFF800000> : vector<8xf32>
    %963 = vector.multi_reduction <maximumf>, %962, %cst_371 [1] : vector<8x8xf32> to vector<8xf32>
    %964 = vector.shape_cast %963 : vector<8xf32> to vector<8x1xf32>
    %965 = vector.broadcast %964 : vector<8x1xf32> to vector<8x8xf32>
    %966 = arith.subf %962, %965 : vector<8x8xf32>
    %967 = math.exp %966 : vector<8x8xf32>
    %cst_372 = arith.constant dense<0.000000e+00> : vector<8xf32>
    %968 = vector.multi_reduction <add>, %967, %cst_372 [1] : vector<8x8xf32> to vector<8xf32>
    %969 = vector.shape_cast %968 : vector<8xf32> to vector<8x1xf32>
    %970 = tpu.reciprocal %969 {approx = true} : vector<8x1xf32> -> vector<8x1xf32>
    %971 = vector.broadcast %970 : vector<8x1xf32> to vector<8x8xf32>
    %972 = arith.mulf %967, %971 : vector<8x8xf32>
    %973 = arith.truncf %972 : vector<8x8xf32> to vector<8x8xbf16>
    %cst_373 = arith.constant dense<0.000000e+00> : vector<8x8xf32>
    %974 = tpu.matmul %973, %959, %cst_373 {dimension_numbers = #tpu.dot_dimension_numbers<[1], [0], [0], [1], [0, 0, 1, 1], [], []>} : vector<8x8xbf16>, vector<8x8xbf16>, vector<8x8xf32> -> vector<8x8xf32>
    %975 = arith.truncf %974 : vector<8x8xf32> to vector<8x8xbf16>
    %976 = vector.extract_strided_slice %883 {offsets = [3, 0, 0], sizes = [1, 8, 32], strides = [1, 1, 1]} : vector<4x8x32xbf16> to vector<1x8x32xbf16>
    %977 = vector.shape_cast %976 : vector<1x8x32xbf16> to vector<8x32xbf16>
    %cst_374 = arith.constant dense<0.000000e+00> : vector<8x32xf32>
    %978 = tpu.matmul %975, %977, %cst_374 {dimension_numbers = #tpu.dot_dimension_numbers<[1], [0], [0], [1], [0, 0, 1, 1], [], []>} : vector<8x8xbf16>, vector<8x32xbf16>, vector<8x32xf32> -> vector<8x32xf32>
    %979 = arith.addf %956, %978 : vector<8x32xf32>
    %980 = vector.broadcast %885 : vector<1x32xf32> to vector<8x32xf32>
    %981 = arith.addf %979, %980 : vector<8x32xf32>
    %982 = arith.addf %981, %863 : vector<8x32xf32>
    %c1_375 = arith.constant 1 : index
    %c0_376 = arith.constant 0 : index
    %c0_377 = arith.constant 0 : index
    %983 = vector.load %arg30[%c1_375, %c0_376, %c0_377] : memref<2x1x32xf32, #tpu.memory_space<vmem>>, vector<1x1x32xf32>
    %984 = vector.shape_cast %983 : vector<1x1x32xf32> to vector<1x32xf32>
    %c1_378 = arith.constant 1 : index
    %c0_379 = arith.constant 0 : index
    %c0_380 = arith.constant 0 : index
    %985 = vector.load %arg31[%c1_378, %c0_379, %c0_380] : memref<2x1x32xf32, #tpu.memory_space<vmem>>, vector<1x1x32xf32>
    %986 = vector.shape_cast %985 : vector<1x1x32xf32> to vector<1x32xf32>
    %cst_381 = arith.constant dense<0.000000e+00> : vector<8xf32>
    %987 = vector.multi_reduction <add>, %982, %cst_381 [1] : vector<8x32xf32> to vector<8xf32>
    %988 = vector.shape_cast %987 : vector<8xf32> to vector<8x1xf32>
    %cst_382 = arith.constant 3.200000e+01 : f32
    %989 = vector.broadcast %cst_382 : f32 to vector<8x1xf32>
    %990 = arith.divf %988, %989 : vector<8x1xf32>
    %991 = vector.broadcast %990 : vector<8x1xf32> to vector<8x32xf32>
    %992 = arith.subf %982, %991 : vector<8x32xf32>
    %993 = arith.mulf %992, %992 : vector<8x32xf32>
    %cst_383 = arith.constant dense<0.000000e+00> : vector<8xf32>
    %994 = vector.multi_reduction <add>, %993, %cst_383 [1] : vector<8x32xf32> to vector<8xf32>
    %995 = vector.shape_cast %994 : vector<8xf32> to vector<8x1xf32>
    %cst_384 = arith.constant 3.200000e+01 : f32
    %996 = vector.broadcast %cst_384 : f32 to vector<8x1xf32>
    %997 = arith.divf %995, %996 : vector<8x1xf32>
    %cst_385 = arith.constant 9.99999974E-6 : f32
    %998 = vector.broadcast %cst_385 : f32 to vector<8x1xf32>
    %999 = arith.addf %997, %998 : vector<8x1xf32>
    %1000 = math.rsqrt %999 : vector<8x1xf32>
    %1001 = vector.broadcast %1000 : vector<8x1xf32> to vector<8x32xf32>
    %1002 = arith.mulf %992, %1001 : vector<8x32xf32>
    %1003 = vector.broadcast %984 : vector<1x32xf32> to vector<8x32xf32>
    %1004 = arith.mulf %1002, %1003 : vector<8x32xf32>
    %1005 = vector.broadcast %986 : vector<1x32xf32> to vector<8x32xf32>
    %1006 = arith.addf %1004, %1005 : vector<8x32xf32>
    %c1_386 = arith.constant 1 : index
    %c0_387 = arith.constant 0 : index
    %c0_388 = arith.constant 0 : index
    %1007 = vector.load %arg24[%c1_386, %c0_387, %c0_388] : memref<2x32x64xbf16, #tpu.memory_space<vmem>>, vector<1x32x64xbf16>
    %1008 = vector.shape_cast %1007 : vector<1x32x64xbf16> to vector<32x64xbf16>
    %1009 = arith.truncf %1006 : vector<8x32xf32> to vector<8x32xbf16>
    %cst_389 = arith.constant dense<0.000000e+00> : vector<8x64xf32>
    %1010 = tpu.matmul %1009, %1008, %cst_389 {dimension_numbers = #tpu.dot_dimension_numbers<[1], [0], [0], [1], [0, 0, 1, 1], [], []>} : vector<8x32xbf16>, vector<32x64xbf16>, vector<8x64xf32> -> vector<8x64xf32>
    %c1_390 = arith.constant 1 : index
    %c0_391 = arith.constant 0 : index
    %c0_392 = arith.constant 0 : index
    %1011 = vector.load %arg25[%c1_390, %c0_391, %c0_392] : memref<2x1x64xf32, #tpu.memory_space<vmem>>, vector<1x1x64xf32>
    %1012 = vector.shape_cast %1011 : vector<1x1x64xf32> to vector<1x64xf32>
    %1013 = vector.broadcast %1012 : vector<1x64xf32> to vector<8x64xf32>
    %1014 = arith.addf %1010, %1013 : vector<8x64xf32>
    %cst_393 = arith.constant 0.000000e+00 : f32
    %1015 = vector.broadcast %cst_393 : f32 to vector<8x64xf32>
    %1016 = arith.maximumf %1014, %1015 : vector<8x64xf32>
    %c1_394 = arith.constant 1 : index
    %c0_395 = arith.constant 0 : index
    %c0_396 = arith.constant 0 : index
    %1017 = vector.load %arg26[%c1_394, %c0_395, %c0_396] : memref<2x64x32xbf16, #tpu.memory_space<vmem>>, vector<1x64x32xbf16>
    %1018 = vector.shape_cast %1017 : vector<1x64x32xbf16> to vector<64x32xbf16>
    %1019 = arith.truncf %1016 : vector<8x64xf32> to vector<8x64xbf16>
    %cst_397 = arith.constant dense<0.000000e+00> : vector<8x32xf32>
    %1020 = tpu.matmul %1019, %1018, %cst_397 {dimension_numbers = #tpu.dot_dimension_numbers<[1], [0], [0], [1], [0, 0, 1, 1], [], []>} : vector<8x64xbf16>, vector<64x32xbf16>, vector<8x32xf32> -> vector<8x32xf32>
    %c1_398 = arith.constant 1 : index
    %c0_399 = arith.constant 0 : index
    %c0_400 = arith.constant 0 : index
    %1021 = vector.load %arg27[%c1_398, %c0_399, %c0_400] : memref<2x1x32xf32, #tpu.memory_space<vmem>>, vector<1x1x32xf32>
    %1022 = vector.shape_cast %1021 : vector<1x1x32xf32> to vector<1x32xf32>
    %1023 = vector.broadcast %1022 : vector<1x32xf32> to vector<8x32xf32>
    %1024 = arith.addf %1020, %1023 : vector<8x32xf32>
    %1025 = arith.addf %1024, %1006 : vector<8x32xf32>
    %c1_401 = arith.constant 1 : index
    %c0_402 = arith.constant 0 : index
    %c0_403 = arith.constant 0 : index
    %1026 = vector.load %arg32[%c1_401, %c0_402, %c0_403] : memref<2x1x32xf32, #tpu.memory_space<vmem>>, vector<1x1x32xf32>
    %1027 = vector.shape_cast %1026 : vector<1x1x32xf32> to vector<1x32xf32>
    %c1_404 = arith.constant 1 : index
    %c0_405 = arith.constant 0 : index
    %c0_406 = arith.constant 0 : index
    %1028 = vector.load %arg33[%c1_404, %c0_405, %c0_406] : memref<2x1x32xf32, #tpu.memory_space<vmem>>, vector<1x1x32xf32>
    %1029 = vector.shape_cast %1028 : vector<1x1x32xf32> to vector<1x32xf32>
    %cst_407 = arith.constant dense<0.000000e+00> : vector<8xf32>
    %1030 = vector.multi_reduction <add>, %1025, %cst_407 [1] : vector<8x32xf32> to vector<8xf32>
    %1031 = vector.shape_cast %1030 : vector<8xf32> to vector<8x1xf32>
    %cst_408 = arith.constant 3.200000e+01 : f32
    %1032 = vector.broadcast %cst_408 : f32 to vector<8x1xf32>
    %1033 = arith.divf %1031, %1032 : vector<8x1xf32>
    %1034 = vector.broadcast %1033 : vector<8x1xf32> to vector<8x32xf32>
    %1035 = arith.subf %1025, %1034 : vector<8x32xf32>
    %1036 = arith.mulf %1035, %1035 : vector<8x32xf32>
    %cst_409 = arith.constant dense<0.000000e+00> : vector<8xf32>
    %1037 = vector.multi_reduction <add>, %1036, %cst_409 [1] : vector<8x32xf32> to vector<8xf32>
    %1038 = vector.shape_cast %1037 : vector<8xf32> to vector<8x1xf32>
    %cst_410 = arith.constant 3.200000e+01 : f32
    %1039 = vector.broadcast %cst_410 : f32 to vector<8x1xf32>
    %1040 = arith.divf %1038, %1039 : vector<8x1xf32>
    %cst_411 = arith.constant 9.99999974E-6 : f32
    %1041 = vector.broadcast %cst_411 : f32 to vector<8x1xf32>
    %1042 = arith.addf %1040, %1041 : vector<8x1xf32>
    %1043 = math.rsqrt %1042 : vector<8x1xf32>
    %1044 = vector.broadcast %1043 : vector<8x1xf32> to vector<8x32xf32>
    %1045 = arith.mulf %1035, %1044 : vector<8x32xf32>
    %1046 = vector.broadcast %1027 : vector<1x32xf32> to vector<8x32xf32>
    %1047 = arith.mulf %1045, %1046 : vector<8x32xf32>
    %1048 = vector.broadcast %1029 : vector<1x32xf32> to vector<8x32xf32>
    %1049 = arith.addf %1047, %1048 : vector<8x32xf32>
    %c0_412 = arith.constant 0 : index
    %c0_413 = arith.constant 0 : index
    %1050 = vector.load %arg34[%c0_412, %c0_413] : memref<1x32xf32, #tpu.memory_space<vmem>>, vector<1x32xf32>
    %c0_414 = arith.constant 0 : index
    %c0_415 = arith.constant 0 : index
    %1051 = vector.load %arg35[%c0_414, %c0_415] : memref<1x32xf32, #tpu.memory_space<vmem>>, vector<1x32xf32>
    %cst_416 = arith.constant dense<0.000000e+00> : vector<8xf32>
    %1052 = vector.multi_reduction <add>, %1049, %cst_416 [1] : vector<8x32xf32> to vector<8xf32>
    %1053 = vector.shape_cast %1052 : vector<8xf32> to vector<8x1xf32>
    %cst_417 = arith.constant 3.200000e+01 : f32
    %1054 = vector.broadcast %cst_417 : f32 to vector<8x1xf32>
    %1055 = arith.divf %1053, %1054 : vector<8x1xf32>
    %1056 = vector.broadcast %1055 : vector<8x1xf32> to vector<8x32xf32>
    %1057 = arith.subf %1049, %1056 : vector<8x32xf32>
    %1058 = arith.mulf %1057, %1057 : vector<8x32xf32>
    %cst_418 = arith.constant dense<0.000000e+00> : vector<8xf32>
    %1059 = vector.multi_reduction <add>, %1058, %cst_418 [1] : vector<8x32xf32> to vector<8xf32>
    %1060 = vector.shape_cast %1059 : vector<8xf32> to vector<8x1xf32>
    %cst_419 = arith.constant 3.200000e+01 : f32
    %1061 = vector.broadcast %cst_419 : f32 to vector<8x1xf32>
    %1062 = arith.divf %1060, %1061 : vector<8x1xf32>
    %cst_420 = arith.constant 9.99999974E-6 : f32
    %1063 = vector.broadcast %cst_420 : f32 to vector<8x1xf32>
    %1064 = arith.addf %1062, %1063 : vector<8x1xf32>
    %1065 = math.rsqrt %1064 : vector<8x1xf32>
    %1066 = vector.broadcast %1065 : vector<8x1xf32> to vector<8x32xf32>
    %1067 = arith.mulf %1057, %1066 : vector<8x32xf32>
    %1068 = vector.broadcast %1050 : vector<1x32xf32> to vector<8x32xf32>
    %1069 = arith.mulf %1067, %1068 : vector<8x32xf32>
    %1070 = vector.broadcast %1051 : vector<1x32xf32> to vector<8x32xf32>
    %1071 = arith.addf %1069, %1070 : vector<8x32xf32>
    %c0_421 = arith.constant 0 : index
    %c0_422 = arith.constant 0 : index
    %1072 = vector.load %arg36[%c0_421, %c0_422] : memref<32x128xbf16, #tpu.memory_space<vmem>>, vector<32x128xbf16>
    %1073 = arith.truncf %1071 : vector<8x32xf32> to vector<8x32xbf16>
    %cst_423 = arith.constant dense<0.000000e+00> : vector<8x128xf32>
    %1074 = tpu.matmul %1073, %1072, %cst_423 {dimension_numbers = #tpu.dot_dimension_numbers<[1], [0], [0], [1], [0, 0, 1, 1], [], []>} : vector<8x32xbf16>, vector<32x128xbf16>, vector<8x128xf32> -> vector<8x128xf32>
    %c0_424 = arith.constant 0 : index
    %c0_425 = arith.constant 0 : index
    %1075 = vector.load %arg37[%c0_424, %c0_425] : memref<1x128xf32, #tpu.memory_space<vmem>>, vector<1x128xf32>
    %1076 = vector.broadcast %1075 : vector<1x128xf32> to vector<8x128xf32>
    %1077 = arith.addf %1074, %1076 : vector<8x128xf32>
    %c0_426 = arith.constant 0 : index
    %c0_427 = arith.constant 0 : index
    %c0_428 = arith.constant 0 : index
    %1078 = vector.load %arg38[%c0_426, %c0_427, %c0_428] : memref<1x8x128xf32, #tpu.memory_space<vmem>>, vector<1x8x128xf32>
    %1079 = vector.shape_cast %1078 : vector<1x8x128xf32> to vector<8x128xf32>
    %1080 = vector.shape_cast %1077 : vector<8x128xf32> to vector<1x8x128xf32>
    tpu.vector_store %arg38[%c0_426, %c0_427, %c0_428], %1080 {strides = array<i32>} : memref<1x8x128xf32, #tpu.memory_space<vmem>>, vector<1x8x128xf32>,
    return
  }
  func.func @transform_0(%arg0: i32) -> (i32, i32, i32) {
    %c0_i32 = arith.constant 0 : i32
    %c0_i32_0 = arith.constant 0 : i32
    %c0_i32_1 = arith.constant 0 : i32
    return %arg0, %c0_i32, %c0_i32_0 : i32, i32, i32
  }
  func.func @transform_1(%arg0: i32) -> (i32, i32, i32) {
    %c0_i32 = arith.constant 0 : i32
    %c0_i32_0 = arith.constant 0 : i32
    %c0_i32_1 = arith.constant 0 : i32
    %c0_i32_2 = arith.constant 0 : i32
    return %c0_i32, %c0_i32_0, %c0_i32_1 : i32, i32, i32
  }
  func.func @transform_2(%arg0: i32) -> (i32, i32, i32) {
    %c0_i32 = arith.constant 0 : i32
    %c0_i32_0 = arith.constant 0 : i32
    %c0_i32_1 = arith.constant 0 : i32
    %c0_i32_2 = arith.constant 0 : i32
    return %c0_i32, %c0_i32_0, %c0_i32_1 : i32, i32, i32
  }
  func.func @transform_3(%arg0: i32) -> (i32, i32, i32, i32) {
    %c0_i32 = arith.constant 0 : i32
    %c0_i32_0 = arith.constant 0 : i32
    %c0_i32_1 = arith.constant 0 : i32
    %c0_i32_2 = arith.constant 0 : i32
    %c0_i32_3 = arith.constant 0 : i32
    return %c0_i32, %c0_i32_0, %c0_i32_1, %c0_i32_2 : i32, i32, i32, i32
  }
  func.func @transform_4(%arg0: i32) -> (i32, i32, i32) {
    %c0_i32 = arith.constant 0 : i32
    %c0_i32_0 = arith.constant 0 : i32
    %c0_i32_1 = arith.constant 0 : i32
    %c0_i32_2 = arith.constant 0 : i32
    return %c0_i32, %c0_i32_0, %c0_i32_1 : i32, i32, i32
  }
  func.func @transform_5(%arg0: i32) -> (i32, i32, i32) {
    %c0_i32 = arith.constant 0 : i32
    %c0_i32_0 = arith.constant 0 : i32
    %c0_i32_1 = arith.constant 0 : i32
    %c0_i32_2 = arith.constant 0 : i32
    return %c0_i32, %c0_i32_0, %c0_i32_1 : i32, i32, i32
  }
  func.func @transform_6(%arg0: i32) -> (i32, i32, i32) {
    %c0_i32 = arith.constant 0 : i32
    %c0_i32_0 = arith.constant 0 : i32
    %c0_i32_1 = arith.constant 0 : i32
    %c0_i32_2 = arith.constant 0 : i32
    return %c0_i32, %c0_i32_0, %c0_i32_1 : i32, i32, i32
  }
  func.func @transform_7(%arg0: i32) -> (i32, i32, i32) {
    %c0_i32 = arith.constant 0 : i32
    %c0_i32_0 = arith.constant 0 : i32
    %c0_i32_1 = arith.constant 0 : i32
    %c0_i32_2 = arith.constant 0 : i32
    return %c0_i32, %c0_i32_0, %c0_i32_1 : i32, i32, i32
  }
  func.func @transform_8(%arg0: i32) -> (i32, i32, i32) {
    %c0_i32 = arith.constant 0 : i32
    %c0_i32_0 = arith.constant 0 : i32
    %c0_i32_1 = arith.constant 0 : i32
    %c0_i32_2 = arith.constant 0 : i32
    return %c0_i32, %c0_i32_0, %c0_i32_1 : i32, i32, i32
  }
  func.func @transform_9(%arg0: i32) -> (i32, i32, i32) {
    %c0_i32 = arith.constant 0 : i32
    %c0_i32_0 = arith.constant 0 : i32
    %c0_i32_1 = arith.constant 0 : i32
    %c0_i32_2 = arith.constant 0 : i32
    return %c0_i32, %c0_i32_0, %c0_i32_1 : i32, i32, i32
  }
  func.func @transform_10(%arg0: i32) -> (i32, i32, i32) {
    %c0_i32 = arith.constant 0 : i32
    %c0_i32_0 = arith.constant 0 : i32
    %c0_i32_1 = arith.constant 0 : i32
    %c0_i32_2 = arith.constant 0 : i32
    return %c0_i32, %c0_i32_0, %c0_i32_1 : i32, i32, i32
  }
  func.func @transform_11(%arg0: i32) -> (i32, i32, i32) {
    %c0_i32 = arith.constant 0 : i32
    %c0_i32_0 = arith.constant 0 : i32
    %c0_i32_1 = arith.constant 0 : i32
    %c0_i32_2 = arith.constant 0 : i32
    return %c0_i32, %c0_i32_0, %c0_i32_1 : i32, i32, i32
  }
  func.func @transform_12(%arg0: i32) -> (i32, i32, i32) {
    %c0_i32 = arith.constant 0 : i32
    %c0_i32_0 = arith.constant 0 : i32
    %c0_i32_1 = arith.constant 0 : i32
    %c0_i32_2 = arith.constant 0 : i32
    return %c0_i32, %c0_i32_0, %c0_i32_1 : i32, i32, i32
  }
  func.func @transform_13(%arg0: i32) -> (i32, i32) {
    %c0_i32 = arith.constant 0 : i32
    %c0_i32_0 = arith.constant 0 : i32
    %c0_i32_1 = arith.constant 0 : i32
    return %c0_i32, %c0_i32_0 : i32, i32
  }
  func.func @transform_14(%arg0: i32) -> (i32, i32) {
    %c0_i32 = arith.constant 0 : i32
    %c0_i32_0 = arith.constant 0 : i32
    %c0_i32_1 = arith.constant 0 : i32
    return %c0_i32, %c0_i32_0 : i32, i32
  }
  func.func @transform_15(%arg0: i32) -> (i32, i32, i32) {
    %c0_i32 = arith.constant 0 : i32
    %c0_i32_0 = arith.constant 0 : i32
    %c0_i32_1 = arith.constant 0 : i32
    %c0_i32_2 = arith.constant 0 : i32
    return %c0_i32, %c0_i32_0, %c0_i32_1 : i32, i32, i32
  }
  func.func @transform_16(%arg0: i32) -> (i32, i32, i32) {
    %c0_i32 = arith.constant 0 : i32
    %c0_i32_0 = arith.constant 0 : i32
    %c0_i32_1 = arith.constant 0 : i32
    %c0_i32_2 = arith.constant 0 : i32
    return %c0_i32, %c0_i32_0, %c0_i32_1 : i32, i32, i32
  }
  func.func @transform_17(%arg0: i32) -> (i32, i32, i32, i32) {
    %c0_i32 = arith.constant 0 : i32
    %c0_i32_0 = arith.constant 0 : i32
    %c0_i32_1 = arith.constant 0 : i32
    %c0_i32_2 = arith.constant 0 : i32
    %c0_i32_3 = arith.constant 0 : i32
    return %c0_i32, %c0_i32_0, %c0_i32_1, %c0_i32_2 : i32, i32, i32, i32
  }
  func.func @transform_18(%arg0: i32) -> (i32, i32, i32) {
    %c0_i32 = arith.constant 0 : i32
    %c0_i32_0 = arith.constant 0 : i32
    %c0_i32_1 = arith.constant 0 : i32
    %c0_i32_2 = arith.constant 0 : i32
    return %c0_i32, %c0_i32_0, %c0_i32_1 : i32, i32, i32
  }
  func.func @transform_19(%arg0: i32) -> (i32, i32, i32) {
    %c0_i32 = arith.constant 0 : i32
    %c0_i32_0 = arith.constant 0 : i32
    %c0_i32_1 = arith.constant 0 : i32
    %c0_i32_2 = arith.constant 0 : i32
    return %c0_i32, %c0_i32_0, %c0_i32_1 : i32, i32, i32
  }
  func.func @transform_20(%arg0: i32) -> (i32, i32, i32) {
    %c0_i32 = arith.constant 0 : i32
    %c0_i32_0 = arith.constant 0 : i32
    %c0_i32_1 = arith.constant 0 : i32
    %c0_i32_2 = arith.constant 0 : i32
    return %c0_i32, %c0_i32_0, %c0_i32_1 : i32, i32, i32
  }
  func.func @transform_21(%arg0: i32) -> (i32, i32, i32, i32) {
    %c0_i32 = arith.constant 0 : i32
    %c0_i32_0 = arith.constant 0 : i32
    %c0_i32_1 = arith.constant 0 : i32
    %c0_i32_2 = arith.constant 0 : i32
    %c0_i32_3 = arith.constant 0 : i32
    return %c0_i32, %c0_i32_0, %c0_i32_1, %c0_i32_2 : i32, i32, i32, i32
  }
  func.func @transform_22(%arg0: i32) -> (i32, i32, i32) {
    %c0_i32 = arith.constant 0 : i32
    %c0_i32_0 = arith.constant 0 : i32
    %c0_i32_1 = arith.constant 0 : i32
    %c0_i32_2 = arith.constant 0 : i32
    return %c0_i32, %c0_i32_0, %c0_i32_1 : i32, i32, i32
  }
  func.func @transform_23(%arg0: i32) -> (i32, i32, i32) {
    %c0_i32 = arith.constant 0 : i32
    %c0_i32_0 = arith.constant 0 : i32
    %c0_i32_1 = arith.constant 0 : i32
    %c0_i32_2 = arith.constant 0 : i32
    return %c0_i32, %c0_i32_0, %c0_i32_1 : i32, i32, i32
  }
  func.func @transform_24(%arg0: i32) -> (i32, i32, i32) {
    %c0_i32 = arith.constant 0 : i32
    %c0_i32_0 = arith.constant 0 : i32
    %c0_i32_1 = arith.constant 0 : i32
    %c0_i32_2 = arith.constant 0 : i32
    return %c0_i32, %c0_i32_0, %c0_i32_1 : i32, i32, i32
  }
  func.func @transform_25(%arg0: i32) -> (i32, i32, i32) {
    %c0_i32 = arith.constant 0 : i32
    %c0_i32_0 = arith.constant 0 : i32
    %c0_i32_1 = arith.constant 0 : i32
    %c0_i32_2 = arith.constant 0 : i32
    return %c0_i32, %c0_i32_0, %c0_i32_1 : i32, i32, i32
  }
  func.func @transform_26(%arg0: i32) -> (i32, i32, i32) {
    %c0_i32 = arith.constant 0 : i32
    %c0_i32_0 = arith.constant 0 : i32
    %c0_i32_1 = arith.constant 0 : i32
    %c0_i32_2 = arith.constant 0 : i32
    return %c0_i32, %c0_i32_0, %c0_i32_1 : i32, i32, i32
  }
  func.func @transform_27(%arg0: i32) -> (i32, i32, i32) {
    %c0_i32 = arith.constant 0 : i32
    %c0_i32_0 = arith.constant 0 : i32
    %c0_i32_1 = arith.constant 0 : i32
    %c0_i32_2 = arith.constant 0 : i32
    return %c0_i32, %c0_i32_0, %c0_i32_1 : i32, i32, i32
  }
  func.func @transform_28(%arg0: i32) -> (i32, i32, i32) {
    %c0_i32 = arith.constant 0 : i32
    %c0_i32_0 = arith.constant 0 : i32
    %c0_i32_1 = arith.constant 0 : i32
    %c0_i32_2 = arith.constant 0 : i32
    return %c0_i32, %c0_i32_0, %c0_i32_1 : i32, i32, i32
  }
  func.func @transform_29(%arg0: i32) -> (i32, i32, i32) {
    %c0_i32 = arith.constant 0 : i32
    %c0_i32_0 = arith.constant 0 : i32
    %c0_i32_1 = arith.constant 0 : i32
    %c0_i32_2 = arith.constant 0 : i32
    return %c0_i32, %c0_i32_0, %c0_i32_1 : i32, i32, i32
  }
  func.func @transform_30(%arg0: i32) -> (i32, i32, i32) {
    %c0_i32 = arith.constant 0 : i32
    %c0_i32_0 = arith.constant 0 : i32
    %c0_i32_1 = arith.constant 0 : i32
    %c0_i32_2 = arith.constant 0 : i32
    return %c0_i32, %c0_i32_0, %c0_i32_1 : i32, i32, i32
  }
  func.func @transform_31(%arg0: i32) -> (i32, i32, i32) {
    %c0_i32 = arith.constant 0 : i32
    %c0_i32_0 = arith.constant 0 : i32
    %c0_i32_1 = arith.constant 0 : i32
    %c0_i32_2 = arith.constant 0 : i32
    return %c0_i32, %c0_i32_0, %c0_i32_1 : i32, i32, i32
  }
  func.func @transform_32(%arg0: i32) -> (i32, i32, i32) {
    %c0_i32 = arith.constant 0 : i32
    %c0_i32_0 = arith.constant 0 : i32
    %c0_i32_1 = arith.constant 0 : i32
    %c0_i32_2 = arith.constant 0 : i32
    return %c0_i32, %c0_i32_0, %c0_i32_1 : i32, i32, i32
  }
  func.func @transform_33(%arg0: i32) -> (i32, i32) {
    %c0_i32 = arith.constant 0 : i32
    %c0_i32_0 = arith.constant 0 : i32
    %c0_i32_1 = arith.constant 0 : i32
    return %c0_i32, %c0_i32_0 : i32, i32
  }
  func.func @transform_34(%arg0: i32) -> (i32, i32) {
    %c0_i32 = arith.constant 0 : i32
    %c0_i32_0 = arith.constant 0 : i32
    %c0_i32_1 = arith.constant 0 : i32
    return %c0_i32, %c0_i32_0 : i32, i32
  }
  func.func @transform_35(%arg0: i32) -> (i32, i32) {
    %c0_i32 = arith.constant 0 : i32
    %c0_i32_0 = arith.constant 0 : i32
    %c0_i32_1 = arith.constant 0 : i32
    return %c0_i32, %c0_i32_0 : i32, i32
  }
  func.func @transform_36(%arg0: i32) -> (i32, i32) {
    %c0_i32 = arith.constant 0 : i32
    %c0_i32_0 = arith.constant 0 : i32
    %c0_i32_1 = arith.constant 0 : i32
    return %c0_i32, %c0_i32_0 : i32, i32
  }
  func.func @transform_37(%arg0: i32) -> (i32, i32, i32) {
    %c0_i32 = arith.constant 0 : i32
    %c0_i32_0 = arith.constant 0 : i32
    %c0_i32_1 = arith.constant 0 : i32
    return %arg0, %c0_i32, %c0_i32_0 : i32, i32, i32
  }
}

</mosaic_0001>

<llo_original>
// kernel: _lambda_.1
$region0: #{_lambda_.1}
  #allocation0 [shape = 'u32[]', space=smem, size = 0x4, offset = 0x4, fixed_abs, tag = 'smem constant byte address 0x4 - core index']
  #allocation1 [shape = 'u32[72,128]{1,0:T(1,128)}', space=vmem, size = 0x9000, scoped, tag = 'internal scratch']
  %s0 = inlined_call_operand.smem [shape: u32[38], index: -1, kind: input, shape index: {}]
  %s1 = sld [smem:[%s0]]
  %s2 = scalar_lea.smem %s0, 1
  %s3 = sld [smem:[%s2]]
  %s4 = scalar_lea.smem %s0, 2
  %s5 = sld [smem:[%s4]]
  %s6 = scalar_lea.smem %s0, 3
  %s7 = sld [smem:[%s6]]
  %s8 = scalar_lea.smem %s0, 4
  %s9 = sld [smem:[%s8]]
  %s10 = scalar_lea.smem %s0, 5
  %s11 = sld [smem:[%s10]]
  %s12 = scalar_lea.smem %s0, 6
  %s13 = sld [smem:[%s12]]
  %s14 = scalar_lea.smem %s0, 7
  %s15 = sld [smem:[%s14]]
  %s16 = scalar_lea.smem %s0, 8
  %s17 = sld [smem:[%s16]]
  %s18 = scalar_lea.smem %s0, 9
  %s19 = sld [smem:[%s18]]
  %s20 = scalar_lea.smem %s0, 10
  %s21 = sld [smem:[%s20]]
  %s22 = scalar_lea.smem %s0, 11
  %s23 = sld [smem:[%s22]]
  %s24 = scalar_lea.smem %s0, 12
  %s25 = sld [smem:[%s24]]
  %s26 = scalar_lea.smem %s0, 13
  %s27 = sld [smem:[%s26]]
  %s28 = scalar_lea.smem %s0, 14
  %s29 = sld [smem:[%s28]]
  %s30 = scalar_lea.smem %s0, 15
  %s31 = sld [smem:[%s30]]
  %s32 = scalar_lea.smem %s0, 16
  %s33 = sld [smem:[%s32]]
  %s34 = scalar_lea.smem %s0, 17
  %s35 = sld [smem:[%s34]]
  %s36 = scalar_lea.smem %s0, 18
  %s37 = sld [smem:[%s36]]
  %s38 = scalar_lea.smem %s0, 19
  %s39 = sld [smem:[%s38]]
  %s40 = scalar_lea.smem %s0, 20
  %s41 = sld [smem:[%s40]]
  %s42 = scalar_lea.smem %s0, 21
  %s43 = sld [smem:[%s42]]
  %s44 = scalar_lea.smem %s0, 22
  %s45 = sld [smem:[%s44]]
  %s46 = scalar_lea.smem %s0, 23
  %s47 = sld [smem:[%s46]]
  %s48 = scalar_lea.smem %s0, 24
  %s49 = sld [smem:[%s48]]
  %s50 = scalar_lea.smem %s0, 25
  %s51 = sld [smem:[%s50]]
  %s52 = scalar_lea.smem %s0, 26
  %s53 = sld [smem:[%s52]]
  %s54 = scalar_lea.smem %s0, 27
  %s55 = sld [smem:[%s54]]
  %s56 = scalar_lea.smem %s0, 28
  %s57 = sld [smem:[%s56]]
  %s58 = scalar_lea.smem %s0, 29
  %s59 = sld [smem:[%s58]]
  %s60 = scalar_lea.smem %s0, 30
  %s61 = sld [smem:[%s60]]
  %s62 = scalar_lea.smem %s0, 31
  %s63 = sld [smem:[%s62]]
  %s64 = scalar_lea.smem %s0, 32
  %s65 = sld [smem:[%s64]]
  %s66 = scalar_lea.smem %s0, 33
  %s67 = sld [smem:[%s66]]
  %s68 = scalar_lea.smem %s0, 34
  %s69 = sld [smem:[%s68]]
  %s70 = scalar_lea.smem %s0, 35
  %s71 = sld [smem:[%s70]]
  %s72 = scalar_lea.smem %s0, 36
  %s73 = sld [smem:[%s72]]
  %s74 = scalar_lea.smem %s0, 37
  %s75 = sld [smem:[%s74]]
  %s76 = sld [smem:[#allocation0]]
  $region181: #{_lambda_.1} parent=0
    _
  %s78 = ssub.s32 1, %s76
  %s79 = scalar_select 0, %s78, %s76
  loop: start=0, step=1, limit=4
  $region2: #{_lambda_.1} parent=0 // loop_pre_header
    _
  $region3: #{_lambda_.1} parent=0 // loop_header
    %s81 = sphi 0, %s85
    %p82 = scmp.ge.s32.totalorder %s81, 4
    %s91 = sphi 0, %s93
    %s94 = sphi 0, %s91
    %s95 = sphi 0, %s94
    %s111 = sphi 0, %s95
    %s115 = sphi 0, %s115
    %s117 = sphi 0, %s115
    %s118 = sphi 0, %s117
    %s132 = sphi 0, %s118
    %s136 = sphi 0, %s136
    %s138 = sphi 0, %s136
    %s139 = sphi 0, %s138
    %s153 = sphi 0, %s139
    %s157 = sphi 0, %s157
    %s159 = sphi 0, %s157
    %s160 = sphi 0, %s159
    %s174 = sphi 0, %s160
    %s178 = sphi 0, %s178
    %s180 = sphi 0, %s178
    %s181 = sphi 0, %s180
    %s195 = sphi 0, %s181
    %s199 = sphi 0, %s199
    %s201 = sphi 0, %s199
    %s202 = sphi 0, %s201
    %s216 = sphi 0, %s202
    %s220 = sphi 0, %s220
    %s222 = sphi 0, %s220
    %s223 = sphi 0, %s222
    %s237 = sphi 0, %s223
    %s241 = sphi 0, %s241
    %s243 = sphi 0, %s241
    %s244 = sphi 0, %s243
    %s258 = sphi 0, %s244
    %s262 = sphi 0, %s262
    %s264 = sphi 0, %s262
    %s265 = sphi 0, %s264
    %s279 = sphi 0, %s265
    %s283 = sphi 0, %s283
    %s285 = sphi 0, %s283
    %s286 = sphi 0, %s285
    %s300 = sphi 0, %s286
    %s304 = sphi 0, %s304
    %s306 = sphi 0, %s304
    %s307 = sphi 0, %s306
    %s321 = sphi 0, %s307
    %s325 = sphi 0, %s325
    %s327 = sphi 0, %s325
    %s328 = sphi 0, %s327
    %s342 = sphi 0, %s328
    %s346 = sphi 0, %s346
    %s348 = sphi 0, %s346
    %s349 = sphi 0, %s348
    %s363 = sphi 0, %s349
    %s367 = sphi 0, %s367
    %s369 = sphi 0, %s367
    %s370 = sphi 0, %s369
    %s384 = sphi 0, %s370
    %s388 = sphi 0, %s388
    %s390 = sphi 0, %s388
    %s391 = sphi 0, %s390
    %s405 = sphi 0, %s391
    %s409 = sphi 0, %s409
    %s411 = sphi 0, %s409
    %s412 = sphi 0, %s411
    %s426 = sphi 0, %s412
    %s430 = sphi 0, %s430
    %s432 = sphi 0, %s430
    %s433 = sphi 0, %s432
    %s447 = sphi 0, %s433
    %s451 = sphi 0, %s451
    %s453 = sphi 0, %s451
    %s454 = sphi 0, %s453
    %s468 = sphi 0, %s454
    %s472 = sphi 0, %s472
    %s474 = sphi 0, %s472
    %s475 = sphi 0, %s474
    %s489 = sphi 0, %s475
    %s493 = sphi 0, %s493
    %s495 = sphi 0, %s493
    %s496 = sphi 0, %s495
    %s510 = sphi 0, %s496
    %s514 = sphi 0, %s514
    %s516 = sphi 0, %s514
    %s517 = sphi 0, %s516
    %s531 = sphi 0, %s517
    %s535 = sphi 0, %s535
    %s537 = sphi 0, %s535
    %s538 = sphi 0, %s537
    %s552 = sphi 0, %s538
    %s556 = sphi 0, %s556
    %s558 = sphi 0, %s556
    %s559 = sphi 0, %s558
    %s573 = sphi 0, %s559
    %s577 = sphi 0, %s577
    %s579 = sphi 0, %s577
    %s580 = sphi 0, %s579
    %s594 = sphi 0, %s580
    %s598 = sphi 0, %s598
    %s600 = sphi 0, %s598
    %s601 = sphi 0, %s600
    %s615 = sphi 0, %s601
    %s619 = sphi 0, %s619
    %s621 = sphi 0, %s619
    %s622 = sphi 0, %s621
    %s636 = sphi 0, %s622
    %s640 = sphi 0, %s640
    %s642 = sphi 0, %s640
    %s643 = sphi 0, %s642
    %s657 = sphi 0, %s643
    %s661 = sphi 0, %s661
    %s663 = sphi 0, %s661
    %s664 = sphi 0, %s663
    %s678 = sphi 0, %s664
    %s682 = sphi 0, %s682
    %s684 = sphi 0, %s682
    %s685 = sphi 0, %s684
    %s699 = sphi 0, %s685
    %s703 = sphi 0, %s703
    %s705 = sphi 0, %s703
    %s706 = sphi 0, %s705
    %s720 = sphi 0, %s706
    %s724 = sphi 0, %s724
    %s726 = sphi 0, %s724
    %s727 = sphi 0, %s726
    %s741 = sphi 0, %s727
    %s745 = sphi 0, %s745
    %s747 = sphi 0, %s745
    %s748 = sphi 0, %s747
    %s762 = sphi 0, %s748
    %s766 = sphi 0, %s766
    %s768 = sphi 0, %s766
    %s769 = sphi 0, %s768
    %s783 = sphi 0, %s769
    %s787 = sphi 0, %s787
    %s789 = sphi 0, %s787
    %s790 = sphi 0, %s789
    %s804 = sphi 0, %s790
    %s808 = sphi 0, %s808
    %s810 = sphi 0, %s808
    %s811 = sphi 0, %s810
    %s825 = sphi 0, %s811
    %s829 = sphi 0, %s829
    %s831 = sphi 0, %s829
    %s832 = sphi 0, %s831
    %s846 = sphi 0, %s832
    %s850 = sphi 0, %s850
    %s852 = sphi 0, %s850
    %s853 = sphi 0, %s852
    %s867 = sphi 0, %s853
    %s873 = sphi 0, %s875
    %s876 = sphi 0, %s873
    %s877 = sphi 0, %s876
    %s893 = sphi 0, %s877
  $region4: #{_lambda_.1} parent=0 // loop_header_branch
    %84 = sbr.rel (%p82) target = $region8
  $region5: #{_lambda_.1} parent=0 // loop_body
    %s86 = ssub.s32 %s81, 1
    %s87 = ssub.s32 %s81, 2
    %s88 = sadd.s32 %s81, 1
    %s89 = ssub.s32 %s81, %s88
    %p90 = scmp.eq.s32.totalorder %s89, 0
    %s92 = sadd.s32 %s91, 1
    %s93 = scalar_select %p90, %s91, %s92
    %p96 = pneg %p90
    %p97 = scmp.eq.s32.totalorder %s81, 1
    %p98 = por %p96, %p97
    %p99 = scmp.ne.s32.totalorder %s91, %s94
    %p100 = scmp.eq.s32.totalorder %s81, 0
    %p101 = por %p99, %p100
    %p102 = scmp.ne.s32.totalorder %s91, %s94
    %p103 = scmp.eq.s32.totalorder %s86, 1
    %p104 = por %p102, %p103
    %p105 = scmp.ne.s32.totalorder %s94, %s95
    %p106 = scmp.eq.s32.totalorder %s86, 0
    %p107 = por %p105, %p106
    %p108 = scmp.ne.s32.totalorder %s94, %s95
    %p109 = scmp.eq.s32.totalorder %s87, 1
    %p110 = por %p108, %p109
    %p112 = scmp.ne.s32.totalorder %s95, %s111
    %p113 = scmp.eq.s32.totalorder %s87, 0
    %p114 = por %p112, %p113
    %s116 = sadd.s32 %s115, 1
    %p119 = scmp.eq.s32.totalorder %s81, 1
    %p120 = scmp.ne.s32.totalorder %s115, %s117
    %p121 = scmp.eq.s32.totalorder %s81, 0
    %p122 = por %p120, %p121
    %p123 = scmp.ne.s32.totalorder %s115, %s117
    %p124 = scmp.eq.s32.totalorder %s86, 1
    %p125 = por %p123, %p124
    %p126 = scmp.ne.s32.totalorder %s117, %s118
    %p127 = scmp.eq.s32.totalorder %s86, 0
    %p128 = por %p126, %p127
    %p129 = scmp.ne.s32.totalorder %s117, %s118
    %p130 = scmp.eq.s32.totalorder %s87, 1
    %p131 = por %p129, %p130
    %p133 = scmp.ne.s32.totalorder %s118, %s132
    %p134 = scmp.eq.s32.totalorder %s87, 0
    %p135 = por %p133, %p134
    %s137 = sadd.s32 %s136, 1
    %p140 = scmp.eq.s32.totalorder %s81, 1
    %p141 = scmp.ne.s32.totalorder %s136, %s138
    %p142 = scmp.eq.s32.totalorder %s81, 0
    %p143 = por %p141, %p142
    %p144 = scmp.ne.s32.totalorder %s136, %s138
    %p145 = scmp.eq.s32.totalorder %s86, 1
    %p146 = por %p144, %p145
    %p147 = scmp.ne.s32.totalorder %s138, %s139
    %p148 = scmp.eq.s32.totalorder %s86, 0
    %p149 = por %p147, %p148
    %p150 = scmp.ne.s32.totalorder %s138, %s139
    %p151 = scmp.eq.s32.totalorder %s87, 1
    %p152 = por %p150, %p151
    %p154 = scmp.ne.s32.totalorder %s139, %s153
    %p155 = scmp.eq.s32.totalorder %s87, 0
    %p156 = por %p154, %p155
    %s158 = sadd.s32 %s157, 1
    %p161 = scmp.eq.s32.totalorder %s81, 1
    %p162 = scmp.ne.s32.totalorder %s157, %s159
    %p163 = scmp.eq.s32.totalorder %s81, 0
    %p164 = por %p162, %p163
    %p165 = scmp.ne.s32.totalorder %s157, %s159
    %p166 = scmp.eq.s32.totalorder %s86, 1
    %p167 = por %p165, %p166
    %p168 = scmp.ne.s32.totalorder %s159, %s160
    %p169 = scmp.eq.s32.totalorder %s86, 0
    %p170 = por %p168, %p169
    %p171 = scmp.ne.s32.totalorder %s159, %s160
    %p172 = scmp.eq.s32.totalorder %s87, 1
    %p173 = por %p171, %p172
    %p175 = scmp.ne.s32.totalorder %s160, %s174
    %p176 = scmp.eq.s32.totalorder %s87, 0
    %p177 = por %p175, %p176
    %s179 = sadd.s32 %s178, 1
    %p182 = scmp.eq.s32.totalorder %s81, 1
    %p183 = scmp.ne.s32.totalorder %s178, %s180
    %p184 = scmp.eq.s32.totalorder %s81, 0
    %p185 = por %p183, %p184
    %p186 = scmp.ne.s32.totalorder %s178, %s180
    %p187 = scmp.eq.s32.totalorder %s86, 1
    %p188 = por %p186, %p187
    %p189 = scmp.ne.s32.totalorder %s180, %s181
    %p190 = scmp.eq.s32.totalorder %s86, 0
    %p191 = por %p189, %p190
    %p192 = scmp.ne.s32.totalorder %s180, %s181
    %p193 = scmp.eq.s32.totalorder %s87, 1
    %p194 = por %p192, %p193
    %p196 = scmp.ne.s32.totalorder %s181, %s195
    %p197 = scmp.eq.s32.totalorder %s87, 0
    %p198 = por %p196, %p197
    %s200 = sadd.s32 %s199, 1
    %p203 = scmp.eq.s32.totalorder %s81, 1
    %p204 = scmp.ne.s32.totalorder %s199, %s201
    %p205 = scmp.eq.s32.totalorder %s81, 0
    %p206 = por %p204, %p205
    %p207 = scmp.ne.s32.totalorder %s199, %s201
    %p208 = scmp.eq.s32.totalorder %s86, 1
    %p209 = por %p207, %p208
    %p210 = scmp.ne.s32.totalorder %s201, %s202
    %p211 = scmp.eq.s32.totalorder %s86, 0
    %p212 = por %p210, %p211
    %p213 = scmp.ne.s32.totalorder %s201, %s202
    %p214 = scmp.eq.s32.totalorder %s87, 1
    %p215 = por %p213, %p214
    %p217 = scmp.ne.s32.totalorder %s202, %s216
    %p218 = scmp.eq.s32.totalorder %s87, 0
    %p219 = por %p217, %p218
    %s221 = sadd.s32 %s220, 1
    %p224 = scmp.eq.s32.totalorder %s81, 1
    %p225 = scmp.ne.s32.totalorder %s220, %s222
    %p226 = scmp.eq.s32.totalorder %s81, 0
    %p227 = por %p225, %p226
    %p228 = scmp.ne.s32.totalorder %s220, %s222
    %p229 = scmp.eq.s32.totalorder %s86, 1
    %p230 = por %p228, %p229
    %p231 = scmp.ne.s32.totalorder %s222, %s223
    %p232 = scmp.eq.s32.totalorder %s86, 0
    %p233 = por %p231, %p232
    %p234 = scmp.ne.s32.totalorder %s222, %s223
    %p235 = scmp.eq.s32.totalorder %s87, 1
    %p236 = por %p234, %p235
    %p238 = scmp.ne.s32.totalorder %s223, %s237
    %p239 = scmp.eq.s32.totalorder %s87, 0
    %p240 = por %p238, %p239
    %s242 = sadd.s32 %s241, 1
    %p245 = scmp.eq.s32.totalorder %s81, 1
    %p246 = scmp.ne.s32.totalorder %s241, %s243
    %p247 = scmp.eq.s32.totalorder %s81, 0
    %p248 = por %p246, %p247
    %p249 = scmp.ne.s32.totalorder %s241, %s243
    %p250 = scmp.eq.s32.totalorder %s86, 1
    %p251 = por %p249, %p250
    %p252 = scmp.ne.s32.totalorder %s243, %s244
    %p253 = scmp.eq.s32.totalorder %s86, 0
    %p254 = por %p252, %p253
    %p255 = scmp.ne.s32.totalorder %s243, %s244
    %p256 = scmp.eq.s32.totalorder %s87, 1
    %p257 = por %p255, %p256
    %p259 = scmp.ne.s32.totalorder %s244, %s258
    %p260 = scmp.eq.s32.totalorder %s87, 0
    %p261 = por %p259, %p260
    %s263 = sadd.s32 %s262, 1
    %p266 = scmp.eq.s32.totalorder %s81, 1
    %p267 = scmp.ne.s32.totalorder %s262, %s264
    %p268 = scmp.eq.s32.totalorder %s81, 0
    %p269 = por %p267, %p268
    %p270 = scmp.ne.s32.totalorder %s262, %s264
    %p271 = scmp.eq.s32.totalorder %s86, 1
    %p272 = por %p270, %p271
    %p273 = scmp.ne.s32.totalorder %s264, %s265
    %p274 = scmp.eq.s32.totalorder %s86, 0
    %p275 = por %p273, %p274
    %p276 = scmp.ne.s32.totalorder %s264, %s265
    %p277 = scmp.eq.s32.totalorder %s87, 1
    %p278 = por %p276, %p277
    %p280 = scmp.ne.s32.totalorder %s265, %s279
    %p281 = scmp.eq.s32.totalorder %s87, 0
    %p282 = por %p280, %p281
    %s284 = sadd.s32 %s283, 1
    %p287 = scmp.eq.s32.totalorder %s81, 1
    %p288 = scmp.ne.s32.totalorder %s283, %s285
    %p289 = scmp.eq.s32.totalorder %s81, 0
    %p290 = por %p288, %p289
    %p291 = scmp.ne.s32.totalorder %s283, %s285
    %p292 = scmp.eq.s32.totalorder %s86, 1
    %p293 = por %p291, %p292
    %p294 = scmp.ne.s32.totalorder %s285, %s286
    %p295 = scmp.eq.s32.totalorder %s86, 0
    %p296 = por %p294, %p295
    %p297 = scmp.ne.s32.totalorder %s285, %s286
    %p298 = scmp.eq.s32.totalorder %s87, 1
    %p299 = por %p297, %p298
    %p301 = scmp.ne.s32.totalorder %s286, %s300
    %p302 = scmp.eq.s32.totalorder %s87, 0
    %p303 = por %p301, %p302
    %s305 = sadd.s32 %s304, 1
    %p308 = scmp.eq.s32.totalorder %s81, 1
    %p309 = scmp.ne.s32.totalorder %s304, %s306
    %p310 = scmp.eq.s32.totalorder %s81, 0
    %p311 = por %p309, %p310
    %p312 = scmp.ne.s32.totalorder %s304, %s306
    %p313 = scmp.eq.s32.totalorder %s86, 1
    %p314 = por %p312, %p313
    %p315 = scmp.ne.s32.totalorder %s306, %s307
    %p316 = scmp.eq.s32.totalorder %s86, 0
    %p317 = por %p315, %p316
    %p318 = scmp.ne.s32.totalorder %s306, %s307
    %p319 = scmp.eq.s32.totalorder %s87, 1
    %p320 = por %p318, %p319
    %p322 = scmp.ne.s32.totalorder %s307, %s321
    %p323 = scmp.eq.s32.totalorder %s87, 0
    %p324 = por %p322, %p323
    %s326 = sadd.s32 %s325, 1
    %p329 = scmp.eq.s32.totalorder %s81, 1
    %p330 = scmp.ne.s32.totalorder %s325, %s327
    %p331 = scmp.eq.s32.totalorder %s81, 0
    %p332 = por %p330, %p331
    %p333 = scmp.ne.s32.totalorder %s325, %s327
    %p334 = scmp.eq.s32.totalorder %s86, 1
    %p335 = por %p333, %p334
    %p336 = scmp.ne.s32.totalorder %s327, %s328
    %p337 = scmp.eq.s32.totalorder %s86, 0
    %p338 = por %p336, %p337
    %p339 = scmp.ne.s32.totalorder %s327, %s328
    %p340 = scmp.eq.s32.totalorder %s87, 1
    %p341 = por %p339, %p340
    %p343 = scmp.ne.s32.totalorder %s328, %s342
    %p344 = scmp.eq.s32.totalorder %s87, 0
    %p345 = por %p343, %p344
    %s347 = sadd.s32 %s346, 1
    %p350 = scmp.eq.s32.totalorder %s81, 1
    %p351 = scmp.ne.s32.totalorder %s346, %s348
    %p352 = scmp.eq.s32.totalorder %s81, 0
    %p353 = por %p351, %p352
    %p354 = scmp.ne.s32.totalorder %s346, %s348
    %p355 = scmp.eq.s32.totalorder %s86, 1
    %p356 = por %p354, %p355
    %p357 = scmp.ne.s32.totalorder %s348, %s349
    %p358 = scmp.eq.s32.totalorder %s86, 0
    %p359 = por %p357, %p358
    %p360 = scmp.ne.s32.totalorder %s348, %s349
    %p361 = scmp.eq.s32.totalorder %s87, 1
    %p362 = por %p360, %p361
    %p364 = scmp.ne.s32.totalorder %s349, %s363
    %p365 = scmp.eq.s32.totalorder %s87, 0
    %p366 = por %p364, %p365
    %s368 = sadd.s32 %s367, 1
    %p371 = scmp.eq.s32.totalorder %s81, 1
    %p372 = scmp.ne.s32.totalorder %s367, %s369
    %p373 = scmp.eq.s32.totalorder %s81, 0
    %p374 = por %p372, %p373
    %p375 = scmp.ne.s32.totalorder %s367, %s369
    %p376 = scmp.eq.s32.totalorder %s86, 1
    %p377 = por %p375, %p376
    %p378 = scmp.ne.s32.totalorder %s369, %s370
    %p379 = scmp.eq.s32.totalorder %s86, 0
    %p380 = por %p378, %p379
    %p381 = scmp.ne.s32.totalorder %s369, %s370
    %p382 = scmp.eq.s32.totalorder %s87, 1
    %p383 = por %p381, %p382
    %p385 = scmp.ne.s32.totalorder %s370, %s384
    %p386 = scmp.eq.s32.totalorder %s87, 0
    %p387 = por %p385, %p386
    %s389 = sadd.s32 %s388, 1
    %p392 = scmp.eq.s32.totalorder %s81, 1
    %p393 = scmp.ne.s32.totalorder %s388, %s390
    %p394 = scmp.eq.s32.totalorder %s81, 0
    %p395 = por %p393, %p394
    %p396 = scmp.ne.s32.totalorder %s388, %s390
    %p397 = scmp.eq.s32.totalorder %s86, 1
    %p398 = por %p396, %p397
    %p399 = scmp.ne.s32.totalorder %s390, %s391
    %p400 = scmp.eq.s32.totalorder %s86, 0
    %p401 = por %p399, %p400
    %p402 = scmp.ne.s32.totalorder %s390, %s391
    %p403 = scmp.eq.s32.totalorder %s87, 1
    %p404 = por %p402, %p403
    %p406 = scmp.ne.s32.totalorder %s391, %s405
    %p407 = scmp.eq.s32.totalorder %s87, 0
    %p408 = por %p406, %p407
    %s410 = sadd.s32 %s409, 1
    %p413 = scmp.eq.s32.totalorder %s81, 1
    %p414 = scmp.ne.s32.totalorder %s409, %s411
    %p415 = scmp.eq.s32.totalorder %s81, 0
    %p416 = por %p414, %p415
    %p417 = scmp.ne.s32.totalorder %s409, %s411
    %p418 = scmp.eq.s32.totalorder %s86, 1
    %p419 = por %p417, %p418
    %p420 = scmp.ne.s32.totalorder %s411, %s412
    %p421 = scmp.eq.s32.totalorder %s86, 0
    %p422 = por %p420, %p421
    %p423 = scmp.ne.s32.totalorder %s411, %s412
    %p424 = scmp.eq.s32.totalorder %s87, 1
    %p425 = por %p423, %p424
    %p427 = scmp.ne.s32.totalorder %s412, %s426
    %p428 = scmp.eq.s32.totalorder %s87, 0
    %p429 = por %p427, %p428
    %s431 = sadd.s32 %s430, 1
    %p434 = scmp.eq.s32.totalorder %s81, 1
    %p435 = scmp.ne.s32.totalorder %s430, %s432
    %p436 = scmp.eq.s32.totalorder %s81, 0
    %p437 = por %p435, %p436
    %p438 = scmp.ne.s32.totalorder %s430, %s432
    %p439 = scmp.eq.s32.totalorder %s86, 1
    %p440 = por %p438, %p439
    %p441 = scmp.ne.s32.totalorder %s432, %s433
    %p442 = scmp.eq.s32.totalorder %s86, 0
    %p443 = por %p441, %p442
    %p444 = scmp.ne.s32.totalorder %s432, %s433
    %p445 = scmp.eq.s32.totalorder %s87, 1
    %p446 = por %p444, %p445
    %p448 = scmp.ne.s32.totalorder %s433, %s447
    %p449 = scmp.eq.s32.totalorder %s87, 0
    %p450 = por %p448, %p449
    %s452 = sadd.s32 %s451, 1
    %p455 = scmp.eq.s32.totalorder %s81, 1
    %p456 = scmp.ne.s32.totalorder %s451, %s453
    %p457 = scmp.eq.s32.totalorder %s81, 0
    %p458 = por %p456, %p457
    %p459 = scmp.ne.s32.totalorder %s451, %s453
    %p460 = scmp.eq.s32.totalorder %s86, 1
    %p461 = por %p459, %p460
    %p462 = scmp.ne.s32.totalorder %s453, %s454
    %p463 = scmp.eq.s32.totalorder %s86, 0
    %p464 = por %p462, %p463
    %p465 = scmp.ne.s32.totalorder %s453, %s454
    %p466 = scmp.eq.s32.totalorder %s87, 1
    %p467 = por %p465, %p466
    %p469 = scmp.ne.s32.totalorder %s454, %s468
    %p470 = scmp.eq.s32.totalorder %s87, 0
    %p471 = por %p469, %p470
    %s473 = sadd.s32 %s472, 1
    %p476 = scmp.eq.s32.totalorder %s81, 1
    %p477 = scmp.ne.s32.totalorder %s472, %s474
    %p478 = scmp.eq.s32.totalorder %s81, 0
    %p479 = por %p477, %p478
    %p480 = scmp.ne.s32.totalorder %s472, %s474
    %p481 = scmp.eq.s32.totalorder %s86, 1
    %p482 = por %p480, %p481
    %p483 = scmp.ne.s32.totalorder %s474, %s475
    %p484 = scmp.eq.s32.totalorder %s86, 0
    %p485 = por %p483, %p484
    %p486 = scmp.ne.s32.totalorder %s474, %s475
    %p487 = scmp.eq.s32.totalorder %s87, 1
    %p488 = por %p486, %p487
    %p490 = scmp.ne.s32.totalorder %s475, %s489
    %p491 = scmp.eq.s32.totalorder %s87, 0
    %p492 = por %p490, %p491
    %s494 = sadd.s32 %s493, 1
    %p497 = scmp.eq.s32.totalorder %s81, 1
    %p498 = scmp.ne.s32.totalorder %s493, %s495
    %p499 = scmp.eq.s32.totalorder %s81, 0
    %p500 = por %p498, %p499
    %p501 = scmp.ne.s32.totalorder %s493, %s495
    %p502 = scmp.eq.s32.totalorder %s86, 1
    %p503 = por %p501, %p502
    %p504 = scmp.ne.s32.totalorder %s495, %s496
    %p505 = scmp.eq.s32.totalorder %s86, 0
    %p506 = por %p504, %p505
    %p507 = scmp.ne.s32.totalorder %s495, %s496
    %p508 = scmp.eq.s32.totalorder %s87, 1
    %p509 = por %p507, %p508
    %p511 = scmp.ne.s32.totalorder %s496, %s510
    %p512 = scmp.eq.s32.totalorder %s87, 0
    %p513 = por %p511, %p512
    %s515 = sadd.s32 %s514, 1
    %p518 = scmp.eq.s32.totalorder %s81, 1
    %p519 = scmp.ne.s32.totalorder %s514, %s516
    %p520 = scmp.eq.s32.totalorder %s81, 0
    %p521 = por %p519, %p520
    %p522 = scmp.ne.s32.totalorder %s514, %s516
    %p523 = scmp.eq.s32.totalorder %s86, 1
    %p524 = por %p522, %p523
    %p525 = scmp.ne.s32.totalorder %s516, %s517
    %p526 = scmp.eq.s32.totalorder %s86, 0
    %p527 = por %p525, %p526
    %p528 = scmp.ne.s32.totalorder %s516, %s517
    %p529 = scmp.eq.s32.totalorder %s87, 1
    %p530 = por %p528, %p529
    %p532 = scmp.ne.s32.totalorder %s517, %s531
    %p533 = scmp.eq.s32.totalorder %s87, 0
    %p534 = por %p532, %p533
    %s536 = sadd.s32 %s535, 1
    %p539 = scmp.eq.s32.totalorder %s81, 1
    %p540 = scmp.ne.s32.totalorder %s535, %s537
    %p541 = scmp.eq.s32.totalorder %s81, 0
    %p542 = por %p540, %p541
    %p543 = scmp.ne.s32.totalorder %s535, %s537
    %p544 = scmp.eq.s32.totalorder %s86, 1
    %p545 = por %p543, %p544
    %p546 = scmp.ne.s32.totalorder %s537, %s538
    %p547 = scmp.eq.s32.totalorder %s86, 0
    %p548 = por %p546, %p547
    %p549 = scmp.ne.s32.totalorder %s537, %s538
    %p550 = scmp.eq.s32.totalorder %s87, 1
    %p551 = por %p549, %p550
    %p553 = scmp.ne.s32.totalorder %s538, %s552
    %p554 = scmp.eq.s32.totalorder %s87, 0
    %p555 = por %p553, %p554
    %s557 = sadd.s32 %s556, 1
    %p560 = scmp.eq.s32.totalorder %s81, 1
    %p561 = scmp.ne.s32.totalorder %s556, %s558
    %p562 = scmp.eq.s32.totalorder %s81, 0
    %p563 = por %p561, %p562
    %p564 = scmp.ne.s32.totalorder %s556, %s558
    %p565 = scmp.eq.s32.totalorder %s86, 1
    %p566 = por %p564, %p565
    %p567 = scmp.ne.s32.totalorder %s558, %s559
    %p568 = scmp.eq.s32.totalorder %s86, 0
    %p569 = por %p567, %p568
    %p570 = scmp.ne.s32.totalorder %s558, %s559
    %p571 = scmp.eq.s32.totalorder %s87, 1
    %p572 = por %p570, %p571
    %p574 = scmp.ne.s32.totalorder %s559, %s573
    %p575 = scmp.eq.s32.totalorder %s87, 0
    %p576 = por %p574, %p575
    %s578 = sadd.s32 %s577, 1
    %p581 = scmp.eq.s32.totalorder %s81, 1
    %p582 = scmp.ne.s32.totalorder %s577, %s579
    %p583 = scmp.eq.s32.totalorder %s81, 0
    %p584 = por %p582, %p583
    %p585 = scmp.ne.s32.totalorder %s577, %s579
    %p586 = scmp.eq.s32.totalorder %s86, 1
    %p587 = por %p585, %p586
    %p588 = scmp.ne.s32.totalorder %s579, %s580
    %p589 = scmp.eq.s32.totalorder %s86, 0
    %p590 = por %p588, %p589
    %p591 = scmp.ne.s32.totalorder %s579, %s580
    %p592 = scmp.eq.s32.totalorder %s87, 1
    %p593 = por %p591, %p592
    %p595 = scmp.ne.s32.totalorder %s580, %s594
    %p596 = scmp.eq.s32.totalorder %s87, 0
    %p597 = por %p595, %p596
    %s599 = sadd.s32 %s598, 1
    %p602 = scmp.eq.s32.totalorder %s81, 1
    %p603 = scmp.ne.s32.totalorder %s598, %s600
    %p604 = scmp.eq.s32.totalorder %s81, 0
    %p605 = por %p603, %p604
    %p606 = scmp.ne.s32.totalorder %s598, %s600
    %p607 = scmp.eq.s32.totalorder %s86, 1
    %p608 = por %p606, %p607
    %p609 = scmp.ne.s32.totalorder %s600, %s601
    %p610 = scmp.eq.s32.totalorder %s86, 0
    %p611 = por %p609, %p610
    %p612 = scmp.ne.s32.totalorder %s600, %s601
    %p613 = scmp.eq.s32.totalorder %s87, 1
    %p614 = por %p612, %p613
    %p616 = scmp.ne.s32.totalorder %s601, %s615
    %p617 = scmp.eq.s32.totalorder %s87, 0
    %p618 = por %p616, %p617
    %s620 = sadd.s32 %s619, 1
    %p623 = scmp.eq.s32.totalorder %s81, 1
    %p624 = scmp.ne.s32.totalorder %s619, %s621
    %p625 = scmp.eq.s32.totalorder %s81, 0
    %p626 = por %p624, %p625
    %p627 = scmp.ne.s32.totalorder %s619, %s621
    %p628 = scmp.eq.s32.totalorder %s86, 1
    %p629 = por %p627, %p628
    %p630 = scmp.ne.s32.totalorder %s621, %s622
    %p631 = scmp.eq.s32.totalorder %s86, 0
    %p632 = por %p630, %p631
    %p633 = scmp.ne.s32.totalorder %s621, %s622
    %p634 = scmp.eq.s32.totalorder %s87, 1
    %p635 = por %p633, %p634
    %p637 = scmp.ne.s32.totalorder %s622, %s636
    %p638 = scmp.eq.s32.totalorder %s87, 0
    %p639 = por %p637, %p638
    %s641 = sadd.s32 %s640, 1
    %p644 = scmp.eq.s32.totalorder %s81, 1
    %p645 = scmp.ne.s32.totalorder %s640, %s642
    %p646 = scmp.eq.s32.totalorder %s81, 0
    %p647 = por %p645, %p646
    %p648 = scmp.ne.s32.totalorder %s640, %s642
    %p649 = scmp.eq.s32.totalorder %s86, 1
    %p650 = por %p648, %p649
    %p651 = scmp.ne.s32.totalorder %s642, %s643
    %p652 = scmp.eq.s32.totalorder %s86, 0
    %p653 = por %p651, %p652
    %p654 = scmp.ne.s32.totalorder %s642, %s643
    %p655 = scmp.eq.s32.totalorder %s87, 1
    %p656 = por %p654, %p655
    %p658 = scmp.ne.s32.totalorder %s643, %s657
    %p659 = scmp.eq.s32.totalorder %s87, 0
    %p660 = por %p658, %p659
    %s662 = sadd.s32 %s661, 1
    %p665 = scmp.eq.s32.totalorder %s81, 1
    %p666 = scmp.ne.s32.totalorder %s661, %s663
    %p667 = scmp.eq.s32.totalorder %s81, 0
    %p668 = por %p666, %p667
    %p669 = scmp.ne.s32.totalorder %s661, %s663
    %p670 = scmp.eq.s32.totalorder %s86, 1
    %p671 = por %p669, %p670
    %p672 = scmp.ne.s32.totalorder %s663, %s664
    %p673 = scmp.eq.s32.totalorder %s86, 0
    %p674 = por %p672, %p673
    %p675 = scmp.ne.s32.totalorder %s663, %s664
    %p676 = scmp.eq.s32.totalorder %s87, 1
    %p677 = por %p675, %p676
    %p679 = scmp.ne.s32.totalorder %s664, %s678
    %p680 = scmp.eq.s32.totalorder %s87, 0
    %p681 = por %p679, %p680
    %s683 = sadd.s32 %s682, 1
    %p686 = scmp.eq.s32.totalorder %s81, 1
    %p687 = scmp.ne.s32.totalorder %s682, %s684
    %p688 = scmp.eq.s32.totalorder %s81, 0
    %p689 = por %p687, %p688
    %p690 = scmp.ne.s32.totalorder %s682, %s684
    %p691 = scmp.eq.s32.totalorder %s86, 1
    %p692 = por %p690, %p691
    %p693 = scmp.ne.s32.totalorder %s684, %s685
    %p694 = scmp.eq.s32.totalorder %s86, 0
    %p695 = por %p693, %p694
    %p696 = scmp.ne.s32.totalorder %s684, %s685
    %p697 = scmp.eq.s32.totalorder %s87, 1
    %p698 = por %p696, %p697
    %p700 = scmp.ne.s32.totalorder %s685, %s699
    %p701 = scmp.eq.s32.totalorder %s87, 0
    %p702 = por %p700, %p701
    %s704 = sadd.s32 %s703, 1
    %p707 = scmp.eq.s32.totalorder %s81, 1
    %p708 = scmp.ne.s32.totalorder %s703, %s705
    %p709 = scmp.eq.s32.totalorder %s81, 0
    %p710 = por %p708, %p709
    %p711 = scmp.ne.s32.totalorder %s703, %s705
    %p712 = scmp.eq.s32.totalorder %s86, 1
    %p713 = por %p711, %p712
    %p714 = scmp.ne.s32.totalorder %s705, %s706
    %p715 = scmp.eq.s32.totalorder %s86, 0
    %p716 = por %p714, %p715
    %p717 = scmp.ne.s32.totalorder %s705, %s706
    %p718 = scmp.eq.s32.totalorder %s87, 1
    %p719 = por %p717, %p718
    %p721 = scmp.ne.s32.totalorder %s706, %s720
    %p722 = scmp.eq.s32.totalorder %s87, 0
    %p723 = por %p721, %p722
    %s725 = sadd.s32 %s724, 1
    %p728 = scmp.eq.s32.totalorder %s81, 1
    %p729 = scmp.ne.s32.totalorder %s724, %s726
    %p730 = scmp.eq.s32.totalorder %s81, 0
    %p731 = por %p729, %p730
    %p732 = scmp.ne.s32.totalorder %s724, %s726
    %p733 = scmp.eq.s32.totalorder %s86, 1
    %p734 = por %p732, %p733
    %p735 = scmp.ne.s32.totalorder %s726, %s727
    %p736 = scmp.eq.s32.totalorder %s86, 0
    %p737 = por %p735, %p736
    %p738 = scmp.ne.s32.totalorder %s726, %s727
    %p739 = scmp.eq.s32.totalorder %s87, 1
    %p740 = por %p738, %p739
    %p742 = scmp.ne.s32.totalorder %s727, %s741
    %p743 = scmp.eq.s32.totalorder %s87, 0
    %p744 = por %p742, %p743
    %s746 = sadd.s32 %s745, 1
    %p749 = scmp.eq.s32.totalorder %s81, 1
    %p750 = scmp.ne.s32.totalorder %s745, %s747
    %p751 = scmp.eq.s32.totalorder %s81, 0
    %p752 = por %p750, %p751
    %p753 = scmp.ne.s32.totalorder %s745, %s747
    %p754 = scmp.eq.s32.totalorder %s86, 1
    %p755 = por %p753, %p754
    %p756 = scmp.ne.s32.totalorder %s747, %s748
    %p757 = scmp.eq.s32.totalorder %s86, 0
    %p758 = por %p756, %p757
    %p759 = scmp.ne.s32.totalorder %s747, %s748
    %p760 = scmp.eq.s32.totalorder %s87, 1
    %p761 = por %p759, %p760
    %p763 = scmp.ne.s32.totalorder %s748, %s762
    %p764 = scmp.eq.s32.totalorder %s87, 0
    %p765 = por %p763, %p764
    %s767 = sadd.s32 %s766, 1
    %p770 = scmp.eq.s32.totalorder %s81, 1
    %p771 = scmp.ne.s32.totalorder %s766, %s768
    %p772 = scmp.eq.s32.totalorder %s81, 0
    %p773 = por %p771, %p772
    %p774 = scmp.ne.s32.totalorder %s766, %s768
    %p775 = scmp.eq.s32.totalorder %s86, 1
    %p776 = por %p774, %p775
    %p777 = scmp.ne.s32.totalorder %s768, %s769
    %p778 = scmp.eq.s32.totalorder %s86, 0
    %p779 = por %p777, %p778
    %p780 = scmp.ne.s32.totalorder %s768, %s769
    %p781 = scmp.eq.s32.totalorder %s87, 1
    %p782 = por %p780, %p781
    %p784 = scmp.ne.s32.totalorder %s769, %s783
    %p785 = scmp.eq.s32.totalorder %s87, 0
    %p786 = por %p784, %p785
    %s788 = sadd.s32 %s787, 1
    %p791 = scmp.eq.s32.totalorder %s81, 1
    %p792 = scmp.ne.s32.totalorder %s787, %s789
    %p793 = scmp.eq.s32.totalorder %s81, 0
    %p794 = por %p792, %p793
    %p795 = scmp.ne.s32.totalorder %s787, %s789
    %p796 = scmp.eq.s32.totalorder %s86, 1
    %p797 = por %p795, %p796
    %p798 = scmp.ne.s32.totalorder %s789, %s790
    %p799 = scmp.eq.s32.totalorder %s86, 0
    %p800 = por %p798, %p799
    %p801 = scmp.ne.s32.totalorder %s789, %s790
    %p802 = scmp.eq.s32.totalorder %s87, 1
    %p803 = por %p801, %p802
    %p805 = scmp.ne.s32.totalorder %s790, %s804
    %p806 = scmp.eq.s32.totalorder %s87, 0
    %p807 = por %p805, %p806
    %s809 = sadd.s32 %s808, 1
    %p812 = scmp.eq.s32.totalorder %s81, 1
    %p813 = scmp.ne.s32.totalorder %s808, %s810
    %p814 = scmp.eq.s32.totalorder %s81, 0
    %p815 = por %p813, %p814
    %p816 = scmp.ne.s32.totalorder %s808, %s810
    %p817 = scmp.eq.s32.totalorder %s86, 1
    %p818 = por %p816, %p817
    %p819 = scmp.ne.s32.totalorder %s810, %s811
    %p820 = scmp.eq.s32.totalorder %s86, 0
    %p821 = por %p819, %p820
    %p822 = scmp.ne.s32.totalorder %s810, %s811
    %p823 = scmp.eq.s32.totalorder %s87, 1
    %p824 = por %p822, %p823
    %p826 = scmp.ne.s32.totalorder %s811, %s825
    %p827 = scmp.eq.s32.totalorder %s87, 0
    %p828 = por %p826, %p827
    %s830 = sadd.s32 %s829, 1
    %p833 = scmp.eq.s32.totalorder %s81, 1
    %p834 = scmp.ne.s32.totalorder %s829, %s831
    %p835 = scmp.eq.s32.totalorder %s81, 0
    %p836 = por %p834, %p835
    %p837 = scmp.ne.s32.totalorder %s829, %s831
    %p838 = scmp.eq.s32.totalorder %s86, 1
    %p839 = por %p837, %p838
    %p840 = scmp.ne.s32.totalorder %s831, %s832
    %p841 = scmp.eq.s32.totalorder %s86, 0
    %p842 = por %p840, %p841
    %p843 = scmp.ne.s32.totalorder %s831, %s832
    %p844 = scmp.eq.s32.totalorder %s87, 1
    %p845 = por %p843, %p844
    %p847 = scmp.ne.s32.totalorder %s832, %s846
    %p848 = scmp.eq.s32.totalorder %s87, 0
    %p849 = por %p847, %p848
    %s851 = sadd.s32 %s850, 1
    %p854 = scmp.eq.s32.totalorder %s81, 1
    %p855 = scmp.ne.s32.totalorder %s850, %s852
    %p856 = scmp.eq.s32.totalorder %s81, 0
    %p857 = por %p855, %p856
    %p858 = scmp.ne.s32.totalorder %s850, %s852
    %p859 = scmp.eq.s32.totalorder %s86, 1
    %p860 = por %p858, %p859
    %p861 = scmp.ne.s32.totalorder %s852, %s853
    %p862 = scmp.eq.s32.totalorder %s86, 0
    %p863 = por %p861, %p862
    %p864 = scmp.ne.s32.totalorder %s852, %s853
    %p865 = scmp.eq.s32.totalorder %s87, 1
    %p866 = por %p864, %p865
    %p868 = scmp.ne.s32.totalorder %s853, %s867
    %p869 = scmp.eq.s32.totalorder %s87, 0
    %p870 = por %p868, %p869
    %s871 = ssub.s32 %s81, %s88
    %p872 = scmp.eq.s32.totalorder %s871, 0
    %s874 = sadd.s32 %s873, 1
    %s875 = scalar_select %p872, %s873, %s874
    %p878 = pneg %p872
    %p879 = scmp.eq.s32.totalorder %s81, 1
    %p880 = por %p878, %p879
    %p881 = scmp.ne.s32.totalorder %s873, %s876
    %p882 = scmp.eq.s32.totalorder %s81, 0
    %p883 = por %p881, %p882
    %p884 = scmp.ne.s32.totalorder %s873, %s876
    %p885 = scmp.eq.s32.totalorder %s86, 1
    %p886 = por %p884, %p885
    %p887 = scmp.ne.s32.totalorder %s876, %s877
    %p888 = scmp.eq.s32.totalorder %s86, 0
    %p889 = por %p887, %p888
    %p890 = scmp.ne.s32.totalorder %s876, %s877
    %p891 = scmp.eq.s32.totalorder %s87, 1
    %p892 = por %p890, %p891
    %p894 = scmp.ne.s32.totalorder %s877, %s893
    %p895 = scmp.eq.s32.totalorder %s87, 0
    %p896 = por %p894, %p895
    %p897 = scmp.le.s32.totalorder 1, %s81
    %p898 = scmp.lt.s32.totalorder %s81, 3
    %p899 = pnand %p897, %p898
    %p900 = pneg %p899
    // Predicated region
    $region9: #{_lambda_.1} parent=5 // pred_check
      _
    $region10: #{_lambda_.1} parent=5 // pred_check_branch
      %902 = sbr.rel (%p899) target = $region12
    $region11: #{_lambda_.1} parent=5 // pred_region
      %s903 = ssub.s32 %s81, 1
      // Predicated region
      $region13: #{_lambda_.1} parent=11 // pred_check
        %p904 = pneg %p128
      $region14: #{_lambda_.1} parent=11 // pred_check_branch
        %906 = sbr.rel (%p904) target = $region16
      $region15: #{_lambda_.1} parent=11 // pred_region
        _
      $region16: #{_lambda_.1} parent=11 // pred_fallthru
        _
      // Predicated region
      $region17: #{_lambda_.1} parent=11 // pred_check
        %p907 = pneg %p149
      $region18: #{_lambda_.1} parent=11 // pred_check_branch
        %909 = sbr.rel (%p907) target = $region20
      $region19: #{_lambda_.1} parent=11 // pred_region
        _
      $region20: #{_lambda_.1} parent=11 // pred_fallthru
        _
      // Predicated region
      $region21: #{_lambda_.1} parent=11 // pred_check
        %p910 = pneg %p170
      $region22: #{_lambda_.1} parent=11 // pred_check_branch
        %912 = sbr.rel (%p910) target = $region24
      $region23: #{_lambda_.1} parent=11 // pred_region
        _
      $region24: #{_lambda_.1} parent=11 // pred_fallthru
        _
      // Predicated region
      $region25: #{_lambda_.1} parent=11 // pred_check
        %p913 = pneg %p191
      $region26: #{_lambda_.1} parent=11 // pred_check_branch
        %915 = sbr.rel (%p913) target = $region28
      $region27: #{_lambda_.1} parent=11 // pred_region
        _
      $region28: #{_lambda_.1} parent=11 // pred_fallthru
        _
      // Predicated region
      $region29: #{_lambda_.1} parent=11 // pred_check
        %p916 = pneg %p212
      $region30: #{_lambda_.1} parent=11 // pred_check_branch
        %918 = sbr.rel (%p916) target = $region32
      $region31: #{_lambda_.1} parent=11 // pred_region
        _
      $region32: #{_lambda_.1} parent=11 // pred_fallthru
        _
      // Predicated region
      $region33: #{_lambda_.1} parent=11 // pred_check
        %p919 = pneg %p233
      $region34: #{_lambda_.1} parent=11 // pred_check_branch
        %921 = sbr.rel (%p919) target = $region36
      $region35: #{_lambda_.1} parent=11 // pred_region
        _
      $region36: #{_lambda_.1} parent=11 // pred_fallthru
        _
      // Predicated region
      $region37: #{_lambda_.1} parent=11 // pred_check
        %p922 = pneg %p254
      $region38: #{_lambda_.1} parent=11 // pred_check_branch
        %924 = sbr.rel (%p922) target = $region40
      $region39: #{_lambda_.1} parent=11 // pred_region
        _
      $region40: #{_lambda_.1} parent=11 // pred_fallthru
        _
      // Predicated region
      $region41: #{_lambda_.1} parent=11 // pred_check
        %p925 = pneg %p275
      $region42: #{_lambda_.1} parent=11 // pred_check_branch
        %927 = sbr.rel (%p925) target = $region44
      $region43: #{_lambda_.1} parent=11 // pred_region
        _
      $region44: #{_lambda_.1} parent=11 // pred_fallthru
        _
      // Predicated region
      $region45: #{_lambda_.1} parent=11 // pred_check
        %p928 = pneg %p296
      $region46: #{_lambda_.1} parent=11 // pred_check_branch
        %930 = sbr.rel (%p928) target = $region48
      $region47: #{_lambda_.1} parent=11 // pred_region
        _
      $region48: #{_lambda_.1} parent=11 // pred_fallthru
        _
      // Predicated region
      $region49: #{_lambda_.1} parent=11 // pred_check
        %p931 = pneg %p317
      $region50: #{_lambda_.1} parent=11 // pred_check_branch
        %933 = sbr.rel (%p931) target = $region52
      $region51: #{_lambda_.1} parent=11 // pred_region
        _
      $region52: #{_lambda_.1} parent=11 // pred_fallthru
        _
      // Predicated region
      $region53: #{_lambda_.1} parent=11 // pred_check
        %p934 = pneg %p338
      $region54: #{_lambda_.1} parent=11 // pred_check_branch
        %936 = sbr.rel (%p934) target = $region56
      $region55: #{_lambda_.1} parent=11 // pred_region
        _
      $region56: #{_lambda_.1} parent=11 // pred_fallthru
        _
      // Predicated region
      $region57: #{_lambda_.1} parent=11 // pred_check
        %p937 = pneg %p359
      $region58: #{_lambda_.1} parent=11 // pred_check_branch
        %939 = sbr.rel (%p937) target = $region60
      $region59: #{_lambda_.1} parent=11 // pred_region
        _
      $region60: #{_lambda_.1} parent=11 // pred_fallthru
        _
      // Predicated region
      $region61: #{_lambda_.1} parent=11 // pred_check
        %p940 = pneg %p380
      $region62: #{_lambda_.1} parent=11 // pred_check_branch
        %942 = sbr.rel (%p940) target = $region64
      $region63: #{_lambda_.1} parent=11 // pred_region
        _
      $region64: #{_lambda_.1} parent=11 // pred_fallthru
        _
      // Predicated region
      $region65: #{_lambda_.1} parent=11 // pred_check
        %p943 = pneg %p401
      $region66: #{_lambda_.1} parent=11 // pred_check_branch
        %945 = sbr.rel (%p943) target = $region68
      $region67: #{_lambda_.1} parent=11 // pred_region
        _
      $region68: #{_lambda_.1} parent=11 // pred_fallthru
        _
      // Predicated region
      $region69: #{_lambda_.1} parent=11 // pred_check
        %p946 = pneg %p422
      $region70: #{_lambda_.1} parent=11 // pred_check_branch
        %948 = sbr.rel (%p946) target = $region72
      $region71: #{_lambda_.1} parent=11 // pred_region
        _
      $region72: #{_lambda_.1} parent=11 // pred_fallthru
        _
      // Predicated region
      $region73: #{_lambda_.1} parent=11 // pred_check
        %p949 = pneg %p443
      $region74: #{_lambda_.1} parent=11 // pred_check_branch
        %951 = sbr.rel (%p949) target = $region76
      $region75: #{_lambda_.1} parent=11 // pred_region
        _
      $region76: #{_lambda_.1} parent=11 // pred_fallthru
        _
      // Predicated region
      $region77: #{_lambda_.1} parent=11 // pred_check
        %p952 = pneg %p464
      $region78: #{_lambda_.1} parent=11 // pred_check_branch
        %954 = sbr.rel (%p952) target = $region80
      $region79: #{_lambda_.1} parent=11 // pred_region
        _
      $region80: #{_lambda_.1} parent=11 // pred_fallthru
        _
      // Predicated region
      $region81: #{_lambda_.1} parent=11 // pred_check
        %p955 = pneg %p485
      $region82: #{_lambda_.1} parent=11 // pred_check_branch
        %957 = sbr.rel (%p955) target = $region84
      $region83: #{_lambda_.1} parent=11 // pred_region
        _
      $region84: #{_lambda_.1} parent=11 // pred_fallthru
        _
      // Predicated region
      $region85: #{_lambda_.1} parent=11 // pred_check
        %p958 = pneg %p506
      $region86: #{_lambda_.1} parent=11 // pred_check_branch
        %960 = sbr.rel (%p958) target = $region88
      $region87: #{_lambda_.1} parent=11 // pred_region
        _
      $region88: #{_lambda_.1} parent=11 // pred_fallthru
        _
      // Predicated region
      $region89: #{_lambda_.1} parent=11 // pred_check
        %p961 = pneg %p527
      $region90: #{_lambda_.1} parent=11 // pred_check_branch
        %963 = sbr.rel (%p961) target = $region92
      $region91: #{_lambda_.1} parent=11 // pred_region
        _
      $region92: #{_lambda_.1} parent=11 // pred_fallthru
        _
      // Predicated region
      $region93: #{_lambda_.1} parent=11 // pred_check
        %p964 = pneg %p548
      $region94: #{_lambda_.1} parent=11 // pred_check_branch
        %966 = sbr.rel (%p964) target = $region96
      $region95: #{_lambda_.1} parent=11 // pred_region
        _
      $region96: #{_lambda_.1} parent=11 // pred_fallthru
        _
      // Predicated region
      $region97: #{_lambda_.1} parent=11 // pred_check
        %p967 = pneg %p569
      $region98: #{_lambda_.1} parent=11 // pred_check_branch
        %969 = sbr.rel (%p967) target = $region100
      $region99: #{_lambda_.1} parent=11 // pred_region
        _
      $region100: #{_lambda_.1} parent=11 // pred_fallthru
        _
      // Predicated region
      $region101: #{_lambda_.1} parent=11 // pred_check
        %p970 = pneg %p590
      $region102: #{_lambda_.1} parent=11 // pred_check_branch
        %972 = sbr.rel (%p970) target = $region104
      $region103: #{_lambda_.1} parent=11 // pred_region
        _
      $region104: #{_lambda_.1} parent=11 // pred_fallthru
        _
      // Predicated region
      $region105: #{_lambda_.1} parent=11 // pred_check
        %p973 = pneg %p611
      $region106: #{_lambda_.1} parent=11 // pred_check_branch
        %975 = sbr.rel (%p973) target = $region108
      $region107: #{_lambda_.1} parent=11 // pred_region
        _
      $region108: #{_lambda_.1} parent=11 // pred_fallthru
        _
      // Predicated region
      $region109: #{_lambda_.1} parent=11 // pred_check
        %p976 = pneg %p632
      $region110: #{_lambda_.1} parent=11 // pred_check_branch
        %978 = sbr.rel (%p976) target = $region112
      $region111: #{_lambda_.1} parent=11 // pred_region
        _
      $region112: #{_lambda_.1} parent=11 // pred_fallthru
        _
      // Predicated region
      $region113: #{_lambda_.1} parent=11 // pred_check
        %p979 = pneg %p653
      $region114: #{_lambda_.1} parent=11 // pred_check_branch
        %981 = sbr.rel (%p979) target = $region116
      $region115: #{_lambda_.1} parent=11 // pred_region
        _
      $region116: #{_lambda_.1} parent=11 // pred_fallthru
        _
      // Predicated region
      $region117: #{_lambda_.1} parent=11 // pred_check
        %p982 = pneg %p674
      $region118: #{_lambda_.1} parent=11 // pred_check_branch
        %984 = sbr.rel (%p982) target = $region120
      $region119: #{_lambda_.1} parent=11 // pred_region
        _
      $region120: #{_lambda_.1} parent=11 // pred_fallthru
        _
      // Predicated region
      $region121: #{_lambda_.1} parent=11 // pred_check
        %p985 = pneg %p695
      $region122: #{_lambda_.1} parent=11 // pred_check_branch
        %987 = sbr.rel (%p985) target = $region124
      $region123: #{_lambda_.1} parent=11 // pred_region
        _
      $region124: #{_lambda_.1} parent=11 // pred_fallthru
        _
      // Predicated region
      $region125: #{_lambda_.1} parent=11 // pred_check
        %p988 = pneg %p716
      $region126: #{_lambda_.1} parent=11 // pred_check_branch
        %990 = sbr.rel (%p988) target = $region128
      $region127: #{_lambda_.1} parent=11 // pred_region
        _
      $region128: #{_lambda_.1} parent=11 // pred_fallthru
        _
      // Predicated region
      $region129: #{_lambda_.1} parent=11 // pred_check
        %p991 = pneg %p737
      $region130: #{_lambda_.1} parent=11 // pred_check_branch
        %993 = sbr.rel (%p991) target = $region132
      $region131: #{_lambda_.1} parent=11 // pred_region
        _
      $region132: #{_lambda_.1} parent=11 // pred_fallthru
        _
      // Predicated region
      $region133: #{_lambda_.1} parent=11 // pred_check
        %p994 = pneg %p758
      $region134: #{_lambda_.1} parent=11 // pred_check_branch
        %996 = sbr.rel (%p994) target = $region136
      $region135: #{_lambda_.1} parent=11 // pred_region
        _
      $region136: #{_lambda_.1} parent=11 // pred_fallthru
        _
      // Predicated region
      $region137: #{_lambda_.1} parent=11 // pred_check
        %p997 = pneg %p779
      $region138: #{_lambda_.1} parent=11 // pred_check_branch
        %999 = sbr.rel (%p997) target = $region140
      $region139: #{_lambda_.1} parent=11 // pred_region
        _
      $region140: #{_lambda_.1} parent=11 // pred_fallthru
        _
      // Predicated region
      $region141: #{_lambda_.1} parent=11 // pred_check
        %p1000 = pneg %p800
      $region142: #{_lambda_.1} parent=11 // pred_check_branch
        %1002 = sbr.rel (%p1000) target = $region144
      $region143: #{_lambda_.1} parent=11 // pred_region
        _
      $region144: #{_lambda_.1} parent=11 // pred_fallthru
        _
      // Predicated region
      $region145: #{_lambda_.1} parent=11 // pred_check
        %p1003 = pneg %p821
      $region146: #{_lambda_.1} parent=11 // pred_check_branch
        %1005 = sbr.rel (%p1003) target = $region148
      $region147: #{_lambda_.1} parent=11 // pred_region
        _
      $region148: #{_lambda_.1} parent=11 // pred_fallthru
        _
      // Predicated region
      $region149: #{_lambda_.1} parent=11 // pred_check
        %p1006 = pneg %p842
      $region150: #{_lambda_.1} parent=11 // pred_check_branch
        %1008 = sbr.rel (%p1006) target = $region152
      $region151: #{_lambda_.1} parent=11 // pred_region
        _
      $region152: #{_lambda_.1} parent=11 // pred_fallthru
        _
      // Predicated region
      $region153: #{_lambda_.1} parent=11 // pred_check
        %p1009 = pneg %p863
      $region154: #{_lambda_.1} parent=11 // pred_check_branch
        %1011 = sbr.rel (%p1009) target = $region156
      $region155: #{_lambda_.1} parent=11 // pred_region
        _
      $region156: #{_lambda_.1} parent=11 // pred_fallthru
        _
    $region12: #{_lambda_.1} parent=5 // pred_fallthru
      _
    %p1012 = scmp.lt.s32.totalorder %s81, 2
    // Predicated region
    $region157: #{_lambda_.1} parent=5 // pred_check
      %p1013 = pneg %p1012
    $region158: #{_lambda_.1} parent=5 // pred_check_branch
      %1015 = sbr.rel (%p1013) target = $region160
    $region159: #{_lambda_.1} parent=5 // pred_region
      // Predicated region
      $region161: #{_lambda_.1} parent=159 // pred_check
        %p1016 = pneg %p101
      $region162: #{_lambda_.1} parent=159 // pred_check_branch
        %1018 = sbr.rel (%p1016) target = $region164
      $region163: #{_lambda_.1} parent=159 // pred_region
        %p1019 = scmp.lt.s32.totalorder %s81, 1
        %s1020 = scalar_select %p1019, %s81, 1
        %s1021 = smul.addr %s1020, 8
        %s1022 = scalar_lea.vmem %s1, %s1021
      $region164: #{_lambda_.1} parent=159 // pred_fallthru
        _
    $region160: #{_lambda_.1} parent=5 // pred_fallthru
      _
    %p1023 = scmp.le.s32.totalorder 1, %s81
    %p1024 = scmp.lt.s32.totalorder %s81, 3
    %p1025 = pnand %p1023, %p1024
    %p1026 = pneg %p1025
    // Predicated region
    $region165: #{_lambda_.1} parent=5 // pred_check
      _
    $region166: #{_lambda_.1} parent=5 // pred_check_branch
      %1028 = sbr.rel (%p1025) target = $region168
    $region167: #{_lambda_.1} parent=5 // pred_region
      %s1029 = ssub.s32 %s81, 1
      %p1030 = scmp.lt.s32.totalorder %s86, 1
      %s1031 = scalar_select %p1030, %s86, 1
      %s1032 = smul.addr %s1031, 8
      %s1033 = scalar_lea.vmem %s1, %s1032
      %p1034 = pneg %p107
      %p1035 = pneg %p104
      %p1036 = pneg %p128
      %p1037 = pneg %p125
      %p1038 = pneg %p149
      %p1039 = pneg %p146
      %p1040 = pneg %p170
      %p1041 = pneg %p167
      %p1042 = pneg %p191
      %p1043 = pneg %p188
      %p1044 = pneg %p212
      %p1045 = pneg %p209
      %p1046 = pneg %p233
      %p1047 = pneg %p230
      %p1048 = pneg %p254
      %p1049 = pneg %p251
      %p1050 = pneg %p275
      %p1051 = pneg %p272
      %p1052 = pneg %p296
      %p1053 = pneg %p293
      %p1054 = pneg %p317
      %p1055 = pneg %p314
      %p1056 = pneg %p338
      %p1057 = pneg %p335
      %p1058 = pneg %p359
      %p1059 = pneg %p356
      %p1060 = pneg %p380
      %p1061 = pneg %p377
      %p1062 = pneg %p401
      %p1063 = pneg %p398
      %p1064 = pneg %p422
      %p1065 = pneg %p419
      %p1066 = pneg %p443
      %p1067 = pneg %p440
      %p1068 = pneg %p464
      %p1069 = pneg %p461
      %p1070 = pneg %p485
      %p1071 = pneg %p482
      %p1072 = pneg %p506
      %p1073 = pneg %p503
      %p1074 = pneg %p527
      %p1075 = pneg %p524
      %p1076 = pneg %p548
      %p1077 = pneg %p545
      %p1078 = pneg %p569
      %p1079 = pneg %p566
      %p1080 = pneg %p590
      %p1081 = pneg %p587
      %p1082 = pneg %p611
      %p1083 = pneg %p608
      %p1084 = pneg %p632
      %p1085 = pneg %p629
      %p1086 = pneg %p653
      %p1087 = pneg %p650
      %p1088 = pneg %p674
      %p1089 = pneg %p671
      %p1090 = pneg %p695
      %p1091 = pneg %p692
      %p1092 = pneg %p716
      %p1093 = pneg %p713
      %p1094 = pneg %p737
      %p1095 = pneg %p734
      %p1096 = pneg %p758
      %p1097 = pneg %p755
      %p1098 = pneg %p779
      %p1099 = pneg %p776
      %p1100 = pneg %p800
      %p1101 = pneg %p797
      %p1102 = pneg %p821
      %p1103 = pneg %p818
      %p1104 = pneg %p842
      %p1105 = pneg %p839
      %p1106 = pneg %p863
      %p1107 = pneg %p860
      %p1108 = pneg %p889
      %p1109 = pneg %p886
      %p1110 = scmp.lt.s32.totalorder %s86, 1
      %s1111 = scalar_select %p1110, %s86, 1
      %s1112 = smul.addr %s1111, 8
      %s1113 = scalar_lea.vmem %s75, %s1112
      %p1114 = scmp.lt.s32.totalorder %s86, 1
      %s1115 = scalar_select %p1114, %s86, 1
      %s1116 = smul.addr %s1115, 8
      %s1117 = scalar_lea.vmem %s1, %s1116
      %p1118 = scmp.lt.s32.totalorder %s86, 1
      %s1119 = scalar_select %p1118, %s86, 1
      %s1120 = smul.addr %s1119, 8
      %s1121 = scalar_lea.vmem %s75, %s1120
      %v1123 = vlaneseq
      %v1124 = vshrl.u32 %v1123, 7
      %v1125 = vlaneseq
      %v1126 = vand.u32 %v1125, 127
      %vm1127 = vcmp.le.s32.totalorder %v1126, %v1124
      %v1128 = vsel %vm1127, 0.0, -1e+30
      %v1129 = vld [vmem:[%s1117] sm:$0xff]
      %v1130 = vmul.f32 %v1129, 5.656854
      %v1131 = vld [vmem:[%s3] sm:$0xf]
      %v1132 = vld [vmem:[%s3 + $0x4] sm:$0xf]
      %v1133 = vld [vmem:[%s3 + $0x8] sm:$0xf]
      %v1134 = vld [vmem:[%s3 + $0xc] sm:$0xf]
      %v1135 = vpack.c.bf16 %v1130, %v1130
      %v1136 = vld [vmem:[%s5] sm:$0x1]
      %v1138 = vperm.slane %v1136, 0
      %v1144 = vunpack.c.l.b16 %v1131
      %v1145 = vunpack.c.l.b16 %v1132
      %v1146 = vunpack.c.l.b16 %v1133
      %v1147 = vunpack.c.l.b16 %v1134
      %v1148 = vpack.c.b16 %v1145, %v1144
      %v1149 = vpack.c.b16 %v1147, %v1146
      %vm1152 = vcmask 261120
      %v1154 = vsel %vm1152, %v1135, 0
      %1156 = vmatpush.bf16.msra.mxu0 0
      %1157 = vmatpush.bf16.msra.mxu0 0
      %1158 = vmatpush.bf16.msra.mxu0 0
      %1159 = vmatpush.bf16.msra.mxu0 0
      %1160 = vmatpush.bf16.msra.mxu0 0
      %1161 = vmatpush.bf16.msra.mxu0 0
      %1162 = vmatpush.bf16.msra.mxu0 %v1149
      %1163 = vmatpush.bf16.msra.mxu0 %v1148
      %1164 = vmatmul.bf16.gmra.mxu0 %v1154
      %v1165 = vpop.f32.mrf.mxu0
      %v1166 = vadd.f32 %v1138, %v1165
      %v1167 = vpop.f32.mrf.mxu0
      %1168 = vdwg.mxu0
      %v1169 = vld [vmem:[%s7] sm:$0xf]
      %v1170 = vld [vmem:[%s7 + $0x4] sm:$0xf]
      %v1171 = vld [vmem:[%s7 + $0x8] sm:$0xf]
      %v1172 = vld [vmem:[%s7 + $0xc] sm:$0xf]
      %v1173 = vld [vmem:[%s9] sm:$0x1]
      %v1174 = vpack.c.bf16 %v1166, %v1166
      %v1176 = vunpack.c.l.b16 %v1174
      %v1177 = vpack.c.b16 %v1176, %v1176
      %1178 = vrot.lane.b32.xlu0 %v1177, 96
      %v1179 = vpop.permute.xlu0 %1178
      %vm1180 = vcmask 64512
      %v1182 = vsel %vm1180, %v1174, 0
      %v1185 = vsel %vm1180, %v1179, 0
      %1187 = vmatpush.bf16.xpose.msra.mxu0 0
      %1188 = vmatpush.bf16.xpose.msra.mxu0 0
      %1189 = vmatpush.bf16.xpose.msra.mxu0 0
      %1190 = vmatpush.bf16.xpose.msra.mxu0 0
      %1191 = vmatpush.bf16.xpose.msra.mxu0 0
      %1192 = vmatpush.bf16.xpose.msra.mxu0 0
      %1193 = vmatpush.bf16.xpose.msra.mxu0 0
      %1194 = vmatpush.bf16.xpose.msra.mxu0 %v1185
      %1195 = vmatmul.bf16.gmra.mxu0 %v1182
      %v1196 = vpop.f32.mrf.mxu0
      %v1197 = vadd.f32 0.0, %v1196
      %v1198 = vpop.f32.mrf.mxu0
      %1199 = vdwg.mxu0
      %v1200 = vmul.f32 %v1197, 0.35355338
      %v1201 = vadd.f32 %v1200, %v1128
      %v1202 = vsel %vm1180, %v1201, -inf
      %1203 = vmax.xlane.f32.xlu0 %v1202
      %v1204 = vpop.xlane.xlu0 %1203
      %v1205 = vsub.f32 %v1201, %v1204
      %v1206 = vmul.f32 %v1205, 1.442695
      %v1207 = vpow.pop %v1206
      %v1208 = vsel %vm1180, %v1207, 0.0
      %1209 = vadd.xlane.f32.xlu0 %v1208
      %v1210 = vpop.xlane.xlu0 %1209
      %v1211 = vrcp.pop %v1210
      %v1212 = vmul.f32 %v1207, %v1211
      %v1213 = vpack.c.bf16 %v1212, %v1212
      %1214 = vrot.lane.b32.xlu0 %v1177, 64
      %v1215 = vpop.permute.xlu0 %1214
      %v1217 = vsel %vm1180, %v1213, 0
      %vm1219 = vcmask 1043456
      %v1221 = vsel %vm1219, %v1215, 0
      %1223 = vmatpush.bf16.msra.mxu0 0
      %1224 = vmatpush.bf16.msra.mxu0 0
      %1225 = vmatpush.bf16.msra.mxu0 0
      %1226 = vmatpush.bf16.msra.mxu0 0
      %1227 = vmatpush.bf16.msra.mxu0 0
      %1228 = vmatpush.bf16.msra.mxu0 0
      %1229 = vmatpush.bf16.msra.mxu0 0
      %1230 = vmatpush.bf16.msra.mxu0 %v1221
      %1231 = vmatmul.bf16.gmra.mxu0 %v1217
      %v1232 = vpop.f32.mrf.mxu0
      %v1233 = vadd.f32 0.0, %v1232
      %v1234 = vpop.f32.mrf.mxu0
      %1235 = vdwg.mxu0
      %v1236 = vpack.c.bf16 %v1233, %v1233
      %1237 = vrot.lane.b32.xlu0 %v1177, 120
      %v1238 = vpop.permute.xlu0 %1237
      %1239 = vrot.lane.b32.xlu0 %v1177, 88
      %v1240 = vpop.permute.xlu0 %1239
      %v1242 = vsel %vm1180, %v1238, 0
      %v1245 = vsel %vm1180, %v1240, 0
      %1247 = vmatpush.bf16.xpose.msra.mxu0 0
      %1248 = vmatpush.bf16.xpose.msra.mxu0 0
      %1249 = vmatpush.bf16.xpose.msra.mxu0 0
      %1250 = vmatpush.bf16.xpose.msra.mxu0 0
      %1251 = vmatpush.bf16.xpose.msra.mxu0 0
      %1252 = vmatpush.bf16.xpose.msra.mxu0 0
      %1253 = vmatpush.bf16.xpose.msra.mxu0 0
      %1254 = vmatpush.bf16.xpose.msra.mxu0 %v1245
      %1255 = vmatmul.bf16.gmra.mxu0 %v1242
      %v1256 = vpop.f32.mrf.mxu0
      %v1257 = vadd.f32 0.0, %v1256
      %v1258 = vpop.f32.mrf.mxu0
      %1259 = vdwg.mxu0
      %v1260 = vmul.f32 %v1257, 0.35355338
      %v1261 = vadd.f32 %v1260, %v1128
      %v1262 = vsel %vm1180, %v1261, -inf
      %1263 = vmax.xlane.f32.xlu0 %v1262
      %v1264 = vpop.xlane.xlu0 %1263
      %v1265 = vsub.f32 %v1261, %v1264
      %v1266 = vmul.f32 %v1265, 1.442695
      %v1267 = vpow.pop %v1266
      %v1268 = vsel %vm1180, %v1267, 0.0
      %1269 = vadd.xlane.f32.xlu0 %v1268
      %v1270 = vpop.xlane.xlu0 %1269
      %v1271 = vrcp.pop %v1270
      %v1272 = vmul.f32 %v1267, %v1271
      %v1273 = vpack.c.bf16 %v1272, %v1272
      %1274 = vrot.lane.b32.xlu0 %v1177, 56
      %v1275 = vpop.permute.xlu0 %1274
      %v1277 = vsel %vm1180, %v1273, 0
      %v1280 = vsel %vm1219, %v1275, 0
      %1282 = vmatpush.bf16.msra.mxu0 0
      %1283 = vmatpush.bf16.msra.mxu0 0
      %1284 = vmatpush.bf16.msra.mxu0 0
      %1285 = vmatpush.bf16.msra.mxu0 0
      %1286 = vmatpush.bf16.msra.mxu0 0
      %1287 = vmatpush.bf16.msra.mxu0 0
      %1288 = vmatpush.bf16.msra.mxu0 0
      %1289 = vmatpush.bf16.msra.mxu0 %v1280
      %1290 = vmatmul.bf16.gmra.mxu0 %v1277
      %v1291 = vpop.f32.mrf.mxu0
      %v1292 = vadd.f32 0.0, %v1291
      %v1293 = vpop.f32.mrf.mxu0
      %1294 = vdwg.mxu0
      %v1295 = vpack.c.bf16 %v1292, %v1292
      %v1297 = vsel %vm1180, %v1295, 0
      %v1300 = vsel %vm1219, %v1170, 0
      %1302 = vmatpush.bf16.msra.mxu0 0
      %1303 = vmatpush.bf16.msra.mxu0 0
      %1304 = vmatpush.bf16.msra.mxu0 0
      %1305 = vmatpush.bf16.msra.mxu0 0
      %1306 = vmatpush.bf16.msra.mxu0 0
      %1307 = vmatpush.bf16.msra.mxu0 0
      %1308 = vmatpush.bf16.msra.mxu0 0
      %1309 = vmatpush.bf16.msra.mxu0 %v1300
      %1310 = vmatmul.bf16.gmra.mxu0 %v1297
      %v1311 = vpop.f32.mrf.mxu0
      %v1312 = vadd.f32 0.0, %v1311
      %v1313 = vpop.f32.mrf.mxu0
      %1314 = vdwg.mxu0
      %v1316 = vsel %vm1180, %v1236, 0
      %v1319 = vsel %vm1219, %v1169, 0
      %1321 = vmatpush.bf16.msra.mxu0 0
      %1322 = vmatpush.bf16.msra.mxu0 0
      %1323 = vmatpush.bf16.msra.mxu0 0
      %1324 = vmatpush.bf16.msra.mxu0 0
      %1325 = vmatpush.bf16.msra.mxu0 0
      %1326 = vmatpush.bf16.msra.mxu0 0
      %1327 = vmatpush.bf16.msra.mxu0 0
      %1328 = vmatpush.bf16.msra.mxu0 %v1319
      %1329 = vmatmul.bf16.gmra.mxu0 %v1316
      %v1330 = vpop.f32.mrf.mxu0
      %v1331 = vadd.f32 %v1312, %v1330
      %v1332 = vpop.f32.mrf.mxu0
      %1333 = vdwg.mxu0
      %1334 = vrot.lane.b32.xlu0 %v1177, 112
      %v1335 = vpop.permute.xlu0 %1334
      %1336 = vrot.lane.b32.xlu0 %v1177, 80
      %v1337 = vpop.permute.xlu0 %1336
      %v1339 = vsel %vm1180, %v1335, 0
      %v1342 = vsel %vm1180, %v1337, 0
      %1344 = vmatpush.bf16.xpose.msra.mxu0 0
      %1345 = vmatpush.bf16.xpose.msra.mxu0 0
      %1346 = vmatpush.bf16.xpose.msra.mxu0 0
      %1347 = vmatpush.bf16.xpose.msra.mxu0 0
      %1348 = vmatpush.bf16.xpose.msra.mxu0 0
      %1349 = vmatpush.bf16.xpose.msra.mxu0 0
      %1350 = vmatpush.bf16.xpose.msra.mxu0 0
      %1351 = vmatpush.bf16.xpose.msra.mxu0 %v1342
      %1352 = vmatmul.bf16.gmra.mxu0 %v1339
      %v1353 = vpop.f32.mrf.mxu0
      %v1354 = vadd.f32 0.0, %v1353
      %v1355 = vpop.f32.mrf.mxu0
      %1356 = vdwg.mxu0
      %v1357 = vmul.f32 %v1354, 0.35355338
      %v1358 = vadd.f32 %v1357, %v1128
      %v1359 = vsel %vm1180, %v1358, -inf
      %1360 = vmax.xlane.f32.xlu0 %v1359
      %v1361 = vpop.xlane.xlu0 %1360
      %v1362 = vsub.f32 %v1358, %v1361
      %v1363 = vmul.f32 %v1362, 1.442695
      %v1364 = vpow.pop %v1363
      %v1365 = vsel %vm1180, %v1364, 0.0
      %1366 = vadd.xlane.f32.xlu0 %v1365
      %v1367 = vpop.xlane.xlu0 %1366
      %v1368 = vrcp.pop %v1367
      %v1369 = vmul.f32 %v1364, %v1368
      %v1370 = vpack.c.bf16 %v1369, %v1369
      %1371 = vrot.lane.b32.xlu0 %v1177, 48
      %v1372 = vpop.permute.xlu0 %1371
      %v1374 = vsel %vm1180, %v1370, 0
      %v1377 = vsel %vm1219, %v1372, 0
      %1379 = vmatpush.bf16.msra.mxu0 0
      %1380 = vmatpush.bf16.msra.mxu0 0
      %1381 = vmatpush.bf16.msra.mxu0 0
      %1382 = vmatpush.bf16.msra.mxu0 0
      %1383 = vmatpush.bf16.msra.mxu0 0
      %1384 = vmatpush.bf16.msra.mxu0 0
      %1385 = vmatpush.bf16.msra.mxu0 0
      %1386 = vmatpush.bf16.msra.mxu0 %v1377
      %1387 = vmatmul.bf16.gmra.mxu0 %v1374
      %v1388 = vpop.f32.mrf.mxu0
      %v1389 = vadd.f32 0.0, %v1388
      %v1390 = vpop.f32.mrf.mxu0
      %1391 = vdwg.mxu0
      %v1392 = vpack.c.bf16 %v1389, %v1389
      %v1394 = vsel %vm1180, %v1392, 0
      %v1397 = vsel %vm1219, %v1171, 0
      %1399 = vmatpush.bf16.msra.mxu0 0
      %1400 = vmatpush.bf16.msra.mxu0 0
      %1401 = vmatpush.bf16.msra.mxu0 0
      %1402 = vmatpush.bf16.msra.mxu0 0
      %1403 = vmatpush.bf16.msra.mxu0 0
      %1404 = vmatpush.bf16.msra.mxu0 0
      %1405 = vmatpush.bf16.msra.mxu0 0
      %1406 = vmatpush.bf16.msra.mxu0 %v1397
      %1407 = vmatmul.bf16.gmra.mxu0 %v1394
      %v1408 = vpop.f32.mrf.mxu0
      %v1409 = vadd.f32 0.0, %v1408
      %v1410 = vpop.f32.mrf.mxu0
      %1411 = vdwg.mxu0
      %v1412 = vadd.f32 %v1331, %v1409
      %1413 = vrot.lane.b32.xlu0 %v1177, 104
      %v1414 = vpop.permute.xlu0 %1413
      %1415 = vrot.lane.b32.xlu0 %v1177, 72
      %v1416 = vpop.permute.xlu0 %1415
      %v1418 = vsel %vm1180, %v1414, 0
      %v1421 = vsel %vm1180, %v1416, 0
      %1423 = vmatpush.bf16.xpose.msra.mxu0 0
      %1424 = vmatpush.bf16.xpose.msra.mxu0 0
      %1425 = vmatpush.bf16.xpose.msra.mxu0 0
      %1426 = vmatpush.bf16.xpose.msra.mxu0 0
      %1427 = vmatpush.bf16.xpose.msra.mxu0 0
      %1428 = vmatpush.bf16.xpose.msra.mxu0 0
      %1429 = vmatpush.bf16.xpose.msra.mxu0 0
      %1430 = vmatpush.bf16.xpose.msra.mxu0 %v1421
      %1431 = vmatmul.bf16.gmra.mxu0 %v1418
      %v1432 = vpop.f32.mrf.mxu0
      %v1433 = vadd.f32 0.0, %v1432
      %v1434 = vpop.f32.mrf.mxu0
      %1435 = vdwg.mxu0
      %v1436 = vmul.f32 %v1433, 0.35355338
      %v1437 = vadd.f32 %v1436, %v1128
      %v1438 = vsel %vm1180, %v1437, -inf
      %1439 = vmax.xlane.f32.xlu0 %v1438
      %v1440 = vpop.xlane.xlu0 %1439
      %v1441 = vsub.f32 %v1437, %v1440
      %v1442 = vmul.f32 %v1441, 1.442695
      %v1443 = vpow.pop %v1442
      %v1444 = vsel %vm1180, %v1443, 0.0
      %1445 = vadd.xlane.f32.xlu0 %v1444
      %v1446 = vpop.xlane.xlu0 %1445
      %v1447 = vrcp.pop %v1446
      %v1448 = vmul.f32 %v1443, %v1447
      %v1449 = vpack.c.bf16 %v1448, %v1448
      %1450 = vrot.lane.b32.xlu0 %v1177, 40
      %v1451 = vpop.permute.xlu0 %1450
      %v1453 = vsel %vm1180, %v1449, 0
      %v1456 = vsel %vm1219, %v1451, 0
      %1458 = vmatpush.bf16.msra.mxu0 0
      %1459 = vmatpush.bf16.msra.mxu0 0
      %1460 = vmatpush.bf16.msra.mxu0 0
      %1461 = vmatpush.bf16.msra.mxu0 0
      %1462 = vmatpush.bf16.msra.mxu0 0
      %1463 = vmatpush.bf16.msra.mxu0 0
      %1464 = vmatpush.bf16.msra.mxu0 0
      %1465 = vmatpush.bf16.msra.mxu0 %v1456
      %1466 = vmatmul.bf16.gmra.mxu0 %v1453
      %v1467 = vpop.f32.mrf.mxu0
      %v1468 = vadd.f32 0.0, %v1467
      %v1469 = vpop.f32.mrf.mxu0
      %1470 = vdwg.mxu0
      %v1471 = vpack.c.bf16 %v1468, %v1468
      %v1473 = vsel %vm1180, %v1471, 0
      %v1476 = vsel %vm1219, %v1172, 0
      %1478 = vmatpush.bf16.msra.mxu0 0
      %1479 = vmatpush.bf16.msra.mxu0 0
      %1480 = vmatpush.bf16.msra.mxu0 0
      %1481 = vmatpush.bf16.msra.mxu0 0
      %1482 = vmatpush.bf16.msra.mxu0 0
      %1483 = vmatpush.bf16.msra.mxu0 0
      %1484 = vmatpush.bf16.msra.mxu0 0
      %1485 = vmatpush.bf16.msra.mxu0 %v1476
      %1486 = vmatmul.bf16.gmra.mxu0 %v1473
      %v1487 = vpop.f32.mrf.mxu0
      %v1488 = vadd.f32 0.0, %v1487
      %v1489 = vpop.f32.mrf.mxu0
      %1490 = vdwg.mxu0
      %v1491 = vadd.f32 %v1412, %v1488
      %v1493 = vperm.slane %v1173, 0
      %v1495 = vadd.f32 %v1491, %v1493
      %v1496 = vadd.f32 %v1495, %v1130
      %v1497 = vld [vmem:[%s19] sm:$0x1]
      %v1498 = vld [vmem:[%s21] sm:$0x1]
      %v1499 = vsel %vm1152, %v1496, 0.0
      %1500 = vadd.xlane.f32.xlu0 %v1499
      %v1501 = vpop.xlane.xlu0 %1500
      %v1502 = vrcp.pop 32.0
      %v1503 = vmul.f32 32.0, %v1502
      %v1504 = vsub.f32 1.0, %v1503
      %v1505 = vmul.f32 %v1502, %v1504
      %v1506 = vadd.f32 %v1502, %v1505
      %vm1507 = vweird.f32 %v1502
      %v1508 = vsel %vm1507, %v1502, %v1506
      %v1509 = vmul.f32 %v1501, %v1508
      %v1510 = vsub.f32 %v1496, %v1509
      %v1511 = vmul.f32 %v1510, %v1510
      %v1512 = vsel %vm1152, %v1511, 0.0
      %1513 = vadd.xlane.f32.xlu0 %v1512
      %v1514 = vpop.xlane.xlu0 %1513
      %v1515 = vmul.f32 %v1514, %v1508
      %v1516 = vadd.f32 %v1515, 1e-05
      %v1517 = vrsqrt.pop %v1516
      %v1518 = vmul.f32 %v1517, %v1516
      %v1519 = vmul.f32 %v1518, %v1517
      %v1520 = vmul.f32 0.5, %v1519
      %v1521 = vsub.f32 1.5, %v1520
      %v1522 = vmul.f32 %v1517, %v1521
      %vm1523 = vweird.f32 %v1516
      %vm1524 = vweird.f32 %v1517
      %vm1525 = vmor %vm1523, %vm1524
      %v1526 = vsel %vm1525, %v1517, %v1522
      %v1527 = vmul.f32 %v1510, %v1526
      %v1529 = vperm.slane %v1497, 0
      %v1531 = vmul.f32 %v1527, %v1529
      %v1533 = vperm.slane %v1498, 0
      %v1535 = vadd.f32 %v1531, %v1533
      %v1536 = vld [vmem:[%s11] sm:$0xf]
      %v1537 = vld [vmem:[%s11 + $0x4] sm:$0xf]
      %v1538 = vld [vmem:[%s11 + $0x8] sm:$0xf]
      %v1539 = vld [vmem:[%s11 + $0xc] sm:$0xf]
      %v1540 = vpack.c.bf16 %v1535, %v1535
      %v1541 = vld [vmem:[%s13] sm:$0x1]
      %v1543 = vperm.slane %v1541, 0
      %v1549 = vunpack.c.l.b16 %v1536
      %v1550 = vunpack.c.l.b16 %v1537
      %v1551 = vunpack.c.l.b16 %v1538
      %v1552 = vunpack.c.l.b16 %v1539
      %v1553 = vpack.c.b16 %v1550, %v1549
      %v1554 = vpack.c.b16 %v1552, %v1551
      %v1558 = vsel %vm1152, %v1540, 0
      %1560 = vmatpush.bf16.msra.mxu0 0
      %1561 = vmatpush.bf16.msra.mxu0 0
      %1562 = vmatpush.bf16.msra.mxu0 0
      %1563 = vmatpush.bf16.msra.mxu0 0
      %1564 = vmatpush.bf16.msra.mxu0 0
      %1565 = vmatpush.bf16.msra.mxu0 0
      %1566 = vmatpush.bf16.msra.mxu0 %v1554
      %1567 = vmatpush.bf16.msra.mxu0 %v1553
      %1568 = vmatmul.bf16.gmra.mxu0 %v1558
      %v1569 = vpop.f32.mrf.mxu0
      %v1570 = vadd.f32 %v1543, %v1569
      %v1571 = vpop.f32.mrf.mxu0
      %1572 = vdwg.mxu0
      %v1573 = vmax.f32 %v1570, 0.0
      %v1574 = vld [vmem:[%s15] sm:$0xf]
      %v1575 = vld [vmem:[%s15 + $0x4] sm:$0xf]
      %v1576 = vld [vmem:[%s15 + $0x8] sm:$0xf]
      %v1577 = vld [vmem:[%s15 + $0xc] sm:$0xf]
      %v1578 = vld [vmem:[%s15 + $0x10] sm:$0xf]
      %v1579 = vld [vmem:[%s15 + $0x14] sm:$0xf]
      %v1580 = vld [vmem:[%s15 + $0x18] sm:$0xf]
      %v1581 = vld [vmem:[%s15 + $0x1c] sm:$0xf]
      %v1582 = vpack.c.bf16 %v1573, %v1573
      %v1583 = vld [vmem:[%s17] sm:$0x1]
      %v1585 = vperm.slane %v1583, 0
      %v1595 = vunpack.c.l.b16 %v1574
      %v1596 = vunpack.c.l.b16 %v1575
      %v1597 = vunpack.c.l.b16 %v1576
      %v1598 = vunpack.c.l.b16 %v1577
      %v1599 = vunpack.c.l.b16 %v1578
      %v1600 = vunpack.c.l.b16 %v1579
      %v1601 = vunpack.c.l.b16 %v1580
      %v1602 = vunpack.c.l.b16 %v1581
      %v1603 = vpack.c.b16 %v1596, %v1595
      %v1604 = vpack.c.b16 %v1598, %v1597
      %v1605 = vpack.c.b16 %v1600, %v1599
      %v1606 = vpack.c.b16 %v1602, %v1601
      %vm1611 = vcmask 523264
      %v1613 = vsel %vm1611, %v1582, 0
      %1615 = vmatpush.bf16.msra.mxu0 0
      %1616 = vmatpush.bf16.msra.mxu0 0
      %1617 = vmatpush.bf16.msra.mxu0 0
      %1618 = vmatpush.bf16.msra.mxu0 0
      %1619 = vmatpush.bf16.msra.mxu0 %v1606
      %1620 = vmatpush.bf16.msra.mxu0 %v1605
      %1621 = vmatpush.bf16.msra.mxu0 %v1604
      %1622 = vmatpush.bf16.msra.mxu0 %v1603
      %1623 = vmatmul.bf16.gmra.mxu0 %v1613
      %v1624 = vpop.f32.mrf.mxu0
      %v1625 = vadd.f32 %v1585, %v1624
      %v1626 = vpop.f32.mrf.mxu0
      %1627 = vdwg.mxu0
      %v1628 = vadd.f32 %v1625, %v1535
      %v1629 = vld [vmem:[%s23] sm:$0x1]
      %v1630 = vld [vmem:[%s25] sm:$0x1]
      %v1631 = vsel %vm1152, %v1628, 0.0
      %1632 = vadd.xlane.f32.xlu0 %v1631
      %v1633 = vpop.xlane.xlu0 %1632
      %v1634 = vmul.f32 %v1633, %v1508
      %v1635 = vsub.f32 %v1628, %v1634
      %v1636 = vmul.f32 %v1635, %v1635
      %v1637 = vsel %vm1152, %v1636, 0.0
      %1638 = vadd.xlane.f32.xlu0 %v1637
      %v1639 = vpop.xlane.xlu0 %1638
      %v1640 = vmul.f32 %v1639, %v1508
      %v1641 = vadd.f32 %v1640, 1e-05
      %v1642 = vrsqrt.pop %v1641
      %v1643 = vmul.f32 %v1642, %v1641
      %v1644 = vmul.f32 %v1643, %v1642
      %v1645 = vmul.f32 0.5, %v1644
      %v1646 = vsub.f32 1.5, %v1645
      %v1647 = vmul.f32 %v1642, %v1646
      %vm1648 = vweird.f32 %v1641
      %vm1649 = vweird.f32 %v1642
      %vm1650 = vmor %vm1648, %vm1649
      %v1651 = vsel %vm1650, %v1642, %v1647
      %v1652 = vmul.f32 %v1635, %v1651
      %v1654 = vperm.slane %v1629, 0
      %v1656 = vmul.f32 %v1652, %v1654
      %v1658 = vperm.slane %v1630, 0
      %v1660 = vadd.f32 %v1656, %v1658
      %s1661 = scalar_lea.vmem %s3, 16
      %v1662 = vld [vmem:[%s1661] sm:$0xf]
      %v1663 = vld [vmem:[%s1661 + $0x4] sm:$0xf]
      %v1664 = vld [vmem:[%s1661 + $0x8] sm:$0xf]
      %v1665 = vld [vmem:[%s1661 + $0xc] sm:$0xf]
      %v1666 = vpack.c.bf16 %v1660, %v1660
      %s1667 = scalar_lea.vmem %s5, 1
      %v1668 = vld [vmem:[%s1667] sm:$0x1]
      %v1670 = vperm.slane %v1668, 0
      %v1676 = vunpack.c.l.b16 %v1662
      %v1677 = vunpack.c.l.b16 %v1663
      %v1678 = vunpack.c.l.b16 %v1664
      %v1679 = vunpack.c.l.b16 %v1665
      %v1680 = vpack.c.b16 %v1677, %v1676
      %v1681 = vpack.c.b16 %v1679, %v1678
      %v1685 = vsel %vm1152, %v1666, 0
      %1687 = vmatpush.bf16.msra.mxu0 0
      %1688 = vmatpush.bf16.msra.mxu0 0
      %1689 = vmatpush.bf16.msra.mxu0 0
      %1690 = vmatpush.bf16.msra.mxu0 0
      %1691 = vmatpush.bf16.msra.mxu0 0
      %1692 = vmatpush.bf16.msra.mxu0 0
      %1693 = vmatpush.bf16.msra.mxu0 %v1681
      %1694 = vmatpush.bf16.msra.mxu0 %v1680
      %1695 = vmatmul.bf16.gmra.mxu0 %v1685
      %v1696 = vpop.f32.mrf.mxu0
      %v1697 = vadd.f32 %v1670, %v1696
      %v1698 = vpop.f32.mrf.mxu0
      %1699 = vdwg.mxu0
      %s1700 = scalar_lea.vmem %s7, 16
      %v1701 = vld [vmem:[%s1700] sm:$0xf]
      %v1702 = vld [vmem:[%s1700 + $0x4] sm:$0xf]
      %v1703 = vld [vmem:[%s1700 + $0x8] sm:$0xf]
      %v1704 = vld [vmem:[%s1700 + $0xc] sm:$0xf]
      %s1705 = scalar_lea.vmem %s9, 1
      %v1706 = vld [vmem:[%s1705] sm:$0x1]
      %v1707 = vpack.c.bf16 %v1697, %v1697
      %v1709 = vunpack.c.l.b16 %v1707
      %v1710 = vpack.c.b16 %v1709, %v1709
      %1711 = vrot.lane.b32.xlu0 %v1710, 96
      %v1712 = vpop.permute.xlu0 %1711
      %v1714 = vsel %vm1180, %v1707, 0
      %v1717 = vsel %vm1180, %v1712, 0
      %1719 = vmatpush.bf16.xpose.msra.mxu0 0
      %1720 = vmatpush.bf16.xpose.msra.mxu0 0
      %1721 = vmatpush.bf16.xpose.msra.mxu0 0
      %1722 = vmatpush.bf16.xpose.msra.mxu0 0
      %1723 = vmatpush.bf16.xpose.msra.mxu0 0
      %1724 = vmatpush.bf16.xpose.msra.mxu0 0
      %1725 = vmatpush.bf16.xpose.msra.mxu0 0
      %1726 = vmatpush.bf16.xpose.msra.mxu0 %v1717
      %1727 = vmatmul.bf16.gmra.mxu0 %v1714
      %v1728 = vpop.f32.mrf.mxu0
      %v1729 = vadd.f32 0.0, %v1728
      %v1730 = vpop.f32.mrf.mxu0
      %1731 = vdwg.mxu0
      %v1732 = vmul.f32 %v1729, 0.35355338
      %v1733 = vadd.f32 %v1732, %v1128
      %v1734 = vsel %vm1180, %v1733, -inf
      %1735 = vmax.xlane.f32.xlu0 %v1734
      %v1736 = vpop.xlane.xlu0 %1735
      %v1737 = vsub.f32 %v1733, %v1736
      %v1738 = vmul.f32 %v1737, 1.442695
      %v1739 = vpow.pop %v1738
      %v1740 = vsel %vm1180, %v1739, 0.0
      %1741 = vadd.xlane.f32.xlu0 %v1740
      %v1742 = vpop.xlane.xlu0 %1741
      %v1743 = vrcp.pop %v1742
      %v1744 = vmul.f32 %v1739, %v1743
      %v1745 = vpack.c.bf16 %v1744, %v1744
      %1746 = vrot.lane.b32.xlu0 %v1710, 64
      %v1747 = vpop.permute.xlu0 %1746
      %v1749 = vsel %vm1180, %v1745, 0
      %v1752 = vsel %vm1219, %v1747, 0
      %1754 = vmatpush.bf16.msra.mxu0 0
      %1755 = vmatpush.bf16.msra.mxu0 0
      %1756 = vmatpush.bf16.msra.mxu0 0
      %1757 = vmatpush.bf16.msra.mxu0 0
      %1758 = vmatpush.bf16.msra.mxu0 0
      %1759 = vmatpush.bf16.msra.mxu0 0
      %1760 = vmatpush.bf16.msra.mxu0 0
      %1761 = vmatpush.bf16.msra.mxu0 %v1752
      %1762 = vmatmul.bf16.gmra.mxu0 %v1749
      %v1763 = vpop.f32.mrf.mxu0
      %v1764 = vadd.f32 0.0, %v1763
      %v1765 = vpop.f32.mrf.mxu0
      %1766 = vdwg.mxu0
      %v1767 = vpack.c.bf16 %v1764, %v1764
      %1768 = vrot.lane.b32.xlu0 %v1710, 120
      %v1769 = vpop.permute.xlu0 %1768
      %1770 = vrot.lane.b32.xlu0 %v1710, 88
      %v1771 = vpop.permute.xlu0 %1770
      %v1773 = vsel %vm1180, %v1769, 0
      %v1776 = vsel %vm1180, %v1771, 0
      %1778 = vmatpush.bf16.xpose.msra.mxu0 0
      %1779 = vmatpush.bf16.xpose.msra.mxu0 0
      %1780 = vmatpush.bf16.xpose.msra.mxu0 0
      %1781 = vmatpush.bf16.xpose.msra.mxu0 0
      %1782 = vmatpush.bf16.xpose.msra.mxu0 0
      %1783 = vmatpush.bf16.xpose.msra.mxu0 0
      %1784 = vmatpush.bf16.xpose.msra.mxu0 0
      %1785 = vmatpush.bf16.xpose.msra.mxu0 %v1776
      %1786 = vmatmul.bf16.gmra.mxu0 %v1773
      %v1787 = vpop.f32.mrf.mxu0
      %v1788 = vadd.f32 0.0, %v1787
      %v1789 = vpop.f32.mrf.mxu0
      %1790 = vdwg.mxu0
      %v1791 = vmul.f32 %v1788, 0.35355338
      %v1792 = vadd.f32 %v1791, %v1128
      %v1793 = vsel %vm1180, %v1792, -inf
      %1794 = vmax.xlane.f32.xlu0 %v1793
      %v1795 = vpop.xlane.xlu0 %1794
      %v1796 = vsub.f32 %v1792, %v1795
      %v1797 = vmul.f32 %v1796, 1.442695
      %v1798 = vpow.pop %v1797
      %v1799 = vsel %vm1180, %v1798, 0.0
      %1800 = vadd.xlane.f32.xlu0 %v1799
      %v1801 = vpop.xlane.xlu0 %1800
      %v1802 = vrcp.pop %v1801
      %v1803 = vmul.f32 %v1798, %v1802
      %v1804 = vpack.c.bf16 %v1803, %v1803
      %1805 = vrot.lane.b32.xlu0 %v1710, 56
      %v1806 = vpop.permute.xlu0 %1805
      %v1808 = vsel %vm1180, %v1804, 0
      %v1811 = vsel %vm1219, %v1806, 0
      %1813 = vmatpush.bf16.msra.mxu0 0
      %1814 = vmatpush.bf16.msra.mxu0 0
      %1815 = vmatpush.bf16.msra.mxu0 0
      %1816 = vmatpush.bf16.msra.mxu0 0
      %1817 = vmatpush.bf16.msra.mxu0 0
      %1818 = vmatpush.bf16.msra.mxu0 0
      %1819 = vmatpush.bf16.msra.mxu0 0
      %1820 = vmatpush.bf16.msra.mxu0 %v1811
      %1821 = vmatmul.bf16.gmra.mxu0 %v1808
      %v1822 = vpop.f32.mrf.mxu0
      %v1823 = vadd.f32 0.0, %v1822
      %v1824 = vpop.f32.mrf.mxu0
      %1825 = vdwg.mxu0
      %v1826 = vpack.c.bf16 %v1823, %v1823
      %v1828 = vsel %vm1180, %v1826, 0
      %v1831 = vsel %vm1219, %v1702, 0
      %1833 = vmatpush.bf16.msra.mxu0 0
      %1834 = vmatpush.bf16.msra.mxu0 0
      %1835 = vmatpush.bf16.msra.mxu0 0
      %1836 = vmatpush.bf16.msra.mxu0 0
      %1837 = vmatpush.bf16.msra.mxu0 0
      %1838 = vmatpush.bf16.msra.mxu0 0
      %1839 = vmatpush.bf16.msra.mxu0 0
      %1840 = vmatpush.bf16.msra.mxu0 %v1831
      %1841 = vmatmul.bf16.gmra.mxu0 %v1828
      %v1842 = vpop.f32.mrf.mxu0
      %v1843 = vadd.f32 0.0, %v1842
      %v1844 = vpop.f32.mrf.mxu0
      %1845 = vdwg.mxu0
      %v1847 = vsel %vm1180, %v1767, 0
      %v1850 = vsel %vm1219, %v1701, 0
      %1852 = vmatpush.bf16.msra.mxu0 0
      %1853 = vmatpush.bf16.msra.mxu0 0
      %1854 = vmatpush.bf16.msra.mxu0 0
      %1855 = vmatpush.bf16.msra.mxu0 0
      %1856 = vmatpush.bf16.msra.mxu0 0
      %1857 = vmatpush.bf16.msra.mxu0 0
      %1858 = vmatpush.bf16.msra.mxu0 0
      %1859 = vmatpush.bf16.msra.mxu0 %v1850
      %1860 = vmatmul.bf16.gmra.mxu0 %v1847
      %v1861 = vpop.f32.mrf.mxu0
      %v1862 = vadd.f32 %v1843, %v1861
      %v1863 = vpop.f32.mrf.mxu0
      %1864 = vdwg.mxu0
      %1865 = vrot.lane.b32.xlu0 %v1710, 112
      %v1866 = vpop.permute.xlu0 %1865
      %1867 = vrot.lane.b32.xlu0 %v1710, 80
      %v1868 = vpop.permute.xlu0 %1867
      %v1870 = vsel %vm1180, %v1866, 0
      %v1873 = vsel %vm1180, %v1868, 0
      %1875 = vmatpush.bf16.xpose.msra.mxu0 0
      %1876 = vmatpush.bf16.xpose.msra.mxu0 0
      %1877 = vmatpush.bf16.xpose.msra.mxu0 0
      %1878 = vmatpush.bf16.xpose.msra.mxu0 0
      %1879 = vmatpush.bf16.xpose.msra.mxu0 0
      %1880 = vmatpush.bf16.xpose.msra.mxu0 0
      %1881 = vmatpush.bf16.xpose.msra.mxu0 0
      %1882 = vmatpush.bf16.xpose.msra.mxu0 %v1873
      %1883 = vmatmul.bf16.gmra.mxu0 %v1870
      %v1884 = vpop.f32.mrf.mxu0
      %v1885 = vadd.f32 0.0, %v1884
      %v1886 = vpop.f32.mrf.mxu0
      %1887 = vdwg.mxu0
      %v1888 = vmul.f32 %v1885, 0.35355338
      %v1889 = vadd.f32 %v1888, %v1128
      %v1890 = vsel %vm1180, %v1889, -inf
      %1891 = vmax.xlane.f32.xlu0 %v1890
      %v1892 = vpop.xlane.xlu0 %1891
      %v1893 = vsub.f32 %v1889, %v1892
      %v1894 = vmul.f32 %v1893, 1.442695
      %v1895 = vpow.pop %v1894
      %v1896 = vsel %vm1180, %v1895, 0.0
      %1897 = vadd.xlane.f32.xlu0 %v1896
      %v1898 = vpop.xlane.xlu0 %1897
      %v1899 = vrcp.pop %v1898
      %v1900 = vmul.f32 %v1895, %v1899
      %v1901 = vpack.c.bf16 %v1900, %v1900
      %1902 = vrot.lane.b32.xlu0 %v1710, 48
      %v1903 = vpop.permute.xlu0 %1902
      %v1905 = vsel %vm1180, %v1901, 0
      %v1908 = vsel %vm1219, %v1903, 0
      %1910 = vmatpush.bf16.msra.mxu0 0
      %1911 = vmatpush.bf16.msra.mxu0 0
      %1912 = vmatpush.bf16.msra.mxu0 0
      %1913 = vmatpush.bf16.msra.mxu0 0
      %1914 = vmatpush.bf16.msra.mxu0 0
      %1915 = vmatpush.bf16.msra.mxu0 0
      %1916 = vmatpush.bf16.msra.mxu0 0
      %1917 = vmatpush.bf16.msra.mxu0 %v1908
      %1918 = vmatmul.bf16.gmra.mxu0 %v1905
      %v1919 = vpop.f32.mrf.mxu0
      %v1920 = vadd.f32 0.0, %v1919
      %v1921 = vpop.f32.mrf.mxu0
      %1922 = vdwg.mxu0
      %v1923 = vpack.c.bf16 %v1920, %v1920
      %v1925 = vsel %vm1180, %v1923, 0
      %v1928 = vsel %vm1219, %v1703, 0
      %1930 = vmatpush.bf16.msra.mxu0 0
      %1931 = vmatpush.bf16.msra.mxu0 0
      %1932 = vmatpush.bf16.msra.mxu0 0
      %1933 = vmatpush.bf16.msra.mxu0 0
      %1934 = vmatpush.bf16.msra.mxu0 0
      %1935 = vmatpush.bf16.msra.mxu0 0
      %1936 = vmatpush.bf16.msra.mxu0 0
      %1937 = vmatpush.bf16.msra.mxu0 %v1928
      %1938 = vmatmul.bf16.gmra.mxu0 %v1925
      %v1939 = vpop.f32.mrf.mxu0
      %v1940 = vadd.f32 0.0, %v1939
      %v1941 = vpop.f32.mrf.mxu0
      %1942 = vdwg.mxu0
      %v1943 = vadd.f32 %v1862, %v1940
      %1944 = vrot.lane.b32.xlu0 %v1710, 104
      %v1945 = vpop.permute.xlu0 %1944
      %1946 = vrot.lane.b32.xlu0 %v1710, 72
      %v1947 = vpop.permute.xlu0 %1946
      %v1949 = vsel %vm1180, %v1945, 0
      %v1952 = vsel %vm1180, %v1947, 0
      %1954 = vmatpush.bf16.xpose.msra.mxu0 0
      %1955 = vmatpush.bf16.xpose.msra.mxu0 0
      %1956 = vmatpush.bf16.xpose.msra.mxu0 0
      %1957 = vmatpush.bf16.xpose.msra.mxu0 0
      %1958 = vmatpush.bf16.xpose.msra.mxu0 0
      %1959 = vmatpush.bf16.xpose.msra.mxu0 0
      %1960 = vmatpush.bf16.xpose.msra.mxu0 0
      %1961 = vmatpush.bf16.xpose.msra.mxu0 %v1952
      %1962 = vmatmul.bf16.gmra.mxu0 %v1949
      %v1963 = vpop.f32.mrf.mxu0
      %v1964 = vadd.f32 0.0, %v1963
      %v1965 = vpop.f32.mrf.mxu0
      %1966 = vdwg.mxu0
      %v1967 = vmul.f32 %v1964, 0.35355338
      %v1968 = vadd.f32 %v1967, %v1128
      %v1969 = vsel %vm1180, %v1968, -inf
      %1970 = vmax.xlane.f32.xlu0 %v1969
      %v1971 = vpop.xlane.xlu0 %1970
      %v1972 = vsub.f32 %v1968, %v1971
      %v1973 = vmul.f32 %v1972, 1.442695
      %v1974 = vpow.pop %v1973
      %v1975 = vsel %vm1180, %v1974, 0.0
      %1976 = vadd.xlane.f32.xlu0 %v1975
      %v1977 = vpop.xlane.xlu0 %1976
      %v1978 = vrcp.pop %v1977
      %v1979 = vmul.f32 %v1974, %v1978
      %v1980 = vpack.c.bf16 %v1979, %v1979
      %1981 = vrot.lane.b32.xlu0 %v1710, 40
      %v1982 = vpop.permute.xlu0 %1981
      %v1984 = vsel %vm1180, %v1980, 0
      %v1987 = vsel %vm1219, %v1982, 0
      %1989 = vmatpush.bf16.msra.mxu0 0
      %1990 = vmatpush.bf16.msra.mxu0 0
      %1991 = vmatpush.bf16.msra.mxu0 0
      %1992 = vmatpush.bf16.msra.mxu0 0
      %1993 = vmatpush.bf16.msra.mxu0 0
      %1994 = vmatpush.bf16.msra.mxu0 0
      %1995 = vmatpush.bf16.msra.mxu0 0
      %1996 = vmatpush.bf16.msra.mxu0 %v1987
      %1997 = vmatmul.bf16.gmra.mxu0 %v1984
      %v1998 = vpop.f32.mrf.mxu0
      %v1999 = vadd.f32 0.0, %v1998
      %v2000 = vpop.f32.mrf.mxu0
      %2001 = vdwg.mxu0
      %v2002 = vpack.c.bf16 %v1999, %v1999
      %v2004 = vsel %vm1180, %v2002, 0
      %v2007 = vsel %vm1219, %v1704, 0
      %2009 = vmatpush.bf16.msra.mxu0 0
      %2010 = vmatpush.bf16.msra.mxu0 0
      %2011 = vmatpush.bf16.msra.mxu0 0
      %2012 = vmatpush.bf16.msra.mxu0 0
      %2013 = vmatpush.bf16.msra.mxu0 0
      %2014 = vmatpush.bf16.msra.mxu0 0
      %2015 = vmatpush.bf16.msra.mxu0 0
      %2016 = vmatpush.bf16.msra.mxu0 %v2007
      %2017 = vmatmul.bf16.gmra.mxu0 %v2004
      %v2018 = vpop.f32.mrf.mxu0
      %v2019 = vadd.f32 0.0, %v2018
      %v2020 = vpop.f32.mrf.mxu0
      %2021 = vdwg.mxu0
      %v2022 = vadd.f32 %v1943, %v2019
      %v2024 = vperm.slane %v1706, 0
      %v2026 = vadd.f32 %v2022, %v2024
      %v2027 = vadd.f32 %v2026, %v1660
      %s2028 = scalar_lea.vmem %s19, 1
      %v2029 = vld [vmem:[%s2028] sm:$0x1]
      %s2030 = scalar_lea.vmem %s21, 1
      %v2031 = vld [vmem:[%s2030] sm:$0x1]
      %v2032 = vsel %vm1152, %v2027, 0.0
      %2033 = vadd.xlane.f32.xlu0 %v2032
      %v2034 = vpop.xlane.xlu0 %2033
      %v2035 = vmul.f32 %v2034, %v1508
      %v2036 = vsub.f32 %v2027, %v2035
      %v2037 = vmul.f32 %v2036, %v2036
      %v2038 = vsel %vm1152, %v2037, 0.0
      %2039 = vadd.xlane.f32.xlu0 %v2038
      %v2040 = vpop.xlane.xlu0 %2039
      %v2041 = vmul.f32 %v2040, %v1508
      %v2042 = vadd.f32 %v2041, 1e-05
      %v2043 = vrsqrt.pop %v2042
      %v2044 = vmul.f32 %v2043, %v2042
      %v2045 = vmul.f32 %v2044, %v2043
      %v2046 = vmul.f32 0.5, %v2045
      %v2047 = vsub.f32 1.5, %v2046
      %v2048 = vmul.f32 %v2043, %v2047
      %vm2049 = vweird.f32 %v2042
      %vm2050 = vweird.f32 %v2043
      %vm2051 = vmor %vm2049, %vm2050
      %v2052 = vsel %vm2051, %v2043, %v2048
      %v2053 = vmul.f32 %v2036, %v2052
      %v2055 = vperm.slane %v2029, 0
      %v2057 = vmul.f32 %v2053, %v2055
      %v2059 = vperm.slane %v2031, 0
      %v2061 = vadd.f32 %v2057, %v2059
      %s2062 = scalar_lea.vmem %s11, 16
      %v2063 = vld [vmem:[%s2062] sm:$0xf]
      %v2064 = vld [vmem:[%s2062 + $0x4] sm:$0xf]
      %v2065 = vld [vmem:[%s2062 + $0x8] sm:$0xf]
      %v2066 = vld [vmem:[%s2062 + $0xc] sm:$0xf]
      %v2067 = vpack.c.bf16 %v2061, %v2061
      %s2068 = scalar_lea.vmem %s13, 1
      %v2069 = vld [vmem:[%s2068] sm:$0x1]
      %v2071 = vperm.slane %v2069, 0
      %v2077 = vunpack.c.l.b16 %v2063
      %v2078 = vunpack.c.l.b16 %v2064
      %v2079 = vunpack.c.l.b16 %v2065
      %v2080 = vunpack.c.l.b16 %v2066
      %v2081 = vpack.c.b16 %v2078, %v2077
      %v2082 = vpack.c.b16 %v2080, %v2079
      %v2086 = vsel %vm1152, %v2067, 0
      %2088 = vmatpush.bf16.msra.mxu0 0
      %2089 = vmatpush.bf16.msra.mxu0 0
      %2090 = vmatpush.bf16.msra.mxu0 0
      %2091 = vmatpush.bf16.msra.mxu0 0
      %2092 = vmatpush.bf16.msra.mxu0 0
      %2093 = vmatpush.bf16.msra.mxu0 0
      %2094 = vmatpush.bf16.msra.mxu0 %v2082
      %2095 = vmatpush.bf16.msra.mxu0 %v2081
      %2096 = vmatmul.bf16.gmra.mxu0 %v2086
      %v2097 = vpop.f32.mrf.mxu0
      %v2098 = vadd.f32 %v2071, %v2097
      %v2099 = vpop.f32.mrf.mxu0
      %2100 = vdwg.mxu0
      %v2101 = vmax.f32 %v2098, 0.0
      %s2102 = scalar_lea.vmem %s15, 32
      %v2103 = vld [vmem:[%s2102] sm:$0xf]
      %v2104 = vld [vmem:[%s2102 + $0x4] sm:$0xf]
      %v2105 = vld [vmem:[%s2102 + $0x8] sm:$0xf]
      %v2106 = vld [vmem:[%s2102 + $0xc] sm:$0xf]
      %v2107 = vld [vmem:[%s2102 + $0x10] sm:$0xf]
      %v2108 = vld [vmem:[%s2102 + $0x14] sm:$0xf]
      %v2109 = vld [vmem:[%s2102 + $0x18] sm:$0xf]
      %v2110 = vld [vmem:[%s2102 + $0x1c] sm:$0xf]
      %v2111 = vpack.c.bf16 %v2101, %v2101
      %s2112 = scalar_lea.vmem %s17, 1
      %v2113 = vld [vmem:[%s2112] sm:$0x1]
      %v2115 = vperm.slane %v2113, 0
      %v2125 = vunpack.c.l.b16 %v2103
      %v2126 = vunpack.c.l.b16 %v2104
      %v2127 = vunpack.c.l.b16 %v2105
      %v2128 = vunpack.c.l.b16 %v2106
      %v2129 = vunpack.c.l.b16 %v2107
      %v2130 = vunpack.c.l.b16 %v2108
      %v2131 = vunpack.c.l.b16 %v2109
      %v2132 = vunpack.c.l.b16 %v2110
      %v2133 = vpack.c.b16 %v2126, %v2125
      %v2134 = vpack.c.b16 %v2128, %v2127
      %v2135 = vpack.c.b16 %v2130, %v2129
      %v2136 = vpack.c.b16 %v2132, %v2131
      %v2142 = vsel %vm1611, %v2111, 0
      %2144 = vmatpush.bf16.msra.mxu0 0
      %2145 = vmatpush.bf16.msra.mxu0 0
      %2146 = vmatpush.bf16.msra.mxu0 0
      %2147 = vmatpush.bf16.msra.mxu0 0
      %2148 = vmatpush.bf16.msra.mxu0 %v2136
      %2149 = vmatpush.bf16.msra.mxu0 %v2135
      %2150 = vmatpush.bf16.msra.mxu0 %v2134
      %2151 = vmatpush.bf16.msra.mxu0 %v2133
      %2152 = vmatmul.bf16.gmra.mxu0 %v2142
      %v2153 = vpop.f32.mrf.mxu0
      %v2154 = vadd.f32 %v2115, %v2153
      %v2155 = vpop.f32.mrf.mxu0
      %2156 = vdwg.mxu0
      %v2157 = vadd.f32 %v2154, %v2061
      %s2158 = scalar_lea.vmem %s23, 1
      %v2159 = vld [vmem:[%s2158] sm:$0x1]
      %s2160 = scalar_lea.vmem %s25, 1
      %v2161 = vld [vmem:[%s2160] sm:$0x1]
      %v2162 = vsel %vm1152, %v2157, 0.0
      %2163 = vadd.xlane.f32.xlu0 %v2162
      %v2164 = vpop.xlane.xlu0 %2163
      %v2165 = vmul.f32 %v2164, %v1508
      %v2166 = vsub.f32 %v2157, %v2165
      %v2167 = vmul.f32 %v2166, %v2166
      %v2168 = vsel %vm1152, %v2167, 0.0
      %2169 = vadd.xlane.f32.xlu0 %v2168
      %v2170 = vpop.xlane.xlu0 %2169
      %v2171 = vmul.f32 %v2170, %v1508
      %v2172 = vadd.f32 %v2171, 1e-05
      %v2173 = vrsqrt.pop %v2172
      %v2174 = vmul.f32 %v2173, %v2172
      %v2175 = vmul.f32 %v2174, %v2173
      %v2176 = vmul.f32 0.5, %v2175
      %v2177 = vsub.f32 1.5, %v2176
      %v2178 = vmul.f32 %v2173, %v2177
      %vm2179 = vweird.f32 %v2172
      %vm2180 = vweird.f32 %v2173
      %vm2181 = vmor %vm2179, %vm2180
      %v2182 = vsel %vm2181, %v2173, %v2178
      %v2183 = vmul.f32 %v2166, %v2182
      %v2185 = vperm.slane %v2159, 0
      %v2187 = vmul.f32 %v2183, %v2185
      %v2189 = vperm.slane %v2161, 0
      %v2191 = vadd.f32 %v2187, %v2189
      %v2192 = vld [vmem:[%s27] sm:$0x1]
      %v2193 = vld [vmem:[%s29] sm:$0x1]
      %v2194 = vsel %vm1152, %v2191, 0.0
      %2195 = vadd.xlane.f32.xlu0 %v2194
      %v2196 = vpop.xlane.xlu0 %2195
      %v2197 = vmul.f32 %v2196, %v1508
      %v2198 = vsub.f32 %v2191, %v2197
      %v2199 = vmul.f32 %v2198, %v2198
      %v2200 = vsel %vm1152, %v2199, 0.0
      %2201 = vadd.xlane.f32.xlu0 %v2200
      %v2202 = vpop.xlane.xlu0 %2201
      %v2203 = vmul.f32 %v2202, %v1508
      %v2204 = vadd.f32 %v2203, 1e-05
      %v2205 = vrsqrt.pop %v2204
      %v2206 = vmul.f32 %v2205, %v2204
      %v2207 = vmul.f32 %v2206, %v2205
      %v2208 = vmul.f32 0.5, %v2207
      %v2209 = vsub.f32 1.5, %v2208
      %v2210 = vmul.f32 %v2205, %v2209
      %vm2211 = vweird.f32 %v2204
      %vm2212 = vweird.f32 %v2205
      %vm2213 = vmor %vm2211, %vm2212
      %v2214 = vsel %vm2213, %v2205, %v2210
      %v2215 = vmul.f32 %v2198, %v2214
      %v2217 = vperm.slane %v2192, 0
      %v2219 = vmul.f32 %v2215, %v2217
      %v2221 = vperm.slane %v2193, 0
      %v2223 = vadd.f32 %v2219, %v2221
      %v2224 = vld [vmem:[%s31] sm:$0xf]
      %v2225 = vld [vmem:[%s31 + $0x4] sm:$0xf]
      %v2226 = vld [vmem:[%s31 + $0x8] sm:$0xf]
      %v2227 = vld [vmem:[%s31 + $0xc] sm:$0xf]
      %v2228 = vld [vmem:[%s33] sm:$0x1]
      %v2230 = vperm.slane %v2228, 0
      %v2236 = vunpack.c.l.b16 %v2224
      %v2237 = vunpack.c.l.b16 %v2225
      %v2238 = vunpack.c.l.b16 %v2226
      %v2239 = vunpack.c.l.b16 %v2227
      %v2240 = vpack.c.b16 %v2237, %v2236
      %v2241 = vpack.c.b16 %v2239, %v2238
      %2244 = vmatpush.bf16.msra.mxu0 0
      %2245 = vmatpush.bf16.msra.mxu0 0
      %2246 = vmatpush.bf16.msra.mxu0 0
      %2247 = vmatpush.bf16.msra.mxu0 0
      %2248 = vmatpush.bf16.msra.mxu0 0
      %2249 = vmatpush.bf16.msra.mxu0 0
      %2250 = vmatpush.bf16.msra.mxu0 %v2241
      %2251 = vmatpush.bf16.msra.mxu0 %v2240
      %2252 = vmatmul.bf16.gmra.mxu0 %v1154
      %v2253 = vpop.f32.mrf.mxu0
      %v2254 = vadd.f32 %v2230, %v2253
      %v2255 = vpop.f32.mrf.mxu0
      %2256 = vdwg.mxu0
      %v2257 = vld [vmem:[%s35] sm:$0xf]
      %v2258 = vld [vmem:[%s35 + $0x4] sm:$0xf]
      %v2259 = vld [vmem:[%s35 + $0x8] sm:$0xf]
      %v2260 = vld [vmem:[%s35 + $0xc] sm:$0xf]
      %v2261 = vld [vmem:[%s37] sm:$0x1]
      %v2262 = vpack.c.bf16 %v2254, %v2254
      %v2264 = vunpack.c.l.b16 %v2262
      %v2265 = vpack.c.b16 %v2264, %v2264
      %2266 = vrot.lane.b32.xlu0 %v2265, 96
      %v2267 = vpop.permute.xlu0 %2266
      %v2269 = vsel %vm1180, %v2262, 0
      %v2272 = vsel %vm1180, %v2267, 0
      %2274 = vmatpush.bf16.xpose.msra.mxu0 0
      %2275 = vmatpush.bf16.xpose.msra.mxu0 0
      %2276 = vmatpush.bf16.xpose.msra.mxu0 0
      %2277 = vmatpush.bf16.xpose.msra.mxu0 0
      %2278 = vmatpush.bf16.xpose.msra.mxu0 0
      %2279 = vmatpush.bf16.xpose.msra.mxu0 0
      %2280 = vmatpush.bf16.xpose.msra.mxu0 0
      %2281 = vmatpush.bf16.xpose.msra.mxu0 %v2272
      %2282 = vmatmul.bf16.gmra.mxu0 %v2269
      %v2283 = vpop.f32.mrf.mxu0
      %v2284 = vadd.f32 0.0, %v2283
      %v2285 = vpop.f32.mrf.mxu0
      %2286 = vdwg.mxu0
      %v2287 = vmul.f32 %v2284, 0.35355338
      %v2288 = vadd.f32 %v2287, %v1128
      %v2289 = vsel %vm1180, %v2288, -inf
      %2290 = vmax.xlane.f32.xlu0 %v2289
      %v2291 = vpop.xlane.xlu0 %2290
      %v2292 = vsub.f32 %v2288, %v2291
      %v2293 = vmul.f32 %v2292, 1.442695
      %v2294 = vpow.pop %v2293
      %v2295 = vsel %vm1180, %v2294, 0.0
      %2296 = vadd.xlane.f32.xlu0 %v2295
      %v2297 = vpop.xlane.xlu0 %2296
      %v2298 = vrcp.pop %v2297
      %v2299 = vmul.f32 %v2294, %v2298
      %v2300 = vpack.c.bf16 %v2299, %v2299
      %2301 = vrot.lane.b32.xlu0 %v2265, 64
      %v2302 = vpop.permute.xlu0 %2301
      %v2304 = vsel %vm1180, %v2300, 0
      %v2307 = vsel %vm1219, %v2302, 0
      %2309 = vmatpush.bf16.msra.mxu0 0
      %2310 = vmatpush.bf16.msra.mxu0 0
      %2311 = vmatpush.bf16.msra.mxu0 0
      %2312 = vmatpush.bf16.msra.mxu0 0
      %2313 = vmatpush.bf16.msra.mxu0 0
      %2314 = vmatpush.bf16.msra.mxu0 0
      %2315 = vmatpush.bf16.msra.mxu0 0
      %2316 = vmatpush.bf16.msra.mxu0 %v2307
      %2317 = vmatmul.bf16.gmra.mxu0 %v2304
      %v2318 = vpop.f32.mrf.mxu0
      %v2319 = vadd.f32 0.0, %v2318
      %v2320 = vpop.f32.mrf.mxu0
      %2321 = vdwg.mxu0
      %v2322 = vpack.c.bf16 %v2319, %v2319
      %2323 = vrot.lane.b32.xlu0 %v2265, 120
      %v2324 = vpop.permute.xlu0 %2323
      %2325 = vrot.lane.b32.xlu0 %v2265, 88
      %v2326 = vpop.permute.xlu0 %2325
      %v2328 = vsel %vm1180, %v2324, 0
      %v2331 = vsel %vm1180, %v2326, 0
      %2333 = vmatpush.bf16.xpose.msra.mxu0 0
      %2334 = vmatpush.bf16.xpose.msra.mxu0 0
      %2335 = vmatpush.bf16.xpose.msra.mxu0 0
      %2336 = vmatpush.bf16.xpose.msra.mxu0 0
      %2337 = vmatpush.bf16.xpose.msra.mxu0 0
      %2338 = vmatpush.bf16.xpose.msra.mxu0 0
      %2339 = vmatpush.bf16.xpose.msra.mxu0 0
      %2340 = vmatpush.bf16.xpose.msra.mxu0 %v2331
      %2341 = vmatmul.bf16.gmra.mxu0 %v2328
      %v2342 = vpop.f32.mrf.mxu0
      %v2343 = vadd.f32 0.0, %v2342
      %v2344 = vpop.f32.mrf.mxu0
      %2345 = vdwg.mxu0
      %v2346 = vmul.f32 %v2343, 0.35355338
      %v2347 = vadd.f32 %v2346, %v1128
      %v2348 = vsel %vm1180, %v2347, -inf
      %2349 = vmax.xlane.f32.xlu0 %v2348
      %v2350 = vpop.xlane.xlu0 %2349
      %v2351 = vsub.f32 %v2347, %v2350
      %v2352 = vmul.f32 %v2351, 1.442695
      %v2353 = vpow.pop %v2352
      %v2354 = vsel %vm1180, %v2353, 0.0
      %2355 = vadd.xlane.f32.xlu0 %v2354
      %v2356 = vpop.xlane.xlu0 %2355
      %v2357 = vrcp.pop %v2356
      %v2358 = vmul.f32 %v2353, %v2357
      %v2359 = vpack.c.bf16 %v2358, %v2358
      %2360 = vrot.lane.b32.xlu0 %v2265, 56
      %v2361 = vpop.permute.xlu0 %2360
      %v2363 = vsel %vm1180, %v2359, 0
      %v2366 = vsel %vm1219, %v2361, 0
      %2368 = vmatpush.bf16.msra.mxu0 0
      %2369 = vmatpush.bf16.msra.mxu0 0
      %2370 = vmatpush.bf16.msra.mxu0 0
      %2371 = vmatpush.bf16.msra.mxu0 0
      %2372 = vmatpush.bf16.msra.mxu0 0
      %2373 = vmatpush.bf16.msra.mxu0 0
      %2374 = vmatpush.bf16.msra.mxu0 0
      %2375 = vmatpush.bf16.msra.mxu0 %v2366
      %2376 = vmatmul.bf16.gmra.mxu0 %v2363
      %v2377 = vpop.f32.mrf.mxu0
      %v2378 = vadd.f32 0.0, %v2377
      %v2379 = vpop.f32.mrf.mxu0
      %2380 = vdwg.mxu0
      %v2381 = vpack.c.bf16 %v2378, %v2378
      %v2383 = vsel %vm1180, %v2381, 0
      %v2386 = vsel %vm1219, %v2258, 0
      %2388 = vmatpush.bf16.msra.mxu0 0
      %2389 = vmatpush.bf16.msra.mxu0 0
      %2390 = vmatpush.bf16.msra.mxu0 0
      %2391 = vmatpush.bf16.msra.mxu0 0
      %2392 = vmatpush.bf16.msra.mxu0 0
      %2393 = vmatpush.bf16.msra.mxu0 0
      %2394 = vmatpush.bf16.msra.mxu0 0
      %2395 = vmatpush.bf16.msra.mxu0 %v2386
      %2396 = vmatmul.bf16.gmra.mxu0 %v2383
      %v2397 = vpop.f32.mrf.mxu0
      %v2398 = vadd.f32 0.0, %v2397
      %v2399 = vpop.f32.mrf.mxu0
      %2400 = vdwg.mxu0
      %v2402 = vsel %vm1180, %v2322, 0
      %v2405 = vsel %vm1219, %v2257, 0
      %2407 = vmatpush.bf16.msra.mxu0 0
      %2408 = vmatpush.bf16.msra.mxu0 0
      %2409 = vmatpush.bf16.msra.mxu0 0
      %2410 = vmatpush.bf16.msra.mxu0 0
      %2411 = vmatpush.bf16.msra.mxu0 0
      %2412 = vmatpush.bf16.msra.mxu0 0
      %2413 = vmatpush.bf16.msra.mxu0 0
      %2414 = vmatpush.bf16.msra.mxu0 %v2405
      %2415 = vmatmul.bf16.gmra.mxu0 %v2402
      %v2416 = vpop.f32.mrf.mxu0
      %v2417 = vadd.f32 %v2398, %v2416
      %v2418 = vpop.f32.mrf.mxu0
      %2419 = vdwg.mxu0
      %2420 = vrot.lane.b32.xlu0 %v2265, 112
      %v2421 = vpop.permute.xlu0 %2420
      %2422 = vrot.lane.b32.xlu0 %v2265, 80
      %v2423 = vpop.permute.xlu0 %2422
      %v2425 = vsel %vm1180, %v2421, 0
      %v2428 = vsel %vm1180, %v2423, 0
      %2430 = vmatpush.bf16.xpose.msra.mxu0 0
      %2431 = vmatpush.bf16.xpose.msra.mxu0 0
      %2432 = vmatpush.bf16.xpose.msra.mxu0 0
      %2433 = vmatpush.bf16.xpose.msra.mxu0 0
      %2434 = vmatpush.bf16.xpose.msra.mxu0 0
      %2435 = vmatpush.bf16.xpose.msra.mxu0 0
      %2436 = vmatpush.bf16.xpose.msra.mxu0 0
      %2437 = vmatpush.bf16.xpose.msra.mxu0 %v2428
      %2438 = vmatmul.bf16.gmra.mxu0 %v2425
      %v2439 = vpop.f32.mrf.mxu0
      %v2440 = vadd.f32 0.0, %v2439
      %v2441 = vpop.f32.mrf.mxu0
      %2442 = vdwg.mxu0
      %v2443 = vmul.f32 %v2440, 0.35355338
      %v2444 = vadd.f32 %v2443, %v1128
      %v2445 = vsel %vm1180, %v2444, -inf
      %2446 = vmax.xlane.f32.xlu0 %v2445
      %v2447 = vpop.xlane.xlu0 %2446
      %v2448 = vsub.f32 %v2444, %v2447
      %v2449 = vmul.f32 %v2448, 1.442695
      %v2450 = vpow.pop %v2449
      %v2451 = vsel %vm1180, %v2450, 0.0
      %2452 = vadd.xlane.f32.xlu0 %v2451
      %v2453 = vpop.xlane.xlu0 %2452
      %v2454 = vrcp.pop %v2453
      %v2455 = vmul.f32 %v2450, %v2454
      %v2456 = vpack.c.bf16 %v2455, %v2455
      %2457 = vrot.lane.b32.xlu0 %v2265, 48
      %v2458 = vpop.permute.xlu0 %2457
      %v2460 = vsel %vm1180, %v2456, 0
      %v2463 = vsel %vm1219, %v2458, 0
      %2465 = vmatpush.bf16.msra.mxu0 0
      %2466 = vmatpush.bf16.msra.mxu0 0
      %2467 = vmatpush.bf16.msra.mxu0 0
      %2468 = vmatpush.bf16.msra.mxu0 0
      %2469 = vmatpush.bf16.msra.mxu0 0
      %2470 = vmatpush.bf16.msra.mxu0 0
      %2471 = vmatpush.bf16.msra.mxu0 0
      %2472 = vmatpush.bf16.msra.mxu0 %v2463
      %2473 = vmatmul.bf16.gmra.mxu0 %v2460
      %v2474 = vpop.f32.mrf.mxu0
      %v2475 = vadd.f32 0.0, %v2474
      %v2476 = vpop.f32.mrf.mxu0
      %2477 = vdwg.mxu0
      %v2478 = vpack.c.bf16 %v2475, %v2475
      %v2480 = vsel %vm1180, %v2478, 0
      %v2483 = vsel %vm1219, %v2259, 0
      %2485 = vmatpush.bf16.msra.mxu0 0
      %2486 = vmatpush.bf16.msra.mxu0 0
      %2487 = vmatpush.bf16.msra.mxu0 0
      %2488 = vmatpush.bf16.msra.mxu0 0
      %2489 = vmatpush.bf16.msra.mxu0 0
      %2490 = vmatpush.bf16.msra.mxu0 0
      %2491 = vmatpush.bf16.msra.mxu0 0
      %2492 = vmatpush.bf16.msra.mxu0 %v2483
      %2493 = vmatmul.bf16.gmra.mxu0 %v2480
      %v2494 = vpop.f32.mrf.mxu0
      %v2495 = vadd.f32 0.0, %v2494
      %v2496 = vpop.f32.mrf.mxu0
      %2497 = vdwg.mxu0
      %v2498 = vadd.f32 %v2417, %v2495
      %2499 = vrot.lane.b32.xlu0 %v2265, 104
      %v2500 = vpop.permute.xlu0 %2499
      %2501 = vrot.lane.b32.xlu0 %v2265, 72
      %v2502 = vpop.permute.xlu0 %2501
      %v2504 = vsel %vm1180, %v2500, 0
      %v2507 = vsel %vm1180, %v2502, 0
      %2509 = vmatpush.bf16.xpose.msra.mxu0 0
      %2510 = vmatpush.bf16.xpose.msra.mxu0 0
      %2511 = vmatpush.bf16.xpose.msra.mxu0 0
      %2512 = vmatpush.bf16.xpose.msra.mxu0 0
      %2513 = vmatpush.bf16.xpose.msra.mxu0 0
      %2514 = vmatpush.bf16.xpose.msra.mxu0 0
      %2515 = vmatpush.bf16.xpose.msra.mxu0 0
      %2516 = vmatpush.bf16.xpose.msra.mxu0 %v2507
      %2517 = vmatmul.bf16.gmra.mxu0 %v2504
      %v2518 = vpop.f32.mrf.mxu0
      %v2519 = vadd.f32 0.0, %v2518
      %v2520 = vpop.f32.mrf.mxu0
      %2521 = vdwg.mxu0
      %v2522 = vmul.f32 %v2519, 0.35355338
      %v2523 = vadd.f32 %v2522, %v1128
      %v2524 = vsel %vm1180, %v2523, -inf
      %2525 = vmax.xlane.f32.xlu0 %v2524
      %v2526 = vpop.xlane.xlu0 %2525
      %v2527 = vsub.f32 %v2523, %v2526
      %v2528 = vmul.f32 %v2527, 1.442695
      %v2529 = vpow.pop %v2528
      %v2530 = vsel %vm1180, %v2529, 0.0
      %2531 = vadd.xlane.f32.xlu0 %v2530
      %v2532 = vpop.xlane.xlu0 %2531
      %v2533 = vrcp.pop %v2532
      %v2534 = vmul.f32 %v2529, %v2533
      %v2535 = vpack.c.bf16 %v2534, %v2534
      %2536 = vrot.lane.b32.xlu0 %v2265, 40
      %v2537 = vpop.permute.xlu0 %2536
      %v2539 = vsel %vm1180, %v2535, 0
      %v2542 = vsel %vm1219, %v2537, 0
      %2544 = vmatpush.bf16.msra.mxu0 0
      %2545 = vmatpush.bf16.msra.mxu0 0
      %2546 = vmatpush.bf16.msra.mxu0 0
      %2547 = vmatpush.bf16.msra.mxu0 0
      %2548 = vmatpush.bf16.msra.mxu0 0
      %2549 = vmatpush.bf16.msra.mxu0 0
      %2550 = vmatpush.bf16.msra.mxu0 0
      %2551 = vmatpush.bf16.msra.mxu0 %v2542
      %2552 = vmatmul.bf16.gmra.mxu0 %v2539
      %v2553 = vpop.f32.mrf.mxu0
      %v2554 = vadd.f32 0.0, %v2553
      %v2555 = vpop.f32.mrf.mxu0
      %2556 = vdwg.mxu0
      %v2557 = vpack.c.bf16 %v2554, %v2554
      %v2559 = vsel %vm1180, %v2557, 0
      %v2562 = vsel %vm1219, %v2260, 0
      %2564 = vmatpush.bf16.msra.mxu0 0
      %2565 = vmatpush.bf16.msra.mxu0 0
      %2566 = vmatpush.bf16.msra.mxu0 0
      %2567 = vmatpush.bf16.msra.mxu0 0
      %2568 = vmatpush.bf16.msra.mxu0 0
      %2569 = vmatpush.bf16.msra.mxu0 0
      %2570 = vmatpush.bf16.msra.mxu0 0
      %2571 = vmatpush.bf16.msra.mxu0 %v2562
      %2572 = vmatmul.bf16.gmra.mxu0 %v2559
      %v2573 = vpop.f32.mrf.mxu0
      %v2574 = vadd.f32 0.0, %v2573
      %v2575 = vpop.f32.mrf.mxu0
      %2576 = vdwg.mxu0
      %v2577 = vadd.f32 %v2498, %v2574
      %v2579 = vperm.slane %v2261, 0
      %v2581 = vadd.f32 %v2577, %v2579
      %v2582 = vadd.f32 %v2581, %v1130
      %v2583 = vld [vmem:[%s55] sm:$0x1]
      %v2584 = vld [vmem:[%s57] sm:$0x1]
      %v2585 = vsel %vm1152, %v2582, 0.0
      %2586 = vadd.xlane.f32.xlu0 %v2585
      %v2587 = vpop.xlane.xlu0 %2586
      %v2588 = vmul.f32 %v2587, %v1508
      %v2589 = vsub.f32 %v2582, %v2588
      %v2590 = vmul.f32 %v2589, %v2589
      %v2591 = vsel %vm1152, %v2590, 0.0
      %2592 = vadd.xlane.f32.xlu0 %v2591
      %v2593 = vpop.xlane.xlu0 %2592
      %v2594 = vmul.f32 %v2593, %v1508
      %v2595 = vadd.f32 %v2594, 1e-05
      %v2596 = vrsqrt.pop %v2595
      %v2597 = vmul.f32 %v2596, %v2595
      %v2598 = vmul.f32 %v2597, %v2596
      %v2599 = vmul.f32 0.5, %v2598
      %v2600 = vsub.f32 1.5, %v2599
      %v2601 = vmul.f32 %v2596, %v2600
      %vm2602 = vweird.f32 %v2595
      %vm2603 = vweird.f32 %v2596
      %vm2604 = vmor %vm2602, %vm2603
      %v2605 = vsel %vm2604, %v2596, %v2601
      %v2606 = vmul.f32 %v2589, %v2605
      %v2608 = vperm.slane %v2583, 0
      %v2610 = vmul.f32 %v2606, %v2608
      %v2612 = vperm.slane %v2584, 0
      %v2614 = vadd.f32 %v2610, %v2612
      %v2615 = vld [vmem:[%s39] sm:$0xf]
      %v2616 = vld [vmem:[%s39 + $0x4] sm:$0xf]
      %v2617 = vld [vmem:[%s39 + $0x8] sm:$0xf]
      %v2618 = vld [vmem:[%s39 + $0xc] sm:$0xf]
      %v2619 = vld [vmem:[%s41] sm:$0x1]
      %v2620 = vpack.c.bf16 %v2614, %v2614
      %v2622 = vperm.slane %v2619, 0
      %v2628 = vunpack.c.l.b16 %v2615
      %v2629 = vunpack.c.l.b16 %v2616
      %v2630 = vunpack.c.l.b16 %v2617
      %v2631 = vunpack.c.l.b16 %v2618
      %v2632 = vpack.c.b16 %v2629, %v2628
      %v2633 = vpack.c.b16 %v2631, %v2630
      %v2637 = vsel %vm1152, %v2620, 0
      %2639 = vmatpush.bf16.msra.mxu0 0
      %2640 = vmatpush.bf16.msra.mxu0 0
      %2641 = vmatpush.bf16.msra.mxu0 0
      %2642 = vmatpush.bf16.msra.mxu0 0
      %2643 = vmatpush.bf16.msra.mxu0 0
      %2644 = vmatpush.bf16.msra.mxu0 0
      %2645 = vmatpush.bf16.msra.mxu0 %v2633
      %2646 = vmatpush.bf16.msra.mxu0 %v2632
      %2647 = vmatmul.bf16.gmra.mxu0 %v2637
      %v2648 = vpop.f32.mrf.mxu0
      %v2649 = vadd.f32 %v2622, %v2648
      %v2650 = vpop.f32.mrf.mxu0
      %2651 = vdwg.mxu0
      %v2652 = vpack.c.bf16 %v2223, %v2223
      %2653 = vrot.lane.b32.xlu0 %v2632, 96
      %v2654 = vpop.permute.xlu0 %2653
      %2655 = vrot.lane.b32.xlu0 %v2633, 96
      %v2656 = vpop.permute.xlu0 %2655
      %2659 = vrot.lane.b32.xlu0 %v2622, 96
      %v2660 = vpop.permute.xlu0 %2659
      %v2663 = vsel %vm1152, %v2652, 0
      %2665 = vmatpush.bf16.msra.mxu0 0
      %2666 = vmatpush.bf16.msra.mxu0 0
      %2667 = vmatpush.bf16.msra.mxu0 0
      %2668 = vmatpush.bf16.msra.mxu0 0
      %2669 = vmatpush.bf16.msra.mxu0 0
      %2670 = vmatpush.bf16.msra.mxu0 0
      %2671 = vmatpush.bf16.msra.mxu0 %v2656
      %2672 = vmatpush.bf16.msra.mxu0 %v2654
      %2673 = vmatmul.bf16.gmra.mxu0 %v2663
      %v2674 = vpop.f32.mrf.mxu0
      %v2675 = vadd.f32 %v2660, %v2674
      %v2676 = vpop.f32.mrf.mxu0
      %2677 = vdwg.mxu0
      %v2678 = vld [vmem:[%s43] sm:$0xf]
      %v2679 = vld [vmem:[%s43 + $0x4] sm:$0xf]
      %v2680 = vld [vmem:[%s43 + $0x8] sm:$0xf]
      %v2681 = vld [vmem:[%s43 + $0xc] sm:$0xf]
      %v2682 = vld [vmem:[%s45] sm:$0x1]
      %v2683 = vpack.c.bf16 %v2649, %v2649
      %v2684 = vpack.c.bf16 %v2675, %v2675
      %v2686 = vsel %vm1180, %v2683, 0
      %v2689 = vsel %vm1180, %v2684, 0
      %2691 = vmatpush.bf16.xpose.msra.mxu0 0
      %2692 = vmatpush.bf16.xpose.msra.mxu0 0
      %2693 = vmatpush.bf16.xpose.msra.mxu0 0
      %2694 = vmatpush.bf16.xpose.msra.mxu0 0
      %2695 = vmatpush.bf16.xpose.msra.mxu0 0
      %2696 = vmatpush.bf16.xpose.msra.mxu0 0
      %2697 = vmatpush.bf16.xpose.msra.mxu0 0
      %2698 = vmatpush.bf16.xpose.msra.mxu0 %v2689
      %2699 = vmatmul.bf16.gmra.mxu0 %v2686
      %v2700 = vpop.f32.mrf.mxu0
      %v2701 = vadd.f32 0.0, %v2700
      %v2702 = vpop.f32.mrf.mxu0
      %2703 = vdwg.mxu0
      %v2704 = vmul.f32 %v2701, 0.35355338
      %v2705 = vsel %vm1180, %v2704, -inf
      %2706 = vmax.xlane.f32.xlu0 %v2705
      %v2707 = vpop.xlane.xlu0 %2706
      %v2708 = vsub.f32 %v2704, %v2707
      %v2709 = vmul.f32 %v2708, 1.442695
      %v2710 = vpow.pop %v2709
      %v2711 = vsel %vm1180, %v2710, 0.0
      %2712 = vadd.xlane.f32.xlu0 %v2711
      %v2713 = vpop.xlane.xlu0 %2712
      %v2714 = vrcp.pop %v2713
      %v2715 = vmul.f32 %v2710, %v2714
      %v2716 = vpack.c.bf16 %v2715, %v2715
      %v2718 = vunpack.c.l.b16 %v2684
      %v2719 = vpack.c.b16 %v2718, %v2718
      %2720 = vrot.lane.b32.xlu0 %v2719, 96
      %v2721 = vpop.permute.xlu0 %2720
      %v2723 = vsel %vm1180, %v2716, 0
      %v2726 = vsel %vm1219, %v2721, 0
      %2728 = vmatpush.bf16.msra.mxu0 0
      %2729 = vmatpush.bf16.msra.mxu0 0
      %2730 = vmatpush.bf16.msra.mxu0 0
      %2731 = vmatpush.bf16.msra.mxu0 0
      %2732 = vmatpush.bf16.msra.mxu0 0
      %2733 = vmatpush.bf16.msra.mxu0 0
      %2734 = vmatpush.bf16.msra.mxu0 0
      %2735 = vmatpush.bf16.msra.mxu0 %v2726
      %2736 = vmatmul.bf16.gmra.mxu0 %v2723
      %v2737 = vpop.f32.mrf.mxu0
      %v2738 = vadd.f32 0.0, %v2737
      %v2739 = vpop.f32.mrf.mxu0
      %2740 = vdwg.mxu0
      %v2741 = vpack.c.bf16 %v2738, %v2738
      %v2743 = vunpack.c.l.b16 %v2683
      %v2744 = vpack.c.b16 %v2743, %v2743
      %2745 = vrot.lane.b32.xlu0 %v2744, 120
      %v2746 = vpop.permute.xlu0 %2745
      %2747 = vrot.lane.b32.xlu0 %v2719, 120
      %v2748 = vpop.permute.xlu0 %2747
      %v2750 = vsel %vm1180, %v2746, 0
      %v2753 = vsel %vm1180, %v2748, 0
      %2755 = vmatpush.bf16.xpose.msra.mxu0 0
      %2756 = vmatpush.bf16.xpose.msra.mxu0 0
      %2757 = vmatpush.bf16.xpose.msra.mxu0 0
      %2758 = vmatpush.bf16.xpose.msra.mxu0 0
      %2759 = vmatpush.bf16.xpose.msra.mxu0 0
      %2760 = vmatpush.bf16.xpose.msra.mxu0 0
      %2761 = vmatpush.bf16.xpose.msra.mxu0 0
      %2762 = vmatpush.bf16.xpose.msra.mxu0 %v2753
      %2763 = vmatmul.bf16.gmra.mxu0 %v2750
      %v2764 = vpop.f32.mrf.mxu0
      %v2765 = vadd.f32 0.0, %v2764
      %v2766 = vpop.f32.mrf.mxu0
      %2767 = vdwg.mxu0
      %v2768 = vmul.f32 %v2765, 0.35355338
      %v2769 = vsel %vm1180, %v2768, -inf
      %2770 = vmax.xlane.f32.xlu0 %v2769
      %v2771 = vpop.xlane.xlu0 %2770
      %v2772 = vsub.f32 %v2768, %v2771
      %v2773 = vmul.f32 %v2772, 1.442695
      %v2774 = vpow.pop %v2773
      %v2775 = vsel %vm1180, %v2774, 0.0
      %2776 = vadd.xlane.f32.xlu0 %v2775
      %v2777 = vpop.xlane.xlu0 %2776
      %v2778 = vrcp.pop %v2777
      %v2779 = vmul.f32 %v2774, %v2778
      %v2780 = vpack.c.bf16 %v2779, %v2779
      %2781 = vrot.lane.b32.xlu0 %v2719, 88
      %v2782 = vpop.permute.xlu0 %2781
      %v2784 = vsel %vm1180, %v2780, 0
      %v2787 = vsel %vm1219, %v2782, 0
      %2789 = vmatpush.bf16.msra.mxu0 0
      %2790 = vmatpush.bf16.msra.mxu0 0
      %2791 = vmatpush.bf16.msra.mxu0 0
      %2792 = vmatpush.bf16.msra.mxu0 0
      %2793 = vmatpush.bf16.msra.mxu0 0
      %2794 = vmatpush.bf16.msra.mxu0 0
      %2795 = vmatpush.bf16.msra.mxu0 0
      %2796 = vmatpush.bf16.msra.mxu0 %v2787
      %2797 = vmatmul.bf16.gmra.mxu0 %v2784
      %v2798 = vpop.f32.mrf.mxu0
      %v2799 = vadd.f32 0.0, %v2798
      %v2800 = vpop.f32.mrf.mxu0
      %2801 = vdwg.mxu0
      %v2802 = vpack.c.bf16 %v2799, %v2799
      %v2804 = vsel %vm1180, %v2802, 0
      %v2807 = vsel %vm1219, %v2679, 0
      %2809 = vmatpush.bf16.msra.mxu0 0
      %2810 = vmatpush.bf16.msra.mxu0 0
      %2811 = vmatpush.bf16.msra.mxu0 0
      %2812 = vmatpush.bf16.msra.mxu0 0
      %2813 = vmatpush.bf16.msra.mxu0 0
      %2814 = vmatpush.bf16.msra.mxu0 0
      %2815 = vmatpush.bf16.msra.mxu0 0
      %2816 = vmatpush.bf16.msra.mxu0 %v2807
      %2817 = vmatmul.bf16.gmra.mxu0 %v2804
      %v2818 = vpop.f32.mrf.mxu0
      %v2819 = vadd.f32 0.0, %v2818
      %v2820 = vpop.f32.mrf.mxu0
      %2821 = vdwg.mxu0
      %v2823 = vsel %vm1180, %v2741, 0
      %v2826 = vsel %vm1219, %v2678, 0
      %2828 = vmatpush.bf16.msra.mxu0 0
      %2829 = vmatpush.bf16.msra.mxu0 0
      %2830 = vmatpush.bf16.msra.mxu0 0
      %2831 = vmatpush.bf16.msra.mxu0 0
      %2832 = vmatpush.bf16.msra.mxu0 0
      %2833 = vmatpush.bf16.msra.mxu0 0
      %2834 = vmatpush.bf16.msra.mxu0 0
      %2835 = vmatpush.bf16.msra.mxu0 %v2826
      %2836 = vmatmul.bf16.gmra.mxu0 %v2823
      %v2837 = vpop.f32.mrf.mxu0
      %v2838 = vadd.f32 %v2819, %v2837
      %v2839 = vpop.f32.mrf.mxu0
      %2840 = vdwg.mxu0
      %2841 = vrot.lane.b32.xlu0 %v2744, 112
      %v2842 = vpop.permute.xlu0 %2841
      %2843 = vrot.lane.b32.xlu0 %v2719, 112
      %v2844 = vpop.permute.xlu0 %2843
      %v2846 = vsel %vm1180, %v2842, 0
      %v2849 = vsel %vm1180, %v2844, 0
      %2851 = vmatpush.bf16.xpose.msra.mxu0 0
      %2852 = vmatpush.bf16.xpose.msra.mxu0 0
      %2853 = vmatpush.bf16.xpose.msra.mxu0 0
      %2854 = vmatpush.bf16.xpose.msra.mxu0 0
      %2855 = vmatpush.bf16.xpose.msra.mxu0 0
      %2856 = vmatpush.bf16.xpose.msra.mxu0 0
      %2857 = vmatpush.bf16.xpose.msra.mxu0 0
      %2858 = vmatpush.bf16.xpose.msra.mxu0 %v2849
      %2859 = vmatmul.bf16.gmra.mxu0 %v2846
      %v2860 = vpop.f32.mrf.mxu0
      %v2861 = vadd.f32 0.0, %v2860
      %v2862 = vpop.f32.mrf.mxu0
      %2863 = vdwg.mxu0
      %v2864 = vmul.f32 %v2861, 0.35355338
      %v2865 = vsel %vm1180, %v2864, -inf
      %2866 = vmax.xlane.f32.xlu0 %v2865
      %v2867 = vpop.xlane.xlu0 %2866
      %v2868 = vsub.f32 %v2864, %v2867
      %v2869 = vmul.f32 %v2868, 1.442695
      %v2870 = vpow.pop %v2869
      %v2871 = vsel %vm1180, %v2870, 0.0
      %2872 = vadd.xlane.f32.xlu0 %v2871
      %v2873 = vpop.xlane.xlu0 %2872
      %v2874 = vrcp.pop %v2873
      %v2875 = vmul.f32 %v2870, %v2874
      %v2876 = vpack.c.bf16 %v2875, %v2875
      %2877 = vrot.lane.b32.xlu0 %v2719, 80
      %v2878 = vpop.permute.xlu0 %2877
      %v2880 = vsel %vm1180, %v2876, 0
      %v2883 = vsel %vm1219, %v2878, 0
      %2885 = vmatpush.bf16.msra.mxu0 0
      %2886 = vmatpush.bf16.msra.mxu0 0
      %2887 = vmatpush.bf16.msra.mxu0 0
      %2888 = vmatpush.bf16.msra.mxu0 0
      %2889 = vmatpush.bf16.msra.mxu0 0
      %2890 = vmatpush.bf16.msra.mxu0 0
      %2891 = vmatpush.bf16.msra.mxu0 0
      %2892 = vmatpush.bf16.msra.mxu0 %v2883
      %2893 = vmatmul.bf16.gmra.mxu0 %v2880
      %v2894 = vpop.f32.mrf.mxu0
      %v2895 = vadd.f32 0.0, %v2894
      %v2896 = vpop.f32.mrf.mxu0
      %2897 = vdwg.mxu0
      %v2898 = vpack.c.bf16 %v2895, %v2895
      %v2900 = vsel %vm1180, %v2898, 0
      %v2903 = vsel %vm1219, %v2680, 0
      %2905 = vmatpush.bf16.msra.mxu0 0
      %2906 = vmatpush.bf16.msra.mxu0 0
      %2907 = vmatpush.bf16.msra.mxu0 0
      %2908 = vmatpush.bf16.msra.mxu0 0
      %2909 = vmatpush.bf16.msra.mxu0 0
      %2910 = vmatpush.bf16.msra.mxu0 0
      %2911 = vmatpush.bf16.msra.mxu0 0
      %2912 = vmatpush.bf16.msra.mxu0 %v2903
      %2913 = vmatmul.bf16.gmra.mxu0 %v2900
      %v2914 = vpop.f32.mrf.mxu0
      %v2915 = vadd.f32 0.0, %v2914
      %v2916 = vpop.f32.mrf.mxu0
      %2917 = vdwg.mxu0
      %v2918 = vadd.f32 %v2838, %v2915
      %2919 = vrot.lane.b32.xlu0 %v2744, 104
      %v2920 = vpop.permute.xlu0 %2919
      %2921 = vrot.lane.b32.xlu0 %v2719, 104
      %v2922 = vpop.permute.xlu0 %2921
      %v2924 = vsel %vm1180, %v2920, 0
      %v2927 = vsel %vm1180, %v2922, 0
      %2929 = vmatpush.bf16.xpose.msra.mxu0 0
      %2930 = vmatpush.bf16.xpose.msra.mxu0 0
      %2931 = vmatpush.bf16.xpose.msra.mxu0 0
      %2932 = vmatpush.bf16.xpose.msra.mxu0 0
      %2933 = vmatpush.bf16.xpose.msra.mxu0 0
      %2934 = vmatpush.bf16.xpose.msra.mxu0 0
      %2935 = vmatpush.bf16.xpose.msra.mxu0 0
      %2936 = vmatpush.bf16.xpose.msra.mxu0 %v2927
      %2937 = vmatmul.bf16.gmra.mxu0 %v2924
      %v2938 = vpop.f32.mrf.mxu0
      %v2939 = vadd.f32 0.0, %v2938
      %v2940 = vpop.f32.mrf.mxu0
      %2941 = vdwg.mxu0
      %v2942 = vmul.f32 %v2939, 0.35355338
      %v2943 = vsel %vm1180, %v2942, -inf
      %2944 = vmax.xlane.f32.xlu0 %v2943
      %v2945 = vpop.xlane.xlu0 %2944
      %v2946 = vsub.f32 %v2942, %v2945
      %v2947 = vmul.f32 %v2946, 1.442695
      %v2948 = vpow.pop %v2947
      %v2949 = vsel %vm1180, %v2948, 0.0
      %2950 = vadd.xlane.f32.xlu0 %v2949
      %v2951 = vpop.xlane.xlu0 %2950
      %v2952 = vrcp.pop %v2951
      %v2953 = vmul.f32 %v2948, %v2952
      %v2954 = vpack.c.bf16 %v2953, %v2953
      %2955 = vrot.lane.b32.xlu0 %v2719, 72
      %v2956 = vpop.permute.xlu0 %2955
      %v2958 = vsel %vm1180, %v2954, 0
      %v2961 = vsel %vm1219, %v2956, 0
      %2963 = vmatpush.bf16.msra.mxu0 0
      %2964 = vmatpush.bf16.msra.mxu0 0
      %2965 = vmatpush.bf16.msra.mxu0 0
      %2966 = vmatpush.bf16.msra.mxu0 0
      %2967 = vmatpush.bf16.msra.mxu0 0
      %2968 = vmatpush.bf16.msra.mxu0 0
      %2969 = vmatpush.bf16.msra.mxu0 0
      %2970 = vmatpush.bf16.msra.mxu0 %v2961
      %2971 = vmatmul.bf16.gmra.mxu0 %v2958
      %v2972 = vpop.f32.mrf.mxu0
      %v2973 = vadd.f32 0.0, %v2972
      %v2974 = vpop.f32.mrf.mxu0
      %2975 = vdwg.mxu0
      %v2976 = vpack.c.bf16 %v2973, %v2973
      %v2978 = vsel %vm1180, %v2976, 0
      %v2981 = vsel %vm1219, %v2681, 0
      %2983 = vmatpush.bf16.msra.mxu0 0
      %2984 = vmatpush.bf16.msra.mxu0 0
      %2985 = vmatpush.bf16.msra.mxu0 0
      %2986 = vmatpush.bf16.msra.mxu0 0
      %2987 = vmatpush.bf16.msra.mxu0 0
      %2988 = vmatpush.bf16.msra.mxu0 0
      %2989 = vmatpush.bf16.msra.mxu0 0
      %2990 = vmatpush.bf16.msra.mxu0 %v2981
      %2991 = vmatmul.bf16.gmra.mxu0 %v2978
      %v2992 = vpop.f32.mrf.mxu0
      %v2993 = vadd.f32 0.0, %v2992
      %v2994 = vpop.f32.mrf.mxu0
      %2995 = vdwg.mxu0
      %v2996 = vadd.f32 %v2918, %v2993
      %v2998 = vperm.slane %v2682, 0
      %v3000 = vadd.f32 %v2996, %v2998
      %v3001 = vadd.f32 %v3000, %v2614
      %v3002 = vld [vmem:[%s59] sm:$0x1]
      %v3003 = vld [vmem:[%s61] sm:$0x1]
      %v3004 = vsel %vm1152, %v3001, 0.0
      %3005 = vadd.xlane.f32.xlu0 %v3004
      %v3006 = vpop.xlane.xlu0 %3005
      %v3007 = vmul.f32 %v3006, %v1508
      %v3008 = vsub.f32 %v3001, %v3007
      %v3009 = vmul.f32 %v3008, %v3008
      %v3010 = vsel %vm1152, %v3009, 0.0
      %3011 = vadd.xlane.f32.xlu0 %v3010
      %v3012 = vpop.xlane.xlu0 %3011
      %v3013 = vmul.f32 %v3012, %v1508
      %v3014 = vadd.f32 %v3013, 1e-05
      %v3015 = vrsqrt.pop %v3014
      %v3016 = vmul.f32 %v3015, %v3014
      %v3017 = vmul.f32 %v3016, %v3015
      %v3018 = vmul.f32 0.5, %v3017
      %v3019 = vsub.f32 1.5, %v3018
      %v3020 = vmul.f32 %v3015, %v3019
      %vm3021 = vweird.f32 %v3014
      %vm3022 = vweird.f32 %v3015
      %vm3023 = vmor %vm3021, %vm3022
      %v3024 = vsel %vm3023, %v3015, %v3020
      %v3025 = vmul.f32 %v3008, %v3024
      %v3027 = vperm.slane %v3002, 0
      %v3029 = vmul.f32 %v3025, %v3027
      %v3031 = vperm.slane %v3003, 0
      %v3033 = vadd.f32 %v3029, %v3031
      %v3034 = vld [vmem:[%s47] sm:$0xf]
      %v3035 = vld [vmem:[%s47 + $0x4] sm:$0xf]
      %v3036 = vld [vmem:[%s47 + $0x8] sm:$0xf]
      %v3037 = vld [vmem:[%s47 + $0xc] sm:$0xf]
      %v3038 = vpack.c.bf16 %v3033, %v3033
      %v3039 = vld [vmem:[%s49] sm:$0x1]
      %v3041 = vperm.slane %v3039, 0
      %v3047 = vunpack.c.l.b16 %v3034
      %v3048 = vunpack.c.l.b16 %v3035
      %v3049 = vunpack.c.l.b16 %v3036
      %v3050 = vunpack.c.l.b16 %v3037
      %v3051 = vpack.c.b16 %v3048, %v3047
      %v3052 = vpack.c.b16 %v3050, %v3049
      %v3056 = vsel %vm1152, %v3038, 0
      %3058 = vmatpush.bf16.msra.mxu0 0
      %3059 = vmatpush.bf16.msra.mxu0 0
      %3060 = vmatpush.bf16.msra.mxu0 0
      %3061 = vmatpush.bf16.msra.mxu0 0
      %3062 = vmatpush.bf16.msra.mxu0 0
      %3063 = vmatpush.bf16.msra.mxu0 0
      %3064 = vmatpush.bf16.msra.mxu0 %v3052
      %3065 = vmatpush.bf16.msra.mxu0 %v3051
      %3066 = vmatmul.bf16.gmra.mxu0 %v3056
      %v3067 = vpop.f32.mrf.mxu0
      %v3068 = vadd.f32 %v3041, %v3067
      %v3069 = vpop.f32.mrf.mxu0
      %3070 = vdwg.mxu0
      %v3071 = vmax.f32 %v3068, 0.0
      %v3072 = vld [vmem:[%s51] sm:$0xf]
      %v3073 = vld [vmem:[%s51 + $0x4] sm:$0xf]
      %v3074 = vld [vmem:[%s51 + $0x8] sm:$0xf]
      %v3075 = vld [vmem:[%s51 + $0xc] sm:$0xf]
      %v3076 = vld [vmem:[%s51 + $0x10] sm:$0xf]
      %v3077 = vld [vmem:[%s51 + $0x14] sm:$0xf]
      %v3078 = vld [vmem:[%s51 + $0x18] sm:$0xf]
      %v3079 = vld [vmem:[%s51 + $0x1c] sm:$0xf]
      %v3080 = vpack.c.bf16 %v3071, %v3071
      %v3081 = vld [vmem:[%s53] sm:$0x1]
      %v3083 = vperm.slane %v3081, 0
      %v3093 = vunpack.c.l.b16 %v3072
      %v3094 = vunpack.c.l.b16 %v3073
      %v3095 = vunpack.c.l.b16 %v3074
      %v3096 = vunpack.c.l.b16 %v3075
      %v3097 = vunpack.c.l.b16 %v3076
      %v3098 = vunpack.c.l.b16 %v3077
      %v3099 = vunpack.c.l.b16 %v3078
      %v3100 = vunpack.c.l.b16 %v3079
      %v3101 = vpack.c.b16 %v3094, %v3093
      %v3102 = vpack.c.b16 %v3096, %v3095
      %v3103 = vpack.c.b16 %v3098, %v3097
      %v3104 = vpack.c.b16 %v3100, %v3099
      %v3110 = vsel %vm1611, %v3080, 0
      %3112 = vmatpush.bf16.msra.mxu0 0
      %3113 = vmatpush.bf16.msra.mxu0 0
      %3114 = vmatpush.bf16.msra.mxu0 0
      %3115 = vmatpush.bf16.msra.mxu0 0
      %3116 = vmatpush.bf16.msra.mxu0 %v3104
      %3117 = vmatpush.bf16.msra.mxu0 %v3103
      %3118 = vmatpush.bf16.msra.mxu0 %v3102
      %3119 = vmatpush.bf16.msra.mxu0 %v3101
      %3120 = vmatmul.bf16.gmra.mxu0 %v3110
      %v3121 = vpop.f32.mrf.mxu0
      %v3122 = vadd.f32 %v3083, %v3121
      %v3123 = vpop.f32.mrf.mxu0
      %3124 = vdwg.mxu0
      %v3125 = vadd.f32 %v3122, %v3033
      %v3126 = vld [vmem:[%s63] sm:$0x1]
      %v3127 = vld [vmem:[%s65] sm:$0x1]
      %v3128 = vsel %vm1152, %v3125, 0.0
      %3129 = vadd.xlane.f32.xlu0 %v3128
      %v3130 = vpop.xlane.xlu0 %3129
      %v3131 = vmul.f32 %v3130, %v1508
      %v3132 = vsub.f32 %v3125, %v3131
      %v3133 = vmul.f32 %v3132, %v3132
      %v3134 = vsel %vm1152, %v3133, 0.0
      %3135 = vadd.xlane.f32.xlu0 %v3134
      %v3136 = vpop.xlane.xlu0 %3135
      %v3137 = vmul.f32 %v3136, %v1508
      %v3138 = vadd.f32 %v3137, 1e-05
      %v3139 = vrsqrt.pop %v3138
      %v3140 = vmul.f32 %v3139, %v3138
      %v3141 = vmul.f32 %v3140, %v3139
      %v3142 = vmul.f32 0.5, %v3141
      %v3143 = vsub.f32 1.5, %v3142
      %v3144 = vmul.f32 %v3139, %v3143
      %vm3145 = vweird.f32 %v3138
      %vm3146 = vweird.f32 %v3139
      %vm3147 = vmor %vm3145, %vm3146
      %v3148 = vsel %vm3147, %v3139, %v3144
      %v3149 = vmul.f32 %v3132, %v3148
      %v3151 = vperm.slane %v3126, 0
      %v3153 = vmul.f32 %v3149, %v3151
      %v3155 = vperm.slane %v3127, 0
      %v3157 = vadd.f32 %v3153, %v3155
      %s3158 = scalar_lea.vmem %s31, 16
      %v3159 = vld [vmem:[%s3158] sm:$0xf]
      %v3160 = vld [vmem:[%s3158 + $0x4] sm:$0xf]
      %v3161 = vld [vmem:[%s3158 + $0x8] sm:$0xf]
      %v3162 = vld [vmem:[%s3158 + $0xc] sm:$0xf]
      %v3163 = vpack.c.bf16 %v3157, %v3157
      %s3164 = scalar_lea.vmem %s33, 1
      %v3165 = vld [vmem:[%s3164] sm:$0x1]
      %v3167 = vperm.slane %v3165, 0
      %v3173 = vunpack.c.l.b16 %v3159
      %v3174 = vunpack.c.l.b16 %v3160
      %v3175 = vunpack.c.l.b16 %v3161
      %v3176 = vunpack.c.l.b16 %v3162
      %v3177 = vpack.c.b16 %v3174, %v3173
      %v3178 = vpack.c.b16 %v3176, %v3175
      %v3182 = vsel %vm1152, %v3163, 0
      %3184 = vmatpush.bf16.msra.mxu0 0
      %3185 = vmatpush.bf16.msra.mxu0 0
      %3186 = vmatpush.bf16.msra.mxu0 0
      %3187 = vmatpush.bf16.msra.mxu0 0
      %3188 = vmatpush.bf16.msra.mxu0 0
      %3189 = vmatpush.bf16.msra.mxu0 0
      %3190 = vmatpush.bf16.msra.mxu0 %v3178
      %3191 = vmatpush.bf16.msra.mxu0 %v3177
      %3192 = vmatmul.bf16.gmra.mxu0 %v3182
      %v3193 = vpop.f32.mrf.mxu0
      %v3194 = vadd.f32 %v3167, %v3193
      %v3195 = vpop.f32.mrf.mxu0
      %3196 = vdwg.mxu0
      %s3197 = scalar_lea.vmem %s35, 16
      %v3198 = vld [vmem:[%s3197] sm:$0xf]
      %v3199 = vld [vmem:[%s3197 + $0x4] sm:$0xf]
      %v3200 = vld [vmem:[%s3197 + $0x8] sm:$0xf]
      %v3201 = vld [vmem:[%s3197 + $0xc] sm:$0xf]
      %s3202 = scalar_lea.vmem %s37, 1
      %v3203 = vld [vmem:[%s3202] sm:$0x1]
      %v3204 = vpack.c.bf16 %v3194, %v3194
      %v3206 = vunpack.c.l.b16 %v3204
      %v3207 = vpack.c.b16 %v3206, %v3206
      %3208 = vrot.lane.b32.xlu0 %v3207, 96
      %v3209 = vpop.permute.xlu0 %3208
      %v3211 = vsel %vm1180, %v3204, 0
      %v3214 = vsel %vm1180, %v3209, 0
      %3216 = vmatpush.bf16.xpose.msra.mxu0 0
      %3217 = vmatpush.bf16.xpose.msra.mxu0 0
      %3218 = vmatpush.bf16.xpose.msra.mxu0 0
      %3219 = vmatpush.bf16.xpose.msra.mxu0 0
      %3220 = vmatpush.bf16.xpose.msra.mxu0 0
      %3221 = vmatpush.bf16.xpose.msra.mxu0 0
      %3222 = vmatpush.bf16.xpose.msra.mxu0 0
      %3223 = vmatpush.bf16.xpose.msra.mxu0 %v3214
      %3224 = vmatmul.bf16.gmra.mxu0 %v3211
      %v3225 = vpop.f32.mrf.mxu0
      %v3226 = vadd.f32 0.0, %v3225
      %v3227 = vpop.f32.mrf.mxu0
      %3228 = vdwg.mxu0
      %v3229 = vmul.f32 %v3226, 0.35355338
      %v3230 = vadd.f32 %v3229, %v1128
      %v3231 = vsel %vm1180, %v3230, -inf
      %3232 = vmax.xlane.f32.xlu0 %v3231
      %v3233 = vpop.xlane.xlu0 %3232
      %v3234 = vsub.f32 %v3230, %v3233
      %v3235 = vmul.f32 %v3234, 1.442695
      %v3236 = vpow.pop %v3235
      %v3237 = vsel %vm1180, %v3236, 0.0
      %3238 = vadd.xlane.f32.xlu0 %v3237
      %v3239 = vpop.xlane.xlu0 %3238
      %v3240 = vrcp.pop %v3239
      %v3241 = vmul.f32 %v3236, %v3240
      %v3242 = vpack.c.bf16 %v3241, %v3241
      %3243 = vrot.lane.b32.xlu0 %v3207, 64
      %v3244 = vpop.permute.xlu0 %3243
      %v3246 = vsel %vm1180, %v3242, 0
      %v3249 = vsel %vm1219, %v3244, 0
      %3251 = vmatpush.bf16.msra.mxu0 0
      %3252 = vmatpush.bf16.msra.mxu0 0
      %3253 = vmatpush.bf16.msra.mxu0 0
      %3254 = vmatpush.bf16.msra.mxu0 0
      %3255 = vmatpush.bf16.msra.mxu0 0
      %3256 = vmatpush.bf16.msra.mxu0 0
      %3257 = vmatpush.bf16.msra.mxu0 0
      %3258 = vmatpush.bf16.msra.mxu0 %v3249
      %3259 = vmatmul.bf16.gmra.mxu0 %v3246
      %v3260 = vpop.f32.mrf.mxu0
      %v3261 = vadd.f32 0.0, %v3260
      %v3262 = vpop.f32.mrf.mxu0
      %3263 = vdwg.mxu0
      %v3264 = vpack.c.bf16 %v3261, %v3261
      %3265 = vrot.lane.b32.xlu0 %v3207, 120
      %v3266 = vpop.permute.xlu0 %3265
      %3267 = vrot.lane.b32.xlu0 %v3207, 88
      %v3268 = vpop.permute.xlu0 %3267
      %v3270 = vsel %vm1180, %v3266, 0
      %v3273 = vsel %vm1180, %v3268, 0
      %3275 = vmatpush.bf16.xpose.msra.mxu0 0
      %3276 = vmatpush.bf16.xpose.msra.mxu0 0
      %3277 = vmatpush.bf16.xpose.msra.mxu0 0
      %3278 = vmatpush.bf16.xpose.msra.mxu0 0
      %3279 = vmatpush.bf16.xpose.msra.mxu0 0
      %3280 = vmatpush.bf16.xpose.msra.mxu0 0
      %3281 = vmatpush.bf16.xpose.msra.mxu0 0
      %3282 = vmatpush.bf16.xpose.msra.mxu0 %v3273
      %3283 = vmatmul.bf16.gmra.mxu0 %v3270
      %v3284 = vpop.f32.mrf.mxu0
      %v3285 = vadd.f32 0.0, %v3284
      %v3286 = vpop.f32.mrf.mxu0
      %3287 = vdwg.mxu0
      %v3288 = vmul.f32 %v3285, 0.35355338
      %v3289 = vadd.f32 %v3288, %v1128
      %v3290 = vsel %vm1180, %v3289, -inf
      %3291 = vmax.xlane.f32.xlu0 %v3290
      %v3292 = vpop.xlane.xlu0 %3291
      %v3293 = vsub.f32 %v3289, %v3292
      %v3294 = vmul.f32 %v3293, 1.442695
      %v3295 = vpow.pop %v3294
      %v3296 = vsel %vm1180, %v3295, 0.0
      %3297 = vadd.xlane.f32.xlu0 %v3296
      %v3298 = vpop.xlane.xlu0 %3297
      %v3299 = vrcp.pop %v3298
      %v3300 = vmul.f32 %v3295, %v3299
      %v3301 = vpack.c.bf16 %v3300, %v3300
      %3302 = vrot.lane.b32.xlu0 %v3207, 56
      %v3303 = vpop.permute.xlu0 %3302
      %v3305 = vsel %vm1180, %v3301, 0
      %v3308 = vsel %vm1219, %v3303, 0
      %3310 = vmatpush.bf16.msra.mxu0 0
      %3311 = vmatpush.bf16.msra.mxu0 0
      %3312 = vmatpush.bf16.msra.mxu0 0
      %3313 = vmatpush.bf16.msra.mxu0 0
      %3314 = vmatpush.bf16.msra.mxu0 0
      %3315 = vmatpush.bf16.msra.mxu0 0
      %3316 = vmatpush.bf16.msra.mxu0 0
      %3317 = vmatpush.bf16.msra.mxu0 %v3308
      %3318 = vmatmul.bf16.gmra.mxu0 %v3305
      %v3319 = vpop.f32.mrf.mxu0
      %v3320 = vadd.f32 0.0, %v3319
      %v3321 = vpop.f32.mrf.mxu0
      %3322 = vdwg.mxu0
      %v3323 = vpack.c.bf16 %v3320, %v3320
      %v3325 = vsel %vm1180, %v3323, 0
      %v3328 = vsel %vm1219, %v3199, 0
      %3330 = vmatpush.bf16.msra.mxu0 0
      %3331 = vmatpush.bf16.msra.mxu0 0
      %3332 = vmatpush.bf16.msra.mxu0 0
      %3333 = vmatpush.bf16.msra.mxu0 0
      %3334 = vmatpush.bf16.msra.mxu0 0
      %3335 = vmatpush.bf16.msra.mxu0 0
      %3336 = vmatpush.bf16.msra.mxu0 0
      %3337 = vmatpush.bf16.msra.mxu0 %v3328
      %3338 = vmatmul.bf16.gmra.mxu0 %v3325
      %v3339 = vpop.f32.mrf.mxu0
      %v3340 = vadd.f32 0.0, %v3339
      %v3341 = vpop.f32.mrf.mxu0
      %3342 = vdwg.mxu0
      %v3344 = vsel %vm1180, %v3264, 0
      %v3347 = vsel %vm1219, %v3198, 0
      %3349 = vmatpush.bf16.msra.mxu0 0
      %3350 = vmatpush.bf16.msra.mxu0 0
      %3351 = vmatpush.bf16.msra.mxu0 0
      %3352 = vmatpush.bf16.msra.mxu0 0
      %3353 = vmatpush.bf16.msra.mxu0 0
      %3354 = vmatpush.bf16.msra.mxu0 0
      %3355 = vmatpush.bf16.msra.mxu0 0
      %3356 = vmatpush.bf16.msra.mxu0 %v3347
      %3357 = vmatmul.bf16.gmra.mxu0 %v3344
      %v3358 = vpop.f32.mrf.mxu0
      %v3359 = vadd.f32 %v3340, %v3358
      %v3360 = vpop.f32.mrf.mxu0
      %3361 = vdwg.mxu0
      %3362 = vrot.lane.b32.xlu0 %v3207, 112
      %v3363 = vpop.permute.xlu0 %3362
      %3364 = vrot.lane.b32.xlu0 %v3207, 80
      %v3365 = vpop.permute.xlu0 %3364
      %v3367 = vsel %vm1180, %v3363, 0
      %v3370 = vsel %vm1180, %v3365, 0
      %3372 = vmatpush.bf16.xpose.msra.mxu0 0
      %3373 = vmatpush.bf16.xpose.msra.mxu0 0
      %3374 = vmatpush.bf16.xpose.msra.mxu0 0
      %3375 = vmatpush.bf16.xpose.msra.mxu0 0
      %3376 = vmatpush.bf16.xpose.msra.mxu0 0
      %3377 = vmatpush.bf16.xpose.msra.mxu0 0
      %3378 = vmatpush.bf16.xpose.msra.mxu0 0
      %3379 = vmatpush.bf16.xpose.msra.mxu0 %v3370
      %3380 = vmatmul.bf16.gmra.mxu0 %v3367
      %v3381 = vpop.f32.mrf.mxu0
      %v3382 = vadd.f32 0.0, %v3381
      %v3383 = vpop.f32.mrf.mxu0
      %3384 = vdwg.mxu0
      %v3385 = vmul.f32 %v3382, 0.35355338
      %v3386 = vadd.f32 %v3385, %v1128
      %v3387 = vsel %vm1180, %v3386, -inf
      %3388 = vmax.xlane.f32.xlu0 %v3387
      %v3389 = vpop.xlane.xlu0 %3388
      %v3390 = vsub.f32 %v3386, %v3389
      %v3391 = vmul.f32 %v3390, 1.442695
      %v3392 = vpow.pop %v3391
      %v3393 = vsel %vm1180, %v3392, 0.0
      %3394 = vadd.xlane.f32.xlu0 %v3393
      %v3395 = vpop.xlane.xlu0 %3394
      %v3396 = vrcp.pop %v3395
      %v3397 = vmul.f32 %v3392, %v3396
      %v3398 = vpack.c.bf16 %v3397, %v3397
      %3399 = vrot.lane.b32.xlu0 %v3207, 48
      %v3400 = vpop.permute.xlu0 %3399
      %v3402 = vsel %vm1180, %v3398, 0
      %v3405 = vsel %vm1219, %v3400, 0
      %3407 = vmatpush.bf16.msra.mxu0 0
      %3408 = vmatpush.bf16.msra.mxu0 0
      %3409 = vmatpush.bf16.msra.mxu0 0
      %3410 = vmatpush.bf16.msra.mxu0 0
      %3411 = vmatpush.bf16.msra.mxu0 0
      %3412 = vmatpush.bf16.msra.mxu0 0
      %3413 = vmatpush.bf16.msra.mxu0 0
      %3414 = vmatpush.bf16.msra.mxu0 %v3405
      %3415 = vmatmul.bf16.gmra.mxu0 %v3402
      %v3416 = vpop.f32.mrf.mxu0
      %v3417 = vadd.f32 0.0, %v3416
      %v3418 = vpop.f32.mrf.mxu0
      %3419 = vdwg.mxu0
      %v3420 = vpack.c.bf16 %v3417, %v3417
      %v3422 = vsel %vm1180, %v3420, 0
      %v3425 = vsel %vm1219, %v3200, 0
      %3427 = vmatpush.bf16.msra.mxu0 0
      %3428 = vmatpush.bf16.msra.mxu0 0
      %3429 = vmatpush.bf16.msra.mxu0 0
      %3430 = vmatpush.bf16.msra.mxu0 0
      %3431 = vmatpush.bf16.msra.mxu0 0
      %3432 = vmatpush.bf16.msra.mxu0 0
      %3433 = vmatpush.bf16.msra.mxu0 0
      %3434 = vmatpush.bf16.msra.mxu0 %v3425
      %3435 = vmatmul.bf16.gmra.mxu0 %v3422
      %v3436 = vpop.f32.mrf.mxu0
      %v3437 = vadd.f32 0.0, %v3436
      %v3438 = vpop.f32.mrf.mxu0
      %3439 = vdwg.mxu0
      %v3440 = vadd.f32 %v3359, %v3437
      %3441 = vrot.lane.b32.xlu0 %v3207, 104
      %v3442 = vpop.permute.xlu0 %3441
      %3443 = vrot.lane.b32.xlu0 %v3207, 72
      %v3444 = vpop.permute.xlu0 %3443
      %v3446 = vsel %vm1180, %v3442, 0
      %v3449 = vsel %vm1180, %v3444, 0
      %3451 = vmatpush.bf16.xpose.msra.mxu0 0
      %3452 = vmatpush.bf16.xpose.msra.mxu0 0
      %3453 = vmatpush.bf16.xpose.msra.mxu0 0
      %3454 = vmatpush.bf16.xpose.msra.mxu0 0
      %3455 = vmatpush.bf16.xpose.msra.mxu0 0
      %3456 = vmatpush.bf16.xpose.msra.mxu0 0
      %3457 = vmatpush.bf16.xpose.msra.mxu0 0
      %3458 = vmatpush.bf16.xpose.msra.mxu0 %v3449
      %3459 = vmatmul.bf16.gmra.mxu0 %v3446
      %v3460 = vpop.f32.mrf.mxu0
      %v3461 = vadd.f32 0.0, %v3460
      %v3462 = vpop.f32.mrf.mxu0
      %3463 = vdwg.mxu0
      %v3464 = vmul.f32 %v3461, 0.35355338
      %v3465 = vadd.f32 %v3464, %v1128
      %v3466 = vsel %vm1180, %v3465, -inf
      %3467 = vmax.xlane.f32.xlu0 %v3466
      %v3468 = vpop.xlane.xlu0 %3467
      %v3469 = vsub.f32 %v3465, %v3468
      %v3470 = vmul.f32 %v3469, 1.442695
      %v3471 = vpow.pop %v3470
      %v3472 = vsel %vm1180, %v3471, 0.0
      %3473 = vadd.xlane.f32.xlu0 %v3472
      %v3474 = vpop.xlane.xlu0 %3473
      %v3475 = vrcp.pop %v3474
      %v3476 = vmul.f32 %v3471, %v3475
      %v3477 = vpack.c.bf16 %v3476, %v3476
      %3478 = vrot.lane.b32.xlu0 %v3207, 40
      %v3479 = vpop.permute.xlu0 %3478
      %v3481 = vsel %vm1180, %v3477, 0
      %v3484 = vsel %vm1219, %v3479, 0
      %3486 = vmatpush.bf16.msra.mxu0 0
      %3487 = vmatpush.bf16.msra.mxu0 0
      %3488 = vmatpush.bf16.msra.mxu0 0
      %3489 = vmatpush.bf16.msra.mxu0 0
      %3490 = vmatpush.bf16.msra.mxu0 0
      %3491 = vmatpush.bf16.msra.mxu0 0
      %3492 = vmatpush.bf16.msra.mxu0 0
      %3493 = vmatpush.bf16.msra.mxu0 %v3484
      %3494 = vmatmul.bf16.gmra.mxu0 %v3481
      %v3495 = vpop.f32.mrf.mxu0
      %v3496 = vadd.f32 0.0, %v3495
      %v3497 = vpop.f32.mrf.mxu0
      %3498 = vdwg.mxu0
      %v3499 = vpack.c.bf16 %v3496, %v3496
      %v3501 = vsel %vm1180, %v3499, 0
      %v3504 = vsel %vm1219, %v3201, 0
      %3506 = vmatpush.bf16.msra.mxu0 0
      %3507 = vmatpush.bf16.msra.mxu0 0
      %3508 = vmatpush.bf16.msra.mxu0 0
      %3509 = vmatpush.bf16.msra.mxu0 0
      %3510 = vmatpush.bf16.msra.mxu0 0
      %3511 = vmatpush.bf16.msra.mxu0 0
      %3512 = vmatpush.bf16.msra.mxu0 0
      %3513 = vmatpush.bf16.msra.mxu0 %v3504
      %3514 = vmatmul.bf16.gmra.mxu0 %v3501
      %v3515 = vpop.f32.mrf.mxu0
      %v3516 = vadd.f32 0.0, %v3515
      %v3517 = vpop.f32.mrf.mxu0
      %3518 = vdwg.mxu0
      %v3519 = vadd.f32 %v3440, %v3516
      %v3521 = vperm.slane %v3203, 0
      %v3523 = vadd.f32 %v3519, %v3521
      %v3524 = vadd.f32 %v3523, %v3157
      %s3525 = scalar_lea.vmem %s55, 1
      %v3526 = vld [vmem:[%s3525] sm:$0x1]
      %s3527 = scalar_lea.vmem %s57, 1
      %v3528 = vld [vmem:[%s3527] sm:$0x1]
      %v3529 = vsel %vm1152, %v3524, 0.0
      %3530 = vadd.xlane.f32.xlu0 %v3529
      %v3531 = vpop.xlane.xlu0 %3530
      %v3532 = vmul.f32 %v3531, %v1508
      %v3533 = vsub.f32 %v3524, %v3532
      %v3534 = vmul.f32 %v3533, %v3533
      %v3535 = vsel %vm1152, %v3534, 0.0
      %3536 = vadd.xlane.f32.xlu0 %v3535
      %v3537 = vpop.xlane.xlu0 %3536
      %v3538 = vmul.f32 %v3537, %v1508
      %v3539 = vadd.f32 %v3538, 1e-05
      %v3540 = vrsqrt.pop %v3539
      %v3541 = vmul.f32 %v3540, %v3539
      %v3542 = vmul.f32 %v3541, %v3540
      %v3543 = vmul.f32 0.5, %v3542
      %v3544 = vsub.f32 1.5, %v3543
      %v3545 = vmul.f32 %v3540, %v3544
      %vm3546 = vweird.f32 %v3539
      %vm3547 = vweird.f32 %v3540
      %vm3548 = vmor %vm3546, %vm3547
      %v3549 = vsel %vm3548, %v3540, %v3545
      %v3550 = vmul.f32 %v3533, %v3549
      %v3552 = vperm.slane %v3526, 0
      %v3554 = vmul.f32 %v3550, %v3552
      %v3556 = vperm.slane %v3528, 0
      %v3558 = vadd.f32 %v3554, %v3556
      %s3559 = scalar_lea.vmem %s39, 16
      %v3560 = vld [vmem:[%s3559] sm:$0xf]
      %v3561 = vld [vmem:[%s3559 + $0x4] sm:$0xf]
      %v3562 = vld [vmem:[%s3559 + $0x8] sm:$0xf]
      %v3563 = vld [vmem:[%s3559 + $0xc] sm:$0xf]
      %s3564 = scalar_lea.vmem %s41, 1
      %v3565 = vld [vmem:[%s3564] sm:$0x1]
      %v3566 = vpack.c.bf16 %v3558, %v3558
      %v3568 = vperm.slane %v3565, 0
      %v3574 = vunpack.c.l.b16 %v3560
      %v3575 = vunpack.c.l.b16 %v3561
      %v3576 = vunpack.c.l.b16 %v3562
      %v3577 = vunpack.c.l.b16 %v3563
      %v3578 = vpack.c.b16 %v3575, %v3574
      %v3579 = vpack.c.b16 %v3577, %v3576
      %v3583 = vsel %vm1152, %v3566, 0
      %3585 = vmatpush.bf16.msra.mxu0 0
      %3586 = vmatpush.bf16.msra.mxu0 0
      %3587 = vmatpush.bf16.msra.mxu0 0
      %3588 = vmatpush.bf16.msra.mxu0 0
      %3589 = vmatpush.bf16.msra.mxu0 0
      %3590 = vmatpush.bf16.msra.mxu0 0
      %3591 = vmatpush.bf16.msra.mxu0 %v3579
      %3592 = vmatpush.bf16.msra.mxu0 %v3578
      %3593 = vmatmul.bf16.gmra.mxu0 %v3583
      %v3594 = vpop.f32.mrf.mxu0
      %v3595 = vadd.f32 %v3568, %v3594
      %v3596 = vpop.f32.mrf.mxu0
      %3597 = vdwg.mxu0
      %3598 = vrot.lane.b32.xlu0 %v3578, 96
      %v3599 = vpop.permute.xlu0 %3598
      %3600 = vrot.lane.b32.xlu0 %v3579, 96
      %v3601 = vpop.permute.xlu0 %3600
      %3604 = vrot.lane.b32.xlu0 %v3568, 96
      %v3605 = vpop.permute.xlu0 %3604
      %3607 = vmatpush.bf16.msra.mxu0 0
      %3608 = vmatpush.bf16.msra.mxu0 0
      %3609 = vmatpush.bf16.msra.mxu0 0
      %3610 = vmatpush.bf16.msra.mxu0 0
      %3611 = vmatpush.bf16.msra.mxu0 0
      %3612 = vmatpush.bf16.msra.mxu0 0
      %3613 = vmatpush.bf16.msra.mxu0 %v3601
      %3614 = vmatpush.bf16.msra.mxu0 %v3599
      %3615 = vmatmul.bf16.gmra.mxu0 %v2663
      %v3616 = vpop.f32.mrf.mxu0
      %v3617 = vadd.f32 %v3605, %v3616
      %v3618 = vpop.f32.mrf.mxu0
      %3619 = vdwg.mxu0
      %s3620 = scalar_lea.vmem %s43, 16
      %v3621 = vld [vmem:[%s3620] sm:$0xf]
      %v3622 = vld [vmem:[%s3620 + $0x4] sm:$0xf]
      %v3623 = vld [vmem:[%s3620 + $0x8] sm:$0xf]
      %v3624 = vld [vmem:[%s3620 + $0xc] sm:$0xf]
      %s3625 = scalar_lea.vmem %s45, 1
      %v3626 = vld [vmem:[%s3625] sm:$0x1]
      %v3627 = vpack.c.bf16 %v3595, %v3595
      %v3628 = vpack.c.bf16 %v3617, %v3617
      %v3630 = vsel %vm1180, %v3627, 0
      %v3633 = vsel %vm1180, %v3628, 0
      %3635 = vmatpush.bf16.xpose.msra.mxu0 0
      %3636 = vmatpush.bf16.xpose.msra.mxu0 0
      %3637 = vmatpush.bf16.xpose.msra.mxu0 0
      %3638 = vmatpush.bf16.xpose.msra.mxu0 0
      %3639 = vmatpush.bf16.xpose.msra.mxu0 0
      %3640 = vmatpush.bf16.xpose.msra.mxu0 0
      %3641 = vmatpush.bf16.xpose.msra.mxu0 0
      %3642 = vmatpush.bf16.xpose.msra.mxu0 %v3633
      %3643 = vmatmul.bf16.gmra.mxu0 %v3630
      %v3644 = vpop.f32.mrf.mxu0
      %v3645 = vadd.f32 0.0, %v3644
      %v3646 = vpop.f32.mrf.mxu0
      %3647 = vdwg.mxu0
      %v3648 = vmul.f32 %v3645, 0.35355338
      %v3649 = vsel %vm1180, %v3648, -inf
      %3650 = vmax.xlane.f32.xlu0 %v3649
      %v3651 = vpop.xlane.xlu0 %3650
      %v3652 = vsub.f32 %v3648, %v3651
      %v3653 = vmul.f32 %v3652, 1.442695
      %v3654 = vpow.pop %v3653
      %v3655 = vsel %vm1180, %v3654, 0.0
      %3656 = vadd.xlane.f32.xlu0 %v3655
      %v3657 = vpop.xlane.xlu0 %3656
      %v3658 = vrcp.pop %v3657
      %v3659 = vmul.f32 %v3654, %v3658
      %v3660 = vpack.c.bf16 %v3659, %v3659
      %v3662 = vunpack.c.l.b16 %v3628
      %v3663 = vpack.c.b16 %v3662, %v3662
      %3664 = vrot.lane.b32.xlu0 %v3663, 96
      %v3665 = vpop.permute.xlu0 %3664
      %v3667 = vsel %vm1180, %v3660, 0
      %v3670 = vsel %vm1219, %v3665, 0
      %3672 = vmatpush.bf16.msra.mxu0 0
      %3673 = vmatpush.bf16.msra.mxu0 0
      %3674 = vmatpush.bf16.msra.mxu0 0
      %3675 = vmatpush.bf16.msra.mxu0 0
      %3676 = vmatpush.bf16.msra.mxu0 0
      %3677 = vmatpush.bf16.msra.mxu0 0
      %3678 = vmatpush.bf16.msra.mxu0 0
      %3679 = vmatpush.bf16.msra.mxu0 %v3670
      %3680 = vmatmul.bf16.gmra.mxu0 %v3667
      %v3681 = vpop.f32.mrf.mxu0
      %v3682 = vadd.f32 0.0, %v3681
      %v3683 = vpop.f32.mrf.mxu0
      %3684 = vdwg.mxu0
      %v3685 = vpack.c.bf16 %v3682, %v3682
      %v3687 = vunpack.c.l.b16 %v3627
      %v3688 = vpack.c.b16 %v3687, %v3687
      %3689 = vrot.lane.b32.xlu0 %v3688, 120
      %v3690 = vpop.permute.xlu0 %3689
      %3691 = vrot.lane.b32.xlu0 %v3663, 120
      %v3692 = vpop.permute.xlu0 %3691
      %v3694 = vsel %vm1180, %v3690, 0
      %v3697 = vsel %vm1180, %v3692, 0
      %3699 = vmatpush.bf16.xpose.msra.mxu0 0
      %3700 = vmatpush.bf16.xpose.msra.mxu0 0
      %3701 = vmatpush.bf16.xpose.msra.mxu0 0
      %3702 = vmatpush.bf16.xpose.msra.mxu0 0
      %3703 = vmatpush.bf16.xpose.msra.mxu0 0
      %3704 = vmatpush.bf16.xpose.msra.mxu0 0
      %3705 = vmatpush.bf16.xpose.msra.mxu0 0
      %3706 = vmatpush.bf16.xpose.msra.mxu0 %v3697
      %3707 = vmatmul.bf16.gmra.mxu0 %v3694
      %v3708 = vpop.f32.mrf.mxu0
      %v3709 = vadd.f32 0.0, %v3708
      %v3710 = vpop.f32.mrf.mxu0
      %3711 = vdwg.mxu0
      %v3712 = vmul.f32 %v3709, 0.35355338
      %v3713 = vsel %vm1180, %v3712, -inf
      %3714 = vmax.xlane.f32.xlu0 %v3713
      %v3715 = vpop.xlane.xlu0 %3714
      %v3716 = vsub.f32 %v3712, %v3715
      %v3717 = vmul.f32 %v3716, 1.442695
      %v3718 = vpow.pop %v3717
      %v3719 = vsel %vm1180, %v3718, 0.0
      %3720 = vadd.xlane.f32.xlu0 %v3719
      %v3721 = vpop.xlane.xlu0 %3720
      %v3722 = vrcp.pop %v3721
      %v3723 = vmul.f32 %v3718, %v3722
      %v3724 = vpack.c.bf16 %v3723, %v3723
      %3725 = vrot.lane.b32.xlu0 %v3663, 88
      %v3726 = vpop.permute.xlu0 %3725
      %v3728 = vsel %vm1180, %v3724, 0
      %v3731 = vsel %vm1219, %v3726, 0
      %3733 = vmatpush.bf16.msra.mxu0 0
      %3734 = vmatpush.bf16.msra.mxu0 0
      %3735 = vmatpush.bf16.msra.mxu0 0
      %3736 = vmatpush.bf16.msra.mxu0 0
      %3737 = vmatpush.bf16.msra.mxu0 0
      %3738 = vmatpush.bf16.msra.mxu0 0
      %3739 = vmatpush.bf16.msra.mxu0 0
      %3740 = vmatpush.bf16.msra.mxu0 %v3731
      %3741 = vmatmul.bf16.gmra.mxu0 %v3728
      %v3742 = vpop.f32.mrf.mxu0
      %v3743 = vadd.f32 0.0, %v3742
      %v3744 = vpop.f32.mrf.mxu0
      %3745 = vdwg.mxu0
      %v3746 = vpack.c.bf16 %v3743, %v3743
      %v3748 = vsel %vm1180, %v3746, 0
      %v3751 = vsel %vm1219, %v3622, 0
      %3753 = vmatpush.bf16.msra.mxu0 0
      %3754 = vmatpush.bf16.msra.mxu0 0
      %3755 = vmatpush.bf16.msra.mxu0 0
      %3756 = vmatpush.bf16.msra.mxu0 0
      %3757 = vmatpush.bf16.msra.mxu0 0
      %3758 = vmatpush.bf16.msra.mxu0 0
      %3759 = vmatpush.bf16.msra.mxu0 0
      %3760 = vmatpush.bf16.msra.mxu0 %v3751
      %3761 = vmatmul.bf16.gmra.mxu0 %v3748
      %v3762 = vpop.f32.mrf.mxu0
      %v3763 = vadd.f32 0.0, %v3762
      %v3764 = vpop.f32.mrf.mxu0
      %3765 = vdwg.mxu0
      %v3767 = vsel %vm1180, %v3685, 0
      %v3770 = vsel %vm1219, %v3621, 0
      %3772 = vmatpush.bf16.msra.mxu0 0
      %3773 = vmatpush.bf16.msra.mxu0 0
      %3774 = vmatpush.bf16.msra.mxu0 0
      %3775 = vmatpush.bf16.msra.mxu0 0
      %3776 = vmatpush.bf16.msra.mxu0 0
      %3777 = vmatpush.bf16.msra.mxu0 0
      %3778 = vmatpush.bf16.msra.mxu0 0
      %3779 = vmatpush.bf16.msra.mxu0 %v3770
      %3780 = vmatmul.bf16.gmra.mxu0 %v3767
      %v3781 = vpop.f32.mrf.mxu0
      %v3782 = vadd.f32 %v3763, %v3781
      %v3783 = vpop.f32.mrf.mxu0
      %3784 = vdwg.mxu0
      %3785 = vrot.lane.b32.xlu0 %v3688, 112
      %v3786 = vpop.permute.xlu0 %3785
      %3787 = vrot.lane.b32.xlu0 %v3663, 112
      %v3788 = vpop.permute.xlu0 %3787
      %v3790 = vsel %vm1180, %v3786, 0
      %v3793 = vsel %vm1180, %v3788, 0
      %3795 = vmatpush.bf16.xpose.msra.mxu0 0
      %3796 = vmatpush.bf16.xpose.msra.mxu0 0
      %3797 = vmatpush.bf16.xpose.msra.mxu0 0
      %3798 = vmatpush.bf16.xpose.msra.mxu0 0
      %3799 = vmatpush.bf16.xpose.msra.mxu0 0
      %3800 = vmatpush.bf16.xpose.msra.mxu0 0
      %3801 = vmatpush.bf16.xpose.msra.mxu0 0
      %3802 = vmatpush.bf16.xpose.msra.mxu0 %v3793
      %3803 = vmatmul.bf16.gmra.mxu0 %v3790
      %v3804 = vpop.f32.mrf.mxu0
      %v3805 = vadd.f32 0.0, %v3804
      %v3806 = vpop.f32.mrf.mxu0
      %3807 = vdwg.mxu0
      %v3808 = vmul.f32 %v3805, 0.35355338
      %v3809 = vsel %vm1180, %v3808, -inf
      %3810 = vmax.xlane.f32.xlu0 %v3809
      %v3811 = vpop.xlane.xlu0 %3810
      %v3812 = vsub.f32 %v3808, %v3811
      %v3813 = vmul.f32 %v3812, 1.442695
      %v3814 = vpow.pop %v3813
      %v3815 = vsel %vm1180, %v3814, 0.0
      %3816 = vadd.xlane.f32.xlu0 %v3815
      %v3817 = vpop.xlane.xlu0 %3816
      %v3818 = vrcp.pop %v3817
      %v3819 = vmul.f32 %v3814, %v3818
      %v3820 = vpack.c.bf16 %v3819, %v3819
      %3821 = vrot.lane.b32.xlu0 %v3663, 80
      %v3822 = vpop.permute.xlu0 %3821
      %v3824 = vsel %vm1180, %v3820, 0
      %v3827 = vsel %vm1219, %v3822, 0
      %3829 = vmatpush.bf16.msra.mxu0 0
      %3830 = vmatpush.bf16.msra.mxu0 0
      %3831 = vmatpush.bf16.msra.mxu0 0
      %3832 = vmatpush.bf16.msra.mxu0 0
      %3833 = vmatpush.bf16.msra.mxu0 0
      %3834 = vmatpush.bf16.msra.mxu0 0
      %3835 = vmatpush.bf16.msra.mxu0 0
      %3836 = vmatpush.bf16.msra.mxu0 %v3827
      %3837 = vmatmul.bf16.gmra.mxu0 %v3824
      %v3838 = vpop.f32.mrf.mxu0
      %v3839 = vadd.f32 0.0, %v3838
      %v3840 = vpop.f32.mrf.mxu0
      %3841 = vdwg.mxu0
      %v3842 = vpack.c.bf16 %v3839, %v3839
      %v3844 = vsel %vm1180, %v3842, 0
      %v3847 = vsel %vm1219, %v3623, 0
      %3849 = vmatpush.bf16.msra.mxu0 0
      %3850 = vmatpush.bf16.msra.mxu0 0
      %3851 = vmatpush.bf16.msra.mxu0 0
      %3852 = vmatpush.bf16.msra.mxu0 0
      %3853 = vmatpush.bf16.msra.mxu0 0
      %3854 = vmatpush.bf16.msra.mxu0 0
      %3855 = vmatpush.bf16.msra.mxu0 0
      %3856 = vmatpush.bf16.msra.mxu0 %v3847
      %3857 = vmatmul.bf16.gmra.mxu0 %v3844
      %v3858 = vpop.f32.mrf.mxu0
      %v3859 = vadd.f32 0.0, %v3858
      %v3860 = vpop.f32.mrf.mxu0
      %3861 = vdwg.mxu0
      %v3862 = vadd.f32 %v3782, %v3859
      %3863 = vrot.lane.b32.xlu0 %v3688, 104
      %v3864 = vpop.permute.xlu0 %3863
      %3865 = vrot.lane.b32.xlu0 %v3663, 104
      %v3866 = vpop.permute.xlu0 %3865
      %v3868 = vsel %vm1180, %v3864, 0
      %v3871 = vsel %vm1180, %v3866, 0
      %3873 = vmatpush.bf16.xpose.msra.mxu0 0
      %3874 = vmatpush.bf16.xpose.msra.mxu0 0
      %3875 = vmatpush.bf16.xpose.msra.mxu0 0
      %3876 = vmatpush.bf16.xpose.msra.mxu0 0
      %3877 = vmatpush.bf16.xpose.msra.mxu0 0
      %3878 = vmatpush.bf16.xpose.msra.mxu0 0
      %3879 = vmatpush.bf16.xpose.msra.mxu0 0
      %3880 = vmatpush.bf16.xpose.msra.mxu0 %v3871
      %3881 = vmatmul.bf16.gmra.mxu0 %v3868
      %v3882 = vpop.f32.mrf.mxu0
      %v3883 = vadd.f32 0.0, %v3882
      %v3884 = vpop.f32.mrf.mxu0
      %3885 = vdwg.mxu0
      %v3886 = vmul.f32 %v3883, 0.35355338
      %v3887 = vsel %vm1180, %v3886, -inf
      %3888 = vmax.xlane.f32.xlu0 %v3887
      %v3889 = vpop.xlane.xlu0 %3888
      %v3890 = vsub.f32 %v3886, %v3889
      %v3891 = vmul.f32 %v3890, 1.442695
      %v3892 = vpow.pop %v3891
      %v3893 = vsel %vm1180, %v3892, 0.0
      %3894 = vadd.xlane.f32.xlu0 %v3893
      %v3895 = vpop.xlane.xlu0 %3894
      %v3896 = vrcp.pop %v3895
      %v3897 = vmul.f32 %v3892, %v3896
      %v3898 = vpack.c.bf16 %v3897, %v3897
      %3899 = vrot.lane.b32.xlu0 %v3663, 72
      %v3900 = vpop.permute.xlu0 %3899
      %v3902 = vsel %vm1180, %v3898, 0
      %v3905 = vsel %vm1219, %v3900, 0
      %3907 = vmatpush.bf16.msra.mxu0 0
      %3908 = vmatpush.bf16.msra.mxu0 0
      %3909 = vmatpush.bf16.msra.mxu0 0
      %3910 = vmatpush.bf16.msra.mxu0 0
      %3911 = vmatpush.bf16.msra.mxu0 0
      %3912 = vmatpush.bf16.msra.mxu0 0
      %3913 = vmatpush.bf16.msra.mxu0 0
      %3914 = vmatpush.bf16.msra.mxu0 %v3905
      %3915 = vmatmul.bf16.gmra.mxu0 %v3902
      %v3916 = vpop.f32.mrf.mxu0
      %v3917 = vadd.f32 0.0, %v3916
      %v3918 = vpop.f32.mrf.mxu0
      %3919 = vdwg.mxu0
      %v3920 = vpack.c.bf16 %v3917, %v3917
      %v3922 = vsel %vm1180, %v3920, 0
      %v3925 = vsel %vm1219, %v3624, 0
      %3927 = vmatpush.bf16.msra.mxu0 0
      %3928 = vmatpush.bf16.msra.mxu0 0
      %3929 = vmatpush.bf16.msra.mxu0 0
      %3930 = vmatpush.bf16.msra.mxu0 0
      %3931 = vmatpush.bf16.msra.mxu0 0
      %3932 = vmatpush.bf16.msra.mxu0 0
      %3933 = vmatpush.bf16.msra.mxu0 0
      %3934 = vmatpush.bf16.msra.mxu0 %v3925
      %3935 = vmatmul.bf16.gmra.mxu0 %v3922
      %v3936 = vpop.f32.mrf.mxu0
      %v3937 = vadd.f32 0.0, %v3936
      %v3938 = vpop.f32.mrf.mxu0
      %3939 = vdwg.mxu0
      %v3940 = vadd.f32 %v3862, %v3937
      %v3942 = vperm.slane %v3626, 0
      %v3944 = vadd.f32 %v3940, %v3942
      %v3945 = vadd.f32 %v3944, %v3558
      %s3946 = scalar_lea.vmem %s59, 1
      %v3947 = vld [vmem:[%s3946] sm:$0x1]
      %s3948 = scalar_lea.vmem %s61, 1
      %v3949 = vld [vmem:[%s3948] sm:$0x1]
      %v3950 = vsel %vm1152, %v3945, 0.0
      %3951 = vadd.xlane.f32.xlu0 %v3950
      %v3952 = vpop.xlane.xlu0 %3951
      %v3953 = vmul.f32 %v3952, %v1508
      %v3954 = vsub.f32 %v3945, %v3953
      %v3955 = vmul.f32 %v3954, %v3954
      %v3956 = vsel %vm1152, %v3955, 0.0
      %3957 = vadd.xlane.f32.xlu0 %v3956
      %v3958 = vpop.xlane.xlu0 %3957
      %v3959 = vmul.f32 %v3958, %v1508
      %v3960 = vadd.f32 %v3959, 1e-05
      %v3961 = vrsqrt.pop %v3960
      %v3962 = vmul.f32 %v3961, %v3960
      %v3963 = vmul.f32 %v3962, %v3961
      %v3964 = vmul.f32 0.5, %v3963
      %v3965 = vsub.f32 1.5, %v3964
      %v3966 = vmul.f32 %v3961, %v3965
      %vm3967 = vweird.f32 %v3960
      %vm3968 = vweird.f32 %v3961
      %vm3969 = vmor %vm3967, %vm3968
      %v3970 = vsel %vm3969, %v3961, %v3966
      %v3971 = vmul.f32 %v3954, %v3970
      %v3973 = vperm.slane %v3947, 0
      %v3975 = vmul.f32 %v3971, %v3973
      %v3977 = vperm.slane %v3949, 0
      %v3979 = vadd.f32 %v3975, %v3977
      %s3980 = scalar_lea.vmem %s47, 16
      %v3981 = vld [vmem:[%s3980] sm:$0xf]
      %v3982 = vld [vmem:[%s3980 + $0x4] sm:$0xf]
      %v3983 = vld [vmem:[%s3980 + $0x8] sm:$0xf]
      %v3984 = vld [vmem:[%s3980 + $0xc] sm:$0xf]
      %v3985 = vpack.c.bf16 %v3979, %v3979
      %s3986 = scalar_lea.vmem %s49, 1
      %v3987 = vld [vmem:[%s3986] sm:$0x1]
      %v3989 = vperm.slane %v3987, 0
      %v3995 = vunpack.c.l.b16 %v3981
      %v3996 = vunpack.c.l.b16 %v3982
      %v3997 = vunpack.c.l.b16 %v3983
      %v3998 = vunpack.c.l.b16 %v3984
      %v3999 = vpack.c.b16 %v3996, %v3995
      %v4000 = vpack.c.b16 %v3998, %v3997
      %v4004 = vsel %vm1152, %v3985, 0
      %4006 = vmatpush.bf16.msra.mxu0 0
      %4007 = vmatpush.bf16.msra.mxu0 0
      %4008 = vmatpush.bf16.msra.mxu0 0
      %4009 = vmatpush.bf16.msra.mxu0 0
      %4010 = vmatpush.bf16.msra.mxu0 0
      %4011 = vmatpush.bf16.msra.mxu0 0
      %4012 = vmatpush.bf16.msra.mxu0 %v4000
      %4013 = vmatpush.bf16.msra.mxu0 %v3999
      %4014 = vmatmul.bf16.gmra.mxu0 %v4004
      %v4015 = vpop.f32.mrf.mxu0
      %v4016 = vadd.f32 %v3989, %v4015
      %v4017 = vpop.f32.mrf.mxu0
      %4018 = vdwg.mxu0
      %v4019 = vmax.f32 %v4016, 0.0
      %s4020 = scalar_lea.vmem %s51, 32
      %v4021 = vld [vmem:[%s4020] sm:$0xf]
      %v4022 = vld [vmem:[%s4020 + $0x4] sm:$0xf]
      %v4023 = vld [vmem:[%s4020 + $0x8] sm:$0xf]
      %v4024 = vld [vmem:[%s4020 + $0xc] sm:$0xf]
      %v4025 = vld [vmem:[%s4020 + $0x10] sm:$0xf]
      %v4026 = vld [vmem:[%s4020 + $0x14] sm:$0xf]
      %v4027 = vld [vmem:[%s4020 + $0x18] sm:$0xf]
      %v4028 = vld [vmem:[%s4020 + $0x1c] sm:$0xf]
      %v4029 = vpack.c.bf16 %v4019, %v4019
      %s4030 = scalar_lea.vmem %s53, 1
      %v4031 = vld [vmem:[%s4030] sm:$0x1]
      %v4033 = vperm.slane %v4031, 0
      %v4043 = vunpack.c.l.b16 %v4021
      %v4044 = vunpack.c.l.b16 %v4022
      %v4045 = vunpack.c.l.b16 %v4023
      %v4046 = vunpack.c.l.b16 %v4024
      %v4047 = vunpack.c.l.b16 %v4025
      %v4048 = vunpack.c.l.b16 %v4026
      %v4049 = vunpack.c.l.b16 %v4027
      %v4050 = vunpack.c.l.b16 %v4028
      %v4051 = vpack.c.b16 %v4044, %v4043
      %v4052 = vpack.c.b16 %v4046, %v4045
      %v4053 = vpack.c.b16 %v4048, %v4047
      %v4054 = vpack.c.b16 %v4050, %v4049
      %v4060 = vsel %vm1611, %v4029, 0
      %4062 = vmatpush.bf16.msra.mxu0 0
      %4063 = vmatpush.bf16.msra.mxu0 0
      %4064 = vmatpush.bf16.msra.mxu0 0
      %4065 = vmatpush.bf16.msra.mxu0 0
      %4066 = vmatpush.bf16.msra.mxu0 %v4054
      %4067 = vmatpush.bf16.msra.mxu0 %v4053
      %4068 = vmatpush.bf16.msra.mxu0 %v4052
      %4069 = vmatpush.bf16.msra.mxu0 %v4051
      %4070 = vmatmul.bf16.gmra.mxu0 %v4060
      %v4071 = vpop.f32.mrf.mxu0
      %v4072 = vadd.f32 %v4033, %v4071
      %v4073 = vpop.f32.mrf.mxu0
      %4074 = vdwg.mxu0
      %v4075 = vadd.f32 %v4072, %v3979
      %s4076 = scalar_lea.vmem %s63, 1
      %v4077 = vld [vmem:[%s4076] sm:$0x1]
      %s4078 = scalar_lea.vmem %s65, 1
      %v4079 = vld [vmem:[%s4078] sm:$0x1]
      %v4080 = vsel %vm1152, %v4075, 0.0
      %4081 = vadd.xlane.f32.xlu0 %v4080
      %v4082 = vpop.xlane.xlu0 %4081
      %v4083 = vmul.f32 %v4082, %v1508
      %v4084 = vsub.f32 %v4075, %v4083
      %v4085 = vmul.f32 %v4084, %v4084
      %v4086 = vsel %vm1152, %v4085, 0.0
      %4087 = vadd.xlane.f32.xlu0 %v4086
      %v4088 = vpop.xlane.xlu0 %4087
      %v4089 = vmul.f32 %v4088, %v1508
      %v4090 = vadd.f32 %v4089, 1e-05
      %v4091 = vrsqrt.pop %v4090
      %v4092 = vmul.f32 %v4091, %v4090
      %v4093 = vmul.f32 %v4092, %v4091
      %v4094 = vmul.f32 0.5, %v4093
      %v4095 = vsub.f32 1.5, %v4094
      %v4096 = vmul.f32 %v4091, %v4095
      %vm4097 = vweird.f32 %v4090
      %vm4098 = vweird.f32 %v4091
      %vm4099 = vmor %vm4097, %vm4098
      %v4100 = vsel %vm4099, %v4091, %v4096
      %v4101 = vmul.f32 %v4084, %v4100
      %v4103 = vperm.slane %v4077, 0
      %v4105 = vmul.f32 %v4101, %v4103
      %v4107 = vperm.slane %v4079, 0
      %v4109 = vadd.f32 %v4105, %v4107
      %v4110 = vld [vmem:[%s67] sm:$0x1]
      %v4111 = vld [vmem:[%s69] sm:$0x1]
      %v4112 = vsel %vm1152, %v4109, 0.0
      %4113 = vadd.xlane.f32.xlu0 %v4112
      %v4114 = vpop.xlane.xlu0 %4113
      %v4115 = vmul.f32 %v4114, %v1508
      %v4116 = vsub.f32 %v4109, %v4115
      %v4117 = vmul.f32 %v4116, %v4116
      %v4118 = vsel %vm1152, %v4117, 0.0
      %4119 = vadd.xlane.f32.xlu0 %v4118
      %v4120 = vpop.xlane.xlu0 %4119
      %v4121 = vmul.f32 %v4120, %v1508
      %v4122 = vadd.f32 %v4121, 1e-05
      %v4123 = vrsqrt.pop %v4122
      %v4124 = vmul.f32 %v4123, %v4122
      %v4125 = vmul.f32 %v4124, %v4123
      %v4126 = vmul.f32 0.5, %v4125
      %v4127 = vsub.f32 1.5, %v4126
      %v4128 = vmul.f32 %v4123, %v4127
      %vm4129 = vweird.f32 %v4122
      %vm4130 = vweird.f32 %v4123
      %vm4131 = vmor %vm4129, %vm4130
      %v4132 = vsel %vm4131, %v4123, %v4128
      %v4133 = vmul.f32 %v4116, %v4132
      %v4135 = vperm.slane %v4110, 0
      %v4137 = vmul.f32 %v4133, %v4135
      %v4139 = vperm.slane %v4111, 0
      %v4141 = vadd.f32 %v4137, %v4139
      %v4142 = vld [vmem:[%s71] sm:$0xf]
      %v4143 = vld [vmem:[%s71 + $0x4] sm:$0xf]
      %v4144 = vld [vmem:[%s71 + $0x8] sm:$0xf]
      %v4145 = vld [vmem:[%s71 + $0xc] sm:$0xf]
      %v4146 = vpack.c.bf16 %v4141, %v4141
      %v4147 = vld [vmem:[%s73] sm:$0x1]
      %v4149 = vperm.slane %v4147, 0
      %v4155 = vunpack.c.l.b16 %v4142
      %v4156 = vunpack.c.l.b16 %v4143
      %v4157 = vunpack.c.l.b16 %v4144
      %v4158 = vunpack.c.l.b16 %v4145
      %v4159 = vpack.c.b16 %v4156, %v4155
      %v4160 = vpack.c.b16 %v4158, %v4157
      %v4164 = vsel %vm1152, %v4146, 0
      %4166 = vmatpush.bf16.msra.mxu0 0
      %4167 = vmatpush.bf16.msra.mxu0 0
      %4168 = vmatpush.bf16.msra.mxu0 0
      %4169 = vmatpush.bf16.msra.mxu0 0
      %4170 = vmatpush.bf16.msra.mxu0 0
      %4171 = vmatpush.bf16.msra.mxu0 0
      %4172 = vmatpush.bf16.msra.mxu0 %v4160
      %4173 = vmatpush.bf16.msra.mxu0 %v4159
      %4174 = vmatmul.bf16.gmra.mxu0 %v4164
      %v4175 = vpop.f32.mrf.mxu0
      %v4176 = vadd.f32 %v4149, %v4175
      %v4177 = vpop.f32.mrf.mxu0
      %4178 = vdwg.mxu0
      %4179 = vst [vmem:[%s1121] sm:$0xff] %v4176
      %p4180 = scmp.lt.s32.totalorder %s86, 1
      %s4181 = scalar_select %p4180, %s86, 1
      %s4182 = smul.addr %s4181, 8
      %s4183 = scalar_lea.vmem %s75, %s4182
      // Predicated region
      $region169: #{_lambda_.1} parent=167 // pred_check
        %p4184 = pneg %p886
      $region170: #{_lambda_.1} parent=167 // pred_check_branch
        %4186 = sbr.rel (%p4184) target = $region172
      $region171: #{_lambda_.1} parent=167 // pred_region
        _
      $region172: #{_lambda_.1} parent=167 // pred_fallthru
        _
    $region168: #{_lambda_.1} parent=5 // pred_fallthru
      _
    %p4187 = scmp.le.s32.totalorder 2, %s81
    // Predicated region
    $region173: #{_lambda_.1} parent=5 // pred_check
      %p4188 = pneg %p4187
    $region174: #{_lambda_.1} parent=5 // pred_check_branch
      %4190 = sbr.rel (%p4188) target = $region176
    $region175: #{_lambda_.1} parent=5 // pred_region
      %s4191 = ssub.s32 %s81, 2
      // Predicated region
      $region177: #{_lambda_.1} parent=175 // pred_check
        %p4192 = pneg %p892
      $region178: #{_lambda_.1} parent=175 // pred_check_branch
        %4194 = sbr.rel (%p4192) target = $region180
      $region179: #{_lambda_.1} parent=175 // pred_region
        %p4195 = scmp.lt.s32.totalorder %s87, 1
        %s4196 = scalar_select %p4195, %s87, 1
        %s4197 = smul.addr %s4196, 8
        %s4198 = scalar_lea.vmem %s75, %s4197
      $region180: #{_lambda_.1} parent=175 // pred_fallthru
        _
    $region176: #{_lambda_.1} parent=5 // pred_fallthru
      _
  $region6: #{_lambda_.1} parent=0 // loop_footer
    %s85 = sadd.s32 1, %s81
  $region7: #{_lambda_.1} parent=0 // loop_footer_branch
    %80 = sbr.rel target = $region3
  $region8: #{_lambda_.1} parent=0 // loop_exit
    _

</llo_original>
